<compile_context>
chip_gen: v7x
topology: tpu7x:2x2x1
jax: 0.10.0
libtpu: 0.0.40
codegen_flags: <defaults>
</compile_context>

<pallas_src>
import math
import functools

import jax
import jax.numpy as jnp
from jax import lax
from jax.experimental import pallas as pl
from jax.experimental.pallas import tpu as pltpu


def _flash_attn_kernel(xq_ref, xkv_ref, nscale_ref, nshift_ref,
                       wq_ref, wk_ref, wv_ref, bq_ref, bk_ref, bv_ref,
                       wout_ref, bout_ref, gate_ref,
                       o_ref,
                       q_sc, acc_sc, m_sc, l_sc,
                       *, heads, head_dim, sm_scale):
    ki = pl.program_id(2)
    nscale = nscale_ref[0]            # (1, C) folded GroupNorm scale (gamma * rstd)
    nshift = nshift_ref[0]            # (1, C) folded GroupNorm shift (beta - mean*scale)

    # ---- init (once per (b, q-tile)): project Q, reset flash state ----
    @pl.when(ki == 0)
    def _init():
        xq_n = (xq_ref[0] * nscale + nshift).astype(jnp.bfloat16)
        q = jnp.dot(xq_n, wq_ref[...],
                    preferred_element_type=jnp.float32) + bq_ref[...]
        q_sc[...] = (q * sm_scale).astype(jnp.bfloat16)
        acc_sc[...] = jnp.zeros(acc_sc.shape, jnp.float32)
        m_sc[...] = jnp.full(m_sc.shape, -jnp.inf, jnp.float32)
        l_sc[...] = jnp.zeros(l_sc.shape, jnp.float32)

    # ---- K / V for this kv tile (GroupNorm affine + 1x1 conv == channel matmul) ----
    xkv_n = (xkv_ref[0] * nscale + nshift).astype(jnp.bfloat16)
    k = (jnp.dot(xkv_n, wk_ref[...], preferred_element_type=jnp.float32)
         + bk_ref[...]).astype(jnp.bfloat16)                          # (TK, HD)
    v = (jnp.dot(xkv_n, wv_ref[...], preferred_element_type=jnp.float32)
         + bv_ref[...]).astype(jnp.bfloat16)                          # (TK, HD)
    q = q_sc[...]                                                     # (TQ, HD) bf16

    dn = (((1,), (1,)), ((), ()))     # contract last dims -> no kh.T materialization
    for h in range(heads):
        sl = slice(h * head_dim, (h + 1) * head_dim)
        s = lax.dot_general(q[:, sl], k[:, sl], dn,
                            preferred_element_type=jnp.float32)       # (TQ, TK) f32
        m_prev = m_sc[h]                                              # (TQ, 1)
        m_new = jnp.maximum(m_prev, jnp.max(s, axis=-1, keepdims=True))
        alpha = jnp.exp(m_prev - m_new)
        p = jnp.exp(s - m_new)
        l_sc[h] = alpha * l_sc[h] + jnp.sum(p, axis=-1, keepdims=True)
        acc_sc[h] = alpha * acc_sc[h] + jnp.dot(
            p.astype(jnp.bfloat16), v[:, sl], preferred_element_type=jnp.float32)
        m_sc[h] = m_new

    # ---- finalize: normalize, out-proj (accumulated per head), gate, residual ----
    @pl.when(ki == pl.num_programs(2) - 1)
    def _finalize():
        tq, c = o_ref.shape[1], o_ref.shape[2]
        y = jnp.zeros((tq, c), jnp.float32)
        for h in range(heads):
            attn_h = acc_sc[h] * pl.reciprocal(l_sc[h], approx=True)  # (TQ, D) f32
            y = y + jnp.dot(attn_h.astype(jnp.bfloat16), wout_ref[h],
                            preferred_element_type=jnp.float32)
        o_ref[0] = (y + bout_ref[...]) * gate_ref[0] + xq_ref[0]


def _choose_tile(n, preferred):
    """Largest multiple-of-8 tile <= preferred that divides n (or n itself)."""
    if n <= preferred:
        return n
    t = (preferred // 8) * 8
    while t >= 8:
        if n % t == 0:
            return t
        t -= 8
    return n


def nonlocal_self_attention(x_nchw, embedding, params, *, heads, head_dim,
                            num_groups, eps=1e-5, q_tile=128, kv_tile=128):
    B, C, H, W = x_nchw.shape
    N = H * W
    HD = heads * head_dim

    tq = _choose_tile(N, q_tile)
    tk = _choose_tile(N, kv_tile)

    # Layout: (B, N, C) with channels on the lane dim.
    # TODO(synk): if the surrounding model can carry (B, N, C)/NHWC activations, these
    # transposes (a full HBM round-trip each) should be removed / fused into neighbors.
    x_bnc = jnp.transpose(x_nchw.reshape(B, C, N), (0, 2, 1)).astype(jnp.float32)

    # GroupNorm statistics folded into per-(batch, channel) scale/shift (global over the
    # group x spatial axes, so computed once here; the kernel applies them per tile).
    cg = C // num_groups
    xg = x_nchw.reshape(B, num_groups, cg * N).astype(jnp.float32)
    mean = jnp.mean(xg, axis=-1)                                       # (B, G)
    var = jnp.mean(jnp.square(xg - mean[..., None]), axis=-1)          # (B, G), biased
    rstd = lax.rsqrt(var + eps)
    mean_c = jnp.repeat(mean, cg, axis=1)                              # (B, C)
    rstd_c = jnp.repeat(rstd, cg, axis=1)                              # (B, C)
    gamma = params["gamma"].reshape(1, C)
    beta = params["beta"].reshape(1, C)
    n_scale = (gamma * rstd_c).reshape(B, 1, C)
    n_shift = (beta - mean_c * gamma * rstd_c).reshape(B, 1, C)

    # Time-embedding gate hoisted to one batched GEMM (was an M=1 matmul per grid step).
    gate = (embedding.astype(jnp.float32) @ params["w_emb"]
            + params["b_emb"]).reshape(B, 1, C)

    # Weights: split QKV, bf16 for MXU operands, f32 biases; W_out laid out per head.
    w_qkv = params["w_qkv"]
    w_q = w_qkv[:, :HD].astype(jnp.bfloat16)
    w_k = w_qkv[:, HD:2 * HD].astype(jnp.bfloat16)
    w_v = w_qkv[:, 2 * HD:].astype(jnp.bfloat16)
    b_qkv = params["b_qkv"].reshape(1, 3 * HD).astype(jnp.float32)
    b_q, b_k, b_v = b_qkv[:, :HD], b_qkv[:, HD:2 * HD], b_qkv[:, 2 * HD:]
    w_out = params["w_out"].astype(jnp.bfloat16).reshape(heads, head_dim, C)
    b_out = params["b_out"].reshape(1, C).astype(jnp.float32)

    kernel = functools.partial(_flash_attn_kernel, heads=heads, head_dim=head_dim,
                               sm_scale=1.0 / math.sqrt(head_dim))

    const2 = lambda b, qi, ki: (0, 0)
    const3 = lambda b, qi, ki: (0, 0, 0)
    per_b = lambda b, qi, ki: (b, 0, 0)

    out_bnc = pl.pallas_call(
        kernel,
        out_shape=jax.ShapeDtypeStruct((B, N, C), jnp.float32),
        grid_spec=pltpu.PrefetchScalarGridSpec(
            num_scalar_prefetch=0,
            grid=(B, N // tq, N // tk),
            in_specs=[
                pl.BlockSpec((1, tq, C), lambda b, qi, ki: (b, qi, 0)),   # x (q tile)
                pl.BlockSpec((1, tk, C), lambda b, qi, ki: (b, ki, 0)),   # x (kv tile)
                pl.BlockSpec((1, 1, C), per_b),                           # GN scale
                pl.BlockSpec((1, 1, C), per_b),                           # GN shift
                pl.BlockSpec((C, HD), const2),                            # W_q (bf16)
                pl.BlockSpec((C, HD), const2),                            # W_k (bf16)
                pl.BlockSpec((C, HD), const2),                            # W_v (bf16)
                pl.BlockSpec((1, HD), const2),                            # b_q
                pl.BlockSpec((1, HD), const2),                            # b_k
                pl.BlockSpec((1, HD), const2),                            # b_v
                pl.BlockSpec((heads, head_dim, C), const3),               # W_out (bf16)
                pl.BlockSpec((1, C), const2),                             # b_out
                pl.BlockSpec((1, 1, C), per_b),                           # emb gate
            ],
            out_specs=pl.BlockSpec((1, tq, C), lambda b, qi, ki: (b, qi, 0)),
            scratch_shapes=[
                pltpu.VMEM((tq, HD), jnp.bfloat16),                       # pre-scaled Q
                pltpu.VMEM((heads, tq, head_dim), jnp.float32),           # flash acc
                pltpu.VMEM((heads, tq, 1), jnp.float32),                  # running max
                pltpu.VMEM((heads, tq, 1), jnp.float32),                  # running sum
            ],
        ),
        compiler_params=pltpu.CompilerParams(
            dimension_semantics=("parallel", "parallel", "arbitrary"),
            vmem_limit_bytes=48 * 1024 * 1024,
        ),
    )(x_bnc, x_bnc, n_scale, n_shift, w_q, w_k, w_v, b_q, b_k, b_v,
      w_out, b_out, gate)

    return jnp.transpose(out_bnc, (0, 2, 1)).reshape(B, C, H, W)


def _reference(x_nchw, embedding, params, *, heads, head_dim, num_groups, eps=1e-5):
    # Pure-JAX f32 reference mirroring the PyTorch forward.
    B, C, H, W = x_nchw.shape
    N = H * W
    hd = heads * head_dim
    scale = 1.0 / math.sqrt(head_dim)

    xf = x_nchw.reshape(B, num_groups, C // num_groups, N)
    mean = jnp.mean(xf, axis=(2, 3), keepdims=True)
    var = jnp.mean(jnp.square(xf - mean), axis=(2, 3), keepdims=True)
    xn = ((xf - mean) / jnp.sqrt(var + eps)).reshape(B, C, N)
    xn = xn * params["gamma"].reshape(1, C, 1) + params["beta"].reshape(1, C, 1)

    qkv = jnp.einsum("bcn,ck->bnk", xn, params["w_qkv"]) + params["b_qkv"]
    q, k, v = qkv[..., :hd], qkv[..., hd:2 * hd], qkv[..., 2 * hd:]
    q = q.reshape(B, N, heads, head_dim)
    k = k.reshape(B, N, heads, head_dim)
    v = v.reshape(B, N, heads, head_dim)
    s = jnp.einsum("bmhd,bnhd->bhmn", q, k) * scale
    p = jax.nn.softmax(s, axis=-1)
    o = jnp.einsum("bhmn,bnhd->bmhd", p, v).reshape(B, N, hd)
    y = jnp.einsum("bnk,kc->bnc", o, params["w_out"]) + params["b_out"]
    emb = embedding @ params["w_emb"] + params["b_emb"]                 # (B, C)
    y = y * emb[:, None, :]
    y = jnp.transpose(y, (0, 2, 1)).reshape(B, C, H, W)
    return y + x_nchw


if __name__ == "__main__":
    # Small shapes, but big enough to exercise the q/kv tiling (2 q-tiles x 2 kv-tiles).
    B, C, H, W = 2, 128, 16, 16
    heads, head_dim, num_groups, time_dim = 4, 32, 32, 32
    HD = heads * head_dim

    key = jax.random.PRNGKey(0)
    ks = jax.random.split(key, 10)
    params = {
        "gamma": (1.0 + 0.1 * jax.random.normal(ks[0], (1, C))).astype(jnp.float32),
        "beta": (0.1 * jax.random.normal(ks[1], (1, C))).astype(jnp.float32),
        "w_qkv": (0.05 * jax.random.normal(ks[2], (C, 3 * HD))).astype(jnp.float32),
        "b_qkv": (0.01 * jax.random.normal(ks[3], (1, 3 * HD))).astype(jnp.float32),
        "w_out": (0.05 * jax.random.normal(ks[4], (HD, C))).astype(jnp.float32),
        "b_out": (0.01 * jax.random.normal(ks[5], (1, C))).astype(jnp.float32),
        "w_emb": (0.05 * jax.random.normal(ks[6], (time_dim, C))).astype(jnp.float32),
        "b_emb": (0.01 * jax.random.normal(ks[7], (1, C))).astype(jnp.float32),
    }
    x = jax.random.normal(ks[8], (B, C, H, W), dtype=jnp.float32)
    embedding = jax.random.normal(ks[9], (B, time_dim), dtype=jnp.float32)

    out = nonlocal_self_attention(x, embedding, params, heads=heads,
                                  head_dim=head_dim, num_groups=num_groups)
    out = jax.block_until_ready(out)

    ref = _reference(x, embedding, params, heads=heads, head_dim=head_dim,
                     num_groups=num_groups)
    assert out.shape == (B, C, H, W)
    max_err = float(jnp.max(jnp.abs(out - ref)))
    # bf16 MXU matmuls + approx reciprocal -> compare with bf16-appropriate tolerance.
    assert jnp.allclose(out, ref, rtol=2e-2, atol=2e-2), f"mismatch vs reference ({max_err})"

    print("KERNEL_OK")
</pallas_src>

<mosaic_0001>
module attributes {stable_mosaic.version = 11 : i64} {
  func.func @_flash_attn_kernel(%arg0: i32, %arg1: i32, %arg2: i32, %arg3: memref<1x128x128xf32, #tpu.memory_space<vmem>>, %arg4: memref<1x128x128xf32, #tpu.memory_space<vmem>>, %arg5: memref<1x1x128xf32, #tpu.memory_space<vmem>>, %arg6: memref<1x1x128xf32, #tpu.memory_space<vmem>>, %arg7: memref<128x128xbf16, #tpu.memory_space<vmem>>, %arg8: memref<128x128xbf16, #tpu.memory_space<vmem>>, %arg9: memref<128x128xbf16, #tpu.memory_space<vmem>>, %arg10: memref<1x128xf32, #tpu.memory_space<vmem>>, %arg11: memref<1x128xf32, #tpu.memory_space<vmem>>, %arg12: memref<1x128xf32, #tpu.memory_space<vmem>>, %arg13: memref<4x32x128xbf16, #tpu.memory_space<vmem>>, %arg14: memref<1x128xf32, #tpu.memory_space<vmem>>, %arg15: memref<1x1x128xf32, #tpu.memory_space<vmem>>, %arg16: memref<1x128x128xf32, #tpu.memory_space<vmem>>, %arg17: memref<128x128xbf16, #tpu.memory_space<vmem>>, %arg18: memref<4x128x32xf32, #tpu.memory_space<vmem>>, %arg19: memref<4x128x1xf32, #tpu.memory_space<vmem>>, %arg20: memref<4x128x1xf32, #tpu.memory_space<vmem>>) attributes {dimension_semantics = [#tpu.dimension_semantics<parallel>, #tpu.dimension_semantics<parallel>, #tpu.dimension_semantics<arbitrary>], iteration_bounds = array<i64: 2, 2, 2>, scalar_prefetch = 0 : i64, scratch_operands = 4 : i64, tpu.core_type = #tpu.core_type<tc>, window_params = [{transform_indices = @transform_0, window_bounds = array<i64: 1, 128, 128>}, {transform_indices = @transform_1, window_bounds = array<i64: 1, 128, 128>}, {transform_indices = @transform_2, window_bounds = array<i64: 1, 1, 128>}, {transform_indices = @transform_3, window_bounds = array<i64: 1, 1, 128>}, {pipeline_mode = #tpu.pipeline_mode<synchronous>, transform_indices = @transform_4, window_bounds = array<i64: 128, 128>}, {pipeline_mode = #tpu.pipeline_mode<synchronous>, transform_indices = @transform_5, window_bounds = array<i64: 128, 128>}, {pipeline_mode = #tpu.pipeline_mode<synchronous>, transform_indices = @transform_6, window_bounds = array<i64: 128, 128>}, {pipeline_mode = #tpu.pipeline_mode<synchronous>, transform_indices = @transform_7, window_bounds = array<i64: 1, 128>}, {pipeline_mode = #tpu.pipeline_mode<synchronous>, transform_indices = @transform_8, window_bounds = array<i64: 1, 128>}, {pipeline_mode = #tpu.pipeline_mode<synchronous>, transform_indices = @transform_9, window_bounds = array<i64: 1, 128>}, {pipeline_mode = #tpu.pipeline_mode<synchronous>, transform_indices = @transform_10, window_bounds = array<i64: 4, 32, 128>}, {pipeline_mode = #tpu.pipeline_mode<synchronous>, transform_indices = @transform_11, window_bounds = array<i64: 1, 128>}, {transform_indices = @transform_12, window_bounds = array<i64: 1, 1, 128>}, {transform_indices = @transform_13, window_bounds = array<i64: 1, 128, 128>}]} {
    %c0 = arith.constant 0 : index
    %c0_0 = arith.constant 0 : index
    %c0_1 = arith.constant 0 : index
    %0 = vector.load %arg5[%c0, %c0_0, %c0_1] : memref<1x1x128xf32, #tpu.memory_space<vmem>>, vector<1x1x128xf32>
    %1 = vector.shape_cast %0 : vector<1x1x128xf32> to vector<1x128xf32>
    %c0_2 = arith.constant 0 : index
    %c0_3 = arith.constant 0 : index
    %c0_4 = arith.constant 0 : index
    %2 = vector.load %arg6[%c0_2, %c0_3, %c0_4] : memref<1x1x128xf32, #tpu.memory_space<vmem>>, vector<1x1x128xf32>
    %3 = vector.shape_cast %2 : vector<1x1x128xf32> to vector<1x128xf32>
    %c0_i32 = arith.constant 0 : i32
    %4 = arith.cmpi eq, %arg2, %c0_i32 : i32
    %5 = arith.extui %4 : i1 to i32
    %c0_i32_5 = arith.constant 0 : i32
    %6 = arith.cmpi ne, %5, %c0_i32_5 : i32
    scf.if %6 {
      %c0_106 = arith.constant 0 : index
      %c0_107 = arith.constant 0 : index
      %c0_108 = arith.constant 0 : index
      %174 = vector.load %arg3[%c0_106, %c0_107, %c0_108] : memref<1x128x128xf32, #tpu.memory_space<vmem>>, vector<1x128x128xf32>
      %175 = vector.shape_cast %174 : vector<1x128x128xf32> to vector<128x128xf32>
      %176 = vector.broadcast %1 : vector<1x128xf32> to vector<128x128xf32>
      %177 = arith.mulf %175, %176 : vector<128x128xf32>
      %178 = vector.broadcast %3 : vector<1x128xf32> to vector<128x128xf32>
      %179 = arith.addf %177, %178 : vector<128x128xf32>
      %180 = arith.truncf %179 : vector<128x128xf32> to vector<128x128xbf16>
      %c0_109 = arith.constant 0 : index
      %c0_110 = arith.constant 0 : index
      %181 = vector.load %arg7[%c0_109, %c0_110] : memref<128x128xbf16, #tpu.memory_space<vmem>>, vector<128x128xbf16>
      %cst_111 = arith.constant dense<0.000000e+00> : vector<128x128xf32>
      %182 = tpu.matmul %180, %181, %cst_111 {dimension_numbers = #tpu.dot_dimension_numbers<[1], [0], [0], [1], [0, 0, 1, 1], [], []>} : vector<128x128xbf16>, vector<128x128xbf16>, vector<128x128xf32> -> vector<128x128xf32>
      %c0_112 = arith.constant 0 : index
      %c0_113 = arith.constant 0 : index
      %183 = vector.load %arg10[%c0_112, %c0_113] : memref<1x128xf32, #tpu.memory_space<vmem>>, vector<1x128xf32>
      %184 = vector.broadcast %183 : vector<1x128xf32> to vector<128x128xf32>
      %185 = arith.addf %182, %184 : vector<128x128xf32>
      %cst_114 = arith.constant 0.176776692 : f32
      %186 = vector.broadcast %cst_114 : f32 to vector<128x128xf32>
      %187 = arith.mulf %185, %186 : vector<128x128xf32>
      %188 = arith.truncf %187 : vector<128x128xf32> to vector<128x128xbf16>
      %c0_115 = arith.constant 0 : index
      %c0_116 = arith.constant 0 : index
      %189 = vector.load %arg17[%c0_115, %c0_116] : memref<128x128xbf16, #tpu.memory_space<vmem>>, vector<128x128xbf16>
      tpu.vector_store %arg17[%c0_115, %c0_116], %188 {strides = array<i32>} : memref<128x128xbf16, #tpu.memory_space<vmem>>, vector<128x128xbf16>,
      %cst_117 = arith.constant 0.000000e+00 : f32
      %190 = vector.broadcast %cst_117 : f32 to vector<4x128x32xf32>
      %c0_118 = arith.constant 0 : index
      %c0_119 = arith.constant 0 : index
      %c0_120 = arith.constant 0 : index
      %191 = vector.load %arg18[%c0_118, %c0_119, %c0_120] : memref<4x128x32xf32, #tpu.memory_space<vmem>>, vector<4x128x32xf32>
      tpu.vector_store %arg18[%c0_118, %c0_119, %c0_120], %190 {strides = array<i32>} : memref<4x128x32xf32, #tpu.memory_space<vmem>>, vector<4x128x32xf32>,
      %cst_121 = arith.constant 0xFF800000 : f32
      %192 = vector.broadcast %cst_121 : f32 to vector<4x128x1xf32>
      %c0_122 = arith.constant 0 : index
      %c0_123 = arith.constant 0 : index
      %c0_124 = arith.constant 0 : index
      %193 = vector.load %arg19[%c0_122, %c0_123, %c0_124] : memref<4x128x1xf32, #tpu.memory_space<vmem>>, vector<4x128x1xf32>
      tpu.vector_store %arg19[%c0_122, %c0_123, %c0_124], %192 {strides = array<i32>} : memref<4x128x1xf32, #tpu.memory_space<vmem>>, vector<4x128x1xf32>,
      %cst_125 = arith.constant 0.000000e+00 : f32
      %194 = vector.broadcast %cst_125 : f32 to vector<4x128x1xf32>
      %c0_126 = arith.constant 0 : index
      %c0_127 = arith.constant 0 : index
      %c0_128 = arith.constant 0 : index
      %195 = vector.load %arg20[%c0_126, %c0_127, %c0_128] : memref<4x128x1xf32, #tpu.memory_space<vmem>>, vector<4x128x1xf32>
      tpu.vector_store %arg20[%c0_126, %c0_127, %c0_128], %194 {strides = array<i32>} : memref<4x128x1xf32, #tpu.memory_space<vmem>>, vector<4x128x1xf32>,
    } else {
    }
    %c0_6 = arith.constant 0 : index
    %c0_7 = arith.constant 0 : index
    %c0_8 = arith.constant 0 : index
    %7 = vector.load %arg4[%c0_6, %c0_7, %c0_8] : memref<1x128x128xf32, #tpu.memory_space<vmem>>, vector<1x128x128xf32>
    %8 = vector.shape_cast %7 : vector<1x128x128xf32> to vector<128x128xf32>
    %9 = vector.broadcast %1 : vector<1x128xf32> to vector<128x128xf32>
    %10 = arith.mulf %8, %9 : vector<128x128xf32>
    %11 = vector.broadcast %3 : vector<1x128xf32> to vector<128x128xf32>
    %12 = arith.addf %10, %11 : vector<128x128xf32>
    %13 = arith.truncf %12 : vector<128x128xf32> to vector<128x128xbf16>
    %c0_9 = arith.constant 0 : index
    %c0_10 = arith.constant 0 : index
    %14 = vector.load %arg8[%c0_9, %c0_10] : memref<128x128xbf16, #tpu.memory_space<vmem>>, vector<128x128xbf16>
    %cst = arith.constant dense<0.000000e+00> : vector<128x128xf32>
    %15 = tpu.matmul %13, %14, %cst {dimension_numbers = #tpu.dot_dimension_numbers<[1], [0], [0], [1], [0, 0, 1, 1], [], []>} : vector<128x128xbf16>, vector<128x128xbf16>, vector<128x128xf32> -> vector<128x128xf32>
    %c0_11 = arith.constant 0 : index
    %c0_12 = arith.constant 0 : index
    %16 = vector.load %arg11[%c0_11, %c0_12] : memref<1x128xf32, #tpu.memory_space<vmem>>, vector<1x128xf32>
    %17 = vector.broadcast %16 : vector<1x128xf32> to vector<128x128xf32>
    %18 = arith.addf %15, %17 : vector<128x128xf32>
    %19 = arith.truncf %18 : vector<128x128xf32> to vector<128x128xbf16>
    %c0_13 = arith.constant 0 : index
    %c0_14 = arith.constant 0 : index
    %20 = vector.load %arg9[%c0_13, %c0_14] : memref<128x128xbf16, #tpu.memory_space<vmem>>, vector<128x128xbf16>
    %cst_15 = arith.constant dense<0.000000e+00> : vector<128x128xf32>
    %21 = tpu.matmul %13, %20, %cst_15 {dimension_numbers = #tpu.dot_dimension_numbers<[1], [0], [0], [1], [0, 0, 1, 1], [], []>} : vector<128x128xbf16>, vector<128x128xbf16>, vector<128x128xf32> -> vector<128x128xf32>
    %c0_16 = arith.constant 0 : index
    %c0_17 = arith.constant 0 : index
    %22 = vector.load %arg12[%c0_16, %c0_17] : memref<1x128xf32, #tpu.memory_space<vmem>>, vector<1x128xf32>
    %23 = vector.broadcast %22 : vector<1x128xf32> to vector<128x128xf32>
    %24 = arith.addf %21, %23 : vector<128x128xf32>
    %25 = arith.truncf %24 : vector<128x128xf32> to vector<128x128xbf16>
    %c0_18 = arith.constant 0 : index
    %c0_19 = arith.constant 0 : index
    %26 = vector.load %arg17[%c0_18, %c0_19] : memref<128x128xbf16, #tpu.memory_space<vmem>>, vector<128x128xbf16>
    %27 = vector.extract_strided_slice %26 {offsets = [0, 0], sizes = [128, 32], strides = [1, 1]} : vector<128x128xbf16> to vector<128x32xbf16>
    %28 = vector.extract_strided_slice %19 {offsets = [0, 0], sizes = [128, 32], strides = [1, 1]} : vector<128x128xbf16> to vector<128x32xbf16>
    %cst_20 = arith.constant dense<0.000000e+00> : vector<128x128xf32>
    %29 = tpu.matmul %27, %28, %cst_20 {dimension_numbers = #tpu.dot_dimension_numbers<[1], [1], [0], [0], [0, 0, 1, 0], [], []>} : vector<128x32xbf16>, vector<128x32xbf16>, vector<128x128xf32> -> vector<128x128xf32>
    %c0_21 = arith.constant 0 : index
    %c0_22 = arith.constant 0 : index
    %c0_23 = arith.constant 0 : index
    %30 = vector.load %arg19[%c0_21, %c0_22, %c0_23] : memref<4x128x1xf32, #tpu.memory_space<vmem>>, vector<1x128x1xf32>
    %31 = vector.shape_cast %30 : vector<1x128x1xf32> to vector<128x1xf32>
    %cst_24 = arith.constant dense<0xFF800000> : vector<128xf32>
    %32 = vector.multi_reduction <maximumf>, %29, %cst_24 [1] : vector<128x128xf32> to vector<128xf32>
    %33 = vector.shape_cast %32 : vector<128xf32> to vector<128x1xf32>
    %34 = arith.maximumf %31, %33 : vector<128x1xf32>
    %35 = arith.subf %31, %34 : vector<128x1xf32>
    %36 = math.exp %35 : vector<128x1xf32>
    %37 = vector.broadcast %34 : vector<128x1xf32> to vector<128x128xf32>
    %38 = arith.subf %29, %37 : vector<128x128xf32>
    %39 = math.exp %38 : vector<128x128xf32>
    %c0_25 = arith.constant 0 : index
    %c0_26 = arith.constant 0 : index
    %c0_27 = arith.constant 0 : index
    %40 = vector.load %arg20[%c0_25, %c0_26, %c0_27] : memref<4x128x1xf32, #tpu.memory_space<vmem>>, vector<1x128x1xf32>
    %41 = vector.shape_cast %40 : vector<1x128x1xf32> to vector<128x1xf32>
    %42 = arith.mulf %36, %41 : vector<128x1xf32>
    %cst_28 = arith.constant dense<0.000000e+00> : vector<128xf32>
    %43 = vector.multi_reduction <add>, %39, %cst_28 [1] : vector<128x128xf32> to vector<128xf32>
    %44 = vector.shape_cast %43 : vector<128xf32> to vector<128x1xf32>
    %45 = arith.addf %42, %44 : vector<128x1xf32>
    %c0_29 = arith.constant 0 : index
    %c0_30 = arith.constant 0 : index
    %c0_31 = arith.constant 0 : index
    %46 = vector.load %arg20[%c0_29, %c0_30, %c0_31] : memref<4x128x1xf32, #tpu.memory_space<vmem>>, vector<1x128x1xf32>
    %47 = vector.shape_cast %46 : vector<1x128x1xf32> to vector<128x1xf32>
    %48 = vector.shape_cast %45 : vector<128x1xf32> to vector<1x128x1xf32>
    tpu.vector_store %arg20[%c0_29, %c0_30, %c0_31], %48 {strides = array<i32>} : memref<4x128x1xf32, #tpu.memory_space<vmem>>, vector<1x128x1xf32>,
    %c0_32 = arith.constant 0 : index
    %c0_33 = arith.constant 0 : index
    %c0_34 = arith.constant 0 : index
    %49 = vector.load %arg18[%c0_32, %c0_33, %c0_34] : memref<4x128x32xf32, #tpu.memory_space<vmem>>, vector<1x128x32xf32>
    %50 = vector.shape_cast %49 : vector<1x128x32xf32> to vector<128x32xf32>
    %51 = vector.broadcast %36 : vector<128x1xf32> to vector<128x32xf32>
    %52 = arith.mulf %51, %50 : vector<128x32xf32>
    %53 = arith.truncf %39 : vector<128x128xf32> to vector<128x128xbf16>
    %54 = vector.extract_strided_slice %25 {offsets = [0, 0], sizes = [128, 32], strides = [1, 1]} : vector<128x128xbf16> to vector<128x32xbf16>
    %cst_35 = arith.constant dense<0.000000e+00> : vector<128x32xf32>
    %55 = tpu.matmul %53, %54, %cst_35 {dimension_numbers = #tpu.dot_dimension_numbers<[1], [0], [0], [1], [0, 0, 1, 1], [], []>} : vector<128x128xbf16>, vector<128x32xbf16>, vector<128x32xf32> -> vector<128x32xf32>
    %56 = arith.addf %52, %55 : vector<128x32xf32>
    %c0_36 = arith.constant 0 : index
    %c0_37 = arith.constant 0 : index
    %c0_38 = arith.constant 0 : index
    %57 = vector.load %arg18[%c0_36, %c0_37, %c0_38] : memref<4x128x32xf32, #tpu.memory_space<vmem>>, vector<1x128x32xf32>
    %58 = vector.shape_cast %57 : vector<1x128x32xf32> to vector<128x32xf32>
    %59 = vector.shape_cast %56 : vector<128x32xf32> to vector<1x128x32xf32>
    tpu.vector_store %arg18[%c0_36, %c0_37, %c0_38], %59 {strides = array<i32>} : memref<4x128x32xf32, #tpu.memory_space<vmem>>, vector<1x128x32xf32>,
    %c0_39 = arith.constant 0 : index
    %c0_40 = arith.constant 0 : index
    %c0_41 = arith.constant 0 : index
    %60 = vector.load %arg19[%c0_39, %c0_40, %c0_41] : memref<4x128x1xf32, #tpu.memory_space<vmem>>, vector<1x128x1xf32>
    %61 = vector.shape_cast %60 : vector<1x128x1xf32> to vector<128x1xf32>
    %62 = vector.shape_cast %34 : vector<128x1xf32> to vector<1x128x1xf32>
    tpu.vector_store %arg19[%c0_39, %c0_40, %c0_41], %62 {strides = array<i32>} : memref<4x128x1xf32, #tpu.memory_space<vmem>>, vector<1x128x1xf32>,
    %63 = vector.extract_strided_slice %26 {offsets = [0, 32], sizes = [128, 32], strides = [1, 1]} : vector<128x128xbf16> to vector<128x32xbf16>
    %64 = vector.extract_strided_slice %19 {offsets = [0, 32], sizes = [128, 32], strides = [1, 1]} : vector<128x128xbf16> to vector<128x32xbf16>
    %cst_42 = arith.constant dense<0.000000e+00> : vector<128x128xf32>
    %65 = tpu.matmul %63, %64, %cst_42 {dimension_numbers = #tpu.dot_dimension_numbers<[1], [1], [0], [0], [0, 0, 1, 0], [], []>} : vector<128x32xbf16>, vector<128x32xbf16>, vector<128x128xf32> -> vector<128x128xf32>
    %c1 = arith.constant 1 : index
    %c0_43 = arith.constant 0 : index
    %c0_44 = arith.constant 0 : index
    %66 = vector.load %arg19[%c1, %c0_43, %c0_44] : memref<4x128x1xf32, #tpu.memory_space<vmem>>, vector<1x128x1xf32>
    %67 = vector.shape_cast %66 : vector<1x128x1xf32> to vector<128x1xf32>
    %cst_45 = arith.constant dense<0xFF800000> : vector<128xf32>
    %68 = vector.multi_reduction <maximumf>, %65, %cst_45 [1] : vector<128x128xf32> to vector<128xf32>
    %69 = vector.shape_cast %68 : vector<128xf32> to vector<128x1xf32>
    %70 = arith.maximumf %67, %69 : vector<128x1xf32>
    %71 = arith.subf %67, %70 : vector<128x1xf32>
    %72 = math.exp %71 : vector<128x1xf32>
    %73 = vector.broadcast %70 : vector<128x1xf32> to vector<128x128xf32>
    %74 = arith.subf %65, %73 : vector<128x128xf32>
    %75 = math.exp %74 : vector<128x128xf32>
    %c1_46 = arith.constant 1 : index
    %c0_47 = arith.constant 0 : index
    %c0_48 = arith.constant 0 : index
    %76 = vector.load %arg20[%c1_46, %c0_47, %c0_48] : memref<4x128x1xf32, #tpu.memory_space<vmem>>, vector<1x128x1xf32>
    %77 = vector.shape_cast %76 : vector<1x128x1xf32> to vector<128x1xf32>
    %78 = arith.mulf %72, %77 : vector<128x1xf32>
    %cst_49 = arith.constant dense<0.000000e+00> : vector<128xf32>
    %79 = vector.multi_reduction <add>, %75, %cst_49 [1] : vector<128x128xf32> to vector<128xf32>
    %80 = vector.shape_cast %79 : vector<128xf32> to vector<128x1xf32>
    %81 = arith.addf %78, %80 : vector<128x1xf32>
    %c1_50 = arith.constant 1 : index
    %c0_51 = arith.constant 0 : index
    %c0_52 = arith.constant 0 : index
    %82 = vector.load %arg20[%c1_50, %c0_51, %c0_52] : memref<4x128x1xf32, #tpu.memory_space<vmem>>, vector<1x128x1xf32>
    %83 = vector.shape_cast %82 : vector<1x128x1xf32> to vector<128x1xf32>
    %84 = vector.shape_cast %81 : vector<128x1xf32> to vector<1x128x1xf32>
    tpu.vector_store %arg20[%c1_50, %c0_51, %c0_52], %84 {strides = array<i32>} : memref<4x128x1xf32, #tpu.memory_space<vmem>>, vector<1x128x1xf32>,
    %c1_53 = arith.constant 1 : index
    %c0_54 = arith.constant 0 : index
    %c0_55 = arith.constant 0 : index
    %85 = vector.load %arg18[%c1_53, %c0_54, %c0_55] : memref<4x128x32xf32, #tpu.memory_space<vmem>>, vector<1x128x32xf32>
    %86 = vector.shape_cast %85 : vector<1x128x32xf32> to vector<128x32xf32>
    %87 = vector.broadcast %72 : vector<128x1xf32> to vector<128x32xf32>
    %88 = arith.mulf %87, %86 : vector<128x32xf32>
    %89 = arith.truncf %75 : vector<128x128xf32> to vector<128x128xbf16>
    %90 = vector.extract_strided_slice %25 {offsets = [0, 32], sizes = [128, 32], strides = [1, 1]} : vector<128x128xbf16> to vector<128x32xbf16>
    %cst_56 = arith.constant dense<0.000000e+00> : vector<128x32xf32>
    %91 = tpu.matmul %89, %90, %cst_56 {dimension_numbers = #tpu.dot_dimension_numbers<[1], [0], [0], [1], [0, 0, 1, 1], [], []>} : vector<128x128xbf16>, vector<128x32xbf16>, vector<128x32xf32> -> vector<128x32xf32>
    %92 = arith.addf %88, %91 : vector<128x32xf32>
    %c1_57 = arith.constant 1 : index
    %c0_58 = arith.constant 0 : index
    %c0_59 = arith.constant 0 : index
    %93 = vector.load %arg18[%c1_57, %c0_58, %c0_59] : memref<4x128x32xf32, #tpu.memory_space<vmem>>, vector<1x128x32xf32>
    %94 = vector.shape_cast %93 : vector<1x128x32xf32> to vector<128x32xf32>
    %95 = vector.shape_cast %92 : vector<128x32xf32> to vector<1x128x32xf32>
    tpu.vector_store %arg18[%c1_57, %c0_58, %c0_59], %95 {strides = array<i32>} : memref<4x128x32xf32, #tpu.memory_space<vmem>>, vector<1x128x32xf32>,
    %c1_60 = arith.constant 1 : index
    %c0_61 = arith.constant 0 : index
    %c0_62 = arith.constant 0 : index
    %96 = vector.load %arg19[%c1_60, %c0_61, %c0_62] : memref<4x128x1xf32, #tpu.memory_space<vmem>>, vector<1x128x1xf32>
    %97 = vector.shape_cast %96 : vector<1x128x1xf32> to vector<128x1xf32>
    %98 = vector.shape_cast %70 : vector<128x1xf32> to vector<1x128x1xf32>
    tpu.vector_store %arg19[%c1_60, %c0_61, %c0_62], %98 {strides = array<i32>} : memref<4x128x1xf32, #tpu.memory_space<vmem>>, vector<1x128x1xf32>,
    %99 = vector.extract_strided_slice %26 {offsets = [0, 64], sizes = [128, 32], strides = [1, 1]} : vector<128x128xbf16> to vector<128x32xbf16>
    %100 = vector.extract_strided_slice %19 {offsets = [0, 64], sizes = [128, 32], strides = [1, 1]} : vector<128x128xbf16> to vector<128x32xbf16>
    %cst_63 = arith.constant dense<0.000000e+00> : vector<128x128xf32>
    %101 = tpu.matmul %99, %100, %cst_63 {dimension_numbers = #tpu.dot_dimension_numbers<[1], [1], [0], [0], [0, 0, 1, 0], [], []>} : vector<128x32xbf16>, vector<128x32xbf16>, vector<128x128xf32> -> vector<128x128xf32>
    %c2 = arith.constant 2 : index
    %c0_64 = arith.constant 0 : index
    %c0_65 = arith.constant 0 : index
    %102 = vector.load %arg19[%c2, %c0_64, %c0_65] : memref<4x128x1xf32, #tpu.memory_space<vmem>>, vector<1x128x1xf32>
    %103 = vector.shape_cast %102 : vector<1x128x1xf32> to vector<128x1xf32>
    %cst_66 = arith.constant dense<0xFF800000> : vector<128xf32>
    %104 = vector.multi_reduction <maximumf>, %101, %cst_66 [1] : vector<128x128xf32> to vector<128xf32>
    %105 = vector.shape_cast %104 : vector<128xf32> to vector<128x1xf32>
    %106 = arith.maximumf %103, %105 : vector<128x1xf32>
    %107 = arith.subf %103, %106 : vector<128x1xf32>
    %108 = math.exp %107 : vector<128x1xf32>
    %109 = vector.broadcast %106 : vector<128x1xf32> to vector<128x128xf32>
    %110 = arith.subf %101, %109 : vector<128x128xf32>
    %111 = math.exp %110 : vector<128x128xf32>
    %c2_67 = arith.constant 2 : index
    %c0_68 = arith.constant 0 : index
    %c0_69 = arith.constant 0 : index
    %112 = vector.load %arg20[%c2_67, %c0_68, %c0_69] : memref<4x128x1xf32, #tpu.memory_space<vmem>>, vector<1x128x1xf32>
    %113 = vector.shape_cast %112 : vector<1x128x1xf32> to vector<128x1xf32>
    %114 = arith.mulf %108, %113 : vector<128x1xf32>
    %cst_70 = arith.constant dense<0.000000e+00> : vector<128xf32>
    %115 = vector.multi_reduction <add>, %111, %cst_70 [1] : vector<128x128xf32> to vector<128xf32>
    %116 = vector.shape_cast %115 : vector<128xf32> to vector<128x1xf32>
    %117 = arith.addf %114, %116 : vector<128x1xf32>
    %c2_71 = arith.constant 2 : index
    %c0_72 = arith.constant 0 : index
    %c0_73 = arith.constant 0 : index
    %118 = vector.load %arg20[%c2_71, %c0_72, %c0_73] : memref<4x128x1xf32, #tpu.memory_space<vmem>>, vector<1x128x1xf32>
    %119 = vector.shape_cast %118 : vector<1x128x1xf32> to vector<128x1xf32>
    %120 = vector.shape_cast %117 : vector<128x1xf32> to vector<1x128x1xf32>
    tpu.vector_store %arg20[%c2_71, %c0_72, %c0_73], %120 {strides = array<i32>} : memref<4x128x1xf32, #tpu.memory_space<vmem>>, vector<1x128x1xf32>,
    %c2_74 = arith.constant 2 : index
    %c0_75 = arith.constant 0 : index
    %c0_76 = arith.constant 0 : index
    %121 = vector.load %arg18[%c2_74, %c0_75, %c0_76] : memref<4x128x32xf32, #tpu.memory_space<vmem>>, vector<1x128x32xf32>
    %122 = vector.shape_cast %121 : vector<1x128x32xf32> to vector<128x32xf32>
    %123 = vector.broadcast %108 : vector<128x1xf32> to vector<128x32xf32>
    %124 = arith.mulf %123, %122 : vector<128x32xf32>
    %125 = arith.truncf %111 : vector<128x128xf32> to vector<128x128xbf16>
    %126 = vector.extract_strided_slice %25 {offsets = [0, 64], sizes = [128, 32], strides = [1, 1]} : vector<128x128xbf16> to vector<128x32xbf16>
    %cst_77 = arith.constant dense<0.000000e+00> : vector<128x32xf32>
    %127 = tpu.matmul %125, %126, %cst_77 {dimension_numbers = #tpu.dot_dimension_numbers<[1], [0], [0], [1], [0, 0, 1, 1], [], []>} : vector<128x128xbf16>, vector<128x32xbf16>, vector<128x32xf32> -> vector<128x32xf32>
    %128 = arith.addf %124, %127 : vector<128x32xf32>
    %c2_78 = arith.constant 2 : index
    %c0_79 = arith.constant 0 : index
    %c0_80 = arith.constant 0 : index
    %129 = vector.load %arg18[%c2_78, %c0_79, %c0_80] : memref<4x128x32xf32, #tpu.memory_space<vmem>>, vector<1x128x32xf32>
    %130 = vector.shape_cast %129 : vector<1x128x32xf32> to vector<128x32xf32>
    %131 = vector.shape_cast %128 : vector<128x32xf32> to vector<1x128x32xf32>
    tpu.vector_store %arg18[%c2_78, %c0_79, %c0_80], %131 {strides = array<i32>} : memref<4x128x32xf32, #tpu.memory_space<vmem>>, vector<1x128x32xf32>,
    %c2_81 = arith.constant 2 : index
    %c0_82 = arith.constant 0 : index
    %c0_83 = arith.constant 0 : index
    %132 = vector.load %arg19[%c2_81, %c0_82, %c0_83] : memref<4x128x1xf32, #tpu.memory_space<vmem>>, vector<1x128x1xf32>
    %133 = vector.shape_cast %132 : vector<1x128x1xf32> to vector<128x1xf32>
    %134 = vector.shape_cast %106 : vector<128x1xf32> to vector<1x128x1xf32>
    tpu.vector_store %arg19[%c2_81, %c0_82, %c0_83], %134 {strides = array<i32>} : memref<4x128x1xf32, #tpu.memory_space<vmem>>, vector<1x128x1xf32>,
    %135 = vector.extract_strided_slice %26 {offsets = [0, 96], sizes = [128, 32], strides = [1, 1]} : vector<128x128xbf16> to vector<128x32xbf16>
    %136 = vector.extract_strided_slice %19 {offsets = [0, 96], sizes = [128, 32], strides = [1, 1]} : vector<128x128xbf16> to vector<128x32xbf16>
    %cst_84 = arith.constant dense<0.000000e+00> : vector<128x128xf32>
    %137 = tpu.matmul %135, %136, %cst_84 {dimension_numbers = #tpu.dot_dimension_numbers<[1], [1], [0], [0], [0, 0, 1, 0], [], []>} : vector<128x32xbf16>, vector<128x32xbf16>, vector<128x128xf32> -> vector<128x128xf32>
    %c3 = arith.constant 3 : index
    %c0_85 = arith.constant 0 : index
    %c0_86 = arith.constant 0 : index
    %138 = vector.load %arg19[%c3, %c0_85, %c0_86] : memref<4x128x1xf32, #tpu.memory_space<vmem>>, vector<1x128x1xf32>
    %139 = vector.shape_cast %138 : vector<1x128x1xf32> to vector<128x1xf32>
    %cst_87 = arith.constant dense<0xFF800000> : vector<128xf32>
    %140 = vector.multi_reduction <maximumf>, %137, %cst_87 [1] : vector<128x128xf32> to vector<128xf32>
    %141 = vector.shape_cast %140 : vector<128xf32> to vector<128x1xf32>
    %142 = arith.maximumf %139, %141 : vector<128x1xf32>
    %143 = arith.subf %139, %142 : vector<128x1xf32>
    %144 = math.exp %143 : vector<128x1xf32>
    %145 = vector.broadcast %142 : vector<128x1xf32> to vector<128x128xf32>
    %146 = arith.subf %137, %145 : vector<128x128xf32>
    %147 = math.exp %146 : vector<128x128xf32>
    %c3_88 = arith.constant 3 : index
    %c0_89 = arith.constant 0 : index
    %c0_90 = arith.constant 0 : index
    %148 = vector.load %arg20[%c3_88, %c0_89, %c0_90] : memref<4x128x1xf32, #tpu.memory_space<vmem>>, vector<1x128x1xf32>
    %149 = vector.shape_cast %148 : vector<1x128x1xf32> to vector<128x1xf32>
    %150 = arith.mulf %144, %149 : vector<128x1xf32>
    %cst_91 = arith.constant dense<0.000000e+00> : vector<128xf32>
    %151 = vector.multi_reduction <add>, %147, %cst_91 [1] : vector<128x128xf32> to vector<128xf32>
    %152 = vector.shape_cast %151 : vector<128xf32> to vector<128x1xf32>
    %153 = arith.addf %150, %152 : vector<128x1xf32>
    %c3_92 = arith.constant 3 : index
    %c0_93 = arith.constant 0 : index
    %c0_94 = arith.constant 0 : index
    %154 = vector.load %arg20[%c3_92, %c0_93, %c0_94] : memref<4x128x1xf32, #tpu.memory_space<vmem>>, vector<1x128x1xf32>
    %155 = vector.shape_cast %154 : vector<1x128x1xf32> to vector<128x1xf32>
    %156 = vector.shape_cast %153 : vector<128x1xf32> to vector<1x128x1xf32>
    tpu.vector_store %arg20[%c3_92, %c0_93, %c0_94], %156 {strides = array<i32>} : memref<4x128x1xf32, #tpu.memory_space<vmem>>, vector<1x128x1xf32>,
    %c3_95 = arith.constant 3 : index
    %c0_96 = arith.constant 0 : index
    %c0_97 = arith.constant 0 : index
    %157 = vector.load %arg18[%c3_95, %c0_96, %c0_97] : memref<4x128x32xf32, #tpu.memory_space<vmem>>, vector<1x128x32xf32>
    %158 = vector.shape_cast %157 : vector<1x128x32xf32> to vector<128x32xf32>
    %159 = vector.broadcast %144 : vector<128x1xf32> to vector<128x32xf32>
    %160 = arith.mulf %159, %158 : vector<128x32xf32>
    %161 = arith.truncf %147 : vector<128x128xf32> to vector<128x128xbf16>
    %162 = vector.extract_strided_slice %25 {offsets = [0, 96], sizes = [128, 32], strides = [1, 1]} : vector<128x128xbf16> to vector<128x32xbf16>
    %cst_98 = arith.constant dense<0.000000e+00> : vector<128x32xf32>
    %163 = tpu.matmul %161, %162, %cst_98 {dimension_numbers = #tpu.dot_dimension_numbers<[1], [0], [0], [1], [0, 0, 1, 1], [], []>} : vector<128x128xbf16>, vector<128x32xbf16>, vector<128x32xf32> -> vector<128x32xf32>
    %164 = arith.addf %160, %163 : vector<128x32xf32>
    %c3_99 = arith.constant 3 : index
    %c0_100 = arith.constant 0 : index
    %c0_101 = arith.constant 0 : index
    %165 = vector.load %arg18[%c3_99, %c0_100, %c0_101] : memref<4x128x32xf32, #tpu.memory_space<vmem>>, vector<1x128x32xf32>
    %166 = vector.shape_cast %165 : vector<1x128x32xf32> to vector<128x32xf32>
    %167 = vector.shape_cast %164 : vector<128x32xf32> to vector<1x128x32xf32>
    tpu.vector_store %arg18[%c3_99, %c0_100, %c0_101], %167 {strides = array<i32>} : memref<4x128x32xf32, #tpu.memory_space<vmem>>, vector<1x128x32xf32>,
    %c3_102 = arith.constant 3 : index
    %c0_103 = arith.constant 0 : index
    %c0_104 = arith.constant 0 : index
    %168 = vector.load %arg19[%c3_102, %c0_103, %c0_104] : memref<4x128x1xf32, #tpu.memory_space<vmem>>, vector<1x128x1xf32>
    %169 = vector.shape_cast %168 : vector<1x128x1xf32> to vector<128x1xf32>
    %170 = vector.shape_cast %142 : vector<128x1xf32> to vector<1x128x1xf32>
    tpu.vector_store %arg19[%c3_102, %c0_103, %c0_104], %170 {strides = array<i32>} : memref<4x128x1xf32, #tpu.memory_space<vmem>>, vector<1x128x1xf32>,
    %c1_i32 = arith.constant 1 : i32
    %171 = arith.cmpi eq, %arg2, %c1_i32 : i32
    %172 = arith.extui %171 : i1 to i32
    %c0_i32_105 = arith.constant 0 : i32
    %173 = arith.cmpi ne, %172, %c0_i32_105 : i32
    scf.if %173 {
      %cst_106 = arith.constant 0.000000e+00 : f32
      %174 = vector.broadcast %cst_106 : f32 to vector<128x128xf32>
      %c0_107 = arith.constant 0 : index
      %c0_108 = arith.constant 0 : index
      %c0_109 = arith.constant 0 : index
      %175 = vector.load %arg18[%c0_107, %c0_108, %c0_109] : memref<4x128x32xf32, #tpu.memory_space<vmem>>, vector<1x128x32xf32>
      %176 = vector.shape_cast %175 : vector<1x128x32xf32> to vector<128x32xf32>
      %c0_110 = arith.constant 0 : index
      %c0_111 = arith.constant 0 : index
      %c0_112 = arith.constant 0 : index
      %177 = vector.load %arg20[%c0_110, %c0_111, %c0_112] : memref<4x128x1xf32, #tpu.memory_space<vmem>>, vector<1x128x1xf32>
      %178 = vector.shape_cast %177 : vector<1x128x1xf32> to vector<128x1xf32>
      %179 = tpu.reciprocal %178 {approx = true} : vector<128x1xf32> -> vector<128x1xf32>
      %180 = vector.broadcast %179 : vector<128x1xf32> to vector<128x32xf32>
      %181 = arith.mulf %176, %180 : vector<128x32xf32>
      %182 = arith.truncf %181 : vector<128x32xf32> to vector<128x32xbf16>
      %c0_113 = arith.constant 0 : index
      %c0_114 = arith.constant 0 : index
      %c0_115 = arith.constant 0 : index
      %183 = vector.load %arg13[%c0_113, %c0_114, %c0_115] : memref<4x32x128xbf16, #tpu.memory_space<vmem>>, vector<1x32x128xbf16>
      %184 = vector.shape_cast %183 : vector<1x32x128xbf16> to vector<32x128xbf16>
      %cst_116 = arith.constant dense<0.000000e+00> : vector<128x128xf32>
      %185 = tpu.matmul %182, %184, %cst_116 {dimension_numbers = #tpu.dot_dimension_numbers<[1], [0], [0], [1], [0, 0, 1, 1], [], []>} : vector<128x32xbf16>, vector<32x128xbf16>, vector<128x128xf32> -> vector<128x128xf32>
      %186 = arith.addf %174, %185 : vector<128x128xf32>
      %c1_117 = arith.constant 1 : index
      %c0_118 = arith.constant 0 : index
      %c0_119 = arith.constant 0 : index
      %187 = vector.load %arg18[%c1_117, %c0_118, %c0_119] : memref<4x128x32xf32, #tpu.memory_space<vmem>>, vector<1x128x32xf32>
      %188 = vector.shape_cast %187 : vector<1x128x32xf32> to vector<128x32xf32>
      %c1_120 = arith.constant 1 : index
      %c0_121 = arith.constant 0 : index
      %c0_122 = arith.constant 0 : index
      %189 = vector.load %arg20[%c1_120, %c0_121, %c0_122] : memref<4x128x1xf32, #tpu.memory_space<vmem>>, vector<1x128x1xf32>
      %190 = vector.shape_cast %189 : vector<1x128x1xf32> to vector<128x1xf32>
      %191 = tpu.reciprocal %190 {approx = true} : vector<128x1xf32> -> vector<128x1xf32>
      %192 = vector.broadcast %191 : vector<128x1xf32> to vector<128x32xf32>
      %193 = arith.mulf %188, %192 : vector<128x32xf32>
      %194 = arith.truncf %193 : vector<128x32xf32> to vector<128x32xbf16>
      %c1_123 = arith.constant 1 : index
      %c0_124 = arith.constant 0 : index
      %c0_125 = arith.constant 0 : index
      %195 = vector.load %arg13[%c1_123, %c0_124, %c0_125] : memref<4x32x128xbf16, #tpu.memory_space<vmem>>, vector<1x32x128xbf16>
      %196 = vector.shape_cast %195 : vector<1x32x128xbf16> to vector<32x128xbf16>
      %cst_126 = arith.constant dense<0.000000e+00> : vector<128x128xf32>
      %197 = tpu.matmul %194, %196, %cst_126 {dimension_numbers = #tpu.dot_dimension_numbers<[1], [0], [0], [1], [0, 0, 1, 1], [], []>} : vector<128x32xbf16>, vector<32x128xbf16>, vector<128x128xf32> -> vector<128x128xf32>
      %198 = arith.addf %186, %197 : vector<128x128xf32>
      %c2_127 = arith.constant 2 : index
      %c0_128 = arith.constant 0 : index
      %c0_129 = arith.constant 0 : index
      %199 = vector.load %arg18[%c2_127, %c0_128, %c0_129] : memref<4x128x32xf32, #tpu.memory_space<vmem>>, vector<1x128x32xf32>
      %200 = vector.shape_cast %199 : vector<1x128x32xf32> to vector<128x32xf32>
      %c2_130 = arith.constant 2 : index
      %c0_131 = arith.constant 0 : index
      %c0_132 = arith.constant 0 : index
      %201 = vector.load %arg20[%c2_130, %c0_131, %c0_132] : memref<4x128x1xf32, #tpu.memory_space<vmem>>, vector<1x128x1xf32>
      %202 = vector.shape_cast %201 : vector<1x128x1xf32> to vector<128x1xf32>
      %203 = tpu.reciprocal %202 {approx = true} : vector<128x1xf32> -> vector<128x1xf32>
      %204 = vector.broadcast %203 : vector<128x1xf32> to vector<128x32xf32>
      %205 = arith.mulf %200, %204 : vector<128x32xf32>
      %206 = arith.truncf %205 : vector<128x32xf32> to vector<128x32xbf16>
      %c2_133 = arith.constant 2 : index
      %c0_134 = arith.constant 0 : index
      %c0_135 = arith.constant 0 : index
      %207 = vector.load %arg13[%c2_133, %c0_134, %c0_135] : memref<4x32x128xbf16, #tpu.memory_space<vmem>>, vector<1x32x128xbf16>
      %208 = vector.shape_cast %207 : vector<1x32x128xbf16> to vector<32x128xbf16>
      %cst_136 = arith.constant dense<0.000000e+00> : vector<128x128xf32>
      %209 = tpu.matmul %206, %208, %cst_136 {dimension_numbers = #tpu.dot_dimension_numbers<[1], [0], [0], [1], [0, 0, 1, 1], [], []>} : vector<128x32xbf16>, vector<32x128xbf16>, vector<128x128xf32> -> vector<128x128xf32>
      %210 = arith.addf %198, %209 : vector<128x128xf32>
      %c3_137 = arith.constant 3 : index
      %c0_138 = arith.constant 0 : index
      %c0_139 = arith.constant 0 : index
      %211 = vector.load %arg18[%c3_137, %c0_138, %c0_139] : memref<4x128x32xf32, #tpu.memory_space<vmem>>, vector<1x128x32xf32>
      %212 = vector.shape_cast %211 : vector<1x128x32xf32> to vector<128x32xf32>
      %c3_140 = arith.constant 3 : index
      %c0_141 = arith.constant 0 : index
      %c0_142 = arith.constant 0 : index
      %213 = vector.load %arg20[%c3_140, %c0_141, %c0_142] : memref<4x128x1xf32, #tpu.memory_space<vmem>>, vector<1x128x1xf32>
      %214 = vector.shape_cast %213 : vector<1x128x1xf32> to vector<128x1xf32>
      %215 = tpu.reciprocal %214 {approx = true} : vector<128x1xf32> -> vector<128x1xf32>
      %216 = vector.broadcast %215 : vector<128x1xf32> to vector<128x32xf32>
      %217 = arith.mulf %212, %216 : vector<128x32xf32>
      %218 = arith.truncf %217 : vector<128x32xf32> to vector<128x32xbf16>
      %c3_143 = arith.constant 3 : index
      %c0_144 = arith.constant 0 : index
      %c0_145 = arith.constant 0 : index
      %219 = vector.load %arg13[%c3_143, %c0_144, %c0_145] : memref<4x32x128xbf16, #tpu.memory_space<vmem>>, vector<1x32x128xbf16>
      %220 = vector.shape_cast %219 : vector<1x32x128xbf16> to vector<32x128xbf16>
      %cst_146 = arith.constant dense<0.000000e+00> : vector<128x128xf32>
      %221 = tpu.matmul %218, %220, %cst_146 {dimension_numbers = #tpu.dot_dimension_numbers<[1], [0], [0], [1], [0, 0, 1, 1], [], []>} : vector<128x32xbf16>, vector<32x128xbf16>, vector<128x128xf32> -> vector<128x128xf32>
      %222 = arith.addf %210, %221 : vector<128x128xf32>
      %c0_147 = arith.constant 0 : index
      %c0_148 = arith.constant 0 : index
      %223 = vector.load %arg14[%c0_147, %c0_148] : memref<1x128xf32, #tpu.memory_space<vmem>>, vector<1x128xf32>
      %224 = vector.broadcast %223 : vector<1x128xf32> to vector<128x128xf32>
      %225 = arith.addf %222, %224 : vector<128x128xf32>
      %c0_149 = arith.constant 0 : index
      %c0_150 = arith.constant 0 : index
      %c0_151 = arith.constant 0 : index
      %226 = vector.load %arg15[%c0_149, %c0_150, %c0_151] : memref<1x1x128xf32, #tpu.memory_space<vmem>>, vector<1x1x128xf32>
      %227 = vector.shape_cast %226 : vector<1x1x128xf32> to vector<1x128xf32>
      %228 = vector.broadcast %227 : vector<1x128xf32> to vector<128x128xf32>
      %229 = arith.mulf %225, %228 : vector<128x128xf32>
      %c0_152 = arith.constant 0 : index
      %c0_153 = arith.constant 0 : index
      %c0_154 = arith.constant 0 : index
      %230 = vector.load %arg3[%c0_152, %c0_153, %c0_154] : memref<1x128x128xf32, #tpu.memory_space<vmem>>, vector<1x128x128xf32>
      %231 = vector.shape_cast %230 : vector<1x128x128xf32> to vector<128x128xf32>
      %232 = arith.addf %229, %231 : vector<128x128xf32>
      %c0_155 = arith.constant 0 : index
      %c0_156 = arith.constant 0 : index
      %c0_157 = arith.constant 0 : index
      %233 = vector.load %arg16[%c0_155, %c0_156, %c0_157] : memref<1x128x128xf32, #tpu.memory_space<vmem>>, vector<1x128x128xf32>
      %234 = vector.shape_cast %233 : vector<1x128x128xf32> to vector<128x128xf32>
      %235 = vector.shape_cast %232 : vector<128x128xf32> to vector<1x128x128xf32>
      tpu.vector_store %arg16[%c0_155, %c0_156, %c0_157], %235 {strides = array<i32>} : memref<1x128x128xf32, #tpu.memory_space<vmem>>, vector<1x128x128xf32>,
    } else {
    }
    return
  }
  func.func @transform_0(%arg0: i32, %arg1: i32, %arg2: i32) -> (i32, i32, i32) {
    %c0_i32 = arith.constant 0 : i32
    %c0_i32_0 = arith.constant 0 : i32
    return %arg0, %arg1, %c0_i32 : i32, i32, i32
  }
  func.func @transform_1(%arg0: i32, %arg1: i32, %arg2: i32) -> (i32, i32, i32) {
    %c0_i32 = arith.constant 0 : i32
    %c0_i32_0 = arith.constant 0 : i32
    return %arg0, %arg2, %c0_i32 : i32, i32, i32
  }
  func.func @transform_2(%arg0: i32, %arg1: i32, %arg2: i32) -> (i32, i32, i32) {
    %c0_i32 = arith.constant 0 : i32
    %c0_i32_0 = arith.constant 0 : i32
    %c0_i32_1 = arith.constant 0 : i32
    return %arg0, %c0_i32, %c0_i32_0 : i32, i32, i32
  }
  func.func @transform_3(%arg0: i32, %arg1: i32, %arg2: i32) -> (i32, i32, i32) {
    %c0_i32 = arith.constant 0 : i32
    %c0_i32_0 = arith.constant 0 : i32
    %c0_i32_1 = arith.constant 0 : i32
    return %arg0, %c0_i32, %c0_i32_0 : i32, i32, i32
  }
  func.func @transform_4(%arg0: i32, %arg1: i32, %arg2: i32) -> (i32, i32) {
    %c0_i32 = arith.constant 0 : i32
    %c0_i32_0 = arith.constant 0 : i32
    %c0_i32_1 = arith.constant 0 : i32
    return %c0_i32, %c0_i32_0 : i32, i32
  }
  func.func @transform_5(%arg0: i32, %arg1: i32, %arg2: i32) -> (i32, i32) {
    %c0_i32 = arith.constant 0 : i32
    %c0_i32_0 = arith.constant 0 : i32
    %c0_i32_1 = arith.constant 0 : i32
    return %c0_i32, %c0_i32_0 : i32, i32
  }
  func.func @transform_6(%arg0: i32, %arg1: i32, %arg2: i32) -> (i32, i32) {
    %c0_i32 = arith.constant 0 : i32
    %c0_i32_0 = arith.constant 0 : i32
    %c0_i32_1 = arith.constant 0 : i32
    return %c0_i32, %c0_i32_0 : i32, i32
  }
  func.func @transform_7(%arg0: i32, %arg1: i32, %arg2: i32) -> (i32, i32) {
    %c0_i32 = arith.constant 0 : i32
    %c0_i32_0 = arith.constant 0 : i32
    %c0_i32_1 = arith.constant 0 : i32
    return %c0_i32, %c0_i32_0 : i32, i32
  }
  func.func @transform_8(%arg0: i32, %arg1: i32, %arg2: i32) -> (i32, i32) {
    %c0_i32 = arith.constant 0 : i32
    %c0_i32_0 = arith.constant 0 : i32
    %c0_i32_1 = arith.constant 0 : i32
    return %c0_i32, %c0_i32_0 : i32, i32
  }
  func.func @transform_9(%arg0: i32, %arg1: i32, %arg2: i32) -> (i32, i32) {
    %c0_i32 = arith.constant 0 : i32
    %c0_i32_0 = arith.constant 0 : i32
    %c0_i32_1 = arith.constant 0 : i32
    return %c0_i32, %c0_i32_0 : i32, i32
  }
  func.func @transform_10(%arg0: i32, %arg1: i32, %arg2: i32) -> (i32, i32, i32) {
    %c0_i32 = arith.constant 0 : i32
    %c0_i32_0 = arith.constant 0 : i32
    %c0_i32_1 = arith.constant 0 : i32
    %c0_i32_2 = arith.constant 0 : i32
    return %c0_i32, %c0_i32_0, %c0_i32_1 : i32, i32, i32
  }
  func.func @transform_11(%arg0: i32, %arg1: i32, %arg2: i32) -> (i32, i32) {
    %c0_i32 = arith.constant 0 : i32
    %c0_i32_0 = arith.constant 0 : i32
    %c0_i32_1 = arith.constant 0 : i32
    return %c0_i32, %c0_i32_0 : i32, i32
  }
  func.func @transform_12(%arg0: i32, %arg1: i32, %arg2: i32) -> (i32, i32, i32) {
    %c0_i32 = arith.constant 0 : i32
    %c0_i32_0 = arith.constant 0 : i32
    %c0_i32_1 = arith.constant 0 : i32
    return %arg0, %c0_i32, %c0_i32_0 : i32, i32, i32
  }
  func.func @transform_13(%arg0: i32, %arg1: i32, %arg2: i32) -> (i32, i32, i32) {
    %c0_i32 = arith.constant 0 : i32
    %c0_i32_0 = arith.constant 0 : i32
    return %arg0, %arg1, %c0_i32 : i32, i32, i32
  }
}

</mosaic_0001>

<llo_original>
// kernel: tpu_custom_call.1
$region0: #{tpu_custom_call.1}
  #allocation0 [shape = 'u32[]', space=smem, size = 0x4, offset = 0x4, fixed_abs, tag = 'smem constant byte address 0x4 - core index']
  #allocation1 [shape = 'u32[144,128]{1,0:T(1,128)}', space=vmem, size = 0x12000, scoped, tag = 'internal scratch']
  #allocation2 [shape = 'bf16[128,128]{1,0:T(16,128)(2,1)}', space=vmem, size = 0x8000, scoped, tag = 'scratch operand']
  #allocation3 [shape = 'f32[4,128,32]{2,1,0:T(8,128)}', space=vmem, size = 0x40000, scoped, tag = 'scratch operand']
  #allocation4 [shape = 'f32[4,128,1]{2,1,0:T(8,128)}', space=vmem, size = 0x40000, scoped, tag = 'scratch operand']
  #allocation5 [shape = 'f32[4,128,1]{2,1,0:T(8,128)}', space=vmem, size = 0x40000, scoped, tag = 'scratch operand']
  %s0 = inlined_call_operand.hbm [shape: f32[2,256,128], index: 0, kind: input, shape index: {}]
  %s1 = inlined_call_operand.hbm [shape: f32[2,256,128], index: 1, kind: input, shape index: {}]
  %s2 = inlined_call_operand.vmem [shape: f32[2,1,128], index: 2, kind: input, shape index: {}]
  %s3 = inlined_call_operand.vmem [shape: f32[2,1,128], index: 3, kind: input, shape index: {}]
  %s4 = inlined_call_operand.hbm [shape: bf16[128,128], index: 4, kind: input, shape index: {}]
  %s5 = inlined_call_operand.hbm [shape: bf16[128,128], index: 5, kind: input, shape index: {}]
  %s6 = inlined_call_operand.hbm [shape: bf16[128,128], index: 6, kind: input, shape index: {}]
  %s7 = inlined_call_operand.vmem [shape: f32[1,128], index: 7, kind: input, shape index: {}]
  %s8 = inlined_call_operand.vmem [shape: f32[1,128], index: 8, kind: input, shape index: {}]
  %s9 = inlined_call_operand.vmem [shape: f32[1,128], index: 9, kind: input, shape index: {}]
  %s10 = inlined_call_operand.hbm [shape: bf16[4,32,128], index: 10, kind: input, shape index: {}]
  %s11 = inlined_call_operand.vmem [shape: f32[1,128], index: 11, kind: input, shape index: {}]
  %s12 = inlined_call_operand.vmem [shape: f32[2,1,128], index: 12, kind: input, shape index: {}]
  %s13 = inlined_call_operand.hbm [shape: f32[2,256,128], index: 13, kind: output, shape index: {}]
  %s14 = sld [smem:[#allocation0]]
  $region117: #{tpu_custom_call.1} parent=0
    _
  %s16 = ssub.s32 1, %s14
  %s17 = scalar_select 0, %s16, %s14
  $region1: #{tpu_custom_call.1} parent=0
    #allocation6 [shape = 'u8[131072]{0}', space=vmem, size = 0x20000, scoped, tag = 'input window, operand 0']
    #allocation7 [shape = 's32[2]{0}', space=sflag, size = 0x8, scoped, tag = 'scoped memory for tpu_custom_call.1']
    #allocation8 [shape = 's32[2]{0}', space=sflag, size = 0x8, scoped, tag = 'scoped memory for tpu_custom_call.1']
    #allocation9 [shape = 'u8[131072]{0}', space=vmem, size = 0x20000, scoped, tag = 'input window, operand 1']
    #allocation10 [shape = 's32[2]{0}', space=sflag, size = 0x8, scoped, tag = 'scoped memory for tpu_custom_call.1']
    #allocation11 [shape = 'u8[32768]{0}', space=vmem, size = 0x8000, scoped, tag = 'input window, operand 4, single buffered']
    #allocation12 [shape = 'u8[32768]{0}', space=vmem, size = 0x8000, scoped, tag = 'input window, operand 5, single buffered']
    #allocation13 [shape = 's32[1]{0}', space=sflag, size = 0x4, scoped, tag = 'scoped memory for tpu_custom_call.1']
    #allocation14 [shape = 'u8[32768]{0}', space=vmem, size = 0x8000, scoped, tag = 'input window, operand 6, single buffered']
    #allocation15 [shape = 'u8[32768]{0}', space=vmem, size = 0x8000, scoped, tag = 'input window, operand 10, single buffered']
    #allocation16 [shape = 's32[1]{0}', space=sflag, size = 0x4, scoped, tag = 'scoped memory for tpu_custom_call.1']
    #allocation17 [shape = 'u8[131072]{0}', space=vmem, size = 0x20000, scoped, tag = 'output window, operand 0']
    %18 = vsyncpa [#allocation7], 0
    %s19 = scalar_lea.sflag [#allocation7], 1
    %20 = vsyncpa %s19, 0
    %21 = vsyncpa [#allocation10], 0
    %s22 = scalar_lea.sflag [#allocation10], 1
    %23 = vsyncpa %s22, 0
    %24 = vsyncpa [#allocation13], 0
    %25 = vsyncpa [#allocation16], 0
    %26 = vsyncpa [#allocation8], 0
    %s27 = scalar_lea.sflag [#allocation8], 1
    %28 = vsyncpa %s27, 0
    loop: start=0, step=1, limit=10
    $region2: #{tpu_custom_call.1} parent=1 // loop_pre_header
      _
    $region3: #{tpu_custom_call.1} parent=1 // loop_header
      %s30 = sphi 0, %s34
      %p31 = scmp.ge.s32.totalorder %s30, 10
      %s37 = sphi 0, %s56
      %s38 = sphi 0, %s52
      %s39 = sphi 0, %s48
      %s40 = sphi 0, %s37
      %s41 = sphi 0, %s38
      %s42 = sphi 0, %s39
      %s43 = sphi 0, %s40
      %s44 = sphi 0, %s41
      %s45 = sphi 0, %s42
      %s61 = sphi 0, %s63
      %s64 = sphi 0, %s61
      %s65 = sphi 0, %s64
      %s81 = sphi 0, %s65
      %s89 = sphi 0, %s91
      %s92 = sphi 0, %s89
      %s93 = sphi 0, %s92
      %s109 = sphi 0, %s93
      %s115 = sphi 0, %s117
      %s118 = sphi 0, %s115
      %s119 = sphi 0, %s118
      %s135 = sphi 0, %s119
      %s141 = sphi 0, %s143
      %s144 = sphi 0, %s141
      %s145 = sphi 0, %s144
      %s161 = sphi 0, %s145
      %s165 = sphi 0, %s165
      %s167 = sphi 0, %s165
      %s168 = sphi 0, %s167
      %s182 = sphi 0, %s168
      %s186 = sphi 0, %s186
      %s188 = sphi 0, %s186
      %s189 = sphi 0, %s188
      %s203 = sphi 0, %s189
      %s207 = sphi 0, %s207
      %s209 = sphi 0, %s207
      %s210 = sphi 0, %s209
      %s224 = sphi 0, %s210
      %s228 = sphi 0, %s228
      %s230 = sphi 0, %s228
      %s231 = sphi 0, %s230
      %s245 = sphi 0, %s231
      %s249 = sphi 0, %s249
      %s251 = sphi 0, %s249
      %s252 = sphi 0, %s251
      %s266 = sphi 0, %s252
      %s270 = sphi 0, %s270
      %s272 = sphi 0, %s270
      %s273 = sphi 0, %s272
      %s287 = sphi 0, %s273
      %s291 = sphi 0, %s291
      %s293 = sphi 0, %s291
      %s294 = sphi 0, %s293
      %s308 = sphi 0, %s294
      %s312 = sphi 0, %s312
      %s314 = sphi 0, %s312
      %s315 = sphi 0, %s314
      %s329 = sphi 0, %s315
      %s335 = sphi 0, %s337
      %s338 = sphi 0, %s335
      %s339 = sphi 0, %s338
      %s355 = sphi 0, %s339
      %s363 = sphi 0, %s365
      %s366 = sphi 0, %s363
      %s367 = sphi 0, %s366
      %s383 = sphi 0, %s367
    $region4: #{tpu_custom_call.1} parent=1 // loop_header_branch
      %33 = sbr.rel (%p31) target = $region8
    $region5: #{tpu_custom_call.1} parent=1 // loop_body
      %s35 = ssub.s32 %s30, 1
      %s36 = ssub.s32 %s30, 2
      %s46 = sadd.s32 1, %s39
      %p47 = scmp.ge.s32.totalorder %s46, 2
      %s48 = scalar_select %p47, 0, %s46
      %s49 = sadd.s32 1, %s38
      %s50 = scalar_select %p47, %s49, %s38
      %p51 = scmp.ge.s32.totalorder %s50, 2
      %s52 = scalar_select %p51, 0, %s50
      %s53 = sadd.s32 1, %s37
      %s54 = scalar_select %p51, %s53, %s37
      %p55 = scmp.ge.s32.totalorder %s54, 2
      %s56 = scalar_select %p55, 0, %s54
      %s57 = ssub.s32 %s37, %s56
      %s58 = ssub.s32 %s38, %s52
      %s59 = sor.u32 %s57, %s58
      %p60 = scmp.eq.s32.totalorder %s59, 0
      %s62 = sadd.s32 %s61, 1
      %s63 = scalar_select %p60, %s61, %s62
      %p66 = pneg %p60
      %p67 = scmp.eq.s32.totalorder %s30, 7
      %p68 = por %p66, %p67
      %p69 = scmp.ne.s32.totalorder %s61, %s64
      %p70 = scmp.eq.s32.totalorder %s30, 0
      %p71 = por %p69, %p70
      %p72 = scmp.ne.s32.totalorder %s61, %s64
      %p73 = scmp.eq.s32.totalorder %s35, 7
      %p74 = por %p72, %p73
      %p75 = scmp.ne.s32.totalorder %s64, %s65
      %p76 = scmp.eq.s32.totalorder %s35, 0
      %p77 = por %p75, %p76
      %p78 = scmp.ne.s32.totalorder %s64, %s65
      %p79 = scmp.eq.s32.totalorder %s36, 7
      %p80 = por %p78, %p79
      %p82 = scmp.ne.s32.totalorder %s65, %s81
      %p83 = scmp.eq.s32.totalorder %s36, 0
      %p84 = por %p82, %p83
      %s85 = ssub.s32 %s37, %s56
      %s86 = ssub.s32 %s39, %s48
      %s87 = sor.u32 %s85, %s86
      %p88 = scmp.eq.s32.totalorder %s87, 0
      %s90 = sadd.s32 %s89, 1
      %s91 = scalar_select %p88, %s89, %s90
      %p94 = pneg %p88
      %p95 = scmp.eq.s32.totalorder %s30, 7
      %p96 = por %p94, %p95
      %p97 = scmp.ne.s32.totalorder %s89, %s92
      %p98 = scmp.eq.s32.totalorder %s30, 0
      %p99 = por %p97, %p98
      %p100 = scmp.ne.s32.totalorder %s89, %s92
      %p101 = scmp.eq.s32.totalorder %s35, 7
      %p102 = por %p100, %p101
      %p103 = scmp.ne.s32.totalorder %s92, %s93
      %p104 = scmp.eq.s32.totalorder %s35, 0
      %p105 = por %p103, %p104
      %p106 = scmp.ne.s32.totalorder %s92, %s93
      %p107 = scmp.eq.s32.totalorder %s36, 7
      %p108 = por %p106, %p107
      %p110 = scmp.ne.s32.totalorder %s93, %s109
      %p111 = scmp.eq.s32.totalorder %s36, 0
      %p112 = por %p110, %p111
      %s113 = ssub.s32 %s37, %s56
      %p114 = scmp.eq.s32.totalorder %s113, 0
      %s116 = sadd.s32 %s115, 1
      %s117 = scalar_select %p114, %s115, %s116
      %p120 = pneg %p114
      %p121 = scmp.eq.s32.totalorder %s30, 7
      %p122 = por %p120, %p121
      %p123 = scmp.ne.s32.totalorder %s115, %s118
      %p124 = scmp.eq.s32.totalorder %s30, 0
      %p125 = por %p123, %p124
      %p126 = scmp.ne.s32.totalorder %s115, %s118
      %p127 = scmp.eq.s32.totalorder %s35, 7
      %p128 = por %p126, %p127
      %p129 = scmp.ne.s32.totalorder %s118, %s119
      %p130 = scmp.eq.s32.totalorder %s35, 0
      %p131 = por %p129, %p130
      %p132 = scmp.ne.s32.totalorder %s118, %s119
      %p133 = scmp.eq.s32.totalorder %s36, 7
      %p134 = por %p132, %p133
      %p136 = scmp.ne.s32.totalorder %s119, %s135
      %p137 = scmp.eq.s32.totalorder %s36, 0
      %p138 = por %p136, %p137
      %s139 = ssub.s32 %s37, %s56
      %p140 = scmp.eq.s32.totalorder %s139, 0
      %s142 = sadd.s32 %s141, 1
      %s143 = scalar_select %p140, %s141, %s142
      %p146 = pneg %p140
      %p147 = scmp.eq.s32.totalorder %s30, 7
      %p148 = por %p146, %p147
      %p149 = scmp.ne.s32.totalorder %s141, %s144
      %p150 = scmp.eq.s32.totalorder %s30, 0
      %p151 = por %p149, %p150
      %p152 = scmp.ne.s32.totalorder %s141, %s144
      %p153 = scmp.eq.s32.totalorder %s35, 7
      %p154 = por %p152, %p153
      %p155 = scmp.ne.s32.totalorder %s144, %s145
      %p156 = scmp.eq.s32.totalorder %s35, 0
      %p157 = por %p155, %p156
      %p158 = scmp.ne.s32.totalorder %s144, %s145
      %p159 = scmp.eq.s32.totalorder %s36, 7
      %p160 = por %p158, %p159
      %p162 = scmp.ne.s32.totalorder %s145, %s161
      %p163 = scmp.eq.s32.totalorder %s36, 0
      %p164 = por %p162, %p163
      %s166 = sadd.s32 %s165, 1
      %p169 = scmp.eq.s32.totalorder %s30, 7
      %p170 = scmp.ne.s32.totalorder %s165, %s167
      %p171 = scmp.eq.s32.totalorder %s30, 0
      %p172 = por %p170, %p171
      %p173 = scmp.ne.s32.totalorder %s165, %s167
      %p174 = scmp.eq.s32.totalorder %s35, 7
      %p175 = por %p173, %p174
      %p176 = scmp.ne.s32.totalorder %s167, %s168
      %p177 = scmp.eq.s32.totalorder %s35, 0
      %p178 = por %p176, %p177
      %p179 = scmp.ne.s32.totalorder %s167, %s168
      %p180 = scmp.eq.s32.totalorder %s36, 7
      %p181 = por %p179, %p180
      %p183 = scmp.ne.s32.totalorder %s168, %s182
      %p184 = scmp.eq.s32.totalorder %s36, 0
      %p185 = por %p183, %p184
      %s187 = sadd.s32 %s186, 1
      %p190 = scmp.eq.s32.totalorder %s30, 7
      %p191 = scmp.ne.s32.totalorder %s186, %s188
      %p192 = scmp.eq.s32.totalorder %s30, 0
      %p193 = por %p191, %p192
      %p194 = scmp.ne.s32.totalorder %s186, %s188
      %p195 = scmp.eq.s32.totalorder %s35, 7
      %p196 = por %p194, %p195
      %p197 = scmp.ne.s32.totalorder %s188, %s189
      %p198 = scmp.eq.s32.totalorder %s35, 0
      %p199 = por %p197, %p198
      %p200 = scmp.ne.s32.totalorder %s188, %s189
      %p201 = scmp.eq.s32.totalorder %s36, 7
      %p202 = por %p200, %p201
      %p204 = scmp.ne.s32.totalorder %s189, %s203
      %p205 = scmp.eq.s32.totalorder %s36, 0
      %p206 = por %p204, %p205
      %s208 = sadd.s32 %s207, 1
      %p211 = scmp.eq.s32.totalorder %s30, 7
      %p212 = scmp.ne.s32.totalorder %s207, %s209
      %p213 = scmp.eq.s32.totalorder %s30, 0
      %p214 = por %p212, %p213
      %p215 = scmp.ne.s32.totalorder %s207, %s209
      %p216 = scmp.eq.s32.totalorder %s35, 7
      %p217 = por %p215, %p216
      %p218 = scmp.ne.s32.totalorder %s209, %s210
      %p219 = scmp.eq.s32.totalorder %s35, 0
      %p220 = por %p218, %p219
      %p221 = scmp.ne.s32.totalorder %s209, %s210
      %p222 = scmp.eq.s32.totalorder %s36, 7
      %p223 = por %p221, %p222
      %p225 = scmp.ne.s32.totalorder %s210, %s224
      %p226 = scmp.eq.s32.totalorder %s36, 0
      %p227 = por %p225, %p226
      %s229 = sadd.s32 %s228, 1
      %p232 = scmp.eq.s32.totalorder %s30, 7
      %p233 = scmp.ne.s32.totalorder %s228, %s230
      %p234 = scmp.eq.s32.totalorder %s30, 0
      %p235 = por %p233, %p234
      %p236 = scmp.ne.s32.totalorder %s228, %s230
      %p237 = scmp.eq.s32.totalorder %s35, 7
      %p238 = por %p236, %p237
      %p239 = scmp.ne.s32.totalorder %s230, %s231
      %p240 = scmp.eq.s32.totalorder %s35, 0
      %p241 = por %p239, %p240
      %p242 = scmp.ne.s32.totalorder %s230, %s231
      %p243 = scmp.eq.s32.totalorder %s36, 7
      %p244 = por %p242, %p243
      %p246 = scmp.ne.s32.totalorder %s231, %s245
      %p247 = scmp.eq.s32.totalorder %s36, 0
      %p248 = por %p246, %p247
      %s250 = sadd.s32 %s249, 1
      %p253 = scmp.eq.s32.totalorder %s30, 7
      %p254 = scmp.ne.s32.totalorder %s249, %s251
      %p255 = scmp.eq.s32.totalorder %s30, 0
      %p256 = por %p254, %p255
      %p257 = scmp.ne.s32.totalorder %s249, %s251
      %p258 = scmp.eq.s32.totalorder %s35, 7
      %p259 = por %p257, %p258
      %p260 = scmp.ne.s32.totalorder %s251, %s252
      %p261 = scmp.eq.s32.totalorder %s35, 0
      %p262 = por %p260, %p261
      %p263 = scmp.ne.s32.totalorder %s251, %s252
      %p264 = scmp.eq.s32.totalorder %s36, 7
      %p265 = por %p263, %p264
      %p267 = scmp.ne.s32.totalorder %s252, %s266
      %p268 = scmp.eq.s32.totalorder %s36, 0
      %p269 = por %p267, %p268
      %s271 = sadd.s32 %s270, 1
      %p274 = scmp.eq.s32.totalorder %s30, 7
      %p275 = scmp.ne.s32.totalorder %s270, %s272
      %p276 = scmp.eq.s32.totalorder %s30, 0
      %p277 = por %p275, %p276
      %p278 = scmp.ne.s32.totalorder %s270, %s272
      %p279 = scmp.eq.s32.totalorder %s35, 7
      %p280 = por %p278, %p279
      %p281 = scmp.ne.s32.totalorder %s272, %s273
      %p282 = scmp.eq.s32.totalorder %s35, 0
      %p283 = por %p281, %p282
      %p284 = scmp.ne.s32.totalorder %s272, %s273
      %p285 = scmp.eq.s32.totalorder %s36, 7
      %p286 = por %p284, %p285
      %p288 = scmp.ne.s32.totalorder %s273, %s287
      %p289 = scmp.eq.s32.totalorder %s36, 0
      %p290 = por %p288, %p289
      %s292 = sadd.s32 %s291, 1
      %p295 = scmp.eq.s32.totalorder %s30, 7
      %p296 = scmp.ne.s32.totalorder %s291, %s293
      %p297 = scmp.eq.s32.totalorder %s30, 0
      %p298 = por %p296, %p297
      %p299 = scmp.ne.s32.totalorder %s291, %s293
      %p300 = scmp.eq.s32.totalorder %s35, 7
      %p301 = por %p299, %p300
      %p302 = scmp.ne.s32.totalorder %s293, %s294
      %p303 = scmp.eq.s32.totalorder %s35, 0
      %p304 = por %p302, %p303
      %p305 = scmp.ne.s32.totalorder %s293, %s294
      %p306 = scmp.eq.s32.totalorder %s36, 7
      %p307 = por %p305, %p306
      %p309 = scmp.ne.s32.totalorder %s294, %s308
      %p310 = scmp.eq.s32.totalorder %s36, 0
      %p311 = por %p309, %p310
      %s313 = sadd.s32 %s312, 1
      %p316 = scmp.eq.s32.totalorder %s30, 7
      %p317 = scmp.ne.s32.totalorder %s312, %s314
      %p318 = scmp.eq.s32.totalorder %s30, 0
      %p319 = por %p317, %p318
      %p320 = scmp.ne.s32.totalorder %s312, %s314
      %p321 = scmp.eq.s32.totalorder %s35, 7
      %p322 = por %p320, %p321
      %p323 = scmp.ne.s32.totalorder %s314, %s315
      %p324 = scmp.eq.s32.totalorder %s35, 0
      %p325 = por %p323, %p324
      %p326 = scmp.ne.s32.totalorder %s314, %s315
      %p327 = scmp.eq.s32.totalorder %s36, 7
      %p328 = por %p326, %p327
      %p330 = scmp.ne.s32.totalorder %s315, %s329
      %p331 = scmp.eq.s32.totalorder %s36, 0
      %p332 = por %p330, %p331
      %s333 = ssub.s32 %s37, %s56
      %p334 = scmp.eq.s32.totalorder %s333, 0
      %s336 = sadd.s32 %s335, 1
      %s337 = scalar_select %p334, %s335, %s336
      %p340 = pneg %p334
      %p341 = scmp.eq.s32.totalorder %s30, 7
      %p342 = por %p340, %p341
      %p343 = scmp.ne.s32.totalorder %s335, %s338
      %p344 = scmp.eq.s32.totalorder %s30, 0
      %p345 = por %p343, %p344
      %p346 = scmp.ne.s32.totalorder %s335, %s338
      %p347 = scmp.eq.s32.totalorder %s35, 7
      %p348 = por %p346, %p347
      %p349 = scmp.ne.s32.totalorder %s338, %s339
      %p350 = scmp.eq.s32.totalorder %s35, 0
      %p351 = por %p349, %p350
      %p352 = scmp.ne.s32.totalorder %s338, %s339
      %p353 = scmp.eq.s32.totalorder %s36, 7
      %p354 = por %p352, %p353
      %p356 = scmp.ne.s32.totalorder %s339, %s355
      %p357 = scmp.eq.s32.totalorder %s36, 0
      %p358 = por %p356, %p357
      %s359 = ssub.s32 %s37, %s56
      %s360 = ssub.s32 %s38, %s52
      %s361 = sor.u32 %s359, %s360
      %p362 = scmp.eq.s32.totalorder %s361, 0
      %s364 = sadd.s32 %s363, 1
      %s365 = scalar_select %p362, %s363, %s364
      %p368 = pneg %p362
      %p369 = scmp.eq.s32.totalorder %s30, 7
      %p370 = por %p368, %p369
      %p371 = scmp.ne.s32.totalorder %s363, %s366
      %p372 = scmp.eq.s32.totalorder %s30, 0
      %p373 = por %p371, %p372
      %p374 = scmp.ne.s32.totalorder %s363, %s366
      %p375 = scmp.eq.s32.totalorder %s35, 7
      %p376 = por %p374, %p375
      %p377 = scmp.ne.s32.totalorder %s366, %s367
      %p378 = scmp.eq.s32.totalorder %s35, 0
      %p379 = por %p377, %p378
      %p380 = scmp.ne.s32.totalorder %s366, %s367
      %p381 = scmp.eq.s32.totalorder %s36, 7
      %p382 = por %p380, %p381
      %p384 = scmp.ne.s32.totalorder %s367, %s383
      %p385 = scmp.eq.s32.totalorder %s36, 0
      %p386 = por %p384, %p385
      %p387 = scmp.le.s32.totalorder 1, %s30
      %p388 = scmp.lt.s32.totalorder %s30, 9
      %p389 = pnand %p387, %p388
      %p390 = pneg %p389
      // Predicated region
      $region9: #{tpu_custom_call.1} parent=5 // pred_check
        _
      $region10: #{tpu_custom_call.1} parent=5 // pred_check_branch
        %392 = sbr.rel (%p389) target = $region12
      $region11: #{tpu_custom_call.1} parent=5 // pred_region
        %s393 = ssub.s32 %s30, 1
        // Predicated region
        $region13: #{tpu_custom_call.1} parent=11 // pred_check
          %p394 = pneg %p178
        $region14: #{tpu_custom_call.1} parent=11 // pred_check_branch
          %396 = sbr.rel (%p394) target = $region16
        $region15: #{tpu_custom_call.1} parent=11 // pred_region
          %s398 = ssub.s32 1024, 1024
          %399 = vsyncadd [#allocation10], %s398
          %s400 = sshll.u32 [#allocation11], 4
          %s401 = int_to_ptr.vmem [resolvable:$true] %s400
          %406 = dma.hbm_to_vmem [thread:$0]  %s4, 1024, %s401, [#allocation10], 64, 64, 4
        $region16: #{tpu_custom_call.1} parent=11 // pred_fallthru
          _
        // Predicated region
        $region17: #{tpu_custom_call.1} parent=11 // pred_check
          %p407 = pneg %p199
        $region18: #{tpu_custom_call.1} parent=11 // pred_check_branch
          %409 = sbr.rel (%p407) target = $region20
        $region19: #{tpu_custom_call.1} parent=11 // pred_region
          %s411 = ssub.s32 1024, 1024
          %412 = vsyncadd [#allocation13], %s411
          %s413 = sshll.u32 [#allocation12], 4
          %s414 = int_to_ptr.vmem [resolvable:$true] %s413
          %419 = dma.hbm_to_vmem [thread:$0]  %s5, 1024, %s414, [#allocation13], 64, 64, 4
        $region20: #{tpu_custom_call.1} parent=11 // pred_fallthru
          _
        // Predicated region
        $region21: #{tpu_custom_call.1} parent=11 // pred_check
          %p420 = pneg %p220
        $region22: #{tpu_custom_call.1} parent=11 // pred_check_branch
          %422 = sbr.rel (%p420) target = $region24
        $region23: #{tpu_custom_call.1} parent=11 // pred_region
          %s424 = ssub.s32 1024, 1024
          %425 = vsyncadd [#allocation13], %s424
          %s426 = sshll.u32 [#allocation14], 4
          %s427 = int_to_ptr.vmem [resolvable:$true] %s426
          %432 = dma.hbm_to_vmem [thread:$0]  %s6, 1024, %s427, [#allocation13], 64, 64, 4
        $region24: #{tpu_custom_call.1} parent=11 // pred_fallthru
          _
        // Predicated region
        $region25: #{tpu_custom_call.1} parent=11 // pred_check
          %p433 = pneg %p241
        $region26: #{tpu_custom_call.1} parent=11 // pred_check_branch
          %435 = sbr.rel (%p433) target = $region28
        $region27: #{tpu_custom_call.1} parent=11 // pred_region
          _
        $region28: #{tpu_custom_call.1} parent=11 // pred_fallthru
          _
        // Predicated region
        $region29: #{tpu_custom_call.1} parent=11 // pred_check
          %p436 = pneg %p262
        $region30: #{tpu_custom_call.1} parent=11 // pred_check_branch
          %438 = sbr.rel (%p436) target = $region32
        $region31: #{tpu_custom_call.1} parent=11 // pred_region
          _
        $region32: #{tpu_custom_call.1} parent=11 // pred_fallthru
          _
        // Predicated region
        $region33: #{tpu_custom_call.1} parent=11 // pred_check
          %p439 = pneg %p283
        $region34: #{tpu_custom_call.1} parent=11 // pred_check_branch
          %441 = sbr.rel (%p439) target = $region36
        $region35: #{tpu_custom_call.1} parent=11 // pred_region
          _
        $region36: #{tpu_custom_call.1} parent=11 // pred_fallthru
          _
        // Predicated region
        $region37: #{tpu_custom_call.1} parent=11 // pred_check
          %p442 = pneg %p304
        $region38: #{tpu_custom_call.1} parent=11 // pred_check_branch
          %444 = sbr.rel (%p442) target = $region40
        $region39: #{tpu_custom_call.1} parent=11 // pred_region
          %s446 = ssub.s32 1024, 1024
          %447 = vsyncadd [#allocation16], %s446
          %s448 = sshll.u32 [#allocation15], 4
          %s449 = int_to_ptr.vmem [resolvable:$true] %s448
          %454 = dma.hbm_to_vmem [thread:$0]  %s10, 1024, %s449, [#allocation16], 64, 64, 4
        $region40: #{tpu_custom_call.1} parent=11 // pred_fallthru
          _
        // Predicated region
        $region41: #{tpu_custom_call.1} parent=11 // pred_check
          %p455 = pneg %p325
        $region42: #{tpu_custom_call.1} parent=11 // pred_check_branch
          %457 = sbr.rel (%p455) target = $region44
        $region43: #{tpu_custom_call.1} parent=11 // pred_region
          _
        $region44: #{tpu_custom_call.1} parent=11 // pred_fallthru
          _
      $region12: #{tpu_custom_call.1} parent=5 // pred_fallthru
        _
      %p458 = scmp.lt.s32.totalorder %s30, 8
      // Predicated region
      $region45: #{tpu_custom_call.1} parent=5 // pred_check
        %p459 = pneg %p458
      $region46: #{tpu_custom_call.1} parent=5 // pred_check_branch
        %461 = sbr.rel (%p459) target = $region48
      $region47: #{tpu_custom_call.1} parent=5 // pred_region
        // Predicated region
        $region49: #{tpu_custom_call.1} parent=47 // pred_check
          %p462 = pneg %p71
        $region50: #{tpu_custom_call.1} parent=47 // pred_check_branch
          %464 = sbr.rel (%p462) target = $region52
        $region51: #{tpu_custom_call.1} parent=47 // pred_region
          %s465 = sand.u32 %s61, 1
          %s466 = scalar_lea.sflag [#allocation7], %s465
          %s467 = sand.u32 %s61, 1
          %s468 = smul.addr %s467, 128
          %s469 = scalar_lea.vmem [#allocation6], %s468
          %s470 = smul.u32 16, %s38
          %s472 = ssub.s32 2048, 2048
          %473 = vsyncadd %s466, %s472
          %s474 = smul.addr %s37, 32
          %s475 = sadd.s32 %s470, %s474
          %s476 = smul.addr %s475, 128
          %s477 = scalar_lea.hbm %s0, %s476
          %s478 = sshll.u32 %s469, 4
          %s479 = int_to_ptr.vmem [resolvable:$true] %s478
          %484 = dma.hbm_to_vmem [thread:$0]  %s477, 2048, %s479, %s466, 128, 128, 8
        $region52: #{tpu_custom_call.1} parent=47 // pred_fallthru
          _
        // Predicated region
        $region53: #{tpu_custom_call.1} parent=47 // pred_check
          %p485 = pneg %p99
        $region54: #{tpu_custom_call.1} parent=47 // pred_check_branch
          %487 = sbr.rel (%p485) target = $region56
        $region55: #{tpu_custom_call.1} parent=47 // pred_region
          %s488 = sand.u32 %s30, 1
          %s489 = scalar_lea.sflag [#allocation10], %s488
          %s490 = sand.u32 %s89, 1
          %s491 = smul.addr %s490, 128
          %s492 = scalar_lea.vmem [#allocation9], %s491
          %s493 = smul.u32 16, %s39
          %s495 = ssub.s32 2048, 2048
          %496 = vsyncadd %s489, %s495
          %s497 = smul.addr %s37, 32
          %s498 = sadd.s32 %s493, %s497
          %s499 = smul.addr %s498, 128
          %s500 = scalar_lea.hbm %s1, %s499
          %s501 = sshll.u32 %s492, 4
          %s502 = int_to_ptr.vmem [resolvable:$true] %s501
          %507 = dma.hbm_to_vmem [thread:$0]  %s500, 2048, %s502, %s489, 128, 128, 8
        $region56: #{tpu_custom_call.1} parent=47 // pred_fallthru
          _
        // Predicated region
        $region57: #{tpu_custom_call.1} parent=47 // pred_check
          %p508 = pneg %p125
        $region58: #{tpu_custom_call.1} parent=47 // pred_check_branch
          %510 = sbr.rel (%p508) target = $region60
        $region59: #{tpu_custom_call.1} parent=47 // pred_region
          %p511 = scmp.lt.s32.totalorder %s37, 1
          %s512 = scalar_select %p511, %s37, 1
          %s513 = scalar_lea.vmem %s2, %s512
        $region60: #{tpu_custom_call.1} parent=47 // pred_fallthru
          _
        // Predicated region
        $region61: #{tpu_custom_call.1} parent=47 // pred_check
          %p514 = pneg %p151
        $region62: #{tpu_custom_call.1} parent=47 // pred_check_branch
          %516 = sbr.rel (%p514) target = $region64
        $region63: #{tpu_custom_call.1} parent=47 // pred_region
          %p517 = scmp.lt.s32.totalorder %s37, 1
          %s518 = scalar_select %p517, %s37, 1
          %s519 = scalar_lea.vmem %s3, %s518
        $region64: #{tpu_custom_call.1} parent=47 // pred_fallthru
          _
        // Predicated region
        $region65: #{tpu_custom_call.1} parent=47 // pred_check
          %p520 = pneg %p345
        $region66: #{tpu_custom_call.1} parent=47 // pred_check_branch
          %522 = sbr.rel (%p520) target = $region68
        $region67: #{tpu_custom_call.1} parent=47 // pred_region
          %p523 = scmp.lt.s32.totalorder %s37, 1
          %s524 = scalar_select %p523, %s37, 1
          %s525 = scalar_lea.vmem %s12, %s524
        $region68: #{tpu_custom_call.1} parent=47 // pred_fallthru
          _
      $region48: #{tpu_custom_call.1} parent=5 // pred_fallthru
        _
      %p526 = scmp.le.s32.totalorder 1, %s30
      %p527 = scmp.lt.s32.totalorder %s30, 9
      %p528 = pnand %p526, %p527
      %p529 = pneg %p528
      // Predicated region
      $region69: #{tpu_custom_call.1} parent=5 // pred_check
        _
      $region70: #{tpu_custom_call.1} parent=5 // pred_check_branch
        %531 = sbr.rel (%p528) target = $region72
      $region71: #{tpu_custom_call.1} parent=5 // pred_region
        %s532 = ssub.s32 %s30, 1
        %s533 = sand.u32 %s64, 1
        %s534 = scalar_lea.sflag [#allocation7], %s533
        %s535 = sand.u32 %s64, 1
        %s536 = smul.addr %s535, 128
        %s537 = scalar_lea.vmem [#allocation6], %s536
        // Predicated region
        $region73: #{tpu_custom_call.1} parent=71 // pred_check
          %p538 = pneg %p77
        $region74: #{tpu_custom_call.1} parent=71 // pred_check_branch
          %540 = sbr.rel (%p538) target = $region76
        $region75: #{tpu_custom_call.1} parent=71 // pred_region
          %541 = dma.done %s534, 2048
        $region76: #{tpu_custom_call.1} parent=71 // pred_fallthru
          _
        %s542 = sand.u32 %s35, 1
        %s543 = scalar_lea.sflag [#allocation10], %s542
        %s544 = sand.u32 %s92, 1
        %s545 = smul.addr %s544, 128
        %s546 = scalar_lea.vmem [#allocation9], %s545
        // Predicated region
        $region77: #{tpu_custom_call.1} parent=71 // pred_check
          %p547 = pneg %p105
        $region78: #{tpu_custom_call.1} parent=71 // pred_check_branch
          %549 = sbr.rel (%p547) target = $region80
        $region79: #{tpu_custom_call.1} parent=71 // pred_region
          %550 = dma.done %s543, 2048
        $region80: #{tpu_custom_call.1} parent=71 // pred_fallthru
          _
        // Predicated region
        $region81: #{tpu_custom_call.1} parent=71 // pred_check
          %p551 = pneg %p178
        $region82: #{tpu_custom_call.1} parent=71 // pred_check_branch
          %553 = sbr.rel (%p551) target = $region84
        $region83: #{tpu_custom_call.1} parent=71 // pred_region
          %554 = dma.done [#allocation10], 1024
        $region84: #{tpu_custom_call.1} parent=71 // pred_fallthru
          _
        // Predicated region
        $region85: #{tpu_custom_call.1} parent=71 // pred_check
          %p555 = pneg %p199
        $region86: #{tpu_custom_call.1} parent=71 // pred_check_branch
          %557 = sbr.rel (%p555) target = $region88
        $region87: #{tpu_custom_call.1} parent=71 // pred_region
          %558 = dma.done [#allocation13], 1024
        $region88: #{tpu_custom_call.1} parent=71 // pred_fallthru
          _
        // Predicated region
        $region89: #{tpu_custom_call.1} parent=71 // pred_check
          %p559 = pneg %p220
        $region90: #{tpu_custom_call.1} parent=71 // pred_check_branch
          %561 = sbr.rel (%p559) target = $region92
        $region91: #{tpu_custom_call.1} parent=71 // pred_region
          %562 = dma.done [#allocation13], 1024
        $region92: #{tpu_custom_call.1} parent=71 // pred_fallthru
          _
        // Predicated region
        $region93: #{tpu_custom_call.1} parent=71 // pred_check
          %p563 = pneg %p304
        $region94: #{tpu_custom_call.1} parent=71 // pred_check_branch
          %565 = sbr.rel (%p563) target = $region96
        $region95: #{tpu_custom_call.1} parent=71 // pred_region
          %566 = dma.done [#allocation16], 1024
        $region96: #{tpu_custom_call.1} parent=71 // pred_fallthru
          _
        %s567 = sand.u32 %s64, 1
        %s568 = scalar_lea.sflag [#allocation7], %s567
        %s569 = sand.u32 %s64, 1
        %s570 = smul.addr %s569, 128
        %s571 = scalar_lea.vmem [#allocation6], %s570
        %p572 = pneg %p77
        %p573 = pneg %p74
        %s574 = sand.u32 %s35, 1
        %s575 = scalar_lea.sflag [#allocation10], %s574
        %s576 = sand.u32 %s92, 1
        %s577 = smul.addr %s576, 128
        %s578 = scalar_lea.vmem [#allocation9], %s577
        %p579 = pneg %p105
        %p580 = pneg %p102
        %p581 = scmp.lt.s32.totalorder %s40, 1
        %s582 = scalar_select %p581, %s40, 1
        %s583 = scalar_lea.vmem %s2, %s582
        %p584 = pneg %p131
        %p585 = pneg %p128
        %p586 = scmp.lt.s32.totalorder %s40, 1
        %s587 = scalar_select %p586, %s40, 1
        %s588 = scalar_lea.vmem %s3, %s587
        %p589 = pneg %p157
        %p590 = pneg %p154
        %p591 = pneg %p178
        %p592 = pneg %p175
        %p593 = pneg %p199
        %p594 = pneg %p196
        %p595 = pneg %p220
        %p596 = pneg %p217
        %p597 = pneg %p241
        %p598 = pneg %p238
        %p599 = pneg %p262
        %p600 = pneg %p259
        %p601 = pneg %p283
        %p602 = pneg %p280
        %p603 = pneg %p304
        %p604 = pneg %p301
        %p605 = pneg %p325
        %p606 = pneg %p322
        %p607 = scmp.lt.s32.totalorder %s40, 1
        %s608 = scalar_select %p607, %s40, 1
        %s609 = scalar_lea.vmem %s12, %s608
        %p610 = pneg %p351
        %p611 = pneg %p348
        %p612 = pneg %p379
        %p613 = pneg %p376
        %s614 = sand.u32 %s366, 1
        %s615 = scalar_lea.sflag [#allocation8], %s614
        %s616 = sand.u32 %s366, 1
        %s617 = smul.addr %s616, 128
        %s618 = scalar_lea.vmem [#allocation17], %s617
        %s619 = smul.u32 16, %s41
        %s620 = smul.u32 16, %s42
        %p621 = scmp.lt.s32.totalorder %s40, 1
        %s622 = scalar_select %p621, %s40, 1
        %s623 = scalar_lea.vmem %s2, %s622
        %p624 = scmp.lt.s32.totalorder %s40, 1
        %s625 = scalar_select %p624, %s40, 1
        %s626 = scalar_lea.vmem %s3, %s625
        %p627 = scmp.lt.s32.totalorder %s40, 1
        %s628 = scalar_select %p627, %s40, 1
        %s629 = scalar_lea.vmem %s12, %s628
        %s630 = smul.u32 16, %s41
        %v632 = vld [vmem:[%s623] sm:$0x1]
        %v633 = vld [vmem:[%s626] sm:$0x1]
        %p634 = scmp.eq.s32.totalorder %s42, 0
        // Predicated region
        $region97: #{tpu_custom_call.1} parent=71 // pred_check
          %p635 = pneg %p634
        $region98: #{tpu_custom_call.1} parent=71 // pred_check_branch
          %637 = sbr.rel (%p635) target = $region100
        $region99: #{tpu_custom_call.1} parent=71 // pred_region
          %v638 = vld [vmem:[%s537] sm:$0xff]
          %v639 = vld [vmem:[%s537 + $0x8] sm:$0xff]
          %v640 = vld [vmem:[%s537 + $0x10] sm:$0xff]
          %v641 = vld [vmem:[%s537 + $0x18] sm:$0xff]
          %v642 = vld [vmem:[%s537 + $0x20] sm:$0xff]
          %v643 = vld [vmem:[%s537 + $0x28] sm:$0xff]
          %v644 = vld [vmem:[%s537 + $0x30] sm:$0xff]
          %v645 = vld [vmem:[%s537 + $0x38] sm:$0xff]
          %v646 = vld [vmem:[%s537 + $0x40] sm:$0xff]
          %v647 = vld [vmem:[%s537 + $0x48] sm:$0xff]
          %v648 = vld [vmem:[%s537 + $0x50] sm:$0xff]
          %v649 = vld [vmem:[%s537 + $0x58] sm:$0xff]
          %v650 = vld [vmem:[%s537 + $0x60] sm:$0xff]
          %v651 = vld [vmem:[%s537 + $0x68] sm:$0xff]
          %v652 = vld [vmem:[%s537 + $0x70] sm:$0xff]
          %v653 = vld [vmem:[%s537 + $0x78] sm:$0xff]
          %v655 = vlaneseq
          %v656 = vshrl.u32 %v655, 7
          %v657 = vsub.s32 0, %v656
          %v658 = vrot.slane %v632, %v657
          %v660 = vmul.f32 %v638, %v658
          %v661 = vmul.f32 %v639, %v658
          %v662 = vmul.f32 %v640, %v658
          %v663 = vmul.f32 %v641, %v658
          %v664 = vmul.f32 %v642, %v658
          %v665 = vmul.f32 %v643, %v658
          %v666 = vmul.f32 %v644, %v658
          %v667 = vmul.f32 %v645, %v658
          %v668 = vmul.f32 %v646, %v658
          %v669 = vmul.f32 %v647, %v658
          %v670 = vmul.f32 %v648, %v658
          %v671 = vmul.f32 %v649, %v658
          %v672 = vmul.f32 %v650, %v658
          %v673 = vmul.f32 %v651, %v658
          %v674 = vmul.f32 %v652, %v658
          %v675 = vmul.f32 %v653, %v658
          %v677 = vlaneseq
          %v678 = vshrl.u32 %v677, 7
          %v679 = vsub.s32 0, %v678
          %v680 = vrot.slane %v633, %v679
          %v682 = vadd.f32 %v660, %v680
          %v683 = vadd.f32 %v661, %v680
          %v684 = vadd.f32 %v662, %v680
          %v685 = vadd.f32 %v663, %v680
          %v686 = vadd.f32 %v664, %v680
          %v687 = vadd.f32 %v665, %v680
          %v688 = vadd.f32 %v666, %v680
          %v689 = vadd.f32 %v667, %v680
          %v690 = vadd.f32 %v668, %v680
          %v691 = vadd.f32 %v669, %v680
          %v692 = vadd.f32 %v670, %v680
          %v693 = vadd.f32 %v671, %v680
          %v694 = vadd.f32 %v672, %v680
          %v695 = vadd.f32 %v673, %v680
          %v696 = vadd.f32 %v674, %v680
          %v697 = vadd.f32 %v675, %v680
          %v698 = vpack.c.bf16 %v683, %v682
          %v699 = vpack.c.bf16 %v685, %v684
          %v700 = vpack.c.bf16 %v687, %v686
          %v701 = vpack.c.bf16 %v689, %v688
          %v702 = vpack.c.bf16 %v691, %v690
          %v703 = vpack.c.bf16 %v693, %v692
          %v704 = vpack.c.bf16 %v695, %v694
          %v705 = vpack.c.bf16 %v697, %v696
          %v706 = vld [vmem:[#allocation11] sm:$0xf]
          %v707 = vld [vmem:[#allocation11 + $0x4] sm:$0xf]
          %v708 = vld [vmem:[#allocation11 + $0x8] sm:$0xf]
          %v709 = vld [vmem:[#allocation11 + $0xc] sm:$0xf]
          %v710 = vld [vmem:[#allocation11 + $0x10] sm:$0xf]
          %v711 = vld [vmem:[#allocation11 + $0x14] sm:$0xf]
          %v712 = vld [vmem:[#allocation11 + $0x18] sm:$0xf]
          %v713 = vld [vmem:[#allocation11 + $0x1c] sm:$0xf]
          %v714 = vld [vmem:[#allocation11 + $0x20] sm:$0xf]
          %v715 = vld [vmem:[#allocation11 + $0x24] sm:$0xf]
          %v716 = vld [vmem:[#allocation11 + $0x28] sm:$0xf]
          %v717 = vld [vmem:[#allocation11 + $0x2c] sm:$0xf]
          %v718 = vld [vmem:[#allocation11 + $0x30] sm:$0xf]
          %v719 = vld [vmem:[#allocation11 + $0x34] sm:$0xf]
          %v720 = vld [vmem:[#allocation11 + $0x38] sm:$0xf]
          %v721 = vld [vmem:[#allocation11 + $0x3c] sm:$0xf]
          %v722 = vld [vmem:[%s7] sm:$0x1]
          %v724 = vlaneseq
          %v725 = vshrl.u32 %v724, 7
          %v726 = vsub.s32 0, %v725
          %v727 = vrot.slane %v722, %v726
          %v745 = vunpack.c.l.b16 %v706
          %v746 = vunpack.c.l.b16 %v707
          %v747 = vunpack.c.l.b16 %v708
          %v748 = vunpack.c.l.b16 %v709
          %v749 = vunpack.c.l.b16 %v710
          %v750 = vunpack.c.l.b16 %v711
          %v751 = vunpack.c.l.b16 %v712
          %v752 = vunpack.c.l.b16 %v713
          %v753 = vunpack.c.l.b16 %v714
          %v754 = vunpack.c.l.b16 %v715
          %v755 = vunpack.c.l.b16 %v716
          %v756 = vunpack.c.l.b16 %v717
          %v757 = vunpack.c.l.b16 %v718
          %v758 = vunpack.c.l.b16 %v719
          %v759 = vunpack.c.l.b16 %v720
          %v760 = vunpack.c.l.b16 %v721
          %v761 = vpack.c.b16 %v746, %v745
          %v762 = vpack.c.b16 %v748, %v747
          %v763 = vpack.c.b16 %v750, %v749
          %v764 = vpack.c.b16 %v752, %v751
          %v765 = vpack.c.b16 %v754, %v753
          %v766 = vpack.c.b16 %v756, %v755
          %v767 = vpack.c.b16 %v758, %v757
          %v768 = vpack.c.b16 %v760, %v759
          %777 = vmatprep.subr.bf16.mxu0 0
          %778 = vmatpush1.bf16.msra.mxu0 %v761
          %779 = vmatprep.subr.bf16.mxu0 0
          %780 = vmatpush1.bf16.msra.mxu0 %v762
          %781 = vmatprep.subr.bf16.mxu0 0
          %782 = vmatpush1.bf16.msra.mxu0 %v763
          %783 = vmatprep.subr.bf16.mxu0 0
          %784 = vmatpush1.bf16.msra.mxu0 %v764
          %785 = vmatprep.subr.bf16.mxu0 0
          %786 = vmatpush1.bf16.msra.mxu0 %v765
          %787 = vmatprep.subr.bf16.mxu0 0
          %788 = vmatpush1.bf16.msra.mxu0 %v766
          %789 = vmatprep.subr.bf16.mxu0 0
          %790 = vmatpush1.bf16.msra.mxu0 %v767
          %791 = vmatprep.subr.bf16.mxu0 0
          %792 = vmatpush1.bf16.msra.mxu0 %v768
          %793 = vmatprep.subr.bf16.mxu0 0
          %794 = vmatpush1.bf16.msra.mxu0 0
          %795 = vmatprep.subr.bf16.mxu0 0
          %796 = vmatpush1.bf16.msra.mxu0 0
          %797 = vmatprep.subr.bf16.mxu0 0
          %798 = vmatpush1.bf16.msra.mxu0 0
          %799 = vmatprep.subr.bf16.mxu0 0
          %800 = vmatpush1.bf16.msra.mxu0 0
          %801 = vmatprep.subr.bf16.mxu0 0
          %802 = vmatpush1.bf16.msra.mxu0 0
          %803 = vmatprep.subr.bf16.mxu0 0
          %804 = vmatpush1.bf16.msra.mxu0 0
          %805 = vmatprep.subr.bf16.mxu0 0
          %806 = vmatpush1.bf16.msra.mxu0 0
          %807 = vmatprep.subr.bf16.mxu0 0
          %808 = vmatpush1.bf16.msra.mxu0 0
          %809 = vmatprep.mubr.bf16.mxu0 0
          %810 = vmatmul.mubr.bf16.gmra.mrb[0].mxu0 %v698
          %v811 = vpop.f32.mrb[0].mxu0
          %v812 = vadd.f32 %v727, %v811
          %v813 = vpop.f32.mrb[0].mxu0
          %v814 = vpop.f32.mrb[0].mxu0
          %v815 = vadd.f32 %v727, %v814
          %v816 = vpop.f32.mrb[0].mxu0
          %817 = vmatprep.mubr.bf16.mxu0 0
          %818 = vmatmul.mubr.bf16.gmra.mrb[0].mxu0 %v699
          %v819 = vpop.f32.mrb[0].mxu0
          %v820 = vadd.f32 %v727, %v819
          %v821 = vpop.f32.mrb[0].mxu0
          %v822 = vpop.f32.mrb[0].mxu0
          %v823 = vadd.f32 %v727, %v822
          %v824 = vpop.f32.mrb[0].mxu0
          %825 = vmatprep.mubr.bf16.mxu0 0
          %826 = vmatmul.mubr.bf16.gmra.mrb[0].mxu0 %v700
          %v827 = vpop.f32.mrb[0].mxu0
          %v828 = vadd.f32 %v727, %v827
          %v829 = vpop.f32.mrb[0].mxu0
          %v830 = vpop.f32.mrb[0].mxu0
          %v831 = vadd.f32 %v727, %v830
          %v832 = vpop.f32.mrb[0].mxu0
          %833 = vmatprep.mubr.bf16.mxu0 0
          %834 = vmatmul.mubr.bf16.gmra.mrb[0].mxu0 %v701
          %v835 = vpop.f32.mrb[0].mxu0
          %v836 = vadd.f32 %v727, %v835
          %v837 = vpop.f32.mrb[0].mxu0
          %v838 = vpop.f32.mrb[0].mxu0
          %v839 = vadd.f32 %v727, %v838
          %v840 = vpop.f32.mrb[0].mxu0
          %841 = vmatprep.mubr.bf16.mxu0 0
          %842 = vmatmul.mubr.bf16.gmra.mrb[0].mxu0 %v702
          %v843 = vpop.f32.mrb[0].mxu0
          %v844 = vadd.f32 %v727, %v843
          %v845 = vpop.f32.mrb[0].mxu0
          %v846 = vpop.f32.mrb[0].mxu0
          %v847 = vadd.f32 %v727, %v846
          %v848 = vpop.f32.mrb[0].mxu0
          %849 = vmatprep.mubr.bf16.mxu0 0
          %850 = vmatmul.mubr.bf16.gmra.mrb[0].mxu0 %v703
          %v851 = vpop.f32.mrb[0].mxu0
          %v852 = vadd.f32 %v727, %v851
          %v853 = vpop.f32.mrb[0].mxu0
          %v854 = vpop.f32.mrb[0].mxu0
          %v855 = vadd.f32 %v727, %v854
          %v856 = vpop.f32.mrb[0].mxu0
          %857 = vmatprep.mubr.bf16.mxu0 0
          %858 = vmatmul.mubr.bf16.gmra.mrb[0].mxu0 %v704
          %v859 = vpop.f32.mrb[0].mxu0
          %v860 = vadd.f32 %v727, %v859
          %v861 = vpop.f32.mrb[0].mxu0
          %v862 = vpop.f32.mrb[0].mxu0
          %v863 = vadd.f32 %v727, %v862
          %v864 = vpop.f32.mrb[0].mxu0
          %865 = vmatprep.mubr.bf16.mxu0 0
          %866 = vmatmul.mubr.bf16.gmra.mrb[0].mxu0 %v705
          %v867 = vpop.f32.mrb[0].mxu0
          %v868 = vadd.f32 %v727, %v867
          %v869 = vpop.f32.mrb[0].mxu0
          %v870 = vpop.f32.mrb[0].mxu0
          %v871 = vadd.f32 %v727, %v870
          %v872 = vpop.f32.mrb[0].mxu0
          %873 = vdwg.mxu0
          %v874 = vmul.f32 %v812, 0.17677669
          %v875 = vmul.f32 %v815, 0.17677669
          %v876 = vmul.f32 %v820, 0.17677669
          %v877 = vmul.f32 %v823, 0.17677669
          %v878 = vmul.f32 %v828, 0.17677669
          %v879 = vmul.f32 %v831, 0.17677669
          %v880 = vmul.f32 %v836, 0.17677669
          %v881 = vmul.f32 %v839, 0.17677669
          %v882 = vmul.f32 %v844, 0.17677669
          %v883 = vmul.f32 %v847, 0.17677669
          %v884 = vmul.f32 %v852, 0.17677669
          %v885 = vmul.f32 %v855, 0.17677669
          %v886 = vmul.f32 %v860, 0.17677669
          %v887 = vmul.f32 %v863, 0.17677669
          %v888 = vmul.f32 %v868, 0.17677669
          %v889 = vmul.f32 %v871, 0.17677669
          %v890 = vpack.c.bf16 %v875, %v874
          %v891 = vpack.c.bf16 %v877, %v876
          %v892 = vpack.c.bf16 %v879, %v878
          %v893 = vpack.c.bf16 %v881, %v880
          %v894 = vpack.c.bf16 %v883, %v882
          %v895 = vpack.c.bf16 %v885, %v884
          %v896 = vpack.c.bf16 %v887, %v886
          %v897 = vpack.c.bf16 %v889, %v888
          %898 = vst [vmem:[#allocation2] sm:$0xff] %v890
          %899 = vst [vmem:[#allocation2 + $0x8] sm:$0xff] %v891
          %900 = vst [vmem:[#allocation2 + $0x10] sm:$0xff] %v892
          %901 = vst [vmem:[#allocation2 + $0x18] sm:$0xff] %v893
          %902 = vst [vmem:[#allocation2 + $0x20] sm:$0xff] %v894
          %903 = vst [vmem:[#allocation2 + $0x28] sm:$0xff] %v895
          %904 = vst [vmem:[#allocation2 + $0x30] sm:$0xff] %v896
          %905 = vst [vmem:[#allocation2 + $0x38] sm:$0xff] %v897
          %vm906 = vcmask 261120
          %907 = vst.msk [vmem:[#allocation3] sm:$0xff] %vm906, 0.0
          %908 = vst.msk [vmem:[#allocation3 + $0x8] sm:$0xff] %vm906, 0.0
          %909 = vst.msk [vmem:[#allocation3 + $0x10] sm:$0xff] %vm906, 0.0
          %910 = vst.msk [vmem:[#allocation3 + $0x18] sm:$0xff] %vm906, 0.0
          %911 = vst.msk [vmem:[#allocation3 + $0x20] sm:$0xff] %vm906, 0.0
          %912 = vst.msk [vmem:[#allocation3 + $0x28] sm:$0xff] %vm906, 0.0
          %913 = vst.msk [vmem:[#allocation3 + $0x30] sm:$0xff] %vm906, 0.0
          %914 = vst.msk [vmem:[#allocation3 + $0x38] sm:$0xff] %vm906, 0.0
          %915 = vst.msk [vmem:[#allocation3 + $0x40] sm:$0xff] %vm906, 0.0
          %916 = vst.msk [vmem:[#allocation3 + $0x48] sm:$0xff] %vm906, 0.0
          %917 = vst.msk [vmem:[#allocation3 + $0x50] sm:$0xff] %vm906, 0.0
          %918 = vst.msk [vmem:[#allocation3 + $0x58] sm:$0xff] %vm906, 0.0
          %919 = vst.msk [vmem:[#allocation3 + $0x60] sm:$0xff] %vm906, 0.0
          %920 = vst.msk [vmem:[#allocation3 + $0x68] sm:$0xff] %vm906, 0.0
          %921 = vst.msk [vmem:[#allocation3 + $0x70] sm:$0xff] %vm906, 0.0
          %922 = vst.msk [vmem:[#allocation3 + $0x78] sm:$0xff] %vm906, 0.0
          %923 = vst.msk [vmem:[#allocation3 + $0x80] sm:$0xff] %vm906, 0.0
          %924 = vst.msk [vmem:[#allocation3 + $0x88] sm:$0xff] %vm906, 0.0
          %925 = vst.msk [vmem:[#allocation3 + $0x90] sm:$0xff] %vm906, 0.0
          %926 = vst.msk [vmem:[#allocation3 + $0x98] sm:$0xff] %vm906, 0.0
          %927 = vst.msk [vmem:[#allocation3 + $0xa0] sm:$0xff] %vm906, 0.0
          %928 = vst.msk [vmem:[#allocation3 + $0xa8] sm:$0xff] %vm906, 0.0
          %929 = vst.msk [vmem:[#allocation3 + $0xb0] sm:$0xff] %vm906, 0.0
          %930 = vst.msk [vmem:[#allocation3 + $0xb8] sm:$0xff] %vm906, 0.0
          %931 = vst.msk [vmem:[#allocation3 + $0xc0] sm:$0xff] %vm906, 0.0
          %932 = vst.msk [vmem:[#allocation3 + $0xc8] sm:$0xff] %vm906, 0.0
          %933 = vst.msk [vmem:[#allocation3 + $0xd0] sm:$0xff] %vm906, 0.0
          %934 = vst.msk [vmem:[#allocation3 + $0xd8] sm:$0xff] %vm906, 0.0
          %935 = vst.msk [vmem:[#allocation3 + $0xe0] sm:$0xff] %vm906, 0.0
          %936 = vst.msk [vmem:[#allocation3 + $0xe8] sm:$0xff] %vm906, 0.0
          %937 = vst.msk [vmem:[#allocation3 + $0xf0] sm:$0xff] %vm906, 0.0
          %938 = vst.msk [vmem:[#allocation3 + $0xf8] sm:$0xff] %vm906, 0.0
          %939 = vst.msk [vmem:[#allocation3 + $0x100] sm:$0xff] %vm906, 0.0
          %940 = vst.msk [vmem:[#allocation3 + $0x108] sm:$0xff] %vm906, 0.0
          %941 = vst.msk [vmem:[#allocation3 + $0x110] sm:$0xff] %vm906, 0.0
          %942 = vst.msk [vmem:[#allocation3 + $0x118] sm:$0xff] %vm906, 0.0
          %943 = vst.msk [vmem:[#allocation3 + $0x120] sm:$0xff] %vm906, 0.0
          %944 = vst.msk [vmem:[#allocation3 + $0x128] sm:$0xff] %vm906, 0.0
          %945 = vst.msk [vmem:[#allocation3 + $0x130] sm:$0xff] %vm906, 0.0
          %946 = vst.msk [vmem:[#allocation3 + $0x138] sm:$0xff] %vm906, 0.0
          %947 = vst.msk [vmem:[#allocation3 + $0x140] sm:$0xff] %vm906, 0.0
          %948 = vst.msk [vmem:[#allocation3 + $0x148] sm:$0xff] %vm906, 0.0
          %949 = vst.msk [vmem:[#allocation3 + $0x150] sm:$0xff] %vm906, 0.0
          %950 = vst.msk [vmem:[#allocation3 + $0x158] sm:$0xff] %vm906, 0.0
          %951 = vst.msk [vmem:[#allocation3 + $0x160] sm:$0xff] %vm906, 0.0
          %952 = vst.msk [vmem:[#allocation3 + $0x168] sm:$0xff] %vm906, 0.0
          %953 = vst.msk [vmem:[#allocation3 + $0x170] sm:$0xff] %vm906, 0.0
          %954 = vst.msk [vmem:[#allocation3 + $0x178] sm:$0xff] %vm906, 0.0
          %955 = vst.msk [vmem:[#allocation3 + $0x180] sm:$0xff] %vm906, 0.0
          %956 = vst.msk [vmem:[#allocation3 + $0x188] sm:$0xff] %vm906, 0.0
          %957 = vst.msk [vmem:[#allocation3 + $0x190] sm:$0xff] %vm906, 0.0
          %958 = vst.msk [vmem:[#allocation3 + $0x198] sm:$0xff] %vm906, 0.0
          %959 = vst.msk [vmem:[#allocation3 + $0x1a0] sm:$0xff] %vm906, 0.0
          %960 = vst.msk [vmem:[#allocation3 + $0x1a8] sm:$0xff] %vm906, 0.0
          %961 = vst.msk [vmem:[#allocation3 + $0x1b0] sm:$0xff] %vm906, 0.0
          %962 = vst.msk [vmem:[#allocation3 + $0x1b8] sm:$0xff] %vm906, 0.0
          %963 = vst.msk [vmem:[#allocation3 + $0x1c0] sm:$0xff] %vm906, 0.0
          %964 = vst.msk [vmem:[#allocation3 + $0x1c8] sm:$0xff] %vm906, 0.0
          %965 = vst.msk [vmem:[#allocation3 + $0x1d0] sm:$0xff] %vm906, 0.0
          %966 = vst.msk [vmem:[#allocation3 + $0x1d8] sm:$0xff] %vm906, 0.0
          %967 = vst.msk [vmem:[#allocation3 + $0x1e0] sm:$0xff] %vm906, 0.0
          %968 = vst.msk [vmem:[#allocation3 + $0x1e8] sm:$0xff] %vm906, 0.0
          %969 = vst.msk [vmem:[#allocation3 + $0x1f0] sm:$0xff] %vm906, 0.0
          %970 = vst.msk [vmem:[#allocation3 + $0x1f8] sm:$0xff] %vm906, 0.0
          %vm971 = vcmask 7168
          %972 = vst.msk [vmem:[#allocation4] sm:$0xff] %vm971, -inf
          %973 = vst.msk [vmem:[#allocation4 + $0x8] sm:$0xff] %vm971, -inf
          %974 = vst.msk [vmem:[#allocation4 + $0x10] sm:$0xff] %vm971, -inf
          %975 = vst.msk [vmem:[#allocation4 + $0x18] sm:$0xff] %vm971, -inf
          %976 = vst.msk [vmem:[#allocation4 + $0x20] sm:$0xff] %vm971, -inf
          %977 = vst.msk [vmem:[#allocation4 + $0x28] sm:$0xff] %vm971, -inf
          %978 = vst.msk [vmem:[#allocation4 + $0x30] sm:$0xff] %vm971, -inf
          %979 = vst.msk [vmem:[#allocation4 + $0x38] sm:$0xff] %vm971, -inf
          %980 = vst.msk [vmem:[#allocation4 + $0x40] sm:$0xff] %vm971, -inf
          %981 = vst.msk [vmem:[#allocation4 + $0x48] sm:$0xff] %vm971, -inf
          %982 = vst.msk [vmem:[#allocation4 + $0x50] sm:$0xff] %vm971, -inf
          %983 = vst.msk [vmem:[#allocation4 + $0x58] sm:$0xff] %vm971, -inf
          %984 = vst.msk [vmem:[#allocation4 + $0x60] sm:$0xff] %vm971, -inf
          %985 = vst.msk [vmem:[#allocation4 + $0x68] sm:$0xff] %vm971, -inf
          %986 = vst.msk [vmem:[#allocation4 + $0x70] sm:$0xff] %vm971, -inf
          %987 = vst.msk [vmem:[#allocation4 + $0x78] sm:$0xff] %vm971, -inf
          %988 = vst.msk [vmem:[#allocation4 + $0x80] sm:$0xff] %vm971, -inf
          %989 = vst.msk [vmem:[#allocation4 + $0x88] sm:$0xff] %vm971, -inf
          %990 = vst.msk [vmem:[#allocation4 + $0x90] sm:$0xff] %vm971, -inf
          %991 = vst.msk [vmem:[#allocation4 + $0x98] sm:$0xff] %vm971, -inf
          %992 = vst.msk [vmem:[#allocation4 + $0xa0] sm:$0xff] %vm971, -inf
          %993 = vst.msk [vmem:[#allocation4 + $0xa8] sm:$0xff] %vm971, -inf
          %994 = vst.msk [vmem:[#allocation4 + $0xb0] sm:$0xff] %vm971, -inf
          %995 = vst.msk [vmem:[#allocation4 + $0xb8] sm:$0xff] %vm971, -inf
          %996 = vst.msk [vmem:[#allocation4 + $0xc0] sm:$0xff] %vm971, -inf
          %997 = vst.msk [vmem:[#allocation4 + $0xc8] sm:$0xff] %vm971, -inf
          %998 = vst.msk [vmem:[#allocation4 + $0xd0] sm:$0xff] %vm971, -inf
          %999 = vst.msk [vmem:[#allocation4 + $0xd8] sm:$0xff] %vm971, -inf
          %1000 = vst.msk [vmem:[#allocation4 + $0xe0] sm:$0xff] %vm971, -inf
          %1001 = vst.msk [vmem:[#allocation4 + $0xe8] sm:$0xff] %vm971, -inf
          %1002 = vst.msk [vmem:[#allocation4 + $0xf0] sm:$0xff] %vm971, -inf
          %1003 = vst.msk [vmem:[#allocation4 + $0xf8] sm:$0xff] %vm971, -inf
          %1004 = vst.msk [vmem:[#allocation4 + $0x100] sm:$0xff] %vm971, -inf
          %1005 = vst.msk [vmem:[#allocation4 + $0x108] sm:$0xff] %vm971, -inf
          %1006 = vst.msk [vmem:[#allocation4 + $0x110] sm:$0xff] %vm971, -inf
          %1007 = vst.msk [vmem:[#allocation4 + $0x118] sm:$0xff] %vm971, -inf
          %1008 = vst.msk [vmem:[#allocation4 + $0x120] sm:$0xff] %vm971, -inf
          %1009 = vst.msk [vmem:[#allocation4 + $0x128] sm:$0xff] %vm971, -inf
          %1010 = vst.msk [vmem:[#allocation4 + $0x130] sm:$0xff] %vm971, -inf
          %1011 = vst.msk [vmem:[#allocation4 + $0x138] sm:$0xff] %vm971, -inf
          %1012 = vst.msk [vmem:[#allocation4 + $0x140] sm:$0xff] %vm971, -inf
          %1013 = vst.msk [vmem:[#allocation4 + $0x148] sm:$0xff] %vm971, -inf
          %1014 = vst.msk [vmem:[#allocation4 + $0x150] sm:$0xff] %vm971, -inf
          %1015 = vst.msk [vmem:[#allocation4 + $0x158] sm:$0xff] %vm971, -inf
          %1016 = vst.msk [vmem:[#allocation4 + $0x160] sm:$0xff] %vm971, -inf
          %1017 = vst.msk [vmem:[#allocation4 + $0x168] sm:$0xff] %vm971, -inf
          %1018 = vst.msk [vmem:[#allocation4 + $0x170] sm:$0xff] %vm971, -inf
          %1019 = vst.msk [vmem:[#allocation4 + $0x178] sm:$0xff] %vm971, -inf
          %1020 = vst.msk [vmem:[#allocation4 + $0x180] sm:$0xff] %vm971, -inf
          %1021 = vst.msk [vmem:[#allocation4 + $0x188] sm:$0xff] %vm971, -inf
          %1022 = vst.msk [vmem:[#allocation4 + $0x190] sm:$0xff] %vm971, -inf
          %1023 = vst.msk [vmem:[#allocation4 + $0x198] sm:$0xff] %vm971, -inf
          %1024 = vst.msk [vmem:[#allocation4 + $0x1a0] sm:$0xff] %vm971, -inf
          %1025 = vst.msk [vmem:[#allocation4 + $0x1a8] sm:$0xff] %vm971, -inf
          %1026 = vst.msk [vmem:[#allocation4 + $0x1b0] sm:$0xff] %vm971, -inf
          %1027 = vst.msk [vmem:[#allocation4 + $0x1b8] sm:$0xff] %vm971, -inf
          %1028 = vst.msk [vmem:[#allocation4 + $0x1c0] sm:$0xff] %vm971, -inf
          %1029 = vst.msk [vmem:[#allocation4 + $0x1c8] sm:$0xff] %vm971, -inf
          %1030 = vst.msk [vmem:[#allocation4 + $0x1d0] sm:$0xff] %vm971, -inf
          %1031 = vst.msk [vmem:[#allocation4 + $0x1d8] sm:$0xff] %vm971, -inf
          %1032 = vst.msk [vmem:[#allocation4 + $0x1e0] sm:$0xff] %vm971, -inf
          %1033 = vst.msk [vmem:[#allocation4 + $0x1e8] sm:$0xff] %vm971, -inf
          %1034 = vst.msk [vmem:[#allocation4 + $0x1f0] sm:$0xff] %vm971, -inf
          %1035 = vst.msk [vmem:[#allocation4 + $0x1f8] sm:$0xff] %vm971, -inf
          %1036 = vst.msk [vmem:[#allocation5] sm:$0xff] %vm971, 0.0
          %1037 = vst.msk [vmem:[#allocation5 + $0x8] sm:$0xff] %vm971, 0.0
          %1038 = vst.msk [vmem:[#allocation5 + $0x10] sm:$0xff] %vm971, 0.0
          %1039 = vst.msk [vmem:[#allocation5 + $0x18] sm:$0xff] %vm971, 0.0
          %1040 = vst.msk [vmem:[#allocation5 + $0x20] sm:$0xff] %vm971, 0.0
          %1041 = vst.msk [vmem:[#allocation5 + $0x28] sm:$0xff] %vm971, 0.0
          %1042 = vst.msk [vmem:[#allocation5 + $0x30] sm:$0xff] %vm971, 0.0
          %1043 = vst.msk [vmem:[#allocation5 + $0x38] sm:$0xff] %vm971, 0.0
          %1044 = vst.msk [vmem:[#allocation5 + $0x40] sm:$0xff] %vm971, 0.0
          %1045 = vst.msk [vmem:[#allocation5 + $0x48] sm:$0xff] %vm971, 0.0
          %1046 = vst.msk [vmem:[#allocation5 + $0x50] sm:$0xff] %vm971, 0.0
          %1047 = vst.msk [vmem:[#allocation5 + $0x58] sm:$0xff] %vm971, 0.0
          %1048 = vst.msk [vmem:[#allocation5 + $0x60] sm:$0xff] %vm971, 0.0
          %1049 = vst.msk [vmem:[#allocation5 + $0x68] sm:$0xff] %vm971, 0.0
          %1050 = vst.msk [vmem:[#allocation5 + $0x70] sm:$0xff] %vm971, 0.0
          %1051 = vst.msk [vmem:[#allocation5 + $0x78] sm:$0xff] %vm971, 0.0
          %1052 = vst.msk [vmem:[#allocation5 + $0x80] sm:$0xff] %vm971, 0.0
          %1053 = vst.msk [vmem:[#allocation5 + $0x88] sm:$0xff] %vm971, 0.0
          %1054 = vst.msk [vmem:[#allocation5 + $0x90] sm:$0xff] %vm971, 0.0
          %1055 = vst.msk [vmem:[#allocation5 + $0x98] sm:$0xff] %vm971, 0.0
          %1056 = vst.msk [vmem:[#allocation5 + $0xa0] sm:$0xff] %vm971, 0.0
          %1057 = vst.msk [vmem:[#allocation5 + $0xa8] sm:$0xff] %vm971, 0.0
          %1058 = vst.msk [vmem:[#allocation5 + $0xb0] sm:$0xff] %vm971, 0.0
          %1059 = vst.msk [vmem:[#allocation5 + $0xb8] sm:$0xff] %vm971, 0.0
          %1060 = vst.msk [vmem:[#allocation5 + $0xc0] sm:$0xff] %vm971, 0.0
          %1061 = vst.msk [vmem:[#allocation5 + $0xc8] sm:$0xff] %vm971, 0.0
          %1062 = vst.msk [vmem:[#allocation5 + $0xd0] sm:$0xff] %vm971, 0.0
          %1063 = vst.msk [vmem:[#allocation5 + $0xd8] sm:$0xff] %vm971, 0.0
          %1064 = vst.msk [vmem:[#allocation5 + $0xe0] sm:$0xff] %vm971, 0.0
          %1065 = vst.msk [vmem:[#allocation5 + $0xe8] sm:$0xff] %vm971, 0.0
          %1066 = vst.msk [vmem:[#allocation5 + $0xf0] sm:$0xff] %vm971, 0.0
          %1067 = vst.msk [vmem:[#allocation5 + $0xf8] sm:$0xff] %vm971, 0.0
          %1068 = vst.msk [vmem:[#allocation5 + $0x100] sm:$0xff] %vm971, 0.0
          %1069 = vst.msk [vmem:[#allocation5 + $0x108] sm:$0xff] %vm971, 0.0
          %1070 = vst.msk [vmem:[#allocation5 + $0x110] sm:$0xff] %vm971, 0.0
          %1071 = vst.msk [vmem:[#allocation5 + $0x118] sm:$0xff] %vm971, 0.0
          %1072 = vst.msk [vmem:[#allocation5 + $0x120] sm:$0xff] %vm971, 0.0
          %1073 = vst.msk [vmem:[#allocation5 + $0x128] sm:$0xff] %vm971, 0.0
          %1074 = vst.msk [vmem:[#allocation5 + $0x130] sm:$0xff] %vm971, 0.0
          %1075 = vst.msk [vmem:[#allocation5 + $0x138] sm:$0xff] %vm971, 0.0
          %1076 = vst.msk [vmem:[#allocation5 + $0x140] sm:$0xff] %vm971, 0.0
          %1077 = vst.msk [vmem:[#allocation5 + $0x148] sm:$0xff] %vm971, 0.0
          %1078 = vst.msk [vmem:[#allocation5 + $0x150] sm:$0xff] %vm971, 0.0
          %1079 = vst.msk [vmem:[#allocation5 + $0x158] sm:$0xff] %vm971, 0.0
          %1080 = vst.msk [vmem:[#allocation5 + $0x160] sm:$0xff] %vm971, 0.0
          %1081 = vst.msk [vmem:[#allocation5 + $0x168] sm:$0xff] %vm971, 0.0
          %1082 = vst.msk [vmem:[#allocation5 + $0x170] sm:$0xff] %vm971, 0.0
          %1083 = vst.msk [vmem:[#allocation5 + $0x178] sm:$0xff] %vm971, 0.0
          %1084 = vst.msk [vmem:[#allocation5 + $0x180] sm:$0xff] %vm971, 0.0
          %1085 = vst.msk [vmem:[#allocation5 + $0x188] sm:$0xff] %vm971, 0.0
          %1086 = vst.msk [vmem:[#allocation5 + $0x190] sm:$0xff] %vm971, 0.0
          %1087 = vst.msk [vmem:[#allocation5 + $0x198] sm:$0xff] %vm971, 0.0
          %1088 = vst.msk [vmem:[#allocation5 + $0x1a0] sm:$0xff] %vm971, 0.0
          %1089 = vst.msk [vmem:[#allocation5 + $0x1a8] sm:$0xff] %vm971, 0.0
          %1090 = vst.msk [vmem:[#allocation5 + $0x1b0] sm:$0xff] %vm971, 0.0
          %1091 = vst.msk [vmem:[#allocation5 + $0x1b8] sm:$0xff] %vm971, 0.0
          %1092 = vst.msk [vmem:[#allocation5 + $0x1c0] sm:$0xff] %vm971, 0.0
          %1093 = vst.msk [vmem:[#allocation5 + $0x1c8] sm:$0xff] %vm971, 0.0
          %1094 = vst.msk [vmem:[#allocation5 + $0x1d0] sm:$0xff] %vm971, 0.0
          %1095 = vst.msk [vmem:[#allocation5 + $0x1d8] sm:$0xff] %vm971, 0.0
          %1096 = vst.msk [vmem:[#allocation5 + $0x1e0] sm:$0xff] %vm971, 0.0
          %1097 = vst.msk [vmem:[#allocation5 + $0x1e8] sm:$0xff] %vm971, 0.0
          %1098 = vst.msk [vmem:[#allocation5 + $0x1f0] sm:$0xff] %vm971, 0.0
          %1099 = vst.msk [vmem:[#allocation5 + $0x1f8] sm:$0xff] %vm971, 0.0
        $region100: #{tpu_custom_call.1} parent=71 // pred_fallthru
          _
        %v1100 = vld [vmem:[%s546] sm:$0xff]
        %v1101 = vld [vmem:[%s546 + $0x8] sm:$0xff]
        %v1102 = vld [vmem:[%s546 + $0x10] sm:$0xff]
        %v1103 = vld [vmem:[%s546 + $0x18] sm:$0xff]
        %v1104 = vld [vmem:[%s546 + $0x20] sm:$0xff]
        %v1105 = vld [vmem:[%s546 + $0x28] sm:$0xff]
        %v1106 = vld [vmem:[%s546 + $0x30] sm:$0xff]
        %v1107 = vld [vmem:[%s546 + $0x38] sm:$0xff]
        %v1108 = vld [vmem:[%s546 + $0x40] sm:$0xff]
        %v1109 = vld [vmem:[%s546 + $0x48] sm:$0xff]
        %v1110 = vld [vmem:[%s546 + $0x50] sm:$0xff]
        %v1111 = vld [vmem:[%s546 + $0x58] sm:$0xff]
        %v1112 = vld [vmem:[%s546 + $0x60] sm:$0xff]
        %v1113 = vld [vmem:[%s546 + $0x68] sm:$0xff]
        %v1114 = vld [vmem:[%s546 + $0x70] sm:$0xff]
        %v1115 = vld [vmem:[%s546 + $0x78] sm:$0xff]
        %v1117 = vlaneseq
        %v1118 = vshrl.u32 %v1117, 7
        %v1119 = vsub.s32 0, %v1118
        %v1120 = vrot.slane %v632, %v1119
        %v1122 = vmul.f32 %v1100, %v1120
        %v1123 = vmul.f32 %v1101, %v1120
        %v1124 = vmul.f32 %v1102, %v1120
        %v1125 = vmul.f32 %v1103, %v1120
        %v1126 = vmul.f32 %v1104, %v1120
        %v1127 = vmul.f32 %v1105, %v1120
        %v1128 = vmul.f32 %v1106, %v1120
        %v1129 = vmul.f32 %v1107, %v1120
        %v1130 = vmul.f32 %v1108, %v1120
        %v1131 = vmul.f32 %v1109, %v1120
        %v1132 = vmul.f32 %v1110, %v1120
        %v1133 = vmul.f32 %v1111, %v1120
        %v1134 = vmul.f32 %v1112, %v1120
        %v1135 = vmul.f32 %v1113, %v1120
        %v1136 = vmul.f32 %v1114, %v1120
        %v1137 = vmul.f32 %v1115, %v1120
        %v1139 = vlaneseq
        %v1140 = vshrl.u32 %v1139, 7
        %v1141 = vsub.s32 0, %v1140
        %v1142 = vrot.slane %v633, %v1141
        %v1144 = vadd.f32 %v1122, %v1142
        %v1145 = vadd.f32 %v1123, %v1142
        %v1146 = vadd.f32 %v1124, %v1142
        %v1147 = vadd.f32 %v1125, %v1142
        %v1148 = vadd.f32 %v1126, %v1142
        %v1149 = vadd.f32 %v1127, %v1142
        %v1150 = vadd.f32 %v1128, %v1142
        %v1151 = vadd.f32 %v1129, %v1142
        %v1152 = vadd.f32 %v1130, %v1142
        %v1153 = vadd.f32 %v1131, %v1142
        %v1154 = vadd.f32 %v1132, %v1142
        %v1155 = vadd.f32 %v1133, %v1142
        %v1156 = vadd.f32 %v1134, %v1142
        %v1157 = vadd.f32 %v1135, %v1142
        %v1158 = vadd.f32 %v1136, %v1142
        %v1159 = vadd.f32 %v1137, %v1142
        %v1160 = vpack.c.bf16 %v1145, %v1144
        %v1161 = vpack.c.bf16 %v1147, %v1146
        %v1162 = vpack.c.bf16 %v1149, %v1148
        %v1163 = vpack.c.bf16 %v1151, %v1150
        %v1164 = vpack.c.bf16 %v1153, %v1152
        %v1165 = vpack.c.bf16 %v1155, %v1154
        %v1166 = vpack.c.bf16 %v1157, %v1156
        %v1167 = vpack.c.bf16 %v1159, %v1158
        %v1168 = vld [vmem:[#allocation12] sm:$0xf]
        %v1169 = vld [vmem:[#allocation12 + $0x4] sm:$0xf]
        %v1170 = vld [vmem:[#allocation12 + $0x8] sm:$0xf]
        %v1171 = vld [vmem:[#allocation12 + $0xc] sm:$0xf]
        %v1172 = vld [vmem:[#allocation12 + $0x10] sm:$0xf]
        %v1173 = vld [vmem:[#allocation12 + $0x14] sm:$0xf]
        %v1174 = vld [vmem:[#allocation12 + $0x18] sm:$0xf]
        %v1175 = vld [vmem:[#allocation12 + $0x1c] sm:$0xf]
        %v1176 = vld [vmem:[#allocation12 + $0x20] sm:$0xf]
        %v1177 = vld [vmem:[#allocation12 + $0x24] sm:$0xf]
        %v1178 = vld [vmem:[#allocation12 + $0x28] sm:$0xf]
        %v1179 = vld [vmem:[#allocation12 + $0x2c] sm:$0xf]
        %v1180 = vld [vmem:[#allocation12 + $0x30] sm:$0xf]
        %v1181 = vld [vmem:[#allocation12 + $0x34] sm:$0xf]
        %v1182 = vld [vmem:[#allocation12 + $0x38] sm:$0xf]
        %v1183 = vld [vmem:[#allocation12 + $0x3c] sm:$0xf]
        %v1184 = vld [vmem:[%s8] sm:$0x1]
        %v1186 = vlaneseq
        %v1187 = vshrl.u32 %v1186, 7
        %v1188 = vsub.s32 0, %v1187
        %v1189 = vrot.slane %v1184, %v1188
        %v1207 = vunpack.c.l.b16 %v1168
        %v1208 = vunpack.c.l.b16 %v1169
        %v1209 = vunpack.c.l.b16 %v1170
        %v1210 = vunpack.c.l.b16 %v1171
        %v1211 = vunpack.c.l.b16 %v1172
        %v1212 = vunpack.c.l.b16 %v1173
        %v1213 = vunpack.c.l.b16 %v1174
        %v1214 = vunpack.c.l.b16 %v1175
        %v1215 = vunpack.c.l.b16 %v1176
        %v1216 = vunpack.c.l.b16 %v1177
        %v1217 = vunpack.c.l.b16 %v1178
        %v1218 = vunpack.c.l.b16 %v1179
        %v1219 = vunpack.c.l.b16 %v1180
        %v1220 = vunpack.c.l.b16 %v1181
        %v1221 = vunpack.c.l.b16 %v1182
        %v1222 = vunpack.c.l.b16 %v1183
        %v1223 = vpack.c.b16 %v1208, %v1207
        %v1224 = vpack.c.b16 %v1210, %v1209
        %v1225 = vpack.c.b16 %v1212, %v1211
        %v1226 = vpack.c.b16 %v1214, %v1213
        %v1227 = vpack.c.b16 %v1216, %v1215
        %v1228 = vpack.c.b16 %v1218, %v1217
        %v1229 = vpack.c.b16 %v1220, %v1219
        %v1230 = vpack.c.b16 %v1222, %v1221
        %1239 = vmatprep.subr.bf16.mxu0 0
        %1240 = vmatpush1.bf16.msra.mxu0 %v1223
        %1241 = vmatprep.subr.bf16.mxu0 0
        %1242 = vmatpush1.bf16.msra.mxu0 %v1224
        %1243 = vmatprep.subr.bf16.mxu0 0
        %1244 = vmatpush1.bf16.msra.mxu0 %v1225
        %1245 = vmatprep.subr.bf16.mxu0 0
        %1246 = vmatpush1.bf16.msra.mxu0 %v1226
        %1247 = vmatprep.subr.bf16.mxu0 0
        %1248 = vmatpush1.bf16.msra.mxu0 %v1227
        %1249 = vmatprep.subr.bf16.mxu0 0
        %1250 = vmatpush1.bf16.msra.mxu0 %v1228
        %1251 = vmatprep.subr.bf16.mxu0 0
        %1252 = vmatpush1.bf16.msra.mxu0 %v1229
        %1253 = vmatprep.subr.bf16.mxu0 0
        %1254 = vmatpush1.bf16.msra.mxu0 %v1230
        %1255 = vmatprep.subr.bf16.mxu0 0
        %1256 = vmatpush1.bf16.msra.mxu0 0
        %1257 = vmatprep.subr.bf16.mxu0 0
        %1258 = vmatpush1.bf16.msra.mxu0 0
        %1259 = vmatprep.subr.bf16.mxu0 0
        %1260 = vmatpush1.bf16.msra.mxu0 0
        %1261 = vmatprep.subr.bf16.mxu0 0
        %1262 = vmatpush1.bf16.msra.mxu0 0
        %1263 = vmatprep.subr.bf16.mxu0 0
        %1264 = vmatpush1.bf16.msra.mxu0 0
        %1265 = vmatprep.subr.bf16.mxu0 0
        %1266 = vmatpush1.bf16.msra.mxu0 0
        %1267 = vmatprep.subr.bf16.mxu0 0
        %1268 = vmatpush1.bf16.msra.mxu0 0
        %1269 = vmatprep.subr.bf16.mxu0 0
        %1270 = vmatpush1.bf16.msra.mxu0 0
        %1271 = vmatprep.mubr.bf16.mxu0 0
        %1272 = vmatmul.mubr.bf16.gmra.mrb[0].mxu0 %v1160
        %v1273 = vpop.f32.mrb[0].mxu0
        %v1274 = vadd.f32 %v1189, %v1273
        %v1275 = vpop.f32.mrb[0].mxu0
        %v1276 = vpop.f32.mrb[0].mxu0
        %v1277 = vadd.f32 %v1189, %v1276
        %v1278 = vpop.f32.mrb[0].mxu0
        %1279 = vmatprep.mubr.bf16.mxu0 0
        %1280 = vmatmul.mubr.bf16.gmra.mrb[0].mxu0 %v1161
        %v1281 = vpop.f32.mrb[0].mxu0
        %v1282 = vadd.f32 %v1189, %v1281
        %v1283 = vpop.f32.mrb[0].mxu0
        %v1284 = vpop.f32.mrb[0].mxu0
        %v1285 = vadd.f32 %v1189, %v1284
        %v1286 = vpop.f32.mrb[0].mxu0
        %1287 = vmatprep.mubr.bf16.mxu0 0
        %1288 = vmatmul.mubr.bf16.gmra.mrb[0].mxu0 %v1162
        %v1289 = vpop.f32.mrb[0].mxu0
        %v1290 = vadd.f32 %v1189, %v1289
        %v1291 = vpop.f32.mrb[0].mxu0
        %v1292 = vpop.f32.mrb[0].mxu0
        %v1293 = vadd.f32 %v1189, %v1292
        %v1294 = vpop.f32.mrb[0].mxu0
        %1295 = vmatprep.mubr.bf16.mxu0 0
        %1296 = vmatmul.mubr.bf16.gmra.mrb[0].mxu0 %v1163
        %v1297 = vpop.f32.mrb[0].mxu0
        %v1298 = vadd.f32 %v1189, %v1297
        %v1299 = vpop.f32.mrb[0].mxu0
        %v1300 = vpop.f32.mrb[0].mxu0
        %v1301 = vadd.f32 %v1189, %v1300
        %v1302 = vpop.f32.mrb[0].mxu0
        %1303 = vmatprep.mubr.bf16.mxu0 0
        %1304 = vmatmul.mubr.bf16.gmra.mrb[0].mxu0 %v1164
        %v1305 = vpop.f32.mrb[0].mxu0
        %v1306 = vadd.f32 %v1189, %v1305
        %v1307 = vpop.f32.mrb[0].mxu0
        %v1308 = vpop.f32.mrb[0].mxu0
        %v1309 = vadd.f32 %v1189, %v1308
        %v1310 = vpop.f32.mrb[0].mxu0
        %1311 = vmatprep.mubr.bf16.mxu0 0
        %1312 = vmatmul.mubr.bf16.gmra.mrb[0].mxu0 %v1165
        %v1313 = vpop.f32.mrb[0].mxu0
        %v1314 = vadd.f32 %v1189, %v1313
        %v1315 = vpop.f32.mrb[0].mxu0
        %v1316 = vpop.f32.mrb[0].mxu0
        %v1317 = vadd.f32 %v1189, %v1316
        %v1318 = vpop.f32.mrb[0].mxu0
        %1319 = vmatprep.mubr.bf16.mxu0 0
        %1320 = vmatmul.mubr.bf16.gmra.mrb[0].mxu0 %v1166
        %v1321 = vpop.f32.mrb[0].mxu0
        %v1322 = vadd.f32 %v1189, %v1321
        %v1323 = vpop.f32.mrb[0].mxu0
        %v1324 = vpop.f32.mrb[0].mxu0
        %v1325 = vadd.f32 %v1189, %v1324
        %v1326 = vpop.f32.mrb[0].mxu0
        %1327 = vmatprep.mubr.bf16.mxu0 0
        %1328 = vmatmul.mubr.bf16.gmra.mrb[0].mxu0 %v1167
        %v1329 = vpop.f32.mrb[0].mxu0
        %v1330 = vadd.f32 %v1189, %v1329
        %v1331 = vpop.f32.mrb[0].mxu0
        %v1332 = vpop.f32.mrb[0].mxu0
        %v1333 = vadd.f32 %v1189, %v1332
        %v1334 = vpop.f32.mrb[0].mxu0
        %1335 = vdwg.mxu0
        %v1336 = vpack.c.bf16 %v1277, %v1274
        %v1337 = vpack.c.bf16 %v1285, %v1282
        %v1338 = vpack.c.bf16 %v1293, %v1290
        %v1339 = vpack.c.bf16 %v1301, %v1298
        %v1340 = vpack.c.bf16 %v1309, %v1306
        %v1341 = vpack.c.bf16 %v1317, %v1314
        %v1342 = vpack.c.bf16 %v1325, %v1322
        %v1343 = vpack.c.bf16 %v1333, %v1330
        %v1344 = vld [vmem:[#allocation14] sm:$0xf]
        %v1345 = vld [vmem:[#allocation14 + $0x4] sm:$0xf]
        %v1346 = vld [vmem:[#allocation14 + $0x8] sm:$0xf]
        %v1347 = vld [vmem:[#allocation14 + $0xc] sm:$0xf]
        %v1348 = vld [vmem:[#allocation14 + $0x10] sm:$0xf]
        %v1349 = vld [vmem:[#allocation14 + $0x14] sm:$0xf]
        %v1350 = vld [vmem:[#allocation14 + $0x18] sm:$0xf]
        %v1351 = vld [vmem:[#allocation14 + $0x1c] sm:$0xf]
        %v1352 = vld [vmem:[#allocation14 + $0x20] sm:$0xf]
        %v1353 = vld [vmem:[#allocation14 + $0x24] sm:$0xf]
        %v1354 = vld [vmem:[#allocation14 + $0x28] sm:$0xf]
        %v1355 = vld [vmem:[#allocation14 + $0x2c] sm:$0xf]
        %v1356 = vld [vmem:[#allocation14 + $0x30] sm:$0xf]
        %v1357 = vld [vmem:[#allocation14 + $0x34] sm:$0xf]
        %v1358 = vld [vmem:[#allocation14 + $0x38] sm:$0xf]
        %v1359 = vld [vmem:[#allocation14 + $0x3c] sm:$0xf]
        %v1360 = vld [vmem:[%s9] sm:$0x1]
        %v1362 = vlaneseq
        %v1363 = vshrl.u32 %v1362, 7
        %v1364 = vsub.s32 0, %v1363
        %v1365 = vrot.slane %v1360, %v1364
        %v1383 = vunpack.c.l.b16 %v1344
        %v1384 = vunpack.c.l.b16 %v1345
        %v1385 = vunpack.c.l.b16 %v1346
        %v1386 = vunpack.c.l.b16 %v1347
        %v1387 = vunpack.c.l.b16 %v1348
        %v1388 = vunpack.c.l.b16 %v1349
        %v1389 = vunpack.c.l.b16 %v1350
        %v1390 = vunpack.c.l.b16 %v1351
        %v1391 = vunpack.c.l.b16 %v1352
        %v1392 = vunpack.c.l.b16 %v1353
        %v1393 = vunpack.c.l.b16 %v1354
        %v1394 = vunpack.c.l.b16 %v1355
        %v1395 = vunpack.c.l.b16 %v1356
        %v1396 = vunpack.c.l.b16 %v1357
        %v1397 = vunpack.c.l.b16 %v1358
        %v1398 = vunpack.c.l.b16 %v1359
        %v1399 = vpack.c.b16 %v1384, %v1383
        %v1400 = vpack.c.b16 %v1386, %v1385
        %v1401 = vpack.c.b16 %v1388, %v1387
        %v1402 = vpack.c.b16 %v1390, %v1389
        %v1403 = vpack.c.b16 %v1392, %v1391
        %v1404 = vpack.c.b16 %v1394, %v1393
        %v1405 = vpack.c.b16 %v1396, %v1395
        %v1406 = vpack.c.b16 %v1398, %v1397
        %1415 = vmatprep.subr.bf16.mxu0 0
        %1416 = vmatpush1.bf16.msra.mxu0 %v1399
        %1417 = vmatprep.subr.bf16.mxu0 0
        %1418 = vmatpush1.bf16.msra.mxu0 %v1400
        %1419 = vmatprep.subr.bf16.mxu0 0
        %1420 = vmatpush1.bf16.msra.mxu0 %v1401
        %1421 = vmatprep.subr.bf16.mxu0 0
        %1422 = vmatpush1.bf16.msra.mxu0 %v1402
        %1423 = vmatprep.subr.bf16.mxu0 0
        %1424 = vmatpush1.bf16.msra.mxu0 %v1403
        %1425 = vmatprep.subr.bf16.mxu0 0
        %1426 = vmatpush1.bf16.msra.mxu0 %v1404
        %1427 = vmatprep.subr.bf16.mxu0 0
        %1428 = vmatpush1.bf16.msra.mxu0 %v1405
        %1429 = vmatprep.subr.bf16.mxu0 0
        %1430 = vmatpush1.bf16.msra.mxu0 %v1406
        %1431 = vmatprep.subr.bf16.mxu0 0
        %1432 = vmatpush1.bf16.msra.mxu0 0
        %1433 = vmatprep.subr.bf16.mxu0 0
        %1434 = vmatpush1.bf16.msra.mxu0 0
        %1435 = vmatprep.subr.bf16.mxu0 0
        %1436 = vmatpush1.bf16.msra.mxu0 0
        %1437 = vmatprep.subr.bf16.mxu0 0
        %1438 = vmatpush1.bf16.msra.mxu0 0
        %1439 = vmatprep.subr.bf16.mxu0 0
        %1440 = vmatpush1.bf16.msra.mxu0 0
        %1441 = vmatprep.subr.bf16.mxu0 0
        %1442 = vmatpush1.bf16.msra.mxu0 0
        %1443 = vmatprep.subr.bf16.mxu0 0
        %1444 = vmatpush1.bf16.msra.mxu0 0
        %1445 = vmatprep.subr.bf16.mxu0 0
        %1446 = vmatpush1.bf16.msra.mxu0 0
        %1447 = vmatprep.mubr.bf16.mxu0 0
        %1448 = vmatmul.mubr.bf16.gmra.mrb[0].mxu0 %v1160
        %v1449 = vpop.f32.mrb[0].mxu0
        %v1450 = vadd.f32 %v1365, %v1449
        %v1451 = vpop.f32.mrb[0].mxu0
        %v1452 = vpop.f32.mrb[0].mxu0
        %v1453 = vadd.f32 %v1365, %v1452
        %v1454 = vpop.f32.mrb[0].mxu0
        %1455 = vmatprep.mubr.bf16.mxu0 0
        %1456 = vmatmul.mubr.bf16.gmra.mrb[0].mxu0 %v1161
        %v1457 = vpop.f32.mrb[0].mxu0
        %v1458 = vadd.f32 %v1365, %v1457
        %v1459 = vpop.f32.mrb[0].mxu0
        %v1460 = vpop.f32.mrb[0].mxu0
        %v1461 = vadd.f32 %v1365, %v1460
        %v1462 = vpop.f32.mrb[0].mxu0
        %1463 = vmatprep.mubr.bf16.mxu0 0
        %1464 = vmatmul.mubr.bf16.gmra.mrb[0].mxu0 %v1162
        %v1465 = vpop.f32.mrb[0].mxu0
        %v1466 = vadd.f32 %v1365, %v1465
        %v1467 = vpop.f32.mrb[0].mxu0
        %v1468 = vpop.f32.mrb[0].mxu0
        %v1469 = vadd.f32 %v1365, %v1468
        %v1470 = vpop.f32.mrb[0].mxu0
        %1471 = vmatprep.mubr.bf16.mxu0 0
        %1472 = vmatmul.mubr.bf16.gmra.mrb[0].mxu0 %v1163
        %v1473 = vpop.f32.mrb[0].mxu0
        %v1474 = vadd.f32 %v1365, %v1473
        %v1475 = vpop.f32.mrb[0].mxu0
        %v1476 = vpop.f32.mrb[0].mxu0
        %v1477 = vadd.f32 %v1365, %v1476
        %v1478 = vpop.f32.mrb[0].mxu0
        %1479 = vmatprep.mubr.bf16.mxu0 0
        %1480 = vmatmul.mubr.bf16.gmra.mrb[0].mxu0 %v1164
        %v1481 = vpop.f32.mrb[0].mxu0
        %v1482 = vadd.f32 %v1365, %v1481
        %v1483 = vpop.f32.mrb[0].mxu0
        %v1484 = vpop.f32.mrb[0].mxu0
        %v1485 = vadd.f32 %v1365, %v1484
        %v1486 = vpop.f32.mrb[0].mxu0
        %1487 = vmatprep.mubr.bf16.mxu0 0
        %1488 = vmatmul.mubr.bf16.gmra.mrb[0].mxu0 %v1165
        %v1489 = vpop.f32.mrb[0].mxu0
        %v1490 = vadd.f32 %v1365, %v1489
        %v1491 = vpop.f32.mrb[0].mxu0
        %v1492 = vpop.f32.mrb[0].mxu0
        %v1493 = vadd.f32 %v1365, %v1492
        %v1494 = vpop.f32.mrb[0].mxu0
        %1495 = vmatprep.mubr.bf16.mxu0 0
        %1496 = vmatmul.mubr.bf16.gmra.mrb[0].mxu0 %v1166
        %v1497 = vpop.f32.mrb[0].mxu0
        %v1498 = vadd.f32 %v1365, %v1497
        %v1499 = vpop.f32.mrb[0].mxu0
        %v1500 = vpop.f32.mrb[0].mxu0
        %v1501 = vadd.f32 %v1365, %v1500
        %v1502 = vpop.f32.mrb[0].mxu0
        %1503 = vmatprep.mubr.bf16.mxu0 0
        %1504 = vmatmul.mubr.bf16.gmra.mrb[0].mxu0 %v1167
        %v1505 = vpop.f32.mrb[0].mxu0
        %v1506 = vadd.f32 %v1365, %v1505
        %v1507 = vpop.f32.mrb[0].mxu0
        %v1508 = vpop.f32.mrb[0].mxu0
        %v1509 = vadd.f32 %v1365, %v1508
        %v1510 = vpop.f32.mrb[0].mxu0
        %1511 = vdwg.mxu0
        %v1512 = vpack.c.bf16 %v1453, %v1450
        %v1513 = vpack.c.bf16 %v1461, %v1458
        %v1514 = vpack.c.bf16 %v1469, %v1466
        %v1515 = vpack.c.bf16 %v1477, %v1474
        %v1516 = vpack.c.bf16 %v1485, %v1482
        %v1517 = vpack.c.bf16 %v1493, %v1490
        %v1518 = vpack.c.bf16 %v1501, %v1498
        %v1519 = vpack.c.bf16 %v1509, %v1506
        %v1520 = vld [vmem:[#allocation2] sm:$0xff]
        %v1521 = vld [vmem:[#allocation2 + $0x8] sm:$0xff]
        %v1522 = vld [vmem:[#allocation2 + $0x10] sm:$0xff]
        %v1523 = vld [vmem:[#allocation2 + $0x18] sm:$0xff]
        %v1524 = vld [vmem:[#allocation2 + $0x20] sm:$0xff]
        %v1525 = vld [vmem:[#allocation2 + $0x28] sm:$0xff]
        %v1526 = vld [vmem:[#allocation2 + $0x30] sm:$0xff]
        %v1527 = vld [vmem:[#allocation2 + $0x38] sm:$0xff]
        %vm1528 = vcmask 261120
        %v1530 = vsel %vm1528, %v1520, 0
        %v1533 = vsel %vm1528, %v1521, 0
        %v1536 = vsel %vm1528, %v1522, 0
        %v1539 = vsel %vm1528, %v1523, 0
        %v1542 = vsel %vm1528, %v1524, 0
        %v1545 = vsel %vm1528, %v1525, 0
        %v1548 = vsel %vm1528, %v1526, 0
        %v1551 = vsel %vm1528, %v1527, 0
        %v1554 = vsel %vm1528, %v1336, 0
        %v1557 = vsel %vm1528, %v1337, 0
        %v1560 = vsel %vm1528, %v1338, 0
        %v1563 = vsel %vm1528, %v1339, 0
        %v1566 = vsel %vm1528, %v1340, 0
        %v1569 = vsel %vm1528, %v1341, 0
        %v1572 = vsel %vm1528, %v1342, 0
        %v1575 = vsel %vm1528, %v1343, 0
        %1577 = vmatprep.subr.bf16.mxu0 0
        %1578 = vmatpush1.bf16.xpose.msra.mxu0 %v1554
        %1579 = vmatprep.subr.bf16.mxu0 0
        %1580 = vmatpush1.bf16.xpose.msra.mxu0 %v1557
        %1581 = vmatprep.subr.bf16.mxu0 0
        %1582 = vmatpush1.bf16.xpose.msra.mxu0 %v1560
        %1583 = vmatprep.subr.bf16.mxu0 0
        %1584 = vmatpush1.bf16.xpose.msra.mxu0 %v1563
        %1585 = vmatprep.subr.bf16.mxu0 0
        %1586 = vmatpush1.bf16.xpose.msra.mxu0 %v1566
        %1587 = vmatprep.subr.bf16.mxu0 0
        %1588 = vmatpush1.bf16.xpose.msra.mxu0 %v1569
        %1589 = vmatprep.subr.bf16.mxu0 0
        %1590 = vmatpush1.bf16.xpose.msra.mxu0 %v1572
        %1591 = vmatprep.subr.bf16.mxu0 0
        %1592 = vmatpush1.bf16.xpose.msra.mxu0 %v1575
        %1593 = vmatprep.subr.bf16.mxu0 0
        %1594 = vmatpush1.bf16.xpose.msra.mxu0 0
        %1595 = vmatprep.subr.bf16.mxu0 0
        %1596 = vmatpush1.bf16.xpose.msra.mxu0 0
        %1597 = vmatprep.subr.bf16.mxu0 0
        %1598 = vmatpush1.bf16.xpose.msra.mxu0 0
        %1599 = vmatprep.subr.bf16.mxu0 0
        %1600 = vmatpush1.bf16.xpose.msra.mxu0 0
        %1601 = vmatprep.subr.bf16.mxu0 0
        %1602 = vmatpush1.bf16.xpose.msra.mxu0 0
        %1603 = vmatprep.subr.bf16.mxu0 0
        %1604 = vmatpush1.bf16.xpose.msra.mxu0 0
        %1605 = vmatprep.subr.bf16.mxu0 0
        %1606 = vmatpush1.bf16.xpose.msra.mxu0 0
        %1607 = vmatprep.subr.bf16.mxu0 0
        %1608 = vmatpush1.bf16.xpose.msra.mxu0 0
        %1609 = vmatprep.mubr.bf16.mxu0 0
        %1610 = vmatmul.mubr.bf16.gmra.mrb[0].mxu0 %v1530
        %v1611 = vpop.f32.mrb[0].mxu0
        %v1612 = vadd.f32 0.0, %v1611
        %v1613 = vpop.f32.mrb[0].mxu0
        %v1614 = vpop.f32.mrb[0].mxu0
        %v1615 = vadd.f32 0.0, %v1614
        %v1616 = vpop.f32.mrb[0].mxu0
        %1617 = vmatprep.mubr.bf16.mxu0 0
        %1618 = vmatmul.mubr.bf16.gmra.mrb[0].mxu0 %v1533
        %v1619 = vpop.f32.mrb[0].mxu0
        %v1620 = vadd.f32 0.0, %v1619
        %v1621 = vpop.f32.mrb[0].mxu0
        %v1622 = vpop.f32.mrb[0].mxu0
        %v1623 = vadd.f32 0.0, %v1622
        %v1624 = vpop.f32.mrb[0].mxu0
        %1625 = vmatprep.mubr.bf16.mxu0 0
        %1626 = vmatmul.mubr.bf16.gmra.mrb[0].mxu0 %v1536
        %v1627 = vpop.f32.mrb[0].mxu0
        %v1628 = vadd.f32 0.0, %v1627
        %v1629 = vpop.f32.mrb[0].mxu0
        %v1630 = vpop.f32.mrb[0].mxu0
        %v1631 = vadd.f32 0.0, %v1630
        %v1632 = vpop.f32.mrb[0].mxu0
        %1633 = vmatprep.mubr.bf16.mxu0 0
        %1634 = vmatmul.mubr.bf16.gmra.mrb[0].mxu0 %v1539
        %v1635 = vpop.f32.mrb[0].mxu0
        %v1636 = vadd.f32 0.0, %v1635
        %v1637 = vpop.f32.mrb[0].mxu0
        %v1638 = vpop.f32.mrb[0].mxu0
        %v1639 = vadd.f32 0.0, %v1638
        %v1640 = vpop.f32.mrb[0].mxu0
        %1641 = vmatprep.mubr.bf16.mxu0 0
        %1642 = vmatmul.mubr.bf16.gmra.mrb[0].mxu0 %v1542
        %v1643 = vpop.f32.mrb[0].mxu0
        %v1644 = vadd.f32 0.0, %v1643
        %v1645 = vpop.f32.mrb[0].mxu0
        %v1646 = vpop.f32.mrb[0].mxu0
        %v1647 = vadd.f32 0.0, %v1646
        %v1648 = vpop.f32.mrb[0].mxu0
        %1649 = vmatprep.mubr.bf16.mxu0 0
        %1650 = vmatmul.mubr.bf16.gmra.mrb[0].mxu0 %v1545
        %v1651 = vpop.f32.mrb[0].mxu0
        %v1652 = vadd.f32 0.0, %v1651
        %v1653 = vpop.f32.mrb[0].mxu0
        %v1654 = vpop.f32.mrb[0].mxu0
        %v1655 = vadd.f32 0.0, %v1654
        %v1656 = vpop.f32.mrb[0].mxu0
        %1657 = vmatprep.mubr.bf16.mxu0 0
        %1658 = vmatmul.mubr.bf16.gmra.mrb[0].mxu0 %v1548
        %v1659 = vpop.f32.mrb[0].mxu0
        %v1660 = vadd.f32 0.0, %v1659
        %v1661 = vpop.f32.mrb[0].mxu0
        %v1662 = vpop.f32.mrb[0].mxu0
        %v1663 = vadd.f32 0.0, %v1662
        %v1664 = vpop.f32.mrb[0].mxu0
        %1665 = vmatprep.mubr.bf16.mxu0 0
        %1666 = vmatmul.mubr.bf16.gmra.mrb[0].mxu0 %v1551
        %v1667 = vpop.f32.mrb[0].mxu0
        %v1668 = vadd.f32 0.0, %v1667
        %v1669 = vpop.f32.mrb[0].mxu0
        %v1670 = vpop.f32.mrb[0].mxu0
        %v1671 = vadd.f32 0.0, %v1670
        %v1672 = vpop.f32.mrb[0].mxu0
        %1673 = vdwg.mxu0
        %v1674 = vld [vmem:[#allocation4] sm:$0xff]
        %v1675 = vld [vmem:[#allocation4 + $0x8] sm:$0xff]
        %v1676 = vld [vmem:[#allocation4 + $0x10] sm:$0xff]
        %v1677 = vld [vmem:[#allocation4 + $0x18] sm:$0xff]
        %v1678 = vld [vmem:[#allocation4 + $0x20] sm:$0xff]
        %v1679 = vld [vmem:[#allocation4 + $0x28] sm:$0xff]
        %v1680 = vld [vmem:[#allocation4 + $0x30] sm:$0xff]
        %v1681 = vld [vmem:[#allocation4 + $0x38] sm:$0xff]
        %v1682 = vld [vmem:[#allocation4 + $0x40] sm:$0xff]
        %v1683 = vld [vmem:[#allocation4 + $0x48] sm:$0xff]
        %v1684 = vld [vmem:[#allocation4 + $0x50] sm:$0xff]
        %v1685 = vld [vmem:[#allocation4 + $0x58] sm:$0xff]
        %v1686 = vld [vmem:[#allocation4 + $0x60] sm:$0xff]
        %v1687 = vld [vmem:[#allocation4 + $0x68] sm:$0xff]
        %v1688 = vld [vmem:[#allocation4 + $0x70] sm:$0xff]
        %v1689 = vld [vmem:[#allocation4 + $0x78] sm:$0xff]
        %1690 = vmax.xlane.f32.xlu0 %v1612
        %v1691 = vpop.xlane.xlu0 %1690
        %1692 = vmax.xlane.f32.xlu0 %v1615
        %v1693 = vpop.xlane.xlu0 %1692
        %1694 = vmax.xlane.f32.xlu0 %v1620
        %v1695 = vpop.xlane.xlu0 %1694
        %1696 = vmax.xlane.f32.xlu0 %v1623
        %v1697 = vpop.xlane.xlu0 %1696
        %1698 = vmax.xlane.f32.xlu0 %v1628
        %v1699 = vpop.xlane.xlu0 %1698
        %1700 = vmax.xlane.f32.xlu0 %v1631
        %v1701 = vpop.xlane.xlu0 %1700
        %1702 = vmax.xlane.f32.xlu0 %v1636
        %v1703 = vpop.xlane.xlu0 %1702
        %1704 = vmax.xlane.f32.xlu0 %v1639
        %v1705 = vpop.xlane.xlu0 %1704
        %1706 = vmax.xlane.f32.xlu0 %v1644
        %v1707 = vpop.xlane.xlu0 %1706
        %1708 = vmax.xlane.f32.xlu0 %v1647
        %v1709 = vpop.xlane.xlu0 %1708
        %1710 = vmax.xlane.f32.xlu0 %v1652
        %v1711 = vpop.xlane.xlu0 %1710
        %1712 = vmax.xlane.f32.xlu0 %v1655
        %v1713 = vpop.xlane.xlu0 %1712
        %1714 = vmax.xlane.f32.xlu0 %v1660
        %v1715 = vpop.xlane.xlu0 %1714
        %1716 = vmax.xlane.f32.xlu0 %v1663
        %v1717 = vpop.xlane.xlu0 %1716
        %1718 = vmax.xlane.f32.xlu0 %v1668
        %v1719 = vpop.xlane.xlu0 %1718
        %1720 = vmax.xlane.f32.xlu0 %v1671
        %v1721 = vpop.xlane.xlu0 %1720
        %v1722 = vmax.f32 %v1674, %v1691
        %v1723 = vmax.f32 %v1675, %v1693
        %v1724 = vmax.f32 %v1676, %v1695
        %v1725 = vmax.f32 %v1677, %v1697
        %v1726 = vmax.f32 %v1678, %v1699
        %v1727 = vmax.f32 %v1679, %v1701
        %v1728 = vmax.f32 %v1680, %v1703
        %v1729 = vmax.f32 %v1681, %v1705
        %v1730 = vmax.f32 %v1682, %v1707
        %v1731 = vmax.f32 %v1683, %v1709
        %v1732 = vmax.f32 %v1684, %v1711
        %v1733 = vmax.f32 %v1685, %v1713
        %v1734 = vmax.f32 %v1686, %v1715
        %v1735 = vmax.f32 %v1687, %v1717
        %v1736 = vmax.f32 %v1688, %v1719
        %v1737 = vmax.f32 %v1689, %v1721
        %v1738 = vsub.f32 %v1674, %v1722
        %v1739 = vsub.f32 %v1675, %v1723
        %v1740 = vsub.f32 %v1676, %v1724
        %v1741 = vsub.f32 %v1677, %v1725
        %v1742 = vsub.f32 %v1678, %v1726
        %v1743 = vsub.f32 %v1679, %v1727
        %v1744 = vsub.f32 %v1680, %v1728
        %v1745 = vsub.f32 %v1681, %v1729
        %v1746 = vsub.f32 %v1682, %v1730
        %v1747 = vsub.f32 %v1683, %v1731
        %v1748 = vsub.f32 %v1684, %v1732
        %v1749 = vsub.f32 %v1685, %v1733
        %v1750 = vsub.f32 %v1686, %v1734
        %v1751 = vsub.f32 %v1687, %v1735
        %v1752 = vsub.f32 %v1688, %v1736
        %v1753 = vsub.f32 %v1689, %v1737
        %v1754 = vmul.f32 %v1738, 1.442695
        %v1755 = vpow.pop %v1754
        %v1756 = vmul.f32 %v1739, 1.442695
        %v1757 = vpow.pop %v1756
        %v1758 = vmul.f32 %v1740, 1.442695
        %v1759 = vpow.pop %v1758
        %v1760 = vmul.f32 %v1741, 1.442695
        %v1761 = vpow.pop %v1760
        %v1762 = vmul.f32 %v1742, 1.442695
        %v1763 = vpow.pop %v1762
        %v1764 = vmul.f32 %v1743, 1.442695
        %v1765 = vpow.pop %v1764
        %v1766 = vmul.f32 %v1744, 1.442695
        %v1767 = vpow.pop %v1766
        %v1768 = vmul.f32 %v1745, 1.442695
        %v1769 = vpow.pop %v1768
        %v1770 = vmul.f32 %v1746, 1.442695
        %v1771 = vpow.pop %v1770
        %v1772 = vmul.f32 %v1747, 1.442695
        %v1773 = vpow.pop %v1772
        %v1774 = vmul.f32 %v1748, 1.442695
        %v1775 = vpow.pop %v1774
        %v1776 = vmul.f32 %v1749, 1.442695
        %v1777 = vpow.pop %v1776
        %v1778 = vmul.f32 %v1750, 1.442695
        %v1779 = vpow.pop %v1778
        %v1780 = vmul.f32 %v1751, 1.442695
        %v1781 = vpow.pop %v1780
        %v1782 = vmul.f32 %v1752, 1.442695
        %v1783 = vpow.pop %v1782
        %v1784 = vmul.f32 %v1753, 1.442695
        %v1785 = vpow.pop %v1784
        %1787 = vset.pattern.permute.xlu0 0
        %1788 = vperm.xlu0 %1787, %v1722
        %v1789 = vpop.permute.xlu0 %1788
        %1792 = vset.pattern.permute.xlu0 0
        %1793 = vperm.xlu0 %1792, %v1723
        %v1794 = vpop.permute.xlu0 %1793
        %1797 = vset.pattern.permute.xlu0 0
        %1798 = vperm.xlu0 %1797, %v1724
        %v1799 = vpop.permute.xlu0 %1798
        %1802 = vset.pattern.permute.xlu0 0
        %1803 = vperm.xlu0 %1802, %v1725
        %v1804 = vpop.permute.xlu0 %1803
        %1807 = vset.pattern.permute.xlu0 0
        %1808 = vperm.xlu0 %1807, %v1726
        %v1809 = vpop.permute.xlu0 %1808
        %1812 = vset.pattern.permute.xlu0 0
        %1813 = vperm.xlu0 %1812, %v1727
        %v1814 = vpop.permute.xlu0 %1813
        %1817 = vset.pattern.permute.xlu0 0
        %1818 = vperm.xlu0 %1817, %v1728
        %v1819 = vpop.permute.xlu0 %1818
        %1822 = vset.pattern.permute.xlu0 0
        %1823 = vperm.xlu0 %1822, %v1729
        %v1824 = vpop.permute.xlu0 %1823
        %1827 = vset.pattern.permute.xlu0 0
        %1828 = vperm.xlu0 %1827, %v1730
        %v1829 = vpop.permute.xlu0 %1828
        %1832 = vset.pattern.permute.xlu0 0
        %1833 = vperm.xlu0 %1832, %v1731
        %v1834 = vpop.permute.xlu0 %1833
        %1837 = vset.pattern.permute.xlu0 0
        %1838 = vperm.xlu0 %1837, %v1732
        %v1839 = vpop.permute.xlu0 %1838
        %1842 = vset.pattern.permute.xlu0 0
        %1843 = vperm.xlu0 %1842, %v1733
        %v1844 = vpop.permute.xlu0 %1843
        %1847 = vset.pattern.permute.xlu0 0
        %1848 = vperm.xlu0 %1847, %v1734
        %v1849 = vpop.permute.xlu0 %1848
        %1852 = vset.pattern.permute.xlu0 0
        %1853 = vperm.xlu0 %1852, %v1735
        %v1854 = vpop.permute.xlu0 %1853
        %1857 = vset.pattern.permute.xlu0 0
        %1858 = vperm.xlu0 %1857, %v1736
        %v1859 = vpop.permute.xlu0 %1858
        %1862 = vset.pattern.permute.xlu0 0
        %1863 = vperm.xlu0 %1862, %v1737
        %v1864 = vpop.permute.xlu0 %1863
        %v1866 = vsub.f32 %v1612, %v1789
        %v1867 = vsub.f32 %v1615, %v1794
        %v1868 = vsub.f32 %v1620, %v1799
        %v1869 = vsub.f32 %v1623, %v1804
        %v1870 = vsub.f32 %v1628, %v1809
        %v1871 = vsub.f32 %v1631, %v1814
        %v1872 = vsub.f32 %v1636, %v1819
        %v1873 = vsub.f32 %v1639, %v1824
        %v1874 = vsub.f32 %v1644, %v1829
        %v1875 = vsub.f32 %v1647, %v1834
        %v1876 = vsub.f32 %v1652, %v1839
        %v1877 = vsub.f32 %v1655, %v1844
        %v1878 = vsub.f32 %v1660, %v1849
        %v1879 = vsub.f32 %v1663, %v1854
        %v1880 = vsub.f32 %v1668, %v1859
        %v1881 = vsub.f32 %v1671, %v1864
        %v1882 = vmul.f32 %v1866, 1.442695
        %v1883 = vpow.pop %v1882
        %v1884 = vmul.f32 %v1867, 1.442695
        %v1885 = vpow.pop %v1884
        %v1886 = vmul.f32 %v1868, 1.442695
        %v1887 = vpow.pop %v1886
        %v1888 = vmul.f32 %v1869, 1.442695
        %v1889 = vpow.pop %v1888
        %v1890 = vmul.f32 %v1870, 1.442695
        %v1891 = vpow.pop %v1890
        %v1892 = vmul.f32 %v1871, 1.442695
        %v1893 = vpow.pop %v1892
        %v1894 = vmul.f32 %v1872, 1.442695
        %v1895 = vpow.pop %v1894
        %v1896 = vmul.f32 %v1873, 1.442695
        %v1897 = vpow.pop %v1896
        %v1898 = vmul.f32 %v1874, 1.442695
        %v1899 = vpow.pop %v1898
        %v1900 = vmul.f32 %v1875, 1.442695
        %v1901 = vpow.pop %v1900
        %v1902 = vmul.f32 %v1876, 1.442695
        %v1903 = vpow.pop %v1902
        %v1904 = vmul.f32 %v1877, 1.442695
        %v1905 = vpow.pop %v1904
        %v1906 = vmul.f32 %v1878, 1.442695
        %v1907 = vpow.pop %v1906
        %v1908 = vmul.f32 %v1879, 1.442695
        %v1909 = vpow.pop %v1908
        %v1910 = vmul.f32 %v1880, 1.442695
        %v1911 = vpow.pop %v1910
        %v1912 = vmul.f32 %v1881, 1.442695
        %v1913 = vpow.pop %v1912
        %v1914 = vld [vmem:[#allocation5] sm:$0xff]
        %v1915 = vld [vmem:[#allocation5 + $0x8] sm:$0xff]
        %v1916 = vld [vmem:[#allocation5 + $0x10] sm:$0xff]
        %v1917 = vld [vmem:[#allocation5 + $0x18] sm:$0xff]
        %v1918 = vld [vmem:[#allocation5 + $0x20] sm:$0xff]
        %v1919 = vld [vmem:[#allocation5 + $0x28] sm:$0xff]
        %v1920 = vld [vmem:[#allocation5 + $0x30] sm:$0xff]
        %v1921 = vld [vmem:[#allocation5 + $0x38] sm:$0xff]
        %v1922 = vld [vmem:[#allocation5 + $0x40] sm:$0xff]
        %v1923 = vld [vmem:[#allocation5 + $0x48] sm:$0xff]
        %v1924 = vld [vmem:[#allocation5 + $0x50] sm:$0xff]
        %v1925 = vld [vmem:[#allocation5 + $0x58] sm:$0xff]
        %v1926 = vld [vmem:[#allocation5 + $0x60] sm:$0xff]
        %v1927 = vld [vmem:[#allocation5 + $0x68] sm:$0xff]
        %v1928 = vld [vmem:[#allocation5 + $0x70] sm:$0xff]
        %v1929 = vld [vmem:[#allocation5 + $0x78] sm:$0xff]
        %v1930 = vmul.f32 %v1755, %v1914
        %v1931 = vmul.f32 %v1757, %v1915
        %v1932 = vmul.f32 %v1759, %v1916
        %v1933 = vmul.f32 %v1761, %v1917
        %v1934 = vmul.f32 %v1763, %v1918
        %v1935 = vmul.f32 %v1765, %v1919
        %v1936 = vmul.f32 %v1767, %v1920
        %v1937 = vmul.f32 %v1769, %v1921
        %v1938 = vmul.f32 %v1771, %v1922
        %v1939 = vmul.f32 %v1773, %v1923
        %v1940 = vmul.f32 %v1775, %v1924
        %v1941 = vmul.f32 %v1777, %v1925
        %v1942 = vmul.f32 %v1779, %v1926
        %v1943 = vmul.f32 %v1781, %v1927
        %v1944 = vmul.f32 %v1783, %v1928
        %v1945 = vmul.f32 %v1785, %v1929
        %1946 = vadd.xlane.f32.xlu0 %v1883
        %v1947 = vpop.xlane.xlu0 %1946
        %1948 = vadd.xlane.f32.xlu0 %v1885
        %v1949 = vpop.xlane.xlu0 %1948
        %1950 = vadd.xlane.f32.xlu0 %v1887
        %v1951 = vpop.xlane.xlu0 %1950
        %1952 = vadd.xlane.f32.xlu0 %v1889
        %v1953 = vpop.xlane.xlu0 %1952
        %1954 = vadd.xlane.f32.xlu0 %v1891
        %v1955 = vpop.xlane.xlu0 %1954
        %1956 = vadd.xlane.f32.xlu0 %v1893
        %v1957 = vpop.xlane.xlu0 %1956
        %1958 = vadd.xlane.f32.xlu0 %v1895
        %v1959 = vpop.xlane.xlu0 %1958
        %1960 = vadd.xlane.f32.xlu0 %v1897
        %v1961 = vpop.xlane.xlu0 %1960
        %1962 = vadd.xlane.f32.xlu0 %v1899
        %v1963 = vpop.xlane.xlu0 %1962
        %1964 = vadd.xlane.f32.xlu0 %v1901
        %v1965 = vpop.xlane.xlu0 %1964
        %1966 = vadd.xlane.f32.xlu0 %v1903
        %v1967 = vpop.xlane.xlu0 %1966
        %1968 = vadd.xlane.f32.xlu0 %v1905
        %v1969 = vpop.xlane.xlu0 %1968
        %1970 = vadd.xlane.f32.xlu0 %v1907
        %v1971 = vpop.xlane.xlu0 %1970
        %1972 = vadd.xlane.f32.xlu0 %v1909
        %v1973 = vpop.xlane.xlu0 %1972
        %1974 = vadd.xlane.f32.xlu0 %v1911
        %v1975 = vpop.xlane.xlu0 %1974
        %1976 = vadd.xlane.f32.xlu0 %v1913
        %v1977 = vpop.xlane.xlu0 %1976
        %v1978 = vadd.f32 %v1930, %v1947
        %v1979 = vadd.f32 %v1931, %v1949
        %v1980 = vadd.f32 %v1932, %v1951
        %v1981 = vadd.f32 %v1933, %v1953
        %v1982 = vadd.f32 %v1934, %v1955
        %v1983 = vadd.f32 %v1935, %v1957
        %v1984 = vadd.f32 %v1936, %v1959
        %v1985 = vadd.f32 %v1937, %v1961
        %v1986 = vadd.f32 %v1938, %v1963
        %v1987 = vadd.f32 %v1939, %v1965
        %v1988 = vadd.f32 %v1940, %v1967
        %v1989 = vadd.f32 %v1941, %v1969
        %v1990 = vadd.f32 %v1942, %v1971
        %v1991 = vadd.f32 %v1943, %v1973
        %v1992 = vadd.f32 %v1944, %v1975
        %v1993 = vadd.f32 %v1945, %v1977
        %vm1994 = vcmask 7168
        %1995 = vst.msk [vmem:[#allocation5] sm:$0xff] %vm1994, %v1978
        %1996 = vst.msk [vmem:[#allocation5 + $0x8] sm:$0xff] %vm1994, %v1979
        %1997 = vst.msk [vmem:[#allocation5 + $0x10] sm:$0xff] %vm1994, %v1980
        %1998 = vst.msk [vmem:[#allocation5 + $0x18] sm:$0xff] %vm1994, %v1981
        %1999 = vst.msk [vmem:[#allocation5 + $0x20] sm:$0xff] %vm1994, %v1982
        %2000 = vst.msk [vmem:[#allocation5 + $0x28] sm:$0xff] %vm1994, %v1983
        %2001 = vst.msk [vmem:[#allocation5 + $0x30] sm:$0xff] %vm1994, %v1984
        %2002 = vst.msk [vmem:[#allocation5 + $0x38] sm:$0xff] %vm1994, %v1985
        %2003 = vst.msk [vmem:[#allocation5 + $0x40] sm:$0xff] %vm1994, %v1986
        %2004 = vst.msk [vmem:[#allocation5 + $0x48] sm:$0xff] %vm1994, %v1987
        %2005 = vst.msk [vmem:[#allocation5 + $0x50] sm:$0xff] %vm1994, %v1988
        %2006 = vst.msk [vmem:[#allocation5 + $0x58] sm:$0xff] %vm1994, %v1989
        %2007 = vst.msk [vmem:[#allocation5 + $0x60] sm:$0xff] %vm1994, %v1990
        %2008 = vst.msk [vmem:[#allocation5 + $0x68] sm:$0xff] %vm1994, %v1991
        %2009 = vst.msk [vmem:[#allocation5 + $0x70] sm:$0xff] %vm1994, %v1992
        %2010 = vst.msk [vmem:[#allocation5 + $0x78] sm:$0xff] %vm1994, %v1993
        %v2011 = vld [vmem:[#allocation3] sm:$0xff]
        %v2012 = vld [vmem:[#allocation3 + $0x8] sm:$0xff]
        %v2013 = vld [vmem:[#allocation3 + $0x10] sm:$0xff]
        %v2014 = vld [vmem:[#allocation3 + $0x18] sm:$0xff]
        %v2015 = vld [vmem:[#allocation3 + $0x20] sm:$0xff]
        %v2016 = vld [vmem:[#allocation3 + $0x28] sm:$0xff]
        %v2017 = vld [vmem:[#allocation3 + $0x30] sm:$0xff]
        %v2018 = vld [vmem:[#allocation3 + $0x38] sm:$0xff]
        %v2019 = vld [vmem:[#allocation3 + $0x40] sm:$0xff]
        %v2020 = vld [vmem:[#allocation3 + $0x48] sm:$0xff]
        %v2021 = vld [vmem:[#allocation3 + $0x50] sm:$0xff]
        %v2022 = vld [vmem:[#allocation3 + $0x58] sm:$0xff]
        %v2023 = vld [vmem:[#allocation3 + $0x60] sm:$0xff]
        %v2024 = vld [vmem:[#allocation3 + $0x68] sm:$0xff]
        %v2025 = vld [vmem:[#allocation3 + $0x70] sm:$0xff]
        %v2026 = vld [vmem:[#allocation3 + $0x78] sm:$0xff]
        %2028 = vset.pattern.permute.xlu0 0
        %2029 = vperm.xlu0 %2028, %v1755
        %v2030 = vpop.permute.xlu0 %2029
        %2033 = vset.pattern.permute.xlu0 0
        %2034 = vperm.xlu0 %2033, %v1757
        %v2035 = vpop.permute.xlu0 %2034
        %2038 = vset.pattern.permute.xlu0 0
        %2039 = vperm.xlu0 %2038, %v1759
        %v2040 = vpop.permute.xlu0 %2039
        %2043 = vset.pattern.permute.xlu0 0
        %2044 = vperm.xlu0 %2043, %v1761
        %v2045 = vpop.permute.xlu0 %2044
        %2048 = vset.pattern.permute.xlu0 0
        %2049 = vperm.xlu0 %2048, %v1763
        %v2050 = vpop.permute.xlu0 %2049
        %2053 = vset.pattern.permute.xlu0 0
        %2054 = vperm.xlu0 %2053, %v1765
        %v2055 = vpop.permute.xlu0 %2054
        %2058 = vset.pattern.permute.xlu0 0
        %2059 = vperm.xlu0 %2058, %v1767
        %v2060 = vpop.permute.xlu0 %2059
        %2063 = vset.pattern.permute.xlu0 0
        %2064 = vperm.xlu0 %2063, %v1769
        %v2065 = vpop.permute.xlu0 %2064
        %2068 = vset.pattern.permute.xlu0 0
        %2069 = vperm.xlu0 %2068, %v1771
        %v2070 = vpop.permute.xlu0 %2069
        %2073 = vset.pattern.permute.xlu0 0
        %2074 = vperm.xlu0 %2073, %v1773
        %v2075 = vpop.permute.xlu0 %2074
        %2078 = vset.pattern.permute.xlu0 0
        %2079 = vperm.xlu0 %2078, %v1775
        %v2080 = vpop.permute.xlu0 %2079
        %2083 = vset.pattern.permute.xlu0 0
        %2084 = vperm.xlu0 %2083, %v1777
        %v2085 = vpop.permute.xlu0 %2084
        %2088 = vset.pattern.permute.xlu0 0
        %2089 = vperm.xlu0 %2088, %v1779
        %v2090 = vpop.permute.xlu0 %2089
        %2093 = vset.pattern.permute.xlu0 0
        %2094 = vperm.xlu0 %2093, %v1781
        %v2095 = vpop.permute.xlu0 %2094
        %2098 = vset.pattern.permute.xlu0 0
        %2099 = vperm.xlu0 %2098, %v1783
        %v2100 = vpop.permute.xlu0 %2099
        %2103 = vset.pattern.permute.xlu0 0
        %2104 = vperm.xlu0 %2103, %v1785
        %v2105 = vpop.permute.xlu0 %2104
        %v2107 = vmul.f32 %v2030, %v2011
        %v2108 = vmul.f32 %v2035, %v2012
        %v2109 = vmul.f32 %v2040, %v2013
        %v2110 = vmul.f32 %v2045, %v2014
        %v2111 = vmul.f32 %v2050, %v2015
        %v2112 = vmul.f32 %v2055, %v2016
        %v2113 = vmul.f32 %v2060, %v2017
        %v2114 = vmul.f32 %v2065, %v2018
        %v2115 = vmul.f32 %v2070, %v2019
        %v2116 = vmul.f32 %v2075, %v2020
        %v2117 = vmul.f32 %v2080, %v2021
        %v2118 = vmul.f32 %v2085, %v2022
        %v2119 = vmul.f32 %v2090, %v2023
        %v2120 = vmul.f32 %v2095, %v2024
        %v2121 = vmul.f32 %v2100, %v2025
        %v2122 = vmul.f32 %v2105, %v2026
        %v2123 = vpack.c.bf16 %v1885, %v1883
        %v2124 = vpack.c.bf16 %v1889, %v1887
        %v2125 = vpack.c.bf16 %v1893, %v1891
        %v2126 = vpack.c.bf16 %v1897, %v1895
        %v2127 = vpack.c.bf16 %v1901, %v1899
        %v2128 = vpack.c.bf16 %v1905, %v1903
        %v2129 = vpack.c.bf16 %v1909, %v1907
        %v2130 = vpack.c.bf16 %v1913, %v1911
        %2131 = vmatprep.subr.bf16.mxu0 0
        %2132 = vmatpush1.bf16.msra.mxu0 %v1512
        %2133 = vmatprep.subr.bf16.mxu0 0
        %2134 = vmatpush1.bf16.msra.mxu0 %v1513
        %2135 = vmatprep.subr.bf16.mxu0 0
        %2136 = vmatpush1.bf16.msra.mxu0 %v1514
        %2137 = vmatprep.subr.bf16.mxu0 0
        %2138 = vmatpush1.bf16.msra.mxu0 %v1515
        %2139 = vmatprep.subr.bf16.mxu0 0
        %2140 = vmatpush1.bf16.msra.mxu0 %v1516
        %2141 = vmatprep.subr.bf16.mxu0 0
        %2142 = vmatpush1.bf16.msra.mxu0 %v1517
        %2143 = vmatprep.subr.bf16.mxu0 0
        %2144 = vmatpush1.bf16.msra.mxu0 %v1518
        %2145 = vmatprep.subr.bf16.mxu0 0
        %2146 = vmatpush1.bf16.msra.mxu0 %v1519
        %2147 = vmatprep.subr.bf16.mxu0 0
        %2148 = vmatpush1.bf16.msra.mxu0 0
        %2149 = vmatprep.subr.bf16.mxu0 0
        %2150 = vmatpush1.bf16.msra.mxu0 0
        %2151 = vmatprep.subr.bf16.mxu0 0
        %2152 = vmatpush1.bf16.msra.mxu0 0
        %2153 = vmatprep.subr.bf16.mxu0 0
        %2154 = vmatpush1.bf16.msra.mxu0 0
        %2155 = vmatprep.subr.bf16.mxu0 0
        %2156 = vmatpush1.bf16.msra.mxu0 0
        %2157 = vmatprep.subr.bf16.mxu0 0
        %2158 = vmatpush1.bf16.msra.mxu0 0
        %2159 = vmatprep.subr.bf16.mxu0 0
        %2160 = vmatpush1.bf16.msra.mxu0 0
        %2161 = vmatprep.subr.bf16.mxu0 0
        %2162 = vmatpush1.bf16.msra.mxu0 0
        %2163 = vmatprep.mubr.bf16.mxu0 0
        %2164 = vmatmul.mubr.bf16.gmra.mrb[0].mxu0 %v2123
        %v2165 = vpop.f32.mrb[0].mxu0
        %v2166 = vadd.f32 0.0, %v2165
        %v2167 = vpop.f32.mrb[0].mxu0
        %v2168 = vpop.f32.mrb[0].mxu0
        %v2169 = vadd.f32 0.0, %v2168
        %v2170 = vpop.f32.mrb[0].mxu0
        %2171 = vmatprep.mubr.bf16.mxu0 0
        %2172 = vmatmul.mubr.bf16.gmra.mrb[0].mxu0 %v2124
        %v2173 = vpop.f32.mrb[0].mxu0
        %v2174 = vadd.f32 0.0, %v2173
        %v2175 = vpop.f32.mrb[0].mxu0
        %v2176 = vpop.f32.mrb[0].mxu0
        %v2177 = vadd.f32 0.0, %v2176
        %v2178 = vpop.f32.mrb[0].mxu0
        %2179 = vmatprep.mubr.bf16.mxu0 0
        %2180 = vmatmul.mubr.bf16.gmra.mrb[0].mxu0 %v2125
        %v2181 = vpop.f32.mrb[0].mxu0
        %v2182 = vadd.f32 0.0, %v2181
        %v2183 = vpop.f32.mrb[0].mxu0
        %v2184 = vpop.f32.mrb[0].mxu0
        %v2185 = vadd.f32 0.0, %v2184
        %v2186 = vpop.f32.mrb[0].mxu0
        %2187 = vmatprep.mubr.bf16.mxu0 0
        %2188 = vmatmul.mubr.bf16.gmra.mrb[0].mxu0 %v2126
        %v2189 = vpop.f32.mrb[0].mxu0
        %v2190 = vadd.f32 0.0, %v2189
        %v2191 = vpop.f32.mrb[0].mxu0
        %v2192 = vpop.f32.mrb[0].mxu0
        %v2193 = vadd.f32 0.0, %v2192
        %v2194 = vpop.f32.mrb[0].mxu0
        %2195 = vmatprep.mubr.bf16.mxu0 0
        %2196 = vmatmul.mubr.bf16.gmra.mrb[0].mxu0 %v2127
        %v2197 = vpop.f32.mrb[0].mxu0
        %v2198 = vadd.f32 0.0, %v2197
        %v2199 = vpop.f32.mrb[0].mxu0
        %v2200 = vpop.f32.mrb[0].mxu0
        %v2201 = vadd.f32 0.0, %v2200
        %v2202 = vpop.f32.mrb[0].mxu0
        %2203 = vmatprep.mubr.bf16.mxu0 0
        %2204 = vmatmul.mubr.bf16.gmra.mrb[0].mxu0 %v2128
        %v2205 = vpop.f32.mrb[0].mxu0
        %v2206 = vadd.f32 0.0, %v2205
        %v2207 = vpop.f32.mrb[0].mxu0
        %v2208 = vpop.f32.mrb[0].mxu0
        %v2209 = vadd.f32 0.0, %v2208
        %v2210 = vpop.f32.mrb[0].mxu0
        %2211 = vmatprep.mubr.bf16.mxu0 0
        %2212 = vmatmul.mubr.bf16.gmra.mrb[0].mxu0 %v2129
        %v2213 = vpop.f32.mrb[0].mxu0
        %v2214 = vadd.f32 0.0, %v2213
        %v2215 = vpop.f32.mrb[0].mxu0
        %v2216 = vpop.f32.mrb[0].mxu0
        %v2217 = vadd.f32 0.0, %v2216
        %v2218 = vpop.f32.mrb[0].mxu0
        %2219 = vmatprep.mubr.bf16.mxu0 0
        %2220 = vmatmul.mubr.bf16.gmra.mrb[0].mxu0 %v2130
        %v2221 = vpop.f32.mrb[0].mxu0
        %v2222 = vadd.f32 0.0, %v2221
        %v2223 = vpop.f32.mrb[0].mxu0
        %v2224 = vpop.f32.mrb[0].mxu0
        %v2225 = vadd.f32 0.0, %v2224
        %v2226 = vpop.f32.mrb[0].mxu0
        %2227 = vdwg.mxu0
        %v2228 = vadd.f32 %v2107, %v2166
        %v2229 = vadd.f32 %v2108, %v2169
        %v2230 = vadd.f32 %v2109, %v2174
        %v2231 = vadd.f32 %v2110, %v2177
        %v2232 = vadd.f32 %v2111, %v2182
        %v2233 = vadd.f32 %v2112, %v2185
        %v2234 = vadd.f32 %v2113, %v2190
        %v2235 = vadd.f32 %v2114, %v2193
        %v2236 = vadd.f32 %v2115, %v2198
        %v2237 = vadd.f32 %v2116, %v2201
        %v2238 = vadd.f32 %v2117, %v2206
        %v2239 = vadd.f32 %v2118, %v2209
        %v2240 = vadd.f32 %v2119, %v2214
        %v2241 = vadd.f32 %v2120, %v2217
        %v2242 = vadd.f32 %v2121, %v2222
        %v2243 = vadd.f32 %v2122, %v2225
        %2244 = vst.msk [vmem:[#allocation3] sm:$0xff] %vm1528, %v2228
        %2245 = vst.msk [vmem:[#allocation3 + $0x8] sm:$0xff] %vm1528, %v2229
        %2246 = vst.msk [vmem:[#allocation3 + $0x10] sm:$0xff] %vm1528, %v2230
        %2247 = vst.msk [vmem:[#allocation3 + $0x18] sm:$0xff] %vm1528, %v2231
        %2248 = vst.msk [vmem:[#allocation3 + $0x20] sm:$0xff] %vm1528, %v2232
        %2249 = vst.msk [vmem:[#allocation3 + $0x28] sm:$0xff] %vm1528, %v2233
        %2250 = vst.msk [vmem:[#allocation3 + $0x30] sm:$0xff] %vm1528, %v2234
        %2251 = vst.msk [vmem:[#allocation3 + $0x38] sm:$0xff] %vm1528, %v2235
        %2252 = vst.msk [vmem:[#allocation3 + $0x40] sm:$0xff] %vm1528, %v2236
        %2253 = vst.msk [vmem:[#allocation3 + $0x48] sm:$0xff] %vm1528, %v2237
        %2254 = vst.msk [vmem:[#allocation3 + $0x50] sm:$0xff] %vm1528, %v2238
        %2255 = vst.msk [vmem:[#allocation3 + $0x58] sm:$0xff] %vm1528, %v2239
        %2256 = vst.msk [vmem:[#allocation3 + $0x60] sm:$0xff] %vm1528, %v2240
        %2257 = vst.msk [vmem:[#allocation3 + $0x68] sm:$0xff] %vm1528, %v2241
        %2258 = vst.msk [vmem:[#allocation3 + $0x70] sm:$0xff] %vm1528, %v2242
        %2259 = vst.msk [vmem:[#allocation3 + $0x78] sm:$0xff] %vm1528, %v2243
        %2260 = vst.msk [vmem:[#allocation4] sm:$0xff] %vm1994, %v1722
        %2261 = vst.msk [vmem:[#allocation4 + $0x8] sm:$0xff] %vm1994, %v1723
        %2262 = vst.msk [vmem:[#allocation4 + $0x10] sm:$0xff] %vm1994, %v1724
        %2263 = vst.msk [vmem:[#allocation4 + $0x18] sm:$0xff] %vm1994, %v1725
        %2264 = vst.msk [vmem:[#allocation4 + $0x20] sm:$0xff] %vm1994, %v1726
        %2265 = vst.msk [vmem:[#allocation4 + $0x28] sm:$0xff] %vm1994, %v1727
        %2266 = vst.msk [vmem:[#allocation4 + $0x30] sm:$0xff] %vm1994, %v1728
        %2267 = vst.msk [vmem:[#allocation4 + $0x38] sm:$0xff] %vm1994, %v1729
        %2268 = vst.msk [vmem:[#allocation4 + $0x40] sm:$0xff] %vm1994, %v1730
        %2269 = vst.msk [vmem:[#allocation4 + $0x48] sm:$0xff] %vm1994, %v1731
        %2270 = vst.msk [vmem:[#allocation4 + $0x50] sm:$0xff] %vm1994, %v1732
        %2271 = vst.msk [vmem:[#allocation4 + $0x58] sm:$0xff] %vm1994, %v1733
        %2272 = vst.msk [vmem:[#allocation4 + $0x60] sm:$0xff] %vm1994, %v1734
        %2273 = vst.msk [vmem:[#allocation4 + $0x68] sm:$0xff] %vm1994, %v1735
        %2274 = vst.msk [vmem:[#allocation4 + $0x70] sm:$0xff] %vm1994, %v1736
        %2275 = vst.msk [vmem:[#allocation4 + $0x78] sm:$0xff] %vm1994, %v1737
        %2284 = vrot.lane.b32.xlu0 %v1520, 96
        %v2285 = vpop.permute.xlu0 %2284
        %2286 = vrot.lane.b32.xlu0 %v1521, 96
        %v2287 = vpop.permute.xlu0 %2286
        %2288 = vrot.lane.b32.xlu0 %v1522, 96
        %v2289 = vpop.permute.xlu0 %2288
        %2290 = vrot.lane.b32.xlu0 %v1523, 96
        %v2291 = vpop.permute.xlu0 %2290
        %2292 = vrot.lane.b32.xlu0 %v1524, 96
        %v2293 = vpop.permute.xlu0 %2292
        %2294 = vrot.lane.b32.xlu0 %v1525, 96
        %v2295 = vpop.permute.xlu0 %2294
        %2296 = vrot.lane.b32.xlu0 %v1526, 96
        %v2297 = vpop.permute.xlu0 %2296
        %2298 = vrot.lane.b32.xlu0 %v1527, 96
        %v2299 = vpop.permute.xlu0 %2298
        %2308 = vrot.lane.b32.xlu0 %v1336, 96
        %v2309 = vpop.permute.xlu0 %2308
        %2310 = vrot.lane.b32.xlu0 %v1337, 96
        %v2311 = vpop.permute.xlu0 %2310
        %2312 = vrot.lane.b32.xlu0 %v1338, 96
        %v2313 = vpop.permute.xlu0 %2312
        %2314 = vrot.lane.b32.xlu0 %v1339, 96
        %v2315 = vpop.permute.xlu0 %2314
        %2316 = vrot.lane.b32.xlu0 %v1340, 96
        %v2317 = vpop.permute.xlu0 %2316
        %2318 = vrot.lane.b32.xlu0 %v1341, 96
        %v2319 = vpop.permute.xlu0 %2318
        %2320 = vrot.lane.b32.xlu0 %v1342, 96
        %v2321 = vpop.permute.xlu0 %2320
        %2322 = vrot.lane.b32.xlu0 %v1343, 96
        %v2323 = vpop.permute.xlu0 %2322
        %v2325 = vsel %vm1528, %v2285, 0
        %v2328 = vsel %vm1528, %v2287, 0
        %v2331 = vsel %vm1528, %v2289, 0
        %v2334 = vsel %vm1528, %v2291, 0
        %v2337 = vsel %vm1528, %v2293, 0
        %v2340 = vsel %vm1528, %v2295, 0
        %v2343 = vsel %vm1528, %v2297, 0
        %v2346 = vsel %vm1528, %v2299, 0
        %v2349 = vsel %vm1528, %v2309, 0
        %v2352 = vsel %vm1528, %v2311, 0
        %v2355 = vsel %vm1528, %v2313, 0
        %v2358 = vsel %vm1528, %v2315, 0
        %v2361 = vsel %vm1528, %v2317, 0
        %v2364 = vsel %vm1528, %v2319, 0
        %v2367 = vsel %vm1528, %v2321, 0
        %v2370 = vsel %vm1528, %v2323, 0
        %2372 = vmatprep.subr.bf16.mxu0 0
        %2373 = vmatpush1.bf16.xpose.msra.mxu0 %v2349
        %2374 = vmatprep.subr.bf16.mxu0 0
        %2375 = vmatpush1.bf16.xpose.msra.mxu0 %v2352
        %2376 = vmatprep.subr.bf16.mxu0 0
        %2377 = vmatpush1.bf16.xpose.msra.mxu0 %v2355
        %2378 = vmatprep.subr.bf16.mxu0 0
        %2379 = vmatpush1.bf16.xpose.msra.mxu0 %v2358
        %2380 = vmatprep.subr.bf16.mxu0 0
        %2381 = vmatpush1.bf16.xpose.msra.mxu0 %v2361
        %2382 = vmatprep.subr.bf16.mxu0 0
        %2383 = vmatpush1.bf16.xpose.msra.mxu0 %v2364
        %2384 = vmatprep.subr.bf16.mxu0 0
        %2385 = vmatpush1.bf16.xpose.msra.mxu0 %v2367
        %2386 = vmatprep.subr.bf16.mxu0 0
        %2387 = vmatpush1.bf16.xpose.msra.mxu0 %v2370
        %2388 = vmatprep.subr.bf16.mxu0 0
        %2389 = vmatpush1.bf16.xpose.msra.mxu0 0
        %2390 = vmatprep.subr.bf16.mxu0 0
        %2391 = vmatpush1.bf16.xpose.msra.mxu0 0
        %2392 = vmatprep.subr.bf16.mxu0 0
        %2393 = vmatpush1.bf16.xpose.msra.mxu0 0
        %2394 = vmatprep.subr.bf16.mxu0 0
        %2395 = vmatpush1.bf16.xpose.msra.mxu0 0
        %2396 = vmatprep.subr.bf16.mxu0 0
        %2397 = vmatpush1.bf16.xpose.msra.mxu0 0
        %2398 = vmatprep.subr.bf16.mxu0 0
        %2399 = vmatpush1.bf16.xpose.msra.mxu0 0
        %2400 = vmatprep.subr.bf16.mxu0 0
        %2401 = vmatpush1.bf16.xpose.msra.mxu0 0
        %2402 = vmatprep.subr.bf16.mxu0 0
        %2403 = vmatpush1.bf16.xpose.msra.mxu0 0
        %2404 = vmatprep.mubr.bf16.mxu0 0
        %2405 = vmatmul.mubr.bf16.gmra.mrb[0].mxu0 %v2325
        %v2406 = vpop.f32.mrb[0].mxu0
        %v2407 = vadd.f32 0.0, %v2406
        %v2408 = vpop.f32.mrb[0].mxu0
        %v2409 = vpop.f32.mrb[0].mxu0
        %v2410 = vadd.f32 0.0, %v2409
        %v2411 = vpop.f32.mrb[0].mxu0
        %2412 = vmatprep.mubr.bf16.mxu0 0
        %2413 = vmatmul.mubr.bf16.gmra.mrb[0].mxu0 %v2328
        %v2414 = vpop.f32.mrb[0].mxu0
        %v2415 = vadd.f32 0.0, %v2414
        %v2416 = vpop.f32.mrb[0].mxu0
        %v2417 = vpop.f32.mrb[0].mxu0
        %v2418 = vadd.f32 0.0, %v2417
        %v2419 = vpop.f32.mrb[0].mxu0
        %2420 = vmatprep.mubr.bf16.mxu0 0
        %2421 = vmatmul.mubr.bf16.gmra.mrb[0].mxu0 %v2331
        %v2422 = vpop.f32.mrb[0].mxu0
        %v2423 = vadd.f32 0.0, %v2422
        %v2424 = vpop.f32.mrb[0].mxu0
        %v2425 = vpop.f32.mrb[0].mxu0
        %v2426 = vadd.f32 0.0, %v2425
        %v2427 = vpop.f32.mrb[0].mxu0
        %2428 = vmatprep.mubr.bf16.mxu0 0
        %2429 = vmatmul.mubr.bf16.gmra.mrb[0].mxu0 %v2334
        %v2430 = vpop.f32.mrb[0].mxu0
        %v2431 = vadd.f32 0.0, %v2430
        %v2432 = vpop.f32.mrb[0].mxu0
        %v2433 = vpop.f32.mrb[0].mxu0
        %v2434 = vadd.f32 0.0, %v2433
        %v2435 = vpop.f32.mrb[0].mxu0
        %2436 = vmatprep.mubr.bf16.mxu0 0
        %2437 = vmatmul.mubr.bf16.gmra.mrb[0].mxu0 %v2337
        %v2438 = vpop.f32.mrb[0].mxu0
        %v2439 = vadd.f32 0.0, %v2438
        %v2440 = vpop.f32.mrb[0].mxu0
        %v2441 = vpop.f32.mrb[0].mxu0
        %v2442 = vadd.f32 0.0, %v2441
        %v2443 = vpop.f32.mrb[0].mxu0
        %2444 = vmatprep.mubr.bf16.mxu0 0
        %2445 = vmatmul.mubr.bf16.gmra.mrb[0].mxu0 %v2340
        %v2446 = vpop.f32.mrb[0].mxu0
        %v2447 = vadd.f32 0.0, %v2446
        %v2448 = vpop.f32.mrb[0].mxu0
        %v2449 = vpop.f32.mrb[0].mxu0
        %v2450 = vadd.f32 0.0, %v2449
        %v2451 = vpop.f32.mrb[0].mxu0
        %2452 = vmatprep.mubr.bf16.mxu0 0
        %2453 = vmatmul.mubr.bf16.gmra.mrb[0].mxu0 %v2343
        %v2454 = vpop.f32.mrb[0].mxu0
        %v2455 = vadd.f32 0.0, %v2454
        %v2456 = vpop.f32.mrb[0].mxu0
        %v2457 = vpop.f32.mrb[0].mxu0
        %v2458 = vadd.f32 0.0, %v2457
        %v2459 = vpop.f32.mrb[0].mxu0
        %2460 = vmatprep.mubr.bf16.mxu0 0
        %2461 = vmatmul.mubr.bf16.gmra.mrb[0].mxu0 %v2346
        %v2462 = vpop.f32.mrb[0].mxu0
        %v2463 = vadd.f32 0.0, %v2462
        %v2464 = vpop.f32.mrb[0].mxu0
        %v2465 = vpop.f32.mrb[0].mxu0
        %v2466 = vadd.f32 0.0, %v2465
        %v2467 = vpop.f32.mrb[0].mxu0
        %2468 = vdwg.mxu0
        %s2469 = scalar_lea.vmem [#allocation4], 128
        %v2470 = vld [vmem:[%s2469] sm:$0xff]
        %v2471 = vld [vmem:[%s2469 + $0x8] sm:$0xff]
        %v2472 = vld [vmem:[%s2469 + $0x10] sm:$0xff]
        %v2473 = vld [vmem:[%s2469 + $0x18] sm:$0xff]
        %v2474 = vld [vmem:[%s2469 + $0x20] sm:$0xff]
        %v2475 = vld [vmem:[%s2469 + $0x28] sm:$0xff]
        %v2476 = vld [vmem:[%s2469 + $0x30] sm:$0xff]
        %v2477 = vld [vmem:[%s2469 + $0x38] sm:$0xff]
        %v2478 = vld [vmem:[%s2469 + $0x40] sm:$0xff]
        %v2479 = vld [vmem:[%s2469 + $0x48] sm:$0xff]
        %v2480 = vld [vmem:[%s2469 + $0x50] sm:$0xff]
        %v2481 = vld [vmem:[%s2469 + $0x58] sm:$0xff]
        %v2482 = vld [vmem:[%s2469 + $0x60] sm:$0xff]
        %v2483 = vld [vmem:[%s2469 + $0x68] sm:$0xff]
        %v2484 = vld [vmem:[%s2469 + $0x70] sm:$0xff]
        %v2485 = vld [vmem:[%s2469 + $0x78] sm:$0xff]
        %2486 = vmax.xlane.f32.xlu0 %v2407
        %v2487 = vpop.xlane.xlu0 %2486
        %2488 = vmax.xlane.f32.xlu0 %v2410
        %v2489 = vpop.xlane.xlu0 %2488
        %2490 = vmax.xlane.f32.xlu0 %v2415
        %v2491 = vpop.xlane.xlu0 %2490
        %2492 = vmax.xlane.f32.xlu0 %v2418
        %v2493 = vpop.xlane.xlu0 %2492
        %2494 = vmax.xlane.f32.xlu0 %v2423
        %v2495 = vpop.xlane.xlu0 %2494
        %2496 = vmax.xlane.f32.xlu0 %v2426
        %v2497 = vpop.xlane.xlu0 %2496
        %2498 = vmax.xlane.f32.xlu0 %v2431
        %v2499 = vpop.xlane.xlu0 %2498
        %2500 = vmax.xlane.f32.xlu0 %v2434
        %v2501 = vpop.xlane.xlu0 %2500
        %2502 = vmax.xlane.f32.xlu0 %v2439
        %v2503 = vpop.xlane.xlu0 %2502
        %2504 = vmax.xlane.f32.xlu0 %v2442
        %v2505 = vpop.xlane.xlu0 %2504
        %2506 = vmax.xlane.f32.xlu0 %v2447
        %v2507 = vpop.xlane.xlu0 %2506
        %2508 = vmax.xlane.f32.xlu0 %v2450
        %v2509 = vpop.xlane.xlu0 %2508
        %2510 = vmax.xlane.f32.xlu0 %v2455
        %v2511 = vpop.xlane.xlu0 %2510
        %2512 = vmax.xlane.f32.xlu0 %v2458
        %v2513 = vpop.xlane.xlu0 %2512
        %2514 = vmax.xlane.f32.xlu0 %v2463
        %v2515 = vpop.xlane.xlu0 %2514
        %2516 = vmax.xlane.f32.xlu0 %v2466
        %v2517 = vpop.xlane.xlu0 %2516
        %v2518 = vmax.f32 %v2470, %v2487
        %v2519 = vmax.f32 %v2471, %v2489
        %v2520 = vmax.f32 %v2472, %v2491
        %v2521 = vmax.f32 %v2473, %v2493
        %v2522 = vmax.f32 %v2474, %v2495
        %v2523 = vmax.f32 %v2475, %v2497
        %v2524 = vmax.f32 %v2476, %v2499
        %v2525 = vmax.f32 %v2477, %v2501
        %v2526 = vmax.f32 %v2478, %v2503
        %v2527 = vmax.f32 %v2479, %v2505
        %v2528 = vmax.f32 %v2480, %v2507
        %v2529 = vmax.f32 %v2481, %v2509
        %v2530 = vmax.f32 %v2482, %v2511
        %v2531 = vmax.f32 %v2483, %v2513
        %v2532 = vmax.f32 %v2484, %v2515
        %v2533 = vmax.f32 %v2485, %v2517
        %v2534 = vsub.f32 %v2470, %v2518
        %v2535 = vsub.f32 %v2471, %v2519
        %v2536 = vsub.f32 %v2472, %v2520
        %v2537 = vsub.f32 %v2473, %v2521
        %v2538 = vsub.f32 %v2474, %v2522
        %v2539 = vsub.f32 %v2475, %v2523
        %v2540 = vsub.f32 %v2476, %v2524
        %v2541 = vsub.f32 %v2477, %v2525
        %v2542 = vsub.f32 %v2478, %v2526
        %v2543 = vsub.f32 %v2479, %v2527
        %v2544 = vsub.f32 %v2480, %v2528
        %v2545 = vsub.f32 %v2481, %v2529
        %v2546 = vsub.f32 %v2482, %v2530
        %v2547 = vsub.f32 %v2483, %v2531
        %v2548 = vsub.f32 %v2484, %v2532
        %v2549 = vsub.f32 %v2485, %v2533
        %v2550 = vmul.f32 %v2534, 1.442695
        %v2551 = vpow.pop %v2550
        %v2552 = vmul.f32 %v2535, 1.442695
        %v2553 = vpow.pop %v2552
        %v2554 = vmul.f32 %v2536, 1.442695
        %v2555 = vpow.pop %v2554
        %v2556 = vmul.f32 %v2537, 1.442695
        %v2557 = vpow.pop %v2556
        %v2558 = vmul.f32 %v2538, 1.442695
        %v2559 = vpow.pop %v2558
        %v2560 = vmul.f32 %v2539, 1.442695
        %v2561 = vpow.pop %v2560
        %v2562 = vmul.f32 %v2540, 1.442695
        %v2563 = vpow.pop %v2562
        %v2564 = vmul.f32 %v2541, 1.442695
        %v2565 = vpow.pop %v2564
        %v2566 = vmul.f32 %v2542, 1.442695
        %v2567 = vpow.pop %v2566
        %v2568 = vmul.f32 %v2543, 1.442695
        %v2569 = vpow.pop %v2568
        %v2570 = vmul.f32 %v2544, 1.442695
        %v2571 = vpow.pop %v2570
        %v2572 = vmul.f32 %v2545, 1.442695
        %v2573 = vpow.pop %v2572
        %v2574 = vmul.f32 %v2546, 1.442695
        %v2575 = vpow.pop %v2574
        %v2576 = vmul.f32 %v2547, 1.442695
        %v2577 = vpow.pop %v2576
        %v2578 = vmul.f32 %v2548, 1.442695
        %v2579 = vpow.pop %v2578
        %v2580 = vmul.f32 %v2549, 1.442695
        %v2581 = vpow.pop %v2580
        %2583 = vset.pattern.permute.xlu0 0
        %2584 = vperm.xlu0 %2583, %v2518
        %v2585 = vpop.permute.xlu0 %2584
        %2588 = vset.pattern.permute.xlu0 0
        %2589 = vperm.xlu0 %2588, %v2519
        %v2590 = vpop.permute.xlu0 %2589
        %2593 = vset.pattern.permute.xlu0 0
        %2594 = vperm.xlu0 %2593, %v2520
        %v2595 = vpop.permute.xlu0 %2594
        %2598 = vset.pattern.permute.xlu0 0
        %2599 = vperm.xlu0 %2598, %v2521
        %v2600 = vpop.permute.xlu0 %2599
        %2603 = vset.pattern.permute.xlu0 0
        %2604 = vperm.xlu0 %2603, %v2522
        %v2605 = vpop.permute.xlu0 %2604
        %2608 = vset.pattern.permute.xlu0 0
        %2609 = vperm.xlu0 %2608, %v2523
        %v2610 = vpop.permute.xlu0 %2609
        %2613 = vset.pattern.permute.xlu0 0
        %2614 = vperm.xlu0 %2613, %v2524
        %v2615 = vpop.permute.xlu0 %2614
        %2618 = vset.pattern.permute.xlu0 0
        %2619 = vperm.xlu0 %2618, %v2525
        %v2620 = vpop.permute.xlu0 %2619
        %2623 = vset.pattern.permute.xlu0 0
        %2624 = vperm.xlu0 %2623, %v2526
        %v2625 = vpop.permute.xlu0 %2624
        %2628 = vset.pattern.permute.xlu0 0
        %2629 = vperm.xlu0 %2628, %v2527
        %v2630 = vpop.permute.xlu0 %2629
        %2633 = vset.pattern.permute.xlu0 0
        %2634 = vperm.xlu0 %2633, %v2528
        %v2635 = vpop.permute.xlu0 %2634
        %2638 = vset.pattern.permute.xlu0 0
        %2639 = vperm.xlu0 %2638, %v2529
        %v2640 = vpop.permute.xlu0 %2639
        %2643 = vset.pattern.permute.xlu0 0
        %2644 = vperm.xlu0 %2643, %v2530
        %v2645 = vpop.permute.xlu0 %2644
        %2648 = vset.pattern.permute.xlu0 0
        %2649 = vperm.xlu0 %2648, %v2531
        %v2650 = vpop.permute.xlu0 %2649
        %2653 = vset.pattern.permute.xlu0 0
        %2654 = vperm.xlu0 %2653, %v2532
        %v2655 = vpop.permute.xlu0 %2654
        %2658 = vset.pattern.permute.xlu0 0
        %2659 = vperm.xlu0 %2658, %v2533
        %v2660 = vpop.permute.xlu0 %2659
        %v2662 = vsub.f32 %v2407, %v2585
        %v2663 = vsub.f32 %v2410, %v2590
        %v2664 = vsub.f32 %v2415, %v2595
        %v2665 = vsub.f32 %v2418, %v2600
        %v2666 = vsub.f32 %v2423, %v2605
        %v2667 = vsub.f32 %v2426, %v2610
        %v2668 = vsub.f32 %v2431, %v2615
        %v2669 = vsub.f32 %v2434, %v2620
        %v2670 = vsub.f32 %v2439, %v2625
        %v2671 = vsub.f32 %v2442, %v2630
        %v2672 = vsub.f32 %v2447, %v2635
        %v2673 = vsub.f32 %v2450, %v2640
        %v2674 = vsub.f32 %v2455, %v2645
        %v2675 = vsub.f32 %v2458, %v2650
        %v2676 = vsub.f32 %v2463, %v2655
        %v2677 = vsub.f32 %v2466, %v2660
        %v2678 = vmul.f32 %v2662, 1.442695
        %v2679 = vpow.pop %v2678
        %v2680 = vmul.f32 %v2663, 1.442695
        %v2681 = vpow.pop %v2680
        %v2682 = vmul.f32 %v2664, 1.442695
        %v2683 = vpow.pop %v2682
        %v2684 = vmul.f32 %v2665, 1.442695
        %v2685 = vpow.pop %v2684
        %v2686 = vmul.f32 %v2666, 1.442695
        %v2687 = vpow.pop %v2686
        %v2688 = vmul.f32 %v2667, 1.442695
        %v2689 = vpow.pop %v2688
        %v2690 = vmul.f32 %v2668, 1.442695
        %v2691 = vpow.pop %v2690
        %v2692 = vmul.f32 %v2669, 1.442695
        %v2693 = vpow.pop %v2692
        %v2694 = vmul.f32 %v2670, 1.442695
        %v2695 = vpow.pop %v2694
        %v2696 = vmul.f32 %v2671, 1.442695
        %v2697 = vpow.pop %v2696
        %v2698 = vmul.f32 %v2672, 1.442695
        %v2699 = vpow.pop %v2698
        %v2700 = vmul.f32 %v2673, 1.442695
        %v2701 = vpow.pop %v2700
        %v2702 = vmul.f32 %v2674, 1.442695
        %v2703 = vpow.pop %v2702
        %v2704 = vmul.f32 %v2675, 1.442695
        %v2705 = vpow.pop %v2704
        %v2706 = vmul.f32 %v2676, 1.442695
        %v2707 = vpow.pop %v2706
        %v2708 = vmul.f32 %v2677, 1.442695
        %v2709 = vpow.pop %v2708
        %s2710 = scalar_lea.vmem [#allocation5], 128
        %v2711 = vld [vmem:[%s2710] sm:$0xff]
        %v2712 = vld [vmem:[%s2710 + $0x8] sm:$0xff]
        %v2713 = vld [vmem:[%s2710 + $0x10] sm:$0xff]
        %v2714 = vld [vmem:[%s2710 + $0x18] sm:$0xff]
        %v2715 = vld [vmem:[%s2710 + $0x20] sm:$0xff]
        %v2716 = vld [vmem:[%s2710 + $0x28] sm:$0xff]
        %v2717 = vld [vmem:[%s2710 + $0x30] sm:$0xff]
        %v2718 = vld [vmem:[%s2710 + $0x38] sm:$0xff]
        %v2719 = vld [vmem:[%s2710 + $0x40] sm:$0xff]
        %v2720 = vld [vmem:[%s2710 + $0x48] sm:$0xff]
        %v2721 = vld [vmem:[%s2710 + $0x50] sm:$0xff]
        %v2722 = vld [vmem:[%s2710 + $0x58] sm:$0xff]
        %v2723 = vld [vmem:[%s2710 + $0x60] sm:$0xff]
        %v2724 = vld [vmem:[%s2710 + $0x68] sm:$0xff]
        %v2725 = vld [vmem:[%s2710 + $0x70] sm:$0xff]
        %v2726 = vld [vmem:[%s2710 + $0x78] sm:$0xff]
        %v2727 = vmul.f32 %v2551, %v2711
        %v2728 = vmul.f32 %v2553, %v2712
        %v2729 = vmul.f32 %v2555, %v2713
        %v2730 = vmul.f32 %v2557, %v2714
        %v2731 = vmul.f32 %v2559, %v2715
        %v2732 = vmul.f32 %v2561, %v2716
        %v2733 = vmul.f32 %v2563, %v2717
        %v2734 = vmul.f32 %v2565, %v2718
        %v2735 = vmul.f32 %v2567, %v2719
        %v2736 = vmul.f32 %v2569, %v2720
        %v2737 = vmul.f32 %v2571, %v2721
        %v2738 = vmul.f32 %v2573, %v2722
        %v2739 = vmul.f32 %v2575, %v2723
        %v2740 = vmul.f32 %v2577, %v2724
        %v2741 = vmul.f32 %v2579, %v2725
        %v2742 = vmul.f32 %v2581, %v2726
        %2743 = vadd.xlane.f32.xlu0 %v2679
        %v2744 = vpop.xlane.xlu0 %2743
        %2745 = vadd.xlane.f32.xlu0 %v2681
        %v2746 = vpop.xlane.xlu0 %2745
        %2747 = vadd.xlane.f32.xlu0 %v2683
        %v2748 = vpop.xlane.xlu0 %2747
        %2749 = vadd.xlane.f32.xlu0 %v2685
        %v2750 = vpop.xlane.xlu0 %2749
        %2751 = vadd.xlane.f32.xlu0 %v2687
        %v2752 = vpop.xlane.xlu0 %2751
        %2753 = vadd.xlane.f32.xlu0 %v2689
        %v2754 = vpop.xlane.xlu0 %2753
        %2755 = vadd.xlane.f32.xlu0 %v2691
        %v2756 = vpop.xlane.xlu0 %2755
        %2757 = vadd.xlane.f32.xlu0 %v2693
        %v2758 = vpop.xlane.xlu0 %2757
        %2759 = vadd.xlane.f32.xlu0 %v2695
        %v2760 = vpop.xlane.xlu0 %2759
        %2761 = vadd.xlane.f32.xlu0 %v2697
        %v2762 = vpop.xlane.xlu0 %2761
        %2763 = vadd.xlane.f32.xlu0 %v2699
        %v2764 = vpop.xlane.xlu0 %2763
        %2765 = vadd.xlane.f32.xlu0 %v2701
        %v2766 = vpop.xlane.xlu0 %2765
        %2767 = vadd.xlane.f32.xlu0 %v2703
        %v2768 = vpop.xlane.xlu0 %2767
        %2769 = vadd.xlane.f32.xlu0 %v2705
        %v2770 = vpop.xlane.xlu0 %2769
        %2771 = vadd.xlane.f32.xlu0 %v2707
        %v2772 = vpop.xlane.xlu0 %2771
        %2773 = vadd.xlane.f32.xlu0 %v2709
        %v2774 = vpop.xlane.xlu0 %2773
        %v2775 = vadd.f32 %v2727, %v2744
        %v2776 = vadd.f32 %v2728, %v2746
        %v2777 = vadd.f32 %v2729, %v2748
        %v2778 = vadd.f32 %v2730, %v2750
        %v2779 = vadd.f32 %v2731, %v2752
        %v2780 = vadd.f32 %v2732, %v2754
        %v2781 = vadd.f32 %v2733, %v2756
        %v2782 = vadd.f32 %v2734, %v2758
        %v2783 = vadd.f32 %v2735, %v2760
        %v2784 = vadd.f32 %v2736, %v2762
        %v2785 = vadd.f32 %v2737, %v2764
        %v2786 = vadd.f32 %v2738, %v2766
        %v2787 = vadd.f32 %v2739, %v2768
        %v2788 = vadd.f32 %v2740, %v2770
        %v2789 = vadd.f32 %v2741, %v2772
        %v2790 = vadd.f32 %v2742, %v2774
        %2791 = vst.msk [vmem:[%s2710] sm:$0xff] %vm1994, %v2775
        %2792 = vst.msk [vmem:[%s2710 + $0x8] sm:$0xff] %vm1994, %v2776
        %2793 = vst.msk [vmem:[%s2710 + $0x10] sm:$0xff] %vm1994, %v2777
        %2794 = vst.msk [vmem:[%s2710 + $0x18] sm:$0xff] %vm1994, %v2778
        %2795 = vst.msk [vmem:[%s2710 + $0x20] sm:$0xff] %vm1994, %v2779
        %2796 = vst.msk [vmem:[%s2710 + $0x28] sm:$0xff] %vm1994, %v2780
        %2797 = vst.msk [vmem:[%s2710 + $0x30] sm:$0xff] %vm1994, %v2781
        %2798 = vst.msk [vmem:[%s2710 + $0x38] sm:$0xff] %vm1994, %v2782
        %2799 = vst.msk [vmem:[%s2710 + $0x40] sm:$0xff] %vm1994, %v2783
        %2800 = vst.msk [vmem:[%s2710 + $0x48] sm:$0xff] %vm1994, %v2784
        %2801 = vst.msk [vmem:[%s2710 + $0x50] sm:$0xff] %vm1994, %v2785
        %2802 = vst.msk [vmem:[%s2710 + $0x58] sm:$0xff] %vm1994, %v2786
        %2803 = vst.msk [vmem:[%s2710 + $0x60] sm:$0xff] %vm1994, %v2787
        %2804 = vst.msk [vmem:[%s2710 + $0x68] sm:$0xff] %vm1994, %v2788
        %2805 = vst.msk [vmem:[%s2710 + $0x70] sm:$0xff] %vm1994, %v2789
        %2806 = vst.msk [vmem:[%s2710 + $0x78] sm:$0xff] %vm1994, %v2790
        %s2807 = scalar_lea.vmem [#allocation3], 128
        %v2808 = vld [vmem:[%s2807] sm:$0xff]
        %v2809 = vld [vmem:[%s2807 + $0x8] sm:$0xff]
        %v2810 = vld [vmem:[%s2807 + $0x10] sm:$0xff]
        %v2811 = vld [vmem:[%s2807 + $0x18] sm:$0xff]
        %v2812 = vld [vmem:[%s2807 + $0x20] sm:$0xff]
        %v2813 = vld [vmem:[%s2807 + $0x28] sm:$0xff]
        %v2814 = vld [vmem:[%s2807 + $0x30] sm:$0xff]
        %v2815 = vld [vmem:[%s2807 + $0x38] sm:$0xff]
        %v2816 = vld [vmem:[%s2807 + $0x40] sm:$0xff]
        %v2817 = vld [vmem:[%s2807 + $0x48] sm:$0xff]
        %v2818 = vld [vmem:[%s2807 + $0x50] sm:$0xff]
        %v2819 = vld [vmem:[%s2807 + $0x58] sm:$0xff]
        %v2820 = vld [vmem:[%s2807 + $0x60] sm:$0xff]
        %v2821 = vld [vmem:[%s2807 + $0x68] sm:$0xff]
        %v2822 = vld [vmem:[%s2807 + $0x70] sm:$0xff]
        %v2823 = vld [vmem:[%s2807 + $0x78] sm:$0xff]
        %2825 = vset.pattern.permute.xlu0 0
        %2826 = vperm.xlu0 %2825, %v2551
        %v2827 = vpop.permute.xlu0 %2826
        %2830 = vset.pattern.permute.xlu0 0
        %2831 = vperm.xlu0 %2830, %v2553
        %v2832 = vpop.permute.xlu0 %2831
        %2835 = vset.pattern.permute.xlu0 0
        %2836 = vperm.xlu0 %2835, %v2555
        %v2837 = vpop.permute.xlu0 %2836
        %2840 = vset.pattern.permute.xlu0 0
        %2841 = vperm.xlu0 %2840, %v2557
        %v2842 = vpop.permute.xlu0 %2841
        %2845 = vset.pattern.permute.xlu0 0
        %2846 = vperm.xlu0 %2845, %v2559
        %v2847 = vpop.permute.xlu0 %2846
        %2850 = vset.pattern.permute.xlu0 0
        %2851 = vperm.xlu0 %2850, %v2561
        %v2852 = vpop.permute.xlu0 %2851
        %2855 = vset.pattern.permute.xlu0 0
        %2856 = vperm.xlu0 %2855, %v2563
        %v2857 = vpop.permute.xlu0 %2856
        %2860 = vset.pattern.permute.xlu0 0
        %2861 = vperm.xlu0 %2860, %v2565
        %v2862 = vpop.permute.xlu0 %2861
        %2865 = vset.pattern.permute.xlu0 0
        %2866 = vperm.xlu0 %2865, %v2567
        %v2867 = vpop.permute.xlu0 %2866
        %2870 = vset.pattern.permute.xlu0 0
        %2871 = vperm.xlu0 %2870, %v2569
        %v2872 = vpop.permute.xlu0 %2871
        %2875 = vset.pattern.permute.xlu0 0
        %2876 = vperm.xlu0 %2875, %v2571
        %v2877 = vpop.permute.xlu0 %2876
        %2880 = vset.pattern.permute.xlu0 0
        %2881 = vperm.xlu0 %2880, %v2573
        %v2882 = vpop.permute.xlu0 %2881
        %2885 = vset.pattern.permute.xlu0 0
        %2886 = vperm.xlu0 %2885, %v2575
        %v2887 = vpop.permute.xlu0 %2886
        %2890 = vset.pattern.permute.xlu0 0
        %2891 = vperm.xlu0 %2890, %v2577
        %v2892 = vpop.permute.xlu0 %2891
        %2895 = vset.pattern.permute.xlu0 0
        %2896 = vperm.xlu0 %2895, %v2579
        %v2897 = vpop.permute.xlu0 %2896
        %2900 = vset.pattern.permute.xlu0 0
        %2901 = vperm.xlu0 %2900, %v2581
        %v2902 = vpop.permute.xlu0 %2901
        %v2904 = vmul.f32 %v2827, %v2808
        %v2905 = vmul.f32 %v2832, %v2809
        %v2906 = vmul.f32 %v2837, %v2810
        %v2907 = vmul.f32 %v2842, %v2811
        %v2908 = vmul.f32 %v2847, %v2812
        %v2909 = vmul.f32 %v2852, %v2813
        %v2910 = vmul.f32 %v2857, %v2814
        %v2911 = vmul.f32 %v2862, %v2815
        %v2912 = vmul.f32 %v2867, %v2816
        %v2913 = vmul.f32 %v2872, %v2817
        %v2914 = vmul.f32 %v2877, %v2818
        %v2915 = vmul.f32 %v2882, %v2819
        %v2916 = vmul.f32 %v2887, %v2820
        %v2917 = vmul.f32 %v2892, %v2821
        %v2918 = vmul.f32 %v2897, %v2822
        %v2919 = vmul.f32 %v2902, %v2823
        %v2920 = vpack.c.bf16 %v2681, %v2679
        %v2921 = vpack.c.bf16 %v2685, %v2683
        %v2922 = vpack.c.bf16 %v2689, %v2687
        %v2923 = vpack.c.bf16 %v2693, %v2691
        %v2924 = vpack.c.bf16 %v2697, %v2695
        %v2925 = vpack.c.bf16 %v2701, %v2699
        %v2926 = vpack.c.bf16 %v2705, %v2703
        %v2927 = vpack.c.bf16 %v2709, %v2707
        %2936 = vrot.lane.b32.xlu0 %v1512, 96
        %v2937 = vpop.permute.xlu0 %2936
        %2938 = vrot.lane.b32.xlu0 %v1513, 96
        %v2939 = vpop.permute.xlu0 %2938
        %2940 = vrot.lane.b32.xlu0 %v1514, 96
        %v2941 = vpop.permute.xlu0 %2940
        %2942 = vrot.lane.b32.xlu0 %v1515, 96
        %v2943 = vpop.permute.xlu0 %2942
        %2944 = vrot.lane.b32.xlu0 %v1516, 96
        %v2945 = vpop.permute.xlu0 %2944
        %2946 = vrot.lane.b32.xlu0 %v1517, 96
        %v2947 = vpop.permute.xlu0 %2946
        %2948 = vrot.lane.b32.xlu0 %v1518, 96
        %v2949 = vpop.permute.xlu0 %2948
        %2950 = vrot.lane.b32.xlu0 %v1519, 96
        %v2951 = vpop.permute.xlu0 %2950
        %2960 = vmatprep.subr.bf16.mxu0 0
        %2961 = vmatpush1.bf16.msra.mxu0 %v2937
        %2962 = vmatprep.subr.bf16.mxu0 0
        %2963 = vmatpush1.bf16.msra.mxu0 %v2939
        %2964 = vmatprep.subr.bf16.mxu0 0
        %2965 = vmatpush1.bf16.msra.mxu0 %v2941
        %2966 = vmatprep.subr.bf16.mxu0 0
        %2967 = vmatpush1.bf16.msra.mxu0 %v2943
        %2968 = vmatprep.subr.bf16.mxu0 0
        %2969 = vmatpush1.bf16.msra.mxu0 %v2945
        %2970 = vmatprep.subr.bf16.mxu0 0
        %2971 = vmatpush1.bf16.msra.mxu0 %v2947
        %2972 = vmatprep.subr.bf16.mxu0 0
        %2973 = vmatpush1.bf16.msra.mxu0 %v2949
        %2974 = vmatprep.subr.bf16.mxu0 0
        %2975 = vmatpush1.bf16.msra.mxu0 %v2951
        %2976 = vmatprep.subr.bf16.mxu0 0
        %2977 = vmatpush1.bf16.msra.mxu0 0
        %2978 = vmatprep.subr.bf16.mxu0 0
        %2979 = vmatpush1.bf16.msra.mxu0 0
        %2980 = vmatprep.subr.bf16.mxu0 0
        %2981 = vmatpush1.bf16.msra.mxu0 0
        %2982 = vmatprep.subr.bf16.mxu0 0
        %2983 = vmatpush1.bf16.msra.mxu0 0
        %2984 = vmatprep.subr.bf16.mxu0 0
        %2985 = vmatpush1.bf16.msra.mxu0 0
        %2986 = vmatprep.subr.bf16.mxu0 0
        %2987 = vmatpush1.bf16.msra.mxu0 0
        %2988 = vmatprep.subr.bf16.mxu0 0
        %2989 = vmatpush1.bf16.msra.mxu0 0
        %2990 = vmatprep.subr.bf16.mxu0 0
        %2991 = vmatpush1.bf16.msra.mxu0 0
        %2992 = vmatprep.mubr.bf16.mxu0 0
        %2993 = vmatmul.mubr.bf16.gmra.mrb[0].mxu0 %v2920
        %v2994 = vpop.f32.mrb[0].mxu0
        %v2995 = vadd.f32 0.0, %v2994
        %v2996 = vpop.f32.mrb[0].mxu0
        %v2997 = vpop.f32.mrb[0].mxu0
        %v2998 = vadd.f32 0.0, %v2997
        %v2999 = vpop.f32.mrb[0].mxu0
        %3000 = vmatprep.mubr.bf16.mxu0 0
        %3001 = vmatmul.mubr.bf16.gmra.mrb[0].mxu0 %v2921
        %v3002 = vpop.f32.mrb[0].mxu0
        %v3003 = vadd.f32 0.0, %v3002
        %v3004 = vpop.f32.mrb[0].mxu0
        %v3005 = vpop.f32.mrb[0].mxu0
        %v3006 = vadd.f32 0.0, %v3005
        %v3007 = vpop.f32.mrb[0].mxu0
        %3008 = vmatprep.mubr.bf16.mxu0 0
        %3009 = vmatmul.mubr.bf16.gmra.mrb[0].mxu0 %v2922
        %v3010 = vpop.f32.mrb[0].mxu0
        %v3011 = vadd.f32 0.0, %v3010
        %v3012 = vpop.f32.mrb[0].mxu0
        %v3013 = vpop.f32.mrb[0].mxu0
        %v3014 = vadd.f32 0.0, %v3013
        %v3015 = vpop.f32.mrb[0].mxu0
        %3016 = vmatprep.mubr.bf16.mxu0 0
        %3017 = vmatmul.mubr.bf16.gmra.mrb[0].mxu0 %v2923
        %v3018 = vpop.f32.mrb[0].mxu0
        %v3019 = vadd.f32 0.0, %v3018
        %v3020 = vpop.f32.mrb[0].mxu0
        %v3021 = vpop.f32.mrb[0].mxu0
        %v3022 = vadd.f32 0.0, %v3021
        %v3023 = vpop.f32.mrb[0].mxu0
        %3024 = vmatprep.mubr.bf16.mxu0 0
        %3025 = vmatmul.mubr.bf16.gmra.mrb[0].mxu0 %v2924
        %v3026 = vpop.f32.mrb[0].mxu0
        %v3027 = vadd.f32 0.0, %v3026
        %v3028 = vpop.f32.mrb[0].mxu0
        %v3029 = vpop.f32.mrb[0].mxu0
        %v3030 = vadd.f32 0.0, %v3029
        %v3031 = vpop.f32.mrb[0].mxu0
        %3032 = vmatprep.mubr.bf16.mxu0 0
        %3033 = vmatmul.mubr.bf16.gmra.mrb[0].mxu0 %v2925
        %v3034 = vpop.f32.mrb[0].mxu0
        %v3035 = vadd.f32 0.0, %v3034
        %v3036 = vpop.f32.mrb[0].mxu0
        %v3037 = vpop.f32.mrb[0].mxu0
        %v3038 = vadd.f32 0.0, %v3037
        %v3039 = vpop.f32.mrb[0].mxu0
        %3040 = vmatprep.mubr.bf16.mxu0 0
        %3041 = vmatmul.mubr.bf16.gmra.mrb[0].mxu0 %v2926
        %v3042 = vpop.f32.mrb[0].mxu0
        %v3043 = vadd.f32 0.0, %v3042
        %v3044 = vpop.f32.mrb[0].mxu0
        %v3045 = vpop.f32.mrb[0].mxu0
        %v3046 = vadd.f32 0.0, %v3045
        %v3047 = vpop.f32.mrb[0].mxu0
        %3048 = vmatprep.mubr.bf16.mxu0 0
        %3049 = vmatmul.mubr.bf16.gmra.mrb[0].mxu0 %v2927
        %v3050 = vpop.f32.mrb[0].mxu0
        %v3051 = vadd.f32 0.0, %v3050
        %v3052 = vpop.f32.mrb[0].mxu0
        %v3053 = vpop.f32.mrb[0].mxu0
        %v3054 = vadd.f32 0.0, %v3053
        %v3055 = vpop.f32.mrb[0].mxu0
        %3056 = vdwg.mxu0
        %v3057 = vadd.f32 %v2904, %v2995
        %v3058 = vadd.f32 %v2905, %v2998
        %v3059 = vadd.f32 %v2906, %v3003
        %v3060 = vadd.f32 %v2907, %v3006
        %v3061 = vadd.f32 %v2908, %v3011
        %v3062 = vadd.f32 %v2909, %v3014
        %v3063 = vadd.f32 %v2910, %v3019
        %v3064 = vadd.f32 %v2911, %v3022
        %v3065 = vadd.f32 %v2912, %v3027
        %v3066 = vadd.f32 %v2913, %v3030
        %v3067 = vadd.f32 %v2914, %v3035
        %v3068 = vadd.f32 %v2915, %v3038
        %v3069 = vadd.f32 %v2916, %v3043
        %v3070 = vadd.f32 %v2917, %v3046
        %v3071 = vadd.f32 %v2918, %v3051
        %v3072 = vadd.f32 %v2919, %v3054
        %3073 = vst.msk [vmem:[%s2807] sm:$0xff] %vm1528, %v3057
        %3074 = vst.msk [vmem:[%s2807 + $0x8] sm:$0xff] %vm1528, %v3058
        %3075 = vst.msk [vmem:[%s2807 + $0x10] sm:$0xff] %vm1528, %v3059
        %3076 = vst.msk [vmem:[%s2807 + $0x18] sm:$0xff] %vm1528, %v3060
        %3077 = vst.msk [vmem:[%s2807 + $0x20] sm:$0xff] %vm1528, %v3061
        %3078 = vst.msk [vmem:[%s2807 + $0x28] sm:$0xff] %vm1528, %v3062
        %3079 = vst.msk [vmem:[%s2807 + $0x30] sm:$0xff] %vm1528, %v3063
        %3080 = vst.msk [vmem:[%s2807 + $0x38] sm:$0xff] %vm1528, %v3064
        %3081 = vst.msk [vmem:[%s2807 + $0x40] sm:$0xff] %vm1528, %v3065
        %3082 = vst.msk [vmem:[%s2807 + $0x48] sm:$0xff] %vm1528, %v3066
        %3083 = vst.msk [vmem:[%s2807 + $0x50] sm:$0xff] %vm1528, %v3067
        %3084 = vst.msk [vmem:[%s2807 + $0x58] sm:$0xff] %vm1528, %v3068
        %3085 = vst.msk [vmem:[%s2807 + $0x60] sm:$0xff] %vm1528, %v3069
        %3086 = vst.msk [vmem:[%s2807 + $0x68] sm:$0xff] %vm1528, %v3070
        %3087 = vst.msk [vmem:[%s2807 + $0x70] sm:$0xff] %vm1528, %v3071
        %3088 = vst.msk [vmem:[%s2807 + $0x78] sm:$0xff] %vm1528, %v3072
        %3089 = vst.msk [vmem:[%s2469] sm:$0xff] %vm1994, %v2518
        %3090 = vst.msk [vmem:[%s2469 + $0x8] sm:$0xff] %vm1994, %v2519
        %3091 = vst.msk [vmem:[%s2469 + $0x10] sm:$0xff] %vm1994, %v2520
        %3092 = vst.msk [vmem:[%s2469 + $0x18] sm:$0xff] %vm1994, %v2521
        %3093 = vst.msk [vmem:[%s2469 + $0x20] sm:$0xff] %vm1994, %v2522
        %3094 = vst.msk [vmem:[%s2469 + $0x28] sm:$0xff] %vm1994, %v2523
        %3095 = vst.msk [vmem:[%s2469 + $0x30] sm:$0xff] %vm1994, %v2524
        %3096 = vst.msk [vmem:[%s2469 + $0x38] sm:$0xff] %vm1994, %v2525
        %3097 = vst.msk [vmem:[%s2469 + $0x40] sm:$0xff] %vm1994, %v2526
        %3098 = vst.msk [vmem:[%s2469 + $0x48] sm:$0xff] %vm1994, %v2527
        %3099 = vst.msk [vmem:[%s2469 + $0x50] sm:$0xff] %vm1994, %v2528
        %3100 = vst.msk [vmem:[%s2469 + $0x58] sm:$0xff] %vm1994, %v2529
        %3101 = vst.msk [vmem:[%s2469 + $0x60] sm:$0xff] %vm1994, %v2530
        %3102 = vst.msk [vmem:[%s2469 + $0x68] sm:$0xff] %vm1994, %v2531
        %3103 = vst.msk [vmem:[%s2469 + $0x70] sm:$0xff] %vm1994, %v2532
        %3104 = vst.msk [vmem:[%s2469 + $0x78] sm:$0xff] %vm1994, %v2533
        %3105 = vrot.lane.b32.xlu0 %v1520, 64
        %v3106 = vpop.permute.xlu0 %3105
        %3107 = vrot.lane.b32.xlu0 %v1521, 64
        %v3108 = vpop.permute.xlu0 %3107
        %3109 = vrot.lane.b32.xlu0 %v1522, 64
        %v3110 = vpop.permute.xlu0 %3109
        %3111 = vrot.lane.b32.xlu0 %v1523, 64
        %v3112 = vpop.permute.xlu0 %3111
        %3113 = vrot.lane.b32.xlu0 %v1524, 64
        %v3114 = vpop.permute.xlu0 %3113
        %3115 = vrot.lane.b32.xlu0 %v1525, 64
        %v3116 = vpop.permute.xlu0 %3115
        %3117 = vrot.lane.b32.xlu0 %v1526, 64
        %v3118 = vpop.permute.xlu0 %3117
        %3119 = vrot.lane.b32.xlu0 %v1527, 64
        %v3120 = vpop.permute.xlu0 %3119
        %3121 = vrot.lane.b32.xlu0 %v1336, 64
        %v3122 = vpop.permute.xlu0 %3121
        %3123 = vrot.lane.b32.xlu0 %v1337, 64
        %v3124 = vpop.permute.xlu0 %3123
        %3125 = vrot.lane.b32.xlu0 %v1338, 64
        %v3126 = vpop.permute.xlu0 %3125
        %3127 = vrot.lane.b32.xlu0 %v1339, 64
        %v3128 = vpop.permute.xlu0 %3127
        %3129 = vrot.lane.b32.xlu0 %v1340, 64
        %v3130 = vpop.permute.xlu0 %3129
        %3131 = vrot.lane.b32.xlu0 %v1341, 64
        %v3132 = vpop.permute.xlu0 %3131
        %3133 = vrot.lane.b32.xlu0 %v1342, 64
        %v3134 = vpop.permute.xlu0 %3133
        %3135 = vrot.lane.b32.xlu0 %v1343, 64
        %v3136 = vpop.permute.xlu0 %3135
        %v3138 = vsel %vm1528, %v3106, 0
        %v3141 = vsel %vm1528, %v3108, 0
        %v3144 = vsel %vm1528, %v3110, 0
        %v3147 = vsel %vm1528, %v3112, 0
        %v3150 = vsel %vm1528, %v3114, 0
        %v3153 = vsel %vm1528, %v3116, 0
        %v3156 = vsel %vm1528, %v3118, 0
        %v3159 = vsel %vm1528, %v3120, 0
        %v3162 = vsel %vm1528, %v3122, 0
        %v3165 = vsel %vm1528, %v3124, 0
        %v3168 = vsel %vm1528, %v3126, 0
        %v3171 = vsel %vm1528, %v3128, 0
        %v3174 = vsel %vm1528, %v3130, 0
        %v3177 = vsel %vm1528, %v3132, 0
        %v3180 = vsel %vm1528, %v3134, 0
        %v3183 = vsel %vm1528, %v3136, 0
        %3185 = vmatprep.subr.bf16.mxu0 0
        %3186 = vmatpush1.bf16.xpose.msra.mxu0 %v3162
        %3187 = vmatprep.subr.bf16.mxu0 0
        %3188 = vmatpush1.bf16.xpose.msra.mxu0 %v3165
        %3189 = vmatprep.subr.bf16.mxu0 0
        %3190 = vmatpush1.bf16.xpose.msra.mxu0 %v3168
        %3191 = vmatprep.subr.bf16.mxu0 0
        %3192 = vmatpush1.bf16.xpose.msra.mxu0 %v3171
        %3193 = vmatprep.subr.bf16.mxu0 0
        %3194 = vmatpush1.bf16.xpose.msra.mxu0 %v3174
        %3195 = vmatprep.subr.bf16.mxu0 0
        %3196 = vmatpush1.bf16.xpose.msra.mxu0 %v3177
        %3197 = vmatprep.subr.bf16.mxu0 0
        %3198 = vmatpush1.bf16.xpose.msra.mxu0 %v3180
        %3199 = vmatprep.subr.bf16.mxu0 0
        %3200 = vmatpush1.bf16.xpose.msra.mxu0 %v3183
        %3201 = vmatprep.subr.bf16.mxu0 0
        %3202 = vmatpush1.bf16.xpose.msra.mxu0 0
        %3203 = vmatprep.subr.bf16.mxu0 0
        %3204 = vmatpush1.bf16.xpose.msra.mxu0 0
        %3205 = vmatprep.subr.bf16.mxu0 0
        %3206 = vmatpush1.bf16.xpose.msra.mxu0 0
        %3207 = vmatprep.subr.bf16.mxu0 0
        %3208 = vmatpush1.bf16.xpose.msra.mxu0 0
        %3209 = vmatprep.subr.bf16.mxu0 0
        %3210 = vmatpush1.bf16.xpose.msra.mxu0 0
        %3211 = vmatprep.subr.bf16.mxu0 0
        %3212 = vmatpush1.bf16.xpose.msra.mxu0 0
        %3213 = vmatprep.subr.bf16.mxu0 0
        %3214 = vmatpush1.bf16.xpose.msra.mxu0 0
        %3215 = vmatprep.subr.bf16.mxu0 0
        %3216 = vmatpush1.bf16.xpose.msra.mxu0 0
        %3217 = vmatprep.mubr.bf16.mxu0 0
        %3218 = vmatmul.mubr.bf16.gmra.mrb[0].mxu0 %v3138
        %v3219 = vpop.f32.mrb[0].mxu0
        %v3220 = vadd.f32 0.0, %v3219
        %v3221 = vpop.f32.mrb[0].mxu0
        %v3222 = vpop.f32.mrb[0].mxu0
        %v3223 = vadd.f32 0.0, %v3222
        %v3224 = vpop.f32.mrb[0].mxu0
        %3225 = vmatprep.mubr.bf16.mxu0 0
        %3226 = vmatmul.mubr.bf16.gmra.mrb[0].mxu0 %v3141
        %v3227 = vpop.f32.mrb[0].mxu0
        %v3228 = vadd.f32 0.0, %v3227
        %v3229 = vpop.f32.mrb[0].mxu0
        %v3230 = vpop.f32.mrb[0].mxu0
        %v3231 = vadd.f32 0.0, %v3230
        %v3232 = vpop.f32.mrb[0].mxu0
        %3233 = vmatprep.mubr.bf16.mxu0 0
        %3234 = vmatmul.mubr.bf16.gmra.mrb[0].mxu0 %v3144
        %v3235 = vpop.f32.mrb[0].mxu0
        %v3236 = vadd.f32 0.0, %v3235
        %v3237 = vpop.f32.mrb[0].mxu0
        %v3238 = vpop.f32.mrb[0].mxu0
        %v3239 = vadd.f32 0.0, %v3238
        %v3240 = vpop.f32.mrb[0].mxu0
        %3241 = vmatprep.mubr.bf16.mxu0 0
        %3242 = vmatmul.mubr.bf16.gmra.mrb[0].mxu0 %v3147
        %v3243 = vpop.f32.mrb[0].mxu0
        %v3244 = vadd.f32 0.0, %v3243
        %v3245 = vpop.f32.mrb[0].mxu0
        %v3246 = vpop.f32.mrb[0].mxu0
        %v3247 = vadd.f32 0.0, %v3246
        %v3248 = vpop.f32.mrb[0].mxu0
        %3249 = vmatprep.mubr.bf16.mxu0 0
        %3250 = vmatmul.mubr.bf16.gmra.mrb[0].mxu0 %v3150
        %v3251 = vpop.f32.mrb[0].mxu0
        %v3252 = vadd.f32 0.0, %v3251
        %v3253 = vpop.f32.mrb[0].mxu0
        %v3254 = vpop.f32.mrb[0].mxu0
        %v3255 = vadd.f32 0.0, %v3254
        %v3256 = vpop.f32.mrb[0].mxu0
        %3257 = vmatprep.mubr.bf16.mxu0 0
        %3258 = vmatmul.mubr.bf16.gmra.mrb[0].mxu0 %v3153
        %v3259 = vpop.f32.mrb[0].mxu0
        %v3260 = vadd.f32 0.0, %v3259
        %v3261 = vpop.f32.mrb[0].mxu0
        %v3262 = vpop.f32.mrb[0].mxu0
        %v3263 = vadd.f32 0.0, %v3262
        %v3264 = vpop.f32.mrb[0].mxu0
        %3265 = vmatprep.mubr.bf16.mxu0 0
        %3266 = vmatmul.mubr.bf16.gmra.mrb[0].mxu0 %v3156
        %v3267 = vpop.f32.mrb[0].mxu0
        %v3268 = vadd.f32 0.0, %v3267
        %v3269 = vpop.f32.mrb[0].mxu0
        %v3270 = vpop.f32.mrb[0].mxu0
        %v3271 = vadd.f32 0.0, %v3270
        %v3272 = vpop.f32.mrb[0].mxu0
        %3273 = vmatprep.mubr.bf16.mxu0 0
        %3274 = vmatmul.mubr.bf16.gmra.mrb[0].mxu0 %v3159
        %v3275 = vpop.f32.mrb[0].mxu0
        %v3276 = vadd.f32 0.0, %v3275
        %v3277 = vpop.f32.mrb[0].mxu0
        %v3278 = vpop.f32.mrb[0].mxu0
        %v3279 = vadd.f32 0.0, %v3278
        %v3280 = vpop.f32.mrb[0].mxu0
        %3281 = vdwg.mxu0
        %s3282 = scalar_lea.vmem [#allocation4], 256
        %v3283 = vld [vmem:[%s3282] sm:$0xff]
        %v3284 = vld [vmem:[%s3282 + $0x8] sm:$0xff]
        %v3285 = vld [vmem:[%s3282 + $0x10] sm:$0xff]
        %v3286 = vld [vmem:[%s3282 + $0x18] sm:$0xff]
        %v3287 = vld [vmem:[%s3282 + $0x20] sm:$0xff]
        %v3288 = vld [vmem:[%s3282 + $0x28] sm:$0xff]
        %v3289 = vld [vmem:[%s3282 + $0x30] sm:$0xff]
        %v3290 = vld [vmem:[%s3282 + $0x38] sm:$0xff]
        %v3291 = vld [vmem:[%s3282 + $0x40] sm:$0xff]
        %v3292 = vld [vmem:[%s3282 + $0x48] sm:$0xff]
        %v3293 = vld [vmem:[%s3282 + $0x50] sm:$0xff]
        %v3294 = vld [vmem:[%s3282 + $0x58] sm:$0xff]
        %v3295 = vld [vmem:[%s3282 + $0x60] sm:$0xff]
        %v3296 = vld [vmem:[%s3282 + $0x68] sm:$0xff]
        %v3297 = vld [vmem:[%s3282 + $0x70] sm:$0xff]
        %v3298 = vld [vmem:[%s3282 + $0x78] sm:$0xff]
        %3299 = vmax.xlane.f32.xlu0 %v3220
        %v3300 = vpop.xlane.xlu0 %3299
        %3301 = vmax.xlane.f32.xlu0 %v3223
        %v3302 = vpop.xlane.xlu0 %3301
        %3303 = vmax.xlane.f32.xlu0 %v3228
        %v3304 = vpop.xlane.xlu0 %3303
        %3305 = vmax.xlane.f32.xlu0 %v3231
        %v3306 = vpop.xlane.xlu0 %3305
        %3307 = vmax.xlane.f32.xlu0 %v3236
        %v3308 = vpop.xlane.xlu0 %3307
        %3309 = vmax.xlane.f32.xlu0 %v3239
        %v3310 = vpop.xlane.xlu0 %3309
        %3311 = vmax.xlane.f32.xlu0 %v3244
        %v3312 = vpop.xlane.xlu0 %3311
        %3313 = vmax.xlane.f32.xlu0 %v3247
        %v3314 = vpop.xlane.xlu0 %3313
        %3315 = vmax.xlane.f32.xlu0 %v3252
        %v3316 = vpop.xlane.xlu0 %3315
        %3317 = vmax.xlane.f32.xlu0 %v3255
        %v3318 = vpop.xlane.xlu0 %3317
        %3319 = vmax.xlane.f32.xlu0 %v3260
        %v3320 = vpop.xlane.xlu0 %3319
        %3321 = vmax.xlane.f32.xlu0 %v3263
        %v3322 = vpop.xlane.xlu0 %3321
        %3323 = vmax.xlane.f32.xlu0 %v3268
        %v3324 = vpop.xlane.xlu0 %3323
        %3325 = vmax.xlane.f32.xlu0 %v3271
        %v3326 = vpop.xlane.xlu0 %3325
        %3327 = vmax.xlane.f32.xlu0 %v3276
        %v3328 = vpop.xlane.xlu0 %3327
        %3329 = vmax.xlane.f32.xlu0 %v3279
        %v3330 = vpop.xlane.xlu0 %3329
        %v3331 = vmax.f32 %v3283, %v3300
        %v3332 = vmax.f32 %v3284, %v3302
        %v3333 = vmax.f32 %v3285, %v3304
        %v3334 = vmax.f32 %v3286, %v3306
        %v3335 = vmax.f32 %v3287, %v3308
        %v3336 = vmax.f32 %v3288, %v3310
        %v3337 = vmax.f32 %v3289, %v3312
        %v3338 = vmax.f32 %v3290, %v3314
        %v3339 = vmax.f32 %v3291, %v3316
        %v3340 = vmax.f32 %v3292, %v3318
        %v3341 = vmax.f32 %v3293, %v3320
        %v3342 = vmax.f32 %v3294, %v3322
        %v3343 = vmax.f32 %v3295, %v3324
        %v3344 = vmax.f32 %v3296, %v3326
        %v3345 = vmax.f32 %v3297, %v3328
        %v3346 = vmax.f32 %v3298, %v3330
        %v3347 = vsub.f32 %v3283, %v3331
        %v3348 = vsub.f32 %v3284, %v3332
        %v3349 = vsub.f32 %v3285, %v3333
        %v3350 = vsub.f32 %v3286, %v3334
        %v3351 = vsub.f32 %v3287, %v3335
        %v3352 = vsub.f32 %v3288, %v3336
        %v3353 = vsub.f32 %v3289, %v3337
        %v3354 = vsub.f32 %v3290, %v3338
        %v3355 = vsub.f32 %v3291, %v3339
        %v3356 = vsub.f32 %v3292, %v3340
        %v3357 = vsub.f32 %v3293, %v3341
        %v3358 = vsub.f32 %v3294, %v3342
        %v3359 = vsub.f32 %v3295, %v3343
        %v3360 = vsub.f32 %v3296, %v3344
        %v3361 = vsub.f32 %v3297, %v3345
        %v3362 = vsub.f32 %v3298, %v3346
        %v3363 = vmul.f32 %v3347, 1.442695
        %v3364 = vpow.pop %v3363
        %v3365 = vmul.f32 %v3348, 1.442695
        %v3366 = vpow.pop %v3365
        %v3367 = vmul.f32 %v3349, 1.442695
        %v3368 = vpow.pop %v3367
        %v3369 = vmul.f32 %v3350, 1.442695
        %v3370 = vpow.pop %v3369
        %v3371 = vmul.f32 %v3351, 1.442695
        %v3372 = vpow.pop %v3371
        %v3373 = vmul.f32 %v3352, 1.442695
        %v3374 = vpow.pop %v3373
        %v3375 = vmul.f32 %v3353, 1.442695
        %v3376 = vpow.pop %v3375
        %v3377 = vmul.f32 %v3354, 1.442695
        %v3378 = vpow.pop %v3377
        %v3379 = vmul.f32 %v3355, 1.442695
        %v3380 = vpow.pop %v3379
        %v3381 = vmul.f32 %v3356, 1.442695
        %v3382 = vpow.pop %v3381
        %v3383 = vmul.f32 %v3357, 1.442695
        %v3384 = vpow.pop %v3383
        %v3385 = vmul.f32 %v3358, 1.442695
        %v3386 = vpow.pop %v3385
        %v3387 = vmul.f32 %v3359, 1.442695
        %v3388 = vpow.pop %v3387
        %v3389 = vmul.f32 %v3360, 1.442695
        %v3390 = vpow.pop %v3389
        %v3391 = vmul.f32 %v3361, 1.442695
        %v3392 = vpow.pop %v3391
        %v3393 = vmul.f32 %v3362, 1.442695
        %v3394 = vpow.pop %v3393
        %3396 = vset.pattern.permute.xlu0 0
        %3397 = vperm.xlu0 %3396, %v3331
        %v3398 = vpop.permute.xlu0 %3397
        %3401 = vset.pattern.permute.xlu0 0
        %3402 = vperm.xlu0 %3401, %v3332
        %v3403 = vpop.permute.xlu0 %3402
        %3406 = vset.pattern.permute.xlu0 0
        %3407 = vperm.xlu0 %3406, %v3333
        %v3408 = vpop.permute.xlu0 %3407
        %3411 = vset.pattern.permute.xlu0 0
        %3412 = vperm.xlu0 %3411, %v3334
        %v3413 = vpop.permute.xlu0 %3412
        %3416 = vset.pattern.permute.xlu0 0
        %3417 = vperm.xlu0 %3416, %v3335
        %v3418 = vpop.permute.xlu0 %3417
        %3421 = vset.pattern.permute.xlu0 0
        %3422 = vperm.xlu0 %3421, %v3336
        %v3423 = vpop.permute.xlu0 %3422
        %3426 = vset.pattern.permute.xlu0 0
        %3427 = vperm.xlu0 %3426, %v3337
        %v3428 = vpop.permute.xlu0 %3427
        %3431 = vset.pattern.permute.xlu0 0
        %3432 = vperm.xlu0 %3431, %v3338
        %v3433 = vpop.permute.xlu0 %3432
        %3436 = vset.pattern.permute.xlu0 0
        %3437 = vperm.xlu0 %3436, %v3339
        %v3438 = vpop.permute.xlu0 %3437
        %3441 = vset.pattern.permute.xlu0 0
        %3442 = vperm.xlu0 %3441, %v3340
        %v3443 = vpop.permute.xlu0 %3442
        %3446 = vset.pattern.permute.xlu0 0
        %3447 = vperm.xlu0 %3446, %v3341
        %v3448 = vpop.permute.xlu0 %3447
        %3451 = vset.pattern.permute.xlu0 0
        %3452 = vperm.xlu0 %3451, %v3342
        %v3453 = vpop.permute.xlu0 %3452
        %3456 = vset.pattern.permute.xlu0 0
        %3457 = vperm.xlu0 %3456, %v3343
        %v3458 = vpop.permute.xlu0 %3457
        %3461 = vset.pattern.permute.xlu0 0
        %3462 = vperm.xlu0 %3461, %v3344
        %v3463 = vpop.permute.xlu0 %3462
        %3466 = vset.pattern.permute.xlu0 0
        %3467 = vperm.xlu0 %3466, %v3345
        %v3468 = vpop.permute.xlu0 %3467
        %3471 = vset.pattern.permute.xlu0 0
        %3472 = vperm.xlu0 %3471, %v3346
        %v3473 = vpop.permute.xlu0 %3472
        %v3475 = vsub.f32 %v3220, %v3398
        %v3476 = vsub.f32 %v3223, %v3403
        %v3477 = vsub.f32 %v3228, %v3408
        %v3478 = vsub.f32 %v3231, %v3413
        %v3479 = vsub.f32 %v3236, %v3418
        %v3480 = vsub.f32 %v3239, %v3423
        %v3481 = vsub.f32 %v3244, %v3428
        %v3482 = vsub.f32 %v3247, %v3433
        %v3483 = vsub.f32 %v3252, %v3438
        %v3484 = vsub.f32 %v3255, %v3443
        %v3485 = vsub.f32 %v3260, %v3448
        %v3486 = vsub.f32 %v3263, %v3453
        %v3487 = vsub.f32 %v3268, %v3458
        %v3488 = vsub.f32 %v3271, %v3463
        %v3489 = vsub.f32 %v3276, %v3468
        %v3490 = vsub.f32 %v3279, %v3473
        %v3491 = vmul.f32 %v3475, 1.442695
        %v3492 = vpow.pop %v3491
        %v3493 = vmul.f32 %v3476, 1.442695
        %v3494 = vpow.pop %v3493
        %v3495 = vmul.f32 %v3477, 1.442695
        %v3496 = vpow.pop %v3495
        %v3497 = vmul.f32 %v3478, 1.442695
        %v3498 = vpow.pop %v3497
        %v3499 = vmul.f32 %v3479, 1.442695
        %v3500 = vpow.pop %v3499
        %v3501 = vmul.f32 %v3480, 1.442695
        %v3502 = vpow.pop %v3501
        %v3503 = vmul.f32 %v3481, 1.442695
        %v3504 = vpow.pop %v3503
        %v3505 = vmul.f32 %v3482, 1.442695
        %v3506 = vpow.pop %v3505
        %v3507 = vmul.f32 %v3483, 1.442695
        %v3508 = vpow.pop %v3507
        %v3509 = vmul.f32 %v3484, 1.442695
        %v3510 = vpow.pop %v3509
        %v3511 = vmul.f32 %v3485, 1.442695
        %v3512 = vpow.pop %v3511
        %v3513 = vmul.f32 %v3486, 1.442695
        %v3514 = vpow.pop %v3513
        %v3515 = vmul.f32 %v3487, 1.442695
        %v3516 = vpow.pop %v3515
        %v3517 = vmul.f32 %v3488, 1.442695
        %v3518 = vpow.pop %v3517
        %v3519 = vmul.f32 %v3489, 1.442695
        %v3520 = vpow.pop %v3519
        %v3521 = vmul.f32 %v3490, 1.442695
        %v3522 = vpow.pop %v3521
        %s3523 = scalar_lea.vmem [#allocation5], 256
        %v3524 = vld [vmem:[%s3523] sm:$0xff]
        %v3525 = vld [vmem:[%s3523 + $0x8] sm:$0xff]
        %v3526 = vld [vmem:[%s3523 + $0x10] sm:$0xff]
        %v3527 = vld [vmem:[%s3523 + $0x18] sm:$0xff]
        %v3528 = vld [vmem:[%s3523 + $0x20] sm:$0xff]
        %v3529 = vld [vmem:[%s3523 + $0x28] sm:$0xff]
        %v3530 = vld [vmem:[%s3523 + $0x30] sm:$0xff]
        %v3531 = vld [vmem:[%s3523 + $0x38] sm:$0xff]
        %v3532 = vld [vmem:[%s3523 + $0x40] sm:$0xff]
        %v3533 = vld [vmem:[%s3523 + $0x48] sm:$0xff]
        %v3534 = vld [vmem:[%s3523 + $0x50] sm:$0xff]
        %v3535 = vld [vmem:[%s3523 + $0x58] sm:$0xff]
        %v3536 = vld [vmem:[%s3523 + $0x60] sm:$0xff]
        %v3537 = vld [vmem:[%s3523 + $0x68] sm:$0xff]
        %v3538 = vld [vmem:[%s3523 + $0x70] sm:$0xff]
        %v3539 = vld [vmem:[%s3523 + $0x78] sm:$0xff]
        %v3540 = vmul.f32 %v3364, %v3524
        %v3541 = vmul.f32 %v3366, %v3525
        %v3542 = vmul.f32 %v3368, %v3526
        %v3543 = vmul.f32 %v3370, %v3527
        %v3544 = vmul.f32 %v3372, %v3528
        %v3545 = vmul.f32 %v3374, %v3529
        %v3546 = vmul.f32 %v3376, %v3530
        %v3547 = vmul.f32 %v3378, %v3531
        %v3548 = vmul.f32 %v3380, %v3532
        %v3549 = vmul.f32 %v3382, %v3533
        %v3550 = vmul.f32 %v3384, %v3534
        %v3551 = vmul.f32 %v3386, %v3535
        %v3552 = vmul.f32 %v3388, %v3536
        %v3553 = vmul.f32 %v3390, %v3537
        %v3554 = vmul.f32 %v3392, %v3538
        %v3555 = vmul.f32 %v3394, %v3539
        %3556 = vadd.xlane.f32.xlu0 %v3492
        %v3557 = vpop.xlane.xlu0 %3556
        %3558 = vadd.xlane.f32.xlu0 %v3494
        %v3559 = vpop.xlane.xlu0 %3558
        %3560 = vadd.xlane.f32.xlu0 %v3496
        %v3561 = vpop.xlane.xlu0 %3560
        %3562 = vadd.xlane.f32.xlu0 %v3498
        %v3563 = vpop.xlane.xlu0 %3562
        %3564 = vadd.xlane.f32.xlu0 %v3500
        %v3565 = vpop.xlane.xlu0 %3564
        %3566 = vadd.xlane.f32.xlu0 %v3502
        %v3567 = vpop.xlane.xlu0 %3566
        %3568 = vadd.xlane.f32.xlu0 %v3504
        %v3569 = vpop.xlane.xlu0 %3568
        %3570 = vadd.xlane.f32.xlu0 %v3506
        %v3571 = vpop.xlane.xlu0 %3570
        %3572 = vadd.xlane.f32.xlu0 %v3508
        %v3573 = vpop.xlane.xlu0 %3572
        %3574 = vadd.xlane.f32.xlu0 %v3510
        %v3575 = vpop.xlane.xlu0 %3574
        %3576 = vadd.xlane.f32.xlu0 %v3512
        %v3577 = vpop.xlane.xlu0 %3576
        %3578 = vadd.xlane.f32.xlu0 %v3514
        %v3579 = vpop.xlane.xlu0 %3578
        %3580 = vadd.xlane.f32.xlu0 %v3516
        %v3581 = vpop.xlane.xlu0 %3580
        %3582 = vadd.xlane.f32.xlu0 %v3518
        %v3583 = vpop.xlane.xlu0 %3582
        %3584 = vadd.xlane.f32.xlu0 %v3520
        %v3585 = vpop.xlane.xlu0 %3584
        %3586 = vadd.xlane.f32.xlu0 %v3522
        %v3587 = vpop.xlane.xlu0 %3586
        %v3588 = vadd.f32 %v3540, %v3557
        %v3589 = vadd.f32 %v3541, %v3559
        %v3590 = vadd.f32 %v3542, %v3561
        %v3591 = vadd.f32 %v3543, %v3563
        %v3592 = vadd.f32 %v3544, %v3565
        %v3593 = vadd.f32 %v3545, %v3567
        %v3594 = vadd.f32 %v3546, %v3569
        %v3595 = vadd.f32 %v3547, %v3571
        %v3596 = vadd.f32 %v3548, %v3573
        %v3597 = vadd.f32 %v3549, %v3575
        %v3598 = vadd.f32 %v3550, %v3577
        %v3599 = vadd.f32 %v3551, %v3579
        %v3600 = vadd.f32 %v3552, %v3581
        %v3601 = vadd.f32 %v3553, %v3583
        %v3602 = vadd.f32 %v3554, %v3585
        %v3603 = vadd.f32 %v3555, %v3587
        %3604 = vst.msk [vmem:[%s3523] sm:$0xff] %vm1994, %v3588
        %3605 = vst.msk [vmem:[%s3523 + $0x8] sm:$0xff] %vm1994, %v3589
        %3606 = vst.msk [vmem:[%s3523 + $0x10] sm:$0xff] %vm1994, %v3590
        %3607 = vst.msk [vmem:[%s3523 + $0x18] sm:$0xff] %vm1994, %v3591
        %3608 = vst.msk [vmem:[%s3523 + $0x20] sm:$0xff] %vm1994, %v3592
        %3609 = vst.msk [vmem:[%s3523 + $0x28] sm:$0xff] %vm1994, %v3593
        %3610 = vst.msk [vmem:[%s3523 + $0x30] sm:$0xff] %vm1994, %v3594
        %3611 = vst.msk [vmem:[%s3523 + $0x38] sm:$0xff] %vm1994, %v3595
        %3612 = vst.msk [vmem:[%s3523 + $0x40] sm:$0xff] %vm1994, %v3596
        %3613 = vst.msk [vmem:[%s3523 + $0x48] sm:$0xff] %vm1994, %v3597
        %3614 = vst.msk [vmem:[%s3523 + $0x50] sm:$0xff] %vm1994, %v3598
        %3615 = vst.msk [vmem:[%s3523 + $0x58] sm:$0xff] %vm1994, %v3599
        %3616 = vst.msk [vmem:[%s3523 + $0x60] sm:$0xff] %vm1994, %v3600
        %3617 = vst.msk [vmem:[%s3523 + $0x68] sm:$0xff] %vm1994, %v3601
        %3618 = vst.msk [vmem:[%s3523 + $0x70] sm:$0xff] %vm1994, %v3602
        %3619 = vst.msk [vmem:[%s3523 + $0x78] sm:$0xff] %vm1994, %v3603
        %s3620 = scalar_lea.vmem [#allocation3], 256
        %v3621 = vld [vmem:[%s3620] sm:$0xff]
        %v3622 = vld [vmem:[%s3620 + $0x8] sm:$0xff]
        %v3623 = vld [vmem:[%s3620 + $0x10] sm:$0xff]
        %v3624 = vld [vmem:[%s3620 + $0x18] sm:$0xff]
        %v3625 = vld [vmem:[%s3620 + $0x20] sm:$0xff]
        %v3626 = vld [vmem:[%s3620 + $0x28] sm:$0xff]
        %v3627 = vld [vmem:[%s3620 + $0x30] sm:$0xff]
        %v3628 = vld [vmem:[%s3620 + $0x38] sm:$0xff]
        %v3629 = vld [vmem:[%s3620 + $0x40] sm:$0xff]
        %v3630 = vld [vmem:[%s3620 + $0x48] sm:$0xff]
        %v3631 = vld [vmem:[%s3620 + $0x50] sm:$0xff]
        %v3632 = vld [vmem:[%s3620 + $0x58] sm:$0xff]
        %v3633 = vld [vmem:[%s3620 + $0x60] sm:$0xff]
        %v3634 = vld [vmem:[%s3620 + $0x68] sm:$0xff]
        %v3635 = vld [vmem:[%s3620 + $0x70] sm:$0xff]
        %v3636 = vld [vmem:[%s3620 + $0x78] sm:$0xff]
        %3638 = vset.pattern.permute.xlu0 0
        %3639 = vperm.xlu0 %3638, %v3364
        %v3640 = vpop.permute.xlu0 %3639
        %3643 = vset.pattern.permute.xlu0 0
        %3644 = vperm.xlu0 %3643, %v3366
        %v3645 = vpop.permute.xlu0 %3644
        %3648 = vset.pattern.permute.xlu0 0
        %3649 = vperm.xlu0 %3648, %v3368
        %v3650 = vpop.permute.xlu0 %3649
        %3653 = vset.pattern.permute.xlu0 0
        %3654 = vperm.xlu0 %3653, %v3370
        %v3655 = vpop.permute.xlu0 %3654
        %3658 = vset.pattern.permute.xlu0 0
        %3659 = vperm.xlu0 %3658, %v3372
        %v3660 = vpop.permute.xlu0 %3659
        %3663 = vset.pattern.permute.xlu0 0
        %3664 = vperm.xlu0 %3663, %v3374
        %v3665 = vpop.permute.xlu0 %3664
        %3668 = vset.pattern.permute.xlu0 0
        %3669 = vperm.xlu0 %3668, %v3376
        %v3670 = vpop.permute.xlu0 %3669
        %3673 = vset.pattern.permute.xlu0 0
        %3674 = vperm.xlu0 %3673, %v3378
        %v3675 = vpop.permute.xlu0 %3674
        %3678 = vset.pattern.permute.xlu0 0
        %3679 = vperm.xlu0 %3678, %v3380
        %v3680 = vpop.permute.xlu0 %3679
        %3683 = vset.pattern.permute.xlu0 0
        %3684 = vperm.xlu0 %3683, %v3382
        %v3685 = vpop.permute.xlu0 %3684
        %3688 = vset.pattern.permute.xlu0 0
        %3689 = vperm.xlu0 %3688, %v3384
        %v3690 = vpop.permute.xlu0 %3689
        %3693 = vset.pattern.permute.xlu0 0
        %3694 = vperm.xlu0 %3693, %v3386
        %v3695 = vpop.permute.xlu0 %3694
        %3698 = vset.pattern.permute.xlu0 0
        %3699 = vperm.xlu0 %3698, %v3388
        %v3700 = vpop.permute.xlu0 %3699
        %3703 = vset.pattern.permute.xlu0 0
        %3704 = vperm.xlu0 %3703, %v3390
        %v3705 = vpop.permute.xlu0 %3704
        %3708 = vset.pattern.permute.xlu0 0
        %3709 = vperm.xlu0 %3708, %v3392
        %v3710 = vpop.permute.xlu0 %3709
        %3713 = vset.pattern.permute.xlu0 0
        %3714 = vperm.xlu0 %3713, %v3394
        %v3715 = vpop.permute.xlu0 %3714
        %v3717 = vmul.f32 %v3640, %v3621
        %v3718 = vmul.f32 %v3645, %v3622
        %v3719 = vmul.f32 %v3650, %v3623
        %v3720 = vmul.f32 %v3655, %v3624
        %v3721 = vmul.f32 %v3660, %v3625
        %v3722 = vmul.f32 %v3665, %v3626
        %v3723 = vmul.f32 %v3670, %v3627
        %v3724 = vmul.f32 %v3675, %v3628
        %v3725 = vmul.f32 %v3680, %v3629
        %v3726 = vmul.f32 %v3685, %v3630
        %v3727 = vmul.f32 %v3690, %v3631
        %v3728 = vmul.f32 %v3695, %v3632
        %v3729 = vmul.f32 %v3700, %v3633
        %v3730 = vmul.f32 %v3705, %v3634
        %v3731 = vmul.f32 %v3710, %v3635
        %v3732 = vmul.f32 %v3715, %v3636
        %v3733 = vpack.c.bf16 %v3494, %v3492
        %v3734 = vpack.c.bf16 %v3498, %v3496
        %v3735 = vpack.c.bf16 %v3502, %v3500
        %v3736 = vpack.c.bf16 %v3506, %v3504
        %v3737 = vpack.c.bf16 %v3510, %v3508
        %v3738 = vpack.c.bf16 %v3514, %v3512
        %v3739 = vpack.c.bf16 %v3518, %v3516
        %v3740 = vpack.c.bf16 %v3522, %v3520
        %3741 = vrot.lane.b32.xlu0 %v1512, 64
        %v3742 = vpop.permute.xlu0 %3741
        %3743 = vrot.lane.b32.xlu0 %v1513, 64
        %v3744 = vpop.permute.xlu0 %3743
        %3745 = vrot.lane.b32.xlu0 %v1514, 64
        %v3746 = vpop.permute.xlu0 %3745
        %3747 = vrot.lane.b32.xlu0 %v1515, 64
        %v3748 = vpop.permute.xlu0 %3747
        %3749 = vrot.lane.b32.xlu0 %v1516, 64
        %v3750 = vpop.permute.xlu0 %3749
        %3751 = vrot.lane.b32.xlu0 %v1517, 64
        %v3752 = vpop.permute.xlu0 %3751
        %3753 = vrot.lane.b32.xlu0 %v1518, 64
        %v3754 = vpop.permute.xlu0 %3753
        %3755 = vrot.lane.b32.xlu0 %v1519, 64
        %v3756 = vpop.permute.xlu0 %3755
        %3765 = vmatprep.subr.bf16.mxu0 0
        %3766 = vmatpush1.bf16.msra.mxu0 %v3742
        %3767 = vmatprep.subr.bf16.mxu0 0
        %3768 = vmatpush1.bf16.msra.mxu0 %v3744
        %3769 = vmatprep.subr.bf16.mxu0 0
        %3770 = vmatpush1.bf16.msra.mxu0 %v3746
        %3771 = vmatprep.subr.bf16.mxu0 0
        %3772 = vmatpush1.bf16.msra.mxu0 %v3748
        %3773 = vmatprep.subr.bf16.mxu0 0
        %3774 = vmatpush1.bf16.msra.mxu0 %v3750
        %3775 = vmatprep.subr.bf16.mxu0 0
        %3776 = vmatpush1.bf16.msra.mxu0 %v3752
        %3777 = vmatprep.subr.bf16.mxu0 0
        %3778 = vmatpush1.bf16.msra.mxu0 %v3754
        %3779 = vmatprep.subr.bf16.mxu0 0
        %3780 = vmatpush1.bf16.msra.mxu0 %v3756
        %3781 = vmatprep.subr.bf16.mxu0 0
        %3782 = vmatpush1.bf16.msra.mxu0 0
        %3783 = vmatprep.subr.bf16.mxu0 0
        %3784 = vmatpush1.bf16.msra.mxu0 0
        %3785 = vmatprep.subr.bf16.mxu0 0
        %3786 = vmatpush1.bf16.msra.mxu0 0
        %3787 = vmatprep.subr.bf16.mxu0 0
        %3788 = vmatpush1.bf16.msra.mxu0 0
        %3789 = vmatprep.subr.bf16.mxu0 0
        %3790 = vmatpush1.bf16.msra.mxu0 0
        %3791 = vmatprep.subr.bf16.mxu0 0
        %3792 = vmatpush1.bf16.msra.mxu0 0
        %3793 = vmatprep.subr.bf16.mxu0 0
        %3794 = vmatpush1.bf16.msra.mxu0 0
        %3795 = vmatprep.subr.bf16.mxu0 0
        %3796 = vmatpush1.bf16.msra.mxu0 0
        %3797 = vmatprep.mubr.bf16.mxu0 0
        %3798 = vmatmul.mubr.bf16.gmra.mrb[0].mxu0 %v3733
        %v3799 = vpop.f32.mrb[0].mxu0
        %v3800 = vadd.f32 0.0, %v3799
        %v3801 = vpop.f32.mrb[0].mxu0
        %v3802 = vpop.f32.mrb[0].mxu0
        %v3803 = vadd.f32 0.0, %v3802
        %v3804 = vpop.f32.mrb[0].mxu0
        %3805 = vmatprep.mubr.bf16.mxu0 0
        %3806 = vmatmul.mubr.bf16.gmra.mrb[0].mxu0 %v3734
        %v3807 = vpop.f32.mrb[0].mxu0
        %v3808 = vadd.f32 0.0, %v3807
        %v3809 = vpop.f32.mrb[0].mxu0
        %v3810 = vpop.f32.mrb[0].mxu0
        %v3811 = vadd.f32 0.0, %v3810
        %v3812 = vpop.f32.mrb[0].mxu0
        %3813 = vmatprep.mubr.bf16.mxu0 0
        %3814 = vmatmul.mubr.bf16.gmra.mrb[0].mxu0 %v3735
        %v3815 = vpop.f32.mrb[0].mxu0
        %v3816 = vadd.f32 0.0, %v3815
        %v3817 = vpop.f32.mrb[0].mxu0
        %v3818 = vpop.f32.mrb[0].mxu0
        %v3819 = vadd.f32 0.0, %v3818
        %v3820 = vpop.f32.mrb[0].mxu0
        %3821 = vmatprep.mubr.bf16.mxu0 0
        %3822 = vmatmul.mubr.bf16.gmra.mrb[0].mxu0 %v3736
        %v3823 = vpop.f32.mrb[0].mxu0
        %v3824 = vadd.f32 0.0, %v3823
        %v3825 = vpop.f32.mrb[0].mxu0
        %v3826 = vpop.f32.mrb[0].mxu0
        %v3827 = vadd.f32 0.0, %v3826
        %v3828 = vpop.f32.mrb[0].mxu0
        %3829 = vmatprep.mubr.bf16.mxu0 0
        %3830 = vmatmul.mubr.bf16.gmra.mrb[0].mxu0 %v3737
        %v3831 = vpop.f32.mrb[0].mxu0
        %v3832 = vadd.f32 0.0, %v3831
        %v3833 = vpop.f32.mrb[0].mxu0
        %v3834 = vpop.f32.mrb[0].mxu0
        %v3835 = vadd.f32 0.0, %v3834
        %v3836 = vpop.f32.mrb[0].mxu0
        %3837 = vmatprep.mubr.bf16.mxu0 0
        %3838 = vmatmul.mubr.bf16.gmra.mrb[0].mxu0 %v3738
        %v3839 = vpop.f32.mrb[0].mxu0
        %v3840 = vadd.f32 0.0, %v3839
        %v3841 = vpop.f32.mrb[0].mxu0
        %v3842 = vpop.f32.mrb[0].mxu0
        %v3843 = vadd.f32 0.0, %v3842
        %v3844 = vpop.f32.mrb[0].mxu0
        %3845 = vmatprep.mubr.bf16.mxu0 0
        %3846 = vmatmul.mubr.bf16.gmra.mrb[0].mxu0 %v3739
        %v3847 = vpop.f32.mrb[0].mxu0
        %v3848 = vadd.f32 0.0, %v3847
        %v3849 = vpop.f32.mrb[0].mxu0
        %v3850 = vpop.f32.mrb[0].mxu0
        %v3851 = vadd.f32 0.0, %v3850
        %v3852 = vpop.f32.mrb[0].mxu0
        %3853 = vmatprep.mubr.bf16.mxu0 0
        %3854 = vmatmul.mubr.bf16.gmra.mrb[0].mxu0 %v3740
        %v3855 = vpop.f32.mrb[0].mxu0
        %v3856 = vadd.f32 0.0, %v3855
        %v3857 = vpop.f32.mrb[0].mxu0
        %v3858 = vpop.f32.mrb[0].mxu0
        %v3859 = vadd.f32 0.0, %v3858
        %v3860 = vpop.f32.mrb[0].mxu0
        %3861 = vdwg.mxu0
        %v3862 = vadd.f32 %v3717, %v3800
        %v3863 = vadd.f32 %v3718, %v3803
        %v3864 = vadd.f32 %v3719, %v3808
        %v3865 = vadd.f32 %v3720, %v3811
        %v3866 = vadd.f32 %v3721, %v3816
        %v3867 = vadd.f32 %v3722, %v3819
        %v3868 = vadd.f32 %v3723, %v3824
        %v3869 = vadd.f32 %v3724, %v3827
        %v3870 = vadd.f32 %v3725, %v3832
        %v3871 = vadd.f32 %v3726, %v3835
        %v3872 = vadd.f32 %v3727, %v3840
        %v3873 = vadd.f32 %v3728, %v3843
        %v3874 = vadd.f32 %v3729, %v3848
        %v3875 = vadd.f32 %v3730, %v3851
        %v3876 = vadd.f32 %v3731, %v3856
        %v3877 = vadd.f32 %v3732, %v3859
        %3878 = vst.msk [vmem:[%s3620] sm:$0xff] %vm1528, %v3862
        %3879 = vst.msk [vmem:[%s3620 + $0x8] sm:$0xff] %vm1528, %v3863
        %3880 = vst.msk [vmem:[%s3620 + $0x10] sm:$0xff] %vm1528, %v3864
        %3881 = vst.msk [vmem:[%s3620 + $0x18] sm:$0xff] %vm1528, %v3865
        %3882 = vst.msk [vmem:[%s3620 + $0x20] sm:$0xff] %vm1528, %v3866
        %3883 = vst.msk [vmem:[%s3620 + $0x28] sm:$0xff] %vm1528, %v3867
        %3884 = vst.msk [vmem:[%s3620 + $0x30] sm:$0xff] %vm1528, %v3868
        %3885 = vst.msk [vmem:[%s3620 + $0x38] sm:$0xff] %vm1528, %v3869
        %3886 = vst.msk [vmem:[%s3620 + $0x40] sm:$0xff] %vm1528, %v3870
        %3887 = vst.msk [vmem:[%s3620 + $0x48] sm:$0xff] %vm1528, %v3871
        %3888 = vst.msk [vmem:[%s3620 + $0x50] sm:$0xff] %vm1528, %v3872
        %3889 = vst.msk [vmem:[%s3620 + $0x58] sm:$0xff] %vm1528, %v3873
        %3890 = vst.msk [vmem:[%s3620 + $0x60] sm:$0xff] %vm1528, %v3874
        %3891 = vst.msk [vmem:[%s3620 + $0x68] sm:$0xff] %vm1528, %v3875
        %3892 = vst.msk [vmem:[%s3620 + $0x70] sm:$0xff] %vm1528, %v3876
        %3893 = vst.msk [vmem:[%s3620 + $0x78] sm:$0xff] %vm1528, %v3877
        %3894 = vst.msk [vmem:[%s3282] sm:$0xff] %vm1994, %v3331
        %3895 = vst.msk [vmem:[%s3282 + $0x8] sm:$0xff] %vm1994, %v3332
        %3896 = vst.msk [vmem:[%s3282 + $0x10] sm:$0xff] %vm1994, %v3333
        %3897 = vst.msk [vmem:[%s3282 + $0x18] sm:$0xff] %vm1994, %v3334
        %3898 = vst.msk [vmem:[%s3282 + $0x20] sm:$0xff] %vm1994, %v3335
        %3899 = vst.msk [vmem:[%s3282 + $0x28] sm:$0xff] %vm1994, %v3336
        %3900 = vst.msk [vmem:[%s3282 + $0x30] sm:$0xff] %vm1994, %v3337
        %3901 = vst.msk [vmem:[%s3282 + $0x38] sm:$0xff] %vm1994, %v3338
        %3902 = vst.msk [vmem:[%s3282 + $0x40] sm:$0xff] %vm1994, %v3339
        %3903 = vst.msk [vmem:[%s3282 + $0x48] sm:$0xff] %vm1994, %v3340
        %3904 = vst.msk [vmem:[%s3282 + $0x50] sm:$0xff] %vm1994, %v3341
        %3905 = vst.msk [vmem:[%s3282 + $0x58] sm:$0xff] %vm1994, %v3342
        %3906 = vst.msk [vmem:[%s3282 + $0x60] sm:$0xff] %vm1994, %v3343
        %3907 = vst.msk [vmem:[%s3282 + $0x68] sm:$0xff] %vm1994, %v3344
        %3908 = vst.msk [vmem:[%s3282 + $0x70] sm:$0xff] %vm1994, %v3345
        %3909 = vst.msk [vmem:[%s3282 + $0x78] sm:$0xff] %vm1994, %v3346
        %3910 = vrot.lane.b32.xlu0 %v1520, 32
        %v3911 = vpop.permute.xlu0 %3910
        %3912 = vrot.lane.b32.xlu0 %v1521, 32
        %v3913 = vpop.permute.xlu0 %3912
        %3914 = vrot.lane.b32.xlu0 %v1522, 32
        %v3915 = vpop.permute.xlu0 %3914
        %3916 = vrot.lane.b32.xlu0 %v1523, 32
        %v3917 = vpop.permute.xlu0 %3916
        %3918 = vrot.lane.b32.xlu0 %v1524, 32
        %v3919 = vpop.permute.xlu0 %3918
        %3920 = vrot.lane.b32.xlu0 %v1525, 32
        %v3921 = vpop.permute.xlu0 %3920
        %3922 = vrot.lane.b32.xlu0 %v1526, 32
        %v3923 = vpop.permute.xlu0 %3922
        %3924 = vrot.lane.b32.xlu0 %v1527, 32
        %v3925 = vpop.permute.xlu0 %3924
        %3926 = vrot.lane.b32.xlu0 %v1336, 32
        %v3927 = vpop.permute.xlu0 %3926
        %3928 = vrot.lane.b32.xlu0 %v1337, 32
        %v3929 = vpop.permute.xlu0 %3928
        %3930 = vrot.lane.b32.xlu0 %v1338, 32
        %v3931 = vpop.permute.xlu0 %3930
        %3932 = vrot.lane.b32.xlu0 %v1339, 32
        %v3933 = vpop.permute.xlu0 %3932
        %3934 = vrot.lane.b32.xlu0 %v1340, 32
        %v3935 = vpop.permute.xlu0 %3934
        %3936 = vrot.lane.b32.xlu0 %v1341, 32
        %v3937 = vpop.permute.xlu0 %3936
        %3938 = vrot.lane.b32.xlu0 %v1342, 32
        %v3939 = vpop.permute.xlu0 %3938
        %3940 = vrot.lane.b32.xlu0 %v1343, 32
        %v3941 = vpop.permute.xlu0 %3940
        %v3943 = vsel %vm1528, %v3911, 0
        %v3946 = vsel %vm1528, %v3913, 0
        %v3949 = vsel %vm1528, %v3915, 0
        %v3952 = vsel %vm1528, %v3917, 0
        %v3955 = vsel %vm1528, %v3919, 0
        %v3958 = vsel %vm1528, %v3921, 0
        %v3961 = vsel %vm1528, %v3923, 0
        %v3964 = vsel %vm1528, %v3925, 0
        %v3967 = vsel %vm1528, %v3927, 0
        %v3970 = vsel %vm1528, %v3929, 0
        %v3973 = vsel %vm1528, %v3931, 0
        %v3976 = vsel %vm1528, %v3933, 0
        %v3979 = vsel %vm1528, %v3935, 0
        %v3982 = vsel %vm1528, %v3937, 0
        %v3985 = vsel %vm1528, %v3939, 0
        %v3988 = vsel %vm1528, %v3941, 0
        %3990 = vmatprep.subr.bf16.mxu0 0
        %3991 = vmatpush1.bf16.xpose.msra.mxu0 %v3967
        %3992 = vmatprep.subr.bf16.mxu0 0
        %3993 = vmatpush1.bf16.xpose.msra.mxu0 %v3970
        %3994 = vmatprep.subr.bf16.mxu0 0
        %3995 = vmatpush1.bf16.xpose.msra.mxu0 %v3973
        %3996 = vmatprep.subr.bf16.mxu0 0
        %3997 = vmatpush1.bf16.xpose.msra.mxu0 %v3976
        %3998 = vmatprep.subr.bf16.mxu0 0
        %3999 = vmatpush1.bf16.xpose.msra.mxu0 %v3979
        %4000 = vmatprep.subr.bf16.mxu0 0
        %4001 = vmatpush1.bf16.xpose.msra.mxu0 %v3982
        %4002 = vmatprep.subr.bf16.mxu0 0
        %4003 = vmatpush1.bf16.xpose.msra.mxu0 %v3985
        %4004 = vmatprep.subr.bf16.mxu0 0
        %4005 = vmatpush1.bf16.xpose.msra.mxu0 %v3988
        %4006 = vmatprep.subr.bf16.mxu0 0
        %4007 = vmatpush1.bf16.xpose.msra.mxu0 0
        %4008 = vmatprep.subr.bf16.mxu0 0
        %4009 = vmatpush1.bf16.xpose.msra.mxu0 0
        %4010 = vmatprep.subr.bf16.mxu0 0
        %4011 = vmatpush1.bf16.xpose.msra.mxu0 0
        %4012 = vmatprep.subr.bf16.mxu0 0
        %4013 = vmatpush1.bf16.xpose.msra.mxu0 0
        %4014 = vmatprep.subr.bf16.mxu0 0
        %4015 = vmatpush1.bf16.xpose.msra.mxu0 0
        %4016 = vmatprep.subr.bf16.mxu0 0
        %4017 = vmatpush1.bf16.xpose.msra.mxu0 0
        %4018 = vmatprep.subr.bf16.mxu0 0
        %4019 = vmatpush1.bf16.xpose.msra.mxu0 0
        %4020 = vmatprep.subr.bf16.mxu0 0
        %4021 = vmatpush1.bf16.xpose.msra.mxu0 0
        %4022 = vmatprep.mubr.bf16.mxu0 0
        %4023 = vmatmul.mubr.bf16.gmra.mrb[0].mxu0 %v3943
        %v4024 = vpop.f32.mrb[0].mxu0
        %v4025 = vadd.f32 0.0, %v4024
        %v4026 = vpop.f32.mrb[0].mxu0
        %v4027 = vpop.f32.mrb[0].mxu0
        %v4028 = vadd.f32 0.0, %v4027
        %v4029 = vpop.f32.mrb[0].mxu0
        %4030 = vmatprep.mubr.bf16.mxu0 0
        %4031 = vmatmul.mubr.bf16.gmra.mrb[0].mxu0 %v3946
        %v4032 = vpop.f32.mrb[0].mxu0
        %v4033 = vadd.f32 0.0, %v4032
        %v4034 = vpop.f32.mrb[0].mxu0
        %v4035 = vpop.f32.mrb[0].mxu0
        %v4036 = vadd.f32 0.0, %v4035
        %v4037 = vpop.f32.mrb[0].mxu0
        %4038 = vmatprep.mubr.bf16.mxu0 0
        %4039 = vmatmul.mubr.bf16.gmra.mrb[0].mxu0 %v3949
        %v4040 = vpop.f32.mrb[0].mxu0
        %v4041 = vadd.f32 0.0, %v4040
        %v4042 = vpop.f32.mrb[0].mxu0
        %v4043 = vpop.f32.mrb[0].mxu0
        %v4044 = vadd.f32 0.0, %v4043
        %v4045 = vpop.f32.mrb[0].mxu0
        %4046 = vmatprep.mubr.bf16.mxu0 0
        %4047 = vmatmul.mubr.bf16.gmra.mrb[0].mxu0 %v3952
        %v4048 = vpop.f32.mrb[0].mxu0
        %v4049 = vadd.f32 0.0, %v4048
        %v4050 = vpop.f32.mrb[0].mxu0
        %v4051 = vpop.f32.mrb[0].mxu0
        %v4052 = vadd.f32 0.0, %v4051
        %v4053 = vpop.f32.mrb[0].mxu0
        %4054 = vmatprep.mubr.bf16.mxu0 0
        %4055 = vmatmul.mubr.bf16.gmra.mrb[0].mxu0 %v3955
        %v4056 = vpop.f32.mrb[0].mxu0
        %v4057 = vadd.f32 0.0, %v4056
        %v4058 = vpop.f32.mrb[0].mxu0
        %v4059 = vpop.f32.mrb[0].mxu0
        %v4060 = vadd.f32 0.0, %v4059
        %v4061 = vpop.f32.mrb[0].mxu0
        %4062 = vmatprep.mubr.bf16.mxu0 0
        %4063 = vmatmul.mubr.bf16.gmra.mrb[0].mxu0 %v3958
        %v4064 = vpop.f32.mrb[0].mxu0
        %v4065 = vadd.f32 0.0, %v4064
        %v4066 = vpop.f32.mrb[0].mxu0
        %v4067 = vpop.f32.mrb[0].mxu0
        %v4068 = vadd.f32 0.0, %v4067
        %v4069 = vpop.f32.mrb[0].mxu0
        %4070 = vmatprep.mubr.bf16.mxu0 0
        %4071 = vmatmul.mubr.bf16.gmra.mrb[0].mxu0 %v3961
        %v4072 = vpop.f32.mrb[0].mxu0
        %v4073 = vadd.f32 0.0, %v4072
        %v4074 = vpop.f32.mrb[0].mxu0
        %v4075 = vpop.f32.mrb[0].mxu0
        %v4076 = vadd.f32 0.0, %v4075
        %v4077 = vpop.f32.mrb[0].mxu0
        %4078 = vmatprep.mubr.bf16.mxu0 0
        %4079 = vmatmul.mubr.bf16.gmra.mrb[0].mxu0 %v3964
        %v4080 = vpop.f32.mrb[0].mxu0
        %v4081 = vadd.f32 0.0, %v4080
        %v4082 = vpop.f32.mrb[0].mxu0
        %v4083 = vpop.f32.mrb[0].mxu0
        %v4084 = vadd.f32 0.0, %v4083
        %v4085 = vpop.f32.mrb[0].mxu0
        %4086 = vdwg.mxu0
        %s4087 = scalar_lea.vmem [#allocation4], 384
        %v4088 = vld [vmem:[%s4087] sm:$0xff]
        %v4089 = vld [vmem:[%s4087 + $0x8] sm:$0xff]
        %v4090 = vld [vmem:[%s4087 + $0x10] sm:$0xff]
        %v4091 = vld [vmem:[%s4087 + $0x18] sm:$0xff]
        %v4092 = vld [vmem:[%s4087 + $0x20] sm:$0xff]
        %v4093 = vld [vmem:[%s4087 + $0x28] sm:$0xff]
        %v4094 = vld [vmem:[%s4087 + $0x30] sm:$0xff]
        %v4095 = vld [vmem:[%s4087 + $0x38] sm:$0xff]
        %v4096 = vld [vmem:[%s4087 + $0x40] sm:$0xff]
        %v4097 = vld [vmem:[%s4087 + $0x48] sm:$0xff]
        %v4098 = vld [vmem:[%s4087 + $0x50] sm:$0xff]
        %v4099 = vld [vmem:[%s4087 + $0x58] sm:$0xff]
        %v4100 = vld [vmem:[%s4087 + $0x60] sm:$0xff]
        %v4101 = vld [vmem:[%s4087 + $0x68] sm:$0xff]
        %v4102 = vld [vmem:[%s4087 + $0x70] sm:$0xff]
        %v4103 = vld [vmem:[%s4087 + $0x78] sm:$0xff]
        %4104 = vmax.xlane.f32.xlu0 %v4025
        %v4105 = vpop.xlane.xlu0 %4104
        %4106 = vmax.xlane.f32.xlu0 %v4028
        %v4107 = vpop.xlane.xlu0 %4106
        %4108 = vmax.xlane.f32.xlu0 %v4033
        %v4109 = vpop.xlane.xlu0 %4108
        %4110 = vmax.xlane.f32.xlu0 %v4036
        %v4111 = vpop.xlane.xlu0 %4110
        %4112 = vmax.xlane.f32.xlu0 %v4041
        %v4113 = vpop.xlane.xlu0 %4112
        %4114 = vmax.xlane.f32.xlu0 %v4044
        %v4115 = vpop.xlane.xlu0 %4114
        %4116 = vmax.xlane.f32.xlu0 %v4049
        %v4117 = vpop.xlane.xlu0 %4116
        %4118 = vmax.xlane.f32.xlu0 %v4052
        %v4119 = vpop.xlane.xlu0 %4118
        %4120 = vmax.xlane.f32.xlu0 %v4057
        %v4121 = vpop.xlane.xlu0 %4120
        %4122 = vmax.xlane.f32.xlu0 %v4060
        %v4123 = vpop.xlane.xlu0 %4122
        %4124 = vmax.xlane.f32.xlu0 %v4065
        %v4125 = vpop.xlane.xlu0 %4124
        %4126 = vmax.xlane.f32.xlu0 %v4068
        %v4127 = vpop.xlane.xlu0 %4126
        %4128 = vmax.xlane.f32.xlu0 %v4073
        %v4129 = vpop.xlane.xlu0 %4128
        %4130 = vmax.xlane.f32.xlu0 %v4076
        %v4131 = vpop.xlane.xlu0 %4130
        %4132 = vmax.xlane.f32.xlu0 %v4081
        %v4133 = vpop.xlane.xlu0 %4132
        %4134 = vmax.xlane.f32.xlu0 %v4084
        %v4135 = vpop.xlane.xlu0 %4134
        %v4136 = vmax.f32 %v4088, %v4105
        %v4137 = vmax.f32 %v4089, %v4107
        %v4138 = vmax.f32 %v4090, %v4109
        %v4139 = vmax.f32 %v4091, %v4111
        %v4140 = vmax.f32 %v4092, %v4113
        %v4141 = vmax.f32 %v4093, %v4115
        %v4142 = vmax.f32 %v4094, %v4117
        %v4143 = vmax.f32 %v4095, %v4119
        %v4144 = vmax.f32 %v4096, %v4121
        %v4145 = vmax.f32 %v4097, %v4123
        %v4146 = vmax.f32 %v4098, %v4125
        %v4147 = vmax.f32 %v4099, %v4127
        %v4148 = vmax.f32 %v4100, %v4129
        %v4149 = vmax.f32 %v4101, %v4131
        %v4150 = vmax.f32 %v4102, %v4133
        %v4151 = vmax.f32 %v4103, %v4135
        %v4152 = vsub.f32 %v4088, %v4136
        %v4153 = vsub.f32 %v4089, %v4137
        %v4154 = vsub.f32 %v4090, %v4138
        %v4155 = vsub.f32 %v4091, %v4139
        %v4156 = vsub.f32 %v4092, %v4140
        %v4157 = vsub.f32 %v4093, %v4141
        %v4158 = vsub.f32 %v4094, %v4142
        %v4159 = vsub.f32 %v4095, %v4143
        %v4160 = vsub.f32 %v4096, %v4144
        %v4161 = vsub.f32 %v4097, %v4145
        %v4162 = vsub.f32 %v4098, %v4146
        %v4163 = vsub.f32 %v4099, %v4147
        %v4164 = vsub.f32 %v4100, %v4148
        %v4165 = vsub.f32 %v4101, %v4149
        %v4166 = vsub.f32 %v4102, %v4150
        %v4167 = vsub.f32 %v4103, %v4151
        %v4168 = vmul.f32 %v4152, 1.442695
        %v4169 = vpow.pop %v4168
        %v4170 = vmul.f32 %v4153, 1.442695
        %v4171 = vpow.pop %v4170
        %v4172 = vmul.f32 %v4154, 1.442695
        %v4173 = vpow.pop %v4172
        %v4174 = vmul.f32 %v4155, 1.442695
        %v4175 = vpow.pop %v4174
        %v4176 = vmul.f32 %v4156, 1.442695
        %v4177 = vpow.pop %v4176
        %v4178 = vmul.f32 %v4157, 1.442695
        %v4179 = vpow.pop %v4178
        %v4180 = vmul.f32 %v4158, 1.442695
        %v4181 = vpow.pop %v4180
        %v4182 = vmul.f32 %v4159, 1.442695
        %v4183 = vpow.pop %v4182
        %v4184 = vmul.f32 %v4160, 1.442695
        %v4185 = vpow.pop %v4184
        %v4186 = vmul.f32 %v4161, 1.442695
        %v4187 = vpow.pop %v4186
        %v4188 = vmul.f32 %v4162, 1.442695
        %v4189 = vpow.pop %v4188
        %v4190 = vmul.f32 %v4163, 1.442695
        %v4191 = vpow.pop %v4190
        %v4192 = vmul.f32 %v4164, 1.442695
        %v4193 = vpow.pop %v4192
        %v4194 = vmul.f32 %v4165, 1.442695
        %v4195 = vpow.pop %v4194
        %v4196 = vmul.f32 %v4166, 1.442695
        %v4197 = vpow.pop %v4196
        %v4198 = vmul.f32 %v4167, 1.442695
        %v4199 = vpow.pop %v4198
        %4201 = vset.pattern.permute.xlu0 0
        %4202 = vperm.xlu0 %4201, %v4136
        %v4203 = vpop.permute.xlu0 %4202
        %4206 = vset.pattern.permute.xlu0 0
        %4207 = vperm.xlu0 %4206, %v4137
        %v4208 = vpop.permute.xlu0 %4207
        %4211 = vset.pattern.permute.xlu0 0
        %4212 = vperm.xlu0 %4211, %v4138
        %v4213 = vpop.permute.xlu0 %4212
        %4216 = vset.pattern.permute.xlu0 0
        %4217 = vperm.xlu0 %4216, %v4139
        %v4218 = vpop.permute.xlu0 %4217
        %4221 = vset.pattern.permute.xlu0 0
        %4222 = vperm.xlu0 %4221, %v4140
        %v4223 = vpop.permute.xlu0 %4222
        %4226 = vset.pattern.permute.xlu0 0
        %4227 = vperm.xlu0 %4226, %v4141
        %v4228 = vpop.permute.xlu0 %4227
        %4231 = vset.pattern.permute.xlu0 0
        %4232 = vperm.xlu0 %4231, %v4142
        %v4233 = vpop.permute.xlu0 %4232
        %4236 = vset.pattern.permute.xlu0 0
        %4237 = vperm.xlu0 %4236, %v4143
        %v4238 = vpop.permute.xlu0 %4237
        %4241 = vset.pattern.permute.xlu0 0
        %4242 = vperm.xlu0 %4241, %v4144
        %v4243 = vpop.permute.xlu0 %4242
        %4246 = vset.pattern.permute.xlu0 0
        %4247 = vperm.xlu0 %4246, %v4145
        %v4248 = vpop.permute.xlu0 %4247
        %4251 = vset.pattern.permute.xlu0 0
        %4252 = vperm.xlu0 %4251, %v4146
        %v4253 = vpop.permute.xlu0 %4252
        %4256 = vset.pattern.permute.xlu0 0
        %4257 = vperm.xlu0 %4256, %v4147
        %v4258 = vpop.permute.xlu0 %4257
        %4261 = vset.pattern.permute.xlu0 0
        %4262 = vperm.xlu0 %4261, %v4148
        %v4263 = vpop.permute.xlu0 %4262
        %4266 = vset.pattern.permute.xlu0 0
        %4267 = vperm.xlu0 %4266, %v4149
        %v4268 = vpop.permute.xlu0 %4267
        %4271 = vset.pattern.permute.xlu0 0
        %4272 = vperm.xlu0 %4271, %v4150
        %v4273 = vpop.permute.xlu0 %4272
        %4276 = vset.pattern.permute.xlu0 0
        %4277 = vperm.xlu0 %4276, %v4151
        %v4278 = vpop.permute.xlu0 %4277
        %v4280 = vsub.f32 %v4025, %v4203
        %v4281 = vsub.f32 %v4028, %v4208
        %v4282 = vsub.f32 %v4033, %v4213
        %v4283 = vsub.f32 %v4036, %v4218
        %v4284 = vsub.f32 %v4041, %v4223
        %v4285 = vsub.f32 %v4044, %v4228
        %v4286 = vsub.f32 %v4049, %v4233
        %v4287 = vsub.f32 %v4052, %v4238
        %v4288 = vsub.f32 %v4057, %v4243
        %v4289 = vsub.f32 %v4060, %v4248
        %v4290 = vsub.f32 %v4065, %v4253
        %v4291 = vsub.f32 %v4068, %v4258
        %v4292 = vsub.f32 %v4073, %v4263
        %v4293 = vsub.f32 %v4076, %v4268
        %v4294 = vsub.f32 %v4081, %v4273
        %v4295 = vsub.f32 %v4084, %v4278
        %v4296 = vmul.f32 %v4280, 1.442695
        %v4297 = vpow.pop %v4296
        %v4298 = vmul.f32 %v4281, 1.442695
        %v4299 = vpow.pop %v4298
        %v4300 = vmul.f32 %v4282, 1.442695
        %v4301 = vpow.pop %v4300
        %v4302 = vmul.f32 %v4283, 1.442695
        %v4303 = vpow.pop %v4302
        %v4304 = vmul.f32 %v4284, 1.442695
        %v4305 = vpow.pop %v4304
        %v4306 = vmul.f32 %v4285, 1.442695
        %v4307 = vpow.pop %v4306
        %v4308 = vmul.f32 %v4286, 1.442695
        %v4309 = vpow.pop %v4308
        %v4310 = vmul.f32 %v4287, 1.442695
        %v4311 = vpow.pop %v4310
        %v4312 = vmul.f32 %v4288, 1.442695
        %v4313 = vpow.pop %v4312
        %v4314 = vmul.f32 %v4289, 1.442695
        %v4315 = vpow.pop %v4314
        %v4316 = vmul.f32 %v4290, 1.442695
        %v4317 = vpow.pop %v4316
        %v4318 = vmul.f32 %v4291, 1.442695
        %v4319 = vpow.pop %v4318
        %v4320 = vmul.f32 %v4292, 1.442695
        %v4321 = vpow.pop %v4320
        %v4322 = vmul.f32 %v4293, 1.442695
        %v4323 = vpow.pop %v4322
        %v4324 = vmul.f32 %v4294, 1.442695
        %v4325 = vpow.pop %v4324
        %v4326 = vmul.f32 %v4295, 1.442695
        %v4327 = vpow.pop %v4326
        %s4328 = scalar_lea.vmem [#allocation5], 384
        %v4329 = vld [vmem:[%s4328] sm:$0xff]
        %v4330 = vld [vmem:[%s4328 + $0x8] sm:$0xff]
        %v4331 = vld [vmem:[%s4328 + $0x10] sm:$0xff]
        %v4332 = vld [vmem:[%s4328 + $0x18] sm:$0xff]
        %v4333 = vld [vmem:[%s4328 + $0x20] sm:$0xff]
        %v4334 = vld [vmem:[%s4328 + $0x28] sm:$0xff]
        %v4335 = vld [vmem:[%s4328 + $0x30] sm:$0xff]
        %v4336 = vld [vmem:[%s4328 + $0x38] sm:$0xff]
        %v4337 = vld [vmem:[%s4328 + $0x40] sm:$0xff]
        %v4338 = vld [vmem:[%s4328 + $0x48] sm:$0xff]
        %v4339 = vld [vmem:[%s4328 + $0x50] sm:$0xff]
        %v4340 = vld [vmem:[%s4328 + $0x58] sm:$0xff]
        %v4341 = vld [vmem:[%s4328 + $0x60] sm:$0xff]
        %v4342 = vld [vmem:[%s4328 + $0x68] sm:$0xff]
        %v4343 = vld [vmem:[%s4328 + $0x70] sm:$0xff]
        %v4344 = vld [vmem:[%s4328 + $0x78] sm:$0xff]
        %v4345 = vmul.f32 %v4169, %v4329
        %v4346 = vmul.f32 %v4171, %v4330
        %v4347 = vmul.f32 %v4173, %v4331
        %v4348 = vmul.f32 %v4175, %v4332
        %v4349 = vmul.f32 %v4177, %v4333
        %v4350 = vmul.f32 %v4179, %v4334
        %v4351 = vmul.f32 %v4181, %v4335
        %v4352 = vmul.f32 %v4183, %v4336
        %v4353 = vmul.f32 %v4185, %v4337
        %v4354 = vmul.f32 %v4187, %v4338
        %v4355 = vmul.f32 %v4189, %v4339
        %v4356 = vmul.f32 %v4191, %v4340
        %v4357 = vmul.f32 %v4193, %v4341
        %v4358 = vmul.f32 %v4195, %v4342
        %v4359 = vmul.f32 %v4197, %v4343
        %v4360 = vmul.f32 %v4199, %v4344
        %4361 = vadd.xlane.f32.xlu0 %v4297
        %v4362 = vpop.xlane.xlu0 %4361
        %4363 = vadd.xlane.f32.xlu0 %v4299
        %v4364 = vpop.xlane.xlu0 %4363
        %4365 = vadd.xlane.f32.xlu0 %v4301
        %v4366 = vpop.xlane.xlu0 %4365
        %4367 = vadd.xlane.f32.xlu0 %v4303
        %v4368 = vpop.xlane.xlu0 %4367
        %4369 = vadd.xlane.f32.xlu0 %v4305
        %v4370 = vpop.xlane.xlu0 %4369
        %4371 = vadd.xlane.f32.xlu0 %v4307
        %v4372 = vpop.xlane.xlu0 %4371
        %4373 = vadd.xlane.f32.xlu0 %v4309
        %v4374 = vpop.xlane.xlu0 %4373
        %4375 = vadd.xlane.f32.xlu0 %v4311
        %v4376 = vpop.xlane.xlu0 %4375
        %4377 = vadd.xlane.f32.xlu0 %v4313
        %v4378 = vpop.xlane.xlu0 %4377
        %4379 = vadd.xlane.f32.xlu0 %v4315
        %v4380 = vpop.xlane.xlu0 %4379
        %4381 = vadd.xlane.f32.xlu0 %v4317
        %v4382 = vpop.xlane.xlu0 %4381
        %4383 = vadd.xlane.f32.xlu0 %v4319
        %v4384 = vpop.xlane.xlu0 %4383
        %4385 = vadd.xlane.f32.xlu0 %v4321
        %v4386 = vpop.xlane.xlu0 %4385
        %4387 = vadd.xlane.f32.xlu0 %v4323
        %v4388 = vpop.xlane.xlu0 %4387
        %4389 = vadd.xlane.f32.xlu0 %v4325
        %v4390 = vpop.xlane.xlu0 %4389
        %4391 = vadd.xlane.f32.xlu0 %v4327
        %v4392 = vpop.xlane.xlu0 %4391
        %v4393 = vadd.f32 %v4345, %v4362
        %v4394 = vadd.f32 %v4346, %v4364
        %v4395 = vadd.f32 %v4347, %v4366
        %v4396 = vadd.f32 %v4348, %v4368
        %v4397 = vadd.f32 %v4349, %v4370
        %v4398 = vadd.f32 %v4350, %v4372
        %v4399 = vadd.f32 %v4351, %v4374
        %v4400 = vadd.f32 %v4352, %v4376
        %v4401 = vadd.f32 %v4353, %v4378
        %v4402 = vadd.f32 %v4354, %v4380
        %v4403 = vadd.f32 %v4355, %v4382
        %v4404 = vadd.f32 %v4356, %v4384
        %v4405 = vadd.f32 %v4357, %v4386
        %v4406 = vadd.f32 %v4358, %v4388
        %v4407 = vadd.f32 %v4359, %v4390
        %v4408 = vadd.f32 %v4360, %v4392
        %4409 = vst.msk [vmem:[%s4328] sm:$0xff] %vm1994, %v4393
        %4410 = vst.msk [vmem:[%s4328 + $0x8] sm:$0xff] %vm1994, %v4394
        %4411 = vst.msk [vmem:[%s4328 + $0x10] sm:$0xff] %vm1994, %v4395
        %4412 = vst.msk [vmem:[%s4328 + $0x18] sm:$0xff] %vm1994, %v4396
        %4413 = vst.msk [vmem:[%s4328 + $0x20] sm:$0xff] %vm1994, %v4397
        %4414 = vst.msk [vmem:[%s4328 + $0x28] sm:$0xff] %vm1994, %v4398
        %4415 = vst.msk [vmem:[%s4328 + $0x30] sm:$0xff] %vm1994, %v4399
        %4416 = vst.msk [vmem:[%s4328 + $0x38] sm:$0xff] %vm1994, %v4400
        %4417 = vst.msk [vmem:[%s4328 + $0x40] sm:$0xff] %vm1994, %v4401
        %4418 = vst.msk [vmem:[%s4328 + $0x48] sm:$0xff] %vm1994, %v4402
        %4419 = vst.msk [vmem:[%s4328 + $0x50] sm:$0xff] %vm1994, %v4403
        %4420 = vst.msk [vmem:[%s4328 + $0x58] sm:$0xff] %vm1994, %v4404
        %4421 = vst.msk [vmem:[%s4328 + $0x60] sm:$0xff] %vm1994, %v4405
        %4422 = vst.msk [vmem:[%s4328 + $0x68] sm:$0xff] %vm1994, %v4406
        %4423 = vst.msk [vmem:[%s4328 + $0x70] sm:$0xff] %vm1994, %v4407
        %4424 = vst.msk [vmem:[%s4328 + $0x78] sm:$0xff] %vm1994, %v4408
        %s4425 = scalar_lea.vmem [#allocation3], 384
        %v4426 = vld [vmem:[%s4425] sm:$0xff]
        %v4427 = vld [vmem:[%s4425 + $0x8] sm:$0xff]
        %v4428 = vld [vmem:[%s4425 + $0x10] sm:$0xff]
        %v4429 = vld [vmem:[%s4425 + $0x18] sm:$0xff]
        %v4430 = vld [vmem:[%s4425 + $0x20] sm:$0xff]
        %v4431 = vld [vmem:[%s4425 + $0x28] sm:$0xff]
        %v4432 = vld [vmem:[%s4425 + $0x30] sm:$0xff]
        %v4433 = vld [vmem:[%s4425 + $0x38] sm:$0xff]
        %v4434 = vld [vmem:[%s4425 + $0x40] sm:$0xff]
        %v4435 = vld [vmem:[%s4425 + $0x48] sm:$0xff]
        %v4436 = vld [vmem:[%s4425 + $0x50] sm:$0xff]
        %v4437 = vld [vmem:[%s4425 + $0x58] sm:$0xff]
        %v4438 = vld [vmem:[%s4425 + $0x60] sm:$0xff]
        %v4439 = vld [vmem:[%s4425 + $0x68] sm:$0xff]
        %v4440 = vld [vmem:[%s4425 + $0x70] sm:$0xff]
        %v4441 = vld [vmem:[%s4425 + $0x78] sm:$0xff]
        %4443 = vset.pattern.permute.xlu0 0
        %4444 = vperm.xlu0 %4443, %v4169
        %v4445 = vpop.permute.xlu0 %4444
        %4448 = vset.pattern.permute.xlu0 0
        %4449 = vperm.xlu0 %4448, %v4171
        %v4450 = vpop.permute.xlu0 %4449
        %4453 = vset.pattern.permute.xlu0 0
        %4454 = vperm.xlu0 %4453, %v4173
        %v4455 = vpop.permute.xlu0 %4454
        %4458 = vset.pattern.permute.xlu0 0
        %4459 = vperm.xlu0 %4458, %v4175
        %v4460 = vpop.permute.xlu0 %4459
        %4463 = vset.pattern.permute.xlu0 0
        %4464 = vperm.xlu0 %4463, %v4177
        %v4465 = vpop.permute.xlu0 %4464
        %4468 = vset.pattern.permute.xlu0 0
        %4469 = vperm.xlu0 %4468, %v4179
        %v4470 = vpop.permute.xlu0 %4469
        %4473 = vset.pattern.permute.xlu0 0
        %4474 = vperm.xlu0 %4473, %v4181
        %v4475 = vpop.permute.xlu0 %4474
        %4478 = vset.pattern.permute.xlu0 0
        %4479 = vperm.xlu0 %4478, %v4183
        %v4480 = vpop.permute.xlu0 %4479
        %4483 = vset.pattern.permute.xlu0 0
        %4484 = vperm.xlu0 %4483, %v4185
        %v4485 = vpop.permute.xlu0 %4484
        %4488 = vset.pattern.permute.xlu0 0
        %4489 = vperm.xlu0 %4488, %v4187
        %v4490 = vpop.permute.xlu0 %4489
        %4493 = vset.pattern.permute.xlu0 0
        %4494 = vperm.xlu0 %4493, %v4189
        %v4495 = vpop.permute.xlu0 %4494
        %4498 = vset.pattern.permute.xlu0 0
        %4499 = vperm.xlu0 %4498, %v4191
        %v4500 = vpop.permute.xlu0 %4499
        %4503 = vset.pattern.permute.xlu0 0
        %4504 = vperm.xlu0 %4503, %v4193
        %v4505 = vpop.permute.xlu0 %4504
        %4508 = vset.pattern.permute.xlu0 0
        %4509 = vperm.xlu0 %4508, %v4195
        %v4510 = vpop.permute.xlu0 %4509
        %4513 = vset.pattern.permute.xlu0 0
        %4514 = vperm.xlu0 %4513, %v4197
        %v4515 = vpop.permute.xlu0 %4514
        %4518 = vset.pattern.permute.xlu0 0
        %4519 = vperm.xlu0 %4518, %v4199
        %v4520 = vpop.permute.xlu0 %4519
        %v4522 = vmul.f32 %v4445, %v4426
        %v4523 = vmul.f32 %v4450, %v4427
        %v4524 = vmul.f32 %v4455, %v4428
        %v4525 = vmul.f32 %v4460, %v4429
        %v4526 = vmul.f32 %v4465, %v4430
        %v4527 = vmul.f32 %v4470, %v4431
        %v4528 = vmul.f32 %v4475, %v4432
        %v4529 = vmul.f32 %v4480, %v4433
        %v4530 = vmul.f32 %v4485, %v4434
        %v4531 = vmul.f32 %v4490, %v4435
        %v4532 = vmul.f32 %v4495, %v4436
        %v4533 = vmul.f32 %v4500, %v4437
        %v4534 = vmul.f32 %v4505, %v4438
        %v4535 = vmul.f32 %v4510, %v4439
        %v4536 = vmul.f32 %v4515, %v4440
        %v4537 = vmul.f32 %v4520, %v4441
        %v4538 = vpack.c.bf16 %v4299, %v4297
        %v4539 = vpack.c.bf16 %v4303, %v4301
        %v4540 = vpack.c.bf16 %v4307, %v4305
        %v4541 = vpack.c.bf16 %v4311, %v4309
        %v4542 = vpack.c.bf16 %v4315, %v4313
        %v4543 = vpack.c.bf16 %v4319, %v4317
        %v4544 = vpack.c.bf16 %v4323, %v4321
        %v4545 = vpack.c.bf16 %v4327, %v4325
        %4546 = vrot.lane.b32.xlu0 %v1512, 32
        %v4547 = vpop.permute.xlu0 %4546
        %4548 = vrot.lane.b32.xlu0 %v1513, 32
        %v4549 = vpop.permute.xlu0 %4548
        %4550 = vrot.lane.b32.xlu0 %v1514, 32
        %v4551 = vpop.permute.xlu0 %4550
        %4552 = vrot.lane.b32.xlu0 %v1515, 32
        %v4553 = vpop.permute.xlu0 %4552
        %4554 = vrot.lane.b32.xlu0 %v1516, 32
        %v4555 = vpop.permute.xlu0 %4554
        %4556 = vrot.lane.b32.xlu0 %v1517, 32
        %v4557 = vpop.permute.xlu0 %4556
        %4558 = vrot.lane.b32.xlu0 %v1518, 32
        %v4559 = vpop.permute.xlu0 %4558
        %4560 = vrot.lane.b32.xlu0 %v1519, 32
        %v4561 = vpop.permute.xlu0 %4560
        %4570 = vmatprep.subr.bf16.mxu0 0
        %4571 = vmatpush1.bf16.msra.mxu0 %v4547
        %4572 = vmatprep.subr.bf16.mxu0 0
        %4573 = vmatpush1.bf16.msra.mxu0 %v4549
        %4574 = vmatprep.subr.bf16.mxu0 0
        %4575 = vmatpush1.bf16.msra.mxu0 %v4551
        %4576 = vmatprep.subr.bf16.mxu0 0
        %4577 = vmatpush1.bf16.msra.mxu0 %v4553
        %4578 = vmatprep.subr.bf16.mxu0 0
        %4579 = vmatpush1.bf16.msra.mxu0 %v4555
        %4580 = vmatprep.subr.bf16.mxu0 0
        %4581 = vmatpush1.bf16.msra.mxu0 %v4557
        %4582 = vmatprep.subr.bf16.mxu0 0
        %4583 = vmatpush1.bf16.msra.mxu0 %v4559
        %4584 = vmatprep.subr.bf16.mxu0 0
        %4585 = vmatpush1.bf16.msra.mxu0 %v4561
        %4586 = vmatprep.subr.bf16.mxu0 0
        %4587 = vmatpush1.bf16.msra.mxu0 0
        %4588 = vmatprep.subr.bf16.mxu0 0
        %4589 = vmatpush1.bf16.msra.mxu0 0
        %4590 = vmatprep.subr.bf16.mxu0 0
        %4591 = vmatpush1.bf16.msra.mxu0 0
        %4592 = vmatprep.subr.bf16.mxu0 0
        %4593 = vmatpush1.bf16.msra.mxu0 0
        %4594 = vmatprep.subr.bf16.mxu0 0
        %4595 = vmatpush1.bf16.msra.mxu0 0
        %4596 = vmatprep.subr.bf16.mxu0 0
        %4597 = vmatpush1.bf16.msra.mxu0 0
        %4598 = vmatprep.subr.bf16.mxu0 0
        %4599 = vmatpush1.bf16.msra.mxu0 0
        %4600 = vmatprep.subr.bf16.mxu0 0
        %4601 = vmatpush1.bf16.msra.mxu0 0
        %4602 = vmatprep.mubr.bf16.mxu0 0
        %4603 = vmatmul.mubr.bf16.gmra.mrb[0].mxu0 %v4538
        %v4604 = vpop.f32.mrb[0].mxu0
        %v4605 = vadd.f32 0.0, %v4604
        %v4606 = vpop.f32.mrb[0].mxu0
        %v4607 = vpop.f32.mrb[0].mxu0
        %v4608 = vadd.f32 0.0, %v4607
        %v4609 = vpop.f32.mrb[0].mxu0
        %4610 = vmatprep.mubr.bf16.mxu0 0
        %4611 = vmatmul.mubr.bf16.gmra.mrb[0].mxu0 %v4539
        %v4612 = vpop.f32.mrb[0].mxu0
        %v4613 = vadd.f32 0.0, %v4612
        %v4614 = vpop.f32.mrb[0].mxu0
        %v4615 = vpop.f32.mrb[0].mxu0
        %v4616 = vadd.f32 0.0, %v4615
        %v4617 = vpop.f32.mrb[0].mxu0
        %4618 = vmatprep.mubr.bf16.mxu0 0
        %4619 = vmatmul.mubr.bf16.gmra.mrb[0].mxu0 %v4540
        %v4620 = vpop.f32.mrb[0].mxu0
        %v4621 = vadd.f32 0.0, %v4620
        %v4622 = vpop.f32.mrb[0].mxu0
        %v4623 = vpop.f32.mrb[0].mxu0
        %v4624 = vadd.f32 0.0, %v4623
        %v4625 = vpop.f32.mrb[0].mxu0
        %4626 = vmatprep.mubr.bf16.mxu0 0
        %4627 = vmatmul.mubr.bf16.gmra.mrb[0].mxu0 %v4541
        %v4628 = vpop.f32.mrb[0].mxu0
        %v4629 = vadd.f32 0.0, %v4628
        %v4630 = vpop.f32.mrb[0].mxu0
        %v4631 = vpop.f32.mrb[0].mxu0
        %v4632 = vadd.f32 0.0, %v4631
        %v4633 = vpop.f32.mrb[0].mxu0
        %4634 = vmatprep.mubr.bf16.mxu0 0
        %4635 = vmatmul.mubr.bf16.gmra.mrb[0].mxu0 %v4542
        %v4636 = vpop.f32.mrb[0].mxu0
        %v4637 = vadd.f32 0.0, %v4636
        %v4638 = vpop.f32.mrb[0].mxu0
        %v4639 = vpop.f32.mrb[0].mxu0
        %v4640 = vadd.f32 0.0, %v4639
        %v4641 = vpop.f32.mrb[0].mxu0
        %4642 = vmatprep.mubr.bf16.mxu0 0
        %4643 = vmatmul.mubr.bf16.gmra.mrb[0].mxu0 %v4543
        %v4644 = vpop.f32.mrb[0].mxu0
        %v4645 = vadd.f32 0.0, %v4644
        %v4646 = vpop.f32.mrb[0].mxu0
        %v4647 = vpop.f32.mrb[0].mxu0
        %v4648 = vadd.f32 0.0, %v4647
        %v4649 = vpop.f32.mrb[0].mxu0
        %4650 = vmatprep.mubr.bf16.mxu0 0
        %4651 = vmatmul.mubr.bf16.gmra.mrb[0].mxu0 %v4544
        %v4652 = vpop.f32.mrb[0].mxu0
        %v4653 = vadd.f32 0.0, %v4652
        %v4654 = vpop.f32.mrb[0].mxu0
        %v4655 = vpop.f32.mrb[0].mxu0
        %v4656 = vadd.f32 0.0, %v4655
        %v4657 = vpop.f32.mrb[0].mxu0
        %4658 = vmatprep.mubr.bf16.mxu0 0
        %4659 = vmatmul.mubr.bf16.gmra.mrb[0].mxu0 %v4545
        %v4660 = vpop.f32.mrb[0].mxu0
        %v4661 = vadd.f32 0.0, %v4660
        %v4662 = vpop.f32.mrb[0].mxu0
        %v4663 = vpop.f32.mrb[0].mxu0
        %v4664 = vadd.f32 0.0, %v4663
        %v4665 = vpop.f32.mrb[0].mxu0
        %4666 = vdwg.mxu0
        %v4667 = vadd.f32 %v4522, %v4605
        %v4668 = vadd.f32 %v4523, %v4608
        %v4669 = vadd.f32 %v4524, %v4613
        %v4670 = vadd.f32 %v4525, %v4616
        %v4671 = vadd.f32 %v4526, %v4621
        %v4672 = vadd.f32 %v4527, %v4624
        %v4673 = vadd.f32 %v4528, %v4629
        %v4674 = vadd.f32 %v4529, %v4632
        %v4675 = vadd.f32 %v4530, %v4637
        %v4676 = vadd.f32 %v4531, %v4640
        %v4677 = vadd.f32 %v4532, %v4645
        %v4678 = vadd.f32 %v4533, %v4648
        %v4679 = vadd.f32 %v4534, %v4653
        %v4680 = vadd.f32 %v4535, %v4656
        %v4681 = vadd.f32 %v4536, %v4661
        %v4682 = vadd.f32 %v4537, %v4664
        %4683 = vst.msk [vmem:[%s4425] sm:$0xff] %vm1528, %v4667
        %4684 = vst.msk [vmem:[%s4425 + $0x8] sm:$0xff] %vm1528, %v4668
        %4685 = vst.msk [vmem:[%s4425 + $0x10] sm:$0xff] %vm1528, %v4669
        %4686 = vst.msk [vmem:[%s4425 + $0x18] sm:$0xff] %vm1528, %v4670
        %4687 = vst.msk [vmem:[%s4425 + $0x20] sm:$0xff] %vm1528, %v4671
        %4688 = vst.msk [vmem:[%s4425 + $0x28] sm:$0xff] %vm1528, %v4672
        %4689 = vst.msk [vmem:[%s4425 + $0x30] sm:$0xff] %vm1528, %v4673
        %4690 = vst.msk [vmem:[%s4425 + $0x38] sm:$0xff] %vm1528, %v4674
        %4691 = vst.msk [vmem:[%s4425 + $0x40] sm:$0xff] %vm1528, %v4675
        %4692 = vst.msk [vmem:[%s4425 + $0x48] sm:$0xff] %vm1528, %v4676
        %4693 = vst.msk [vmem:[%s4425 + $0x50] sm:$0xff] %vm1528, %v4677
        %4694 = vst.msk [vmem:[%s4425 + $0x58] sm:$0xff] %vm1528, %v4678
        %4695 = vst.msk [vmem:[%s4425 + $0x60] sm:$0xff] %vm1528, %v4679
        %4696 = vst.msk [vmem:[%s4425 + $0x68] sm:$0xff] %vm1528, %v4680
        %4697 = vst.msk [vmem:[%s4425 + $0x70] sm:$0xff] %vm1528, %v4681
        %4698 = vst.msk [vmem:[%s4425 + $0x78] sm:$0xff] %vm1528, %v4682
        %4699 = vst.msk [vmem:[%s4087] sm:$0xff] %vm1994, %v4136
        %4700 = vst.msk [vmem:[%s4087 + $0x8] sm:$0xff] %vm1994, %v4137
        %4701 = vst.msk [vmem:[%s4087 + $0x10] sm:$0xff] %vm1994, %v4138
        %4702 = vst.msk [vmem:[%s4087 + $0x18] sm:$0xff] %vm1994, %v4139
        %4703 = vst.msk [vmem:[%s4087 + $0x20] sm:$0xff] %vm1994, %v4140
        %4704 = vst.msk [vmem:[%s4087 + $0x28] sm:$0xff] %vm1994, %v4141
        %4705 = vst.msk [vmem:[%s4087 + $0x30] sm:$0xff] %vm1994, %v4142
        %4706 = vst.msk [vmem:[%s4087 + $0x38] sm:$0xff] %vm1994, %v4143
        %4707 = vst.msk [vmem:[%s4087 + $0x40] sm:$0xff] %vm1994, %v4144
        %4708 = vst.msk [vmem:[%s4087 + $0x48] sm:$0xff] %vm1994, %v4145
        %4709 = vst.msk [vmem:[%s4087 + $0x50] sm:$0xff] %vm1994, %v4146
        %4710 = vst.msk [vmem:[%s4087 + $0x58] sm:$0xff] %vm1994, %v4147
        %4711 = vst.msk [vmem:[%s4087 + $0x60] sm:$0xff] %vm1994, %v4148
        %4712 = vst.msk [vmem:[%s4087 + $0x68] sm:$0xff] %vm1994, %v4149
        %4713 = vst.msk [vmem:[%s4087 + $0x70] sm:$0xff] %vm1994, %v4150
        %4714 = vst.msk [vmem:[%s4087 + $0x78] sm:$0xff] %vm1994, %v4151
        %p4715 = scmp.eq.s32.totalorder %s42, 1
        // Predicated region
        $region101: #{tpu_custom_call.1} parent=71 // pred_check
          %p4716 = pneg %p4715
        $region102: #{tpu_custom_call.1} parent=71 // pred_check_branch
          %4718 = sbr.rel (%p4716) target = $region104
        $region103: #{tpu_custom_call.1} parent=71 // pred_region
          %v4719 = vld [vmem:[#allocation3] sm:$0xff]
          %v4720 = vld [vmem:[#allocation3 + $0x8] sm:$0xff]
          %v4721 = vld [vmem:[#allocation3 + $0x10] sm:$0xff]
          %v4722 = vld [vmem:[#allocation3 + $0x18] sm:$0xff]
          %v4723 = vld [vmem:[#allocation3 + $0x20] sm:$0xff]
          %v4724 = vld [vmem:[#allocation3 + $0x28] sm:$0xff]
          %v4725 = vld [vmem:[#allocation3 + $0x30] sm:$0xff]
          %v4726 = vld [vmem:[#allocation3 + $0x38] sm:$0xff]
          %v4727 = vld [vmem:[#allocation3 + $0x40] sm:$0xff]
          %v4728 = vld [vmem:[#allocation3 + $0x48] sm:$0xff]
          %v4729 = vld [vmem:[#allocation3 + $0x50] sm:$0xff]
          %v4730 = vld [vmem:[#allocation3 + $0x58] sm:$0xff]
          %v4731 = vld [vmem:[#allocation3 + $0x60] sm:$0xff]
          %v4732 = vld [vmem:[#allocation3 + $0x68] sm:$0xff]
          %v4733 = vld [vmem:[#allocation3 + $0x70] sm:$0xff]
          %v4734 = vld [vmem:[#allocation3 + $0x78] sm:$0xff]
          %v4735 = vld [vmem:[#allocation5] sm:$0xff]
          %v4736 = vld [vmem:[#allocation5 + $0x8] sm:$0xff]
          %v4737 = vld [vmem:[#allocation5 + $0x10] sm:$0xff]
          %v4738 = vld [vmem:[#allocation5 + $0x18] sm:$0xff]
          %v4739 = vld [vmem:[#allocation5 + $0x20] sm:$0xff]
          %v4740 = vld [vmem:[#allocation5 + $0x28] sm:$0xff]
          %v4741 = vld [vmem:[#allocation5 + $0x30] sm:$0xff]
          %v4742 = vld [vmem:[#allocation5 + $0x38] sm:$0xff]
          %v4743 = vld [vmem:[#allocation5 + $0x40] sm:$0xff]
          %v4744 = vld [vmem:[#allocation5 + $0x48] sm:$0xff]
          %v4745 = vld [vmem:[#allocation5 + $0x50] sm:$0xff]
          %v4746 = vld [vmem:[#allocation5 + $0x58] sm:$0xff]
          %v4747 = vld [vmem:[#allocation5 + $0x60] sm:$0xff]
          %v4748 = vld [vmem:[#allocation5 + $0x68] sm:$0xff]
          %v4749 = vld [vmem:[#allocation5 + $0x70] sm:$0xff]
          %v4750 = vld [vmem:[#allocation5 + $0x78] sm:$0xff]
          %v4751 = vrcp.pop %v4735
          %v4752 = vrcp.pop %v4736
          %v4753 = vrcp.pop %v4737
          %v4754 = vrcp.pop %v4738
          %v4755 = vrcp.pop %v4739
          %v4756 = vrcp.pop %v4740
          %v4757 = vrcp.pop %v4741
          %v4758 = vrcp.pop %v4742
          %v4759 = vrcp.pop %v4743
          %v4760 = vrcp.pop %v4744
          %v4761 = vrcp.pop %v4745
          %v4762 = vrcp.pop %v4746
          %v4763 = vrcp.pop %v4747
          %v4764 = vrcp.pop %v4748
          %v4765 = vrcp.pop %v4749
          %v4766 = vrcp.pop %v4750
          %4768 = vset.pattern.permute.xlu0 0
          %4769 = vperm.xlu0 %4768, %v4751
          %v4770 = vpop.permute.xlu0 %4769
          %4773 = vset.pattern.permute.xlu0 0
          %4774 = vperm.xlu0 %4773, %v4752
          %v4775 = vpop.permute.xlu0 %4774
          %4778 = vset.pattern.permute.xlu0 0
          %4779 = vperm.xlu0 %4778, %v4753
          %v4780 = vpop.permute.xlu0 %4779
          %4783 = vset.pattern.permute.xlu0 0
          %4784 = vperm.xlu0 %4783, %v4754
          %v4785 = vpop.permute.xlu0 %4784
          %4788 = vset.pattern.permute.xlu0 0
          %4789 = vperm.xlu0 %4788, %v4755
          %v4790 = vpop.permute.xlu0 %4789
          %4793 = vset.pattern.permute.xlu0 0
          %4794 = vperm.xlu0 %4793, %v4756
          %v4795 = vpop.permute.xlu0 %4794
          %4798 = vset.pattern.permute.xlu0 0
          %4799 = vperm.xlu0 %4798, %v4757
          %v4800 = vpop.permute.xlu0 %4799
          %4803 = vset.pattern.permute.xlu0 0
          %4804 = vperm.xlu0 %4803, %v4758
          %v4805 = vpop.permute.xlu0 %4804
          %4808 = vset.pattern.permute.xlu0 0
          %4809 = vperm.xlu0 %4808, %v4759
          %v4810 = vpop.permute.xlu0 %4809
          %4813 = vset.pattern.permute.xlu0 0
          %4814 = vperm.xlu0 %4813, %v4760
          %v4815 = vpop.permute.xlu0 %4814
          %4818 = vset.pattern.permute.xlu0 0
          %4819 = vperm.xlu0 %4818, %v4761
          %v4820 = vpop.permute.xlu0 %4819
          %4823 = vset.pattern.permute.xlu0 0
          %4824 = vperm.xlu0 %4823, %v4762
          %v4825 = vpop.permute.xlu0 %4824
          %4828 = vset.pattern.permute.xlu0 0
          %4829 = vperm.xlu0 %4828, %v4763
          %v4830 = vpop.permute.xlu0 %4829
          %4833 = vset.pattern.permute.xlu0 0
          %4834 = vperm.xlu0 %4833, %v4764
          %v4835 = vpop.permute.xlu0 %4834
          %4838 = vset.pattern.permute.xlu0 0
          %4839 = vperm.xlu0 %4838, %v4765
          %v4840 = vpop.permute.xlu0 %4839
          %4843 = vset.pattern.permute.xlu0 0
          %4844 = vperm.xlu0 %4843, %v4766
          %v4845 = vpop.permute.xlu0 %4844
          %v4847 = vmul.f32 %v4719, %v4770
          %v4848 = vmul.f32 %v4720, %v4775
          %v4849 = vmul.f32 %v4721, %v4780
          %v4850 = vmul.f32 %v4722, %v4785
          %v4851 = vmul.f32 %v4723, %v4790
          %v4852 = vmul.f32 %v4724, %v4795
          %v4853 = vmul.f32 %v4725, %v4800
          %v4854 = vmul.f32 %v4726, %v4805
          %v4855 = vmul.f32 %v4727, %v4810
          %v4856 = vmul.f32 %v4728, %v4815
          %v4857 = vmul.f32 %v4729, %v4820
          %v4858 = vmul.f32 %v4730, %v4825
          %v4859 = vmul.f32 %v4731, %v4830
          %v4860 = vmul.f32 %v4732, %v4835
          %v4861 = vmul.f32 %v4733, %v4840
          %v4862 = vmul.f32 %v4734, %v4845
          %v4863 = vpack.c.bf16 %v4848, %v4847
          %v4864 = vpack.c.bf16 %v4850, %v4849
          %v4865 = vpack.c.bf16 %v4852, %v4851
          %v4866 = vpack.c.bf16 %v4854, %v4853
          %v4867 = vpack.c.bf16 %v4856, %v4855
          %v4868 = vpack.c.bf16 %v4858, %v4857
          %v4869 = vpack.c.bf16 %v4860, %v4859
          %v4870 = vpack.c.bf16 %v4862, %v4861
          %v4871 = vld [vmem:[#allocation15] sm:$0xf]
          %v4872 = vld [vmem:[#allocation15 + $0x4] sm:$0xf]
          %v4873 = vld [vmem:[#allocation15 + $0x8] sm:$0xf]
          %v4874 = vld [vmem:[#allocation15 + $0xc] sm:$0xf]
          %v4875 = vld [vmem:[%s2807] sm:$0xff]
          %v4876 = vld [vmem:[%s2807 + $0x8] sm:$0xff]
          %v4877 = vld [vmem:[%s2807 + $0x10] sm:$0xff]
          %v4878 = vld [vmem:[%s2807 + $0x18] sm:$0xff]
          %v4879 = vld [vmem:[%s2807 + $0x20] sm:$0xff]
          %v4880 = vld [vmem:[%s2807 + $0x28] sm:$0xff]
          %v4881 = vld [vmem:[%s2807 + $0x30] sm:$0xff]
          %v4882 = vld [vmem:[%s2807 + $0x38] sm:$0xff]
          %v4883 = vld [vmem:[%s2807 + $0x40] sm:$0xff]
          %v4884 = vld [vmem:[%s2807 + $0x48] sm:$0xff]
          %v4885 = vld [vmem:[%s2807 + $0x50] sm:$0xff]
          %v4886 = vld [vmem:[%s2807 + $0x58] sm:$0xff]
          %v4887 = vld [vmem:[%s2807 + $0x60] sm:$0xff]
          %v4888 = vld [vmem:[%s2807 + $0x68] sm:$0xff]
          %v4889 = vld [vmem:[%s2807 + $0x70] sm:$0xff]
          %v4890 = vld [vmem:[%s2807 + $0x78] sm:$0xff]
          %v4891 = vld [vmem:[%s2710] sm:$0xff]
          %v4892 = vld [vmem:[%s2710 + $0x8] sm:$0xff]
          %v4893 = vld [vmem:[%s2710 + $0x10] sm:$0xff]
          %v4894 = vld [vmem:[%s2710 + $0x18] sm:$0xff]
          %v4895 = vld [vmem:[%s2710 + $0x20] sm:$0xff]
          %v4896 = vld [vmem:[%s2710 + $0x28] sm:$0xff]
          %v4897 = vld [vmem:[%s2710 + $0x30] sm:$0xff]
          %v4898 = vld [vmem:[%s2710 + $0x38] sm:$0xff]
          %v4899 = vld [vmem:[%s2710 + $0x40] sm:$0xff]
          %v4900 = vld [vmem:[%s2710 + $0x48] sm:$0xff]
          %v4901 = vld [vmem:[%s2710 + $0x50] sm:$0xff]
          %v4902 = vld [vmem:[%s2710 + $0x58] sm:$0xff]
          %v4903 = vld [vmem:[%s2710 + $0x60] sm:$0xff]
          %v4904 = vld [vmem:[%s2710 + $0x68] sm:$0xff]
          %v4905 = vld [vmem:[%s2710 + $0x70] sm:$0xff]
          %v4906 = vld [vmem:[%s2710 + $0x78] sm:$0xff]
          %v4907 = vrcp.pop %v4891
          %v4908 = vrcp.pop %v4892
          %v4909 = vrcp.pop %v4893
          %v4910 = vrcp.pop %v4894
          %v4911 = vrcp.pop %v4895
          %v4912 = vrcp.pop %v4896
          %v4913 = vrcp.pop %v4897
          %v4914 = vrcp.pop %v4898
          %v4915 = vrcp.pop %v4899
          %v4916 = vrcp.pop %v4900
          %v4917 = vrcp.pop %v4901
          %v4918 = vrcp.pop %v4902
          %v4919 = vrcp.pop %v4903
          %v4920 = vrcp.pop %v4904
          %v4921 = vrcp.pop %v4905
          %v4922 = vrcp.pop %v4906
          %4924 = vset.pattern.permute.xlu0 0
          %4925 = vperm.xlu0 %4924, %v4907
          %v4926 = vpop.permute.xlu0 %4925
          %4929 = vset.pattern.permute.xlu0 0
          %4930 = vperm.xlu0 %4929, %v4908
          %v4931 = vpop.permute.xlu0 %4930
          %4934 = vset.pattern.permute.xlu0 0
          %4935 = vperm.xlu0 %4934, %v4909
          %v4936 = vpop.permute.xlu0 %4935
          %4939 = vset.pattern.permute.xlu0 0
          %4940 = vperm.xlu0 %4939, %v4910
          %v4941 = vpop.permute.xlu0 %4940
          %4944 = vset.pattern.permute.xlu0 0
          %4945 = vperm.xlu0 %4944, %v4911
          %v4946 = vpop.permute.xlu0 %4945
          %4949 = vset.pattern.permute.xlu0 0
          %4950 = vperm.xlu0 %4949, %v4912
          %v4951 = vpop.permute.xlu0 %4950
          %4954 = vset.pattern.permute.xlu0 0
          %4955 = vperm.xlu0 %4954, %v4913
          %v4956 = vpop.permute.xlu0 %4955
          %4959 = vset.pattern.permute.xlu0 0
          %4960 = vperm.xlu0 %4959, %v4914
          %v4961 = vpop.permute.xlu0 %4960
          %4964 = vset.pattern.permute.xlu0 0
          %4965 = vperm.xlu0 %4964, %v4915
          %v4966 = vpop.permute.xlu0 %4965
          %4969 = vset.pattern.permute.xlu0 0
          %4970 = vperm.xlu0 %4969, %v4916
          %v4971 = vpop.permute.xlu0 %4970
          %4974 = vset.pattern.permute.xlu0 0
          %4975 = vperm.xlu0 %4974, %v4917
          %v4976 = vpop.permute.xlu0 %4975
          %4979 = vset.pattern.permute.xlu0 0
          %4980 = vperm.xlu0 %4979, %v4918
          %v4981 = vpop.permute.xlu0 %4980
          %4984 = vset.pattern.permute.xlu0 0
          %4985 = vperm.xlu0 %4984, %v4919
          %v4986 = vpop.permute.xlu0 %4985
          %4989 = vset.pattern.permute.xlu0 0
          %4990 = vperm.xlu0 %4989, %v4920
          %v4991 = vpop.permute.xlu0 %4990
          %4994 = vset.pattern.permute.xlu0 0
          %4995 = vperm.xlu0 %4994, %v4921
          %v4996 = vpop.permute.xlu0 %4995
          %4999 = vset.pattern.permute.xlu0 0
          %5000 = vperm.xlu0 %4999, %v4922
          %v5001 = vpop.permute.xlu0 %5000
          %v5003 = vmul.f32 %v4875, %v4926
          %v5004 = vmul.f32 %v4876, %v4931
          %v5005 = vmul.f32 %v4877, %v4936
          %v5006 = vmul.f32 %v4878, %v4941
          %v5007 = vmul.f32 %v4879, %v4946
          %v5008 = vmul.f32 %v4880, %v4951
          %v5009 = vmul.f32 %v4881, %v4956
          %v5010 = vmul.f32 %v4882, %v4961
          %v5011 = vmul.f32 %v4883, %v4966
          %v5012 = vmul.f32 %v4884, %v4971
          %v5013 = vmul.f32 %v4885, %v4976
          %v5014 = vmul.f32 %v4886, %v4981
          %v5015 = vmul.f32 %v4887, %v4986
          %v5016 = vmul.f32 %v4888, %v4991
          %v5017 = vmul.f32 %v4889, %v4996
          %v5018 = vmul.f32 %v4890, %v5001
          %v5019 = vpack.c.bf16 %v5004, %v5003
          %v5020 = vpack.c.bf16 %v5006, %v5005
          %v5021 = vpack.c.bf16 %v5008, %v5007
          %v5022 = vpack.c.bf16 %v5010, %v5009
          %v5023 = vpack.c.bf16 %v5012, %v5011
          %v5024 = vpack.c.bf16 %v5014, %v5013
          %v5025 = vpack.c.bf16 %v5016, %v5015
          %v5026 = vpack.c.bf16 %v5018, %v5017
          %s5027 = scalar_lea.vmem [#allocation15], 16
          %v5028 = vld [vmem:[%s5027] sm:$0xf]
          %v5029 = vld [vmem:[%s5027 + $0x4] sm:$0xf]
          %v5030 = vld [vmem:[%s5027 + $0x8] sm:$0xf]
          %v5031 = vld [vmem:[%s5027 + $0xc] sm:$0xf]
          %v5036 = vunpack.c.l.b16 %v5028
          %v5037 = vunpack.c.l.b16 %v5029
          %v5038 = vunpack.c.l.b16 %v5030
          %v5039 = vunpack.c.l.b16 %v5031
          %v5040 = vpack.c.b16 %v5037, %v5036
          %v5041 = vpack.c.b16 %v5039, %v5038
          %v5045 = vsel %vm1528, %v5019, 0
          %v5048 = vsel %vm1528, %v5020, 0
          %v5051 = vsel %vm1528, %v5021, 0
          %v5054 = vsel %vm1528, %v5022, 0
          %v5057 = vsel %vm1528, %v5023, 0
          %v5060 = vsel %vm1528, %v5024, 0
          %v5063 = vsel %vm1528, %v5025, 0
          %v5066 = vsel %vm1528, %v5026, 0
          %5068 = vmatprep.subr.bf16.mxu0 0
          %5069 = vmatpush1.bf16.msra.mxu0 %v5040
          %5070 = vmatprep.subr.bf16.mxu0 0
          %5071 = vmatpush1.bf16.msra.mxu0 %v5041
          %5072 = vmatprep.subr.bf16.mxu0 0
          %5073 = vmatpush1.bf16.msra.mxu0 0
          %5074 = vmatprep.subr.bf16.mxu0 0
          %5075 = vmatpush1.bf16.msra.mxu0 0
          %5076 = vmatprep.subr.bf16.mxu0 0
          %5077 = vmatpush1.bf16.msra.mxu0 0
          %5078 = vmatprep.subr.bf16.mxu0 0
          %5079 = vmatpush1.bf16.msra.mxu0 0
          %5080 = vmatprep.subr.bf16.mxu0 0
          %5081 = vmatpush1.bf16.msra.mxu0 0
          %5082 = vmatprep.subr.bf16.mxu0 0
          %5083 = vmatpush1.bf16.msra.mxu0 0
          %5084 = vmatprep.subr.bf16.mxu0 0
          %5085 = vmatpush1.bf16.msra.mxu0 0
          %5086 = vmatprep.subr.bf16.mxu0 0
          %5087 = vmatpush1.bf16.msra.mxu0 0
          %5088 = vmatprep.subr.bf16.mxu0 0
          %5089 = vmatpush1.bf16.msra.mxu0 0
          %5090 = vmatprep.subr.bf16.mxu0 0
          %5091 = vmatpush1.bf16.msra.mxu0 0
          %5092 = vmatprep.subr.bf16.mxu0 0
          %5093 = vmatpush1.bf16.msra.mxu0 0
          %5094 = vmatprep.subr.bf16.mxu0 0
          %5095 = vmatpush1.bf16.msra.mxu0 0
          %5096 = vmatprep.subr.bf16.mxu0 0
          %5097 = vmatpush1.bf16.msra.mxu0 0
          %5098 = vmatprep.subr.bf16.mxu0 0
          %5099 = vmatpush1.bf16.msra.mxu0 0
          %5100 = vmatprep.mubr.bf16.mxu0 0
          %5101 = vmatmul.mubr.bf16.gmra.mrb[0].mxu0 %v5045
          %v5102 = vpop.f32.mrb[0].mxu0
          %v5103 = vadd.f32 0.0, %v5102
          %v5104 = vpop.f32.mrb[0].mxu0
          %v5105 = vpop.f32.mrb[0].mxu0
          %v5106 = vadd.f32 0.0, %v5105
          %v5107 = vpop.f32.mrb[0].mxu0
          %5108 = vmatprep.mubr.bf16.mxu0 0
          %5109 = vmatmul.mubr.bf16.gmra.mrb[0].mxu0 %v5048
          %v5110 = vpop.f32.mrb[0].mxu0
          %v5111 = vadd.f32 0.0, %v5110
          %v5112 = vpop.f32.mrb[0].mxu0
          %v5113 = vpop.f32.mrb[0].mxu0
          %v5114 = vadd.f32 0.0, %v5113
          %v5115 = vpop.f32.mrb[0].mxu0
          %5116 = vmatprep.mubr.bf16.mxu0 0
          %5117 = vmatmul.mubr.bf16.gmra.mrb[0].mxu0 %v5051
          %v5118 = vpop.f32.mrb[0].mxu0
          %v5119 = vadd.f32 0.0, %v5118
          %v5120 = vpop.f32.mrb[0].mxu0
          %v5121 = vpop.f32.mrb[0].mxu0
          %v5122 = vadd.f32 0.0, %v5121
          %v5123 = vpop.f32.mrb[0].mxu0
          %5124 = vmatprep.mubr.bf16.mxu0 0
          %5125 = vmatmul.mubr.bf16.gmra.mrb[0].mxu0 %v5054
          %v5126 = vpop.f32.mrb[0].mxu0
          %v5127 = vadd.f32 0.0, %v5126
          %v5128 = vpop.f32.mrb[0].mxu0
          %v5129 = vpop.f32.mrb[0].mxu0
          %v5130 = vadd.f32 0.0, %v5129
          %v5131 = vpop.f32.mrb[0].mxu0
          %5132 = vmatprep.mubr.bf16.mxu0 0
          %5133 = vmatmul.mubr.bf16.gmra.mrb[0].mxu0 %v5057
          %v5134 = vpop.f32.mrb[0].mxu0
          %v5135 = vadd.f32 0.0, %v5134
          %v5136 = vpop.f32.mrb[0].mxu0
          %v5137 = vpop.f32.mrb[0].mxu0
          %v5138 = vadd.f32 0.0, %v5137
          %v5139 = vpop.f32.mrb[0].mxu0
          %5140 = vmatprep.mubr.bf16.mxu0 0
          %5141 = vmatmul.mubr.bf16.gmra.mrb[0].mxu0 %v5060
          %v5142 = vpop.f32.mrb[0].mxu0
          %v5143 = vadd.f32 0.0, %v5142
          %v5144 = vpop.f32.mrb[0].mxu0
          %v5145 = vpop.f32.mrb[0].mxu0
          %v5146 = vadd.f32 0.0, %v5145
          %v5147 = vpop.f32.mrb[0].mxu0
          %5148 = vmatprep.mubr.bf16.mxu0 0
          %5149 = vmatmul.mubr.bf16.gmra.mrb[0].mxu0 %v5063
          %v5150 = vpop.f32.mrb[0].mxu0
          %v5151 = vadd.f32 0.0, %v5150
          %v5152 = vpop.f32.mrb[0].mxu0
          %v5153 = vpop.f32.mrb[0].mxu0
          %v5154 = vadd.f32 0.0, %v5153
          %v5155 = vpop.f32.mrb[0].mxu0
          %5156 = vmatprep.mubr.bf16.mxu0 0
          %5157 = vmatmul.mubr.bf16.gmra.mrb[0].mxu0 %v5066
          %v5158 = vpop.f32.mrb[0].mxu0
          %v5159 = vadd.f32 0.0, %v5158
          %v5160 = vpop.f32.mrb[0].mxu0
          %v5161 = vpop.f32.mrb[0].mxu0
          %v5162 = vadd.f32 0.0, %v5161
          %v5163 = vpop.f32.mrb[0].mxu0
          %5164 = vdwg.mxu0
          %v5169 = vunpack.c.l.b16 %v4871
          %v5170 = vunpack.c.l.b16 %v4872
          %v5171 = vunpack.c.l.b16 %v4873
          %v5172 = vunpack.c.l.b16 %v4874
          %v5173 = vpack.c.b16 %v5170, %v5169
          %v5174 = vpack.c.b16 %v5172, %v5171
          %v5178 = vsel %vm1528, %v4863, 0
          %v5181 = vsel %vm1528, %v4864, 0
          %v5184 = vsel %vm1528, %v4865, 0
          %v5187 = vsel %vm1528, %v4866, 0
          %v5190 = vsel %vm1528, %v4867, 0
          %v5193 = vsel %vm1528, %v4868, 0
          %v5196 = vsel %vm1528, %v4869, 0
          %v5199 = vsel %vm1528, %v4870, 0
          %5201 = vmatprep.subr.bf16.mxu0 0
          %5202 = vmatpush1.bf16.msra.mxu0 %v5173
          %5203 = vmatprep.subr.bf16.mxu0 0
          %5204 = vmatpush1.bf16.msra.mxu0 %v5174
          %5205 = vmatprep.subr.bf16.mxu0 0
          %5206 = vmatpush1.bf16.msra.mxu0 0
          %5207 = vmatprep.subr.bf16.mxu0 0
          %5208 = vmatpush1.bf16.msra.mxu0 0
          %5209 = vmatprep.subr.bf16.mxu0 0
          %5210 = vmatpush1.bf16.msra.mxu0 0
          %5211 = vmatprep.subr.bf16.mxu0 0
          %5212 = vmatpush1.bf16.msra.mxu0 0
          %5213 = vmatprep.subr.bf16.mxu0 0
          %5214 = vmatpush1.bf16.msra.mxu0 0
          %5215 = vmatprep.subr.bf16.mxu0 0
          %5216 = vmatpush1.bf16.msra.mxu0 0
          %5217 = vmatprep.subr.bf16.mxu0 0
          %5218 = vmatpush1.bf16.msra.mxu0 0
          %5219 = vmatprep.subr.bf16.mxu0 0
          %5220 = vmatpush1.bf16.msra.mxu0 0
          %5221 = vmatprep.subr.bf16.mxu0 0
          %5222 = vmatpush1.bf16.msra.mxu0 0
          %5223 = vmatprep.subr.bf16.mxu0 0
          %5224 = vmatpush1.bf16.msra.mxu0 0
          %5225 = vmatprep.subr.bf16.mxu0 0
          %5226 = vmatpush1.bf16.msra.mxu0 0
          %5227 = vmatprep.subr.bf16.mxu0 0
          %5228 = vmatpush1.bf16.msra.mxu0 0
          %5229 = vmatprep.subr.bf16.mxu0 0
          %5230 = vmatpush1.bf16.msra.mxu0 0
          %5231 = vmatprep.subr.bf16.mxu0 0
          %5232 = vmatpush1.bf16.msra.mxu0 0
          %5233 = vmatprep.mubr.bf16.mxu0 0
          %5234 = vmatmul.mubr.bf16.gmra.mrb[0].mxu0 %v5178
          %v5235 = vpop.f32.mrb[0].mxu0
          %v5236 = vadd.f32 %v5103, %v5235
          %v5237 = vpop.f32.mrb[0].mxu0
          %v5238 = vpop.f32.mrb[0].mxu0
          %v5239 = vadd.f32 %v5106, %v5238
          %v5240 = vpop.f32.mrb[0].mxu0
          %5241 = vmatprep.mubr.bf16.mxu0 0
          %5242 = vmatmul.mubr.bf16.gmra.mrb[0].mxu0 %v5181
          %v5243 = vpop.f32.mrb[0].mxu0
          %v5244 = vadd.f32 %v5111, %v5243
          %v5245 = vpop.f32.mrb[0].mxu0
          %v5246 = vpop.f32.mrb[0].mxu0
          %v5247 = vadd.f32 %v5114, %v5246
          %v5248 = vpop.f32.mrb[0].mxu0
          %5249 = vmatprep.mubr.bf16.mxu0 0
          %5250 = vmatmul.mubr.bf16.gmra.mrb[0].mxu0 %v5184
          %v5251 = vpop.f32.mrb[0].mxu0
          %v5252 = vadd.f32 %v5119, %v5251
          %v5253 = vpop.f32.mrb[0].mxu0
          %v5254 = vpop.f32.mrb[0].mxu0
          %v5255 = vadd.f32 %v5122, %v5254
          %v5256 = vpop.f32.mrb[0].mxu0
          %5257 = vmatprep.mubr.bf16.mxu0 0
          %5258 = vmatmul.mubr.bf16.gmra.mrb[0].mxu0 %v5187
          %v5259 = vpop.f32.mrb[0].mxu0
          %v5260 = vadd.f32 %v5127, %v5259
          %v5261 = vpop.f32.mrb[0].mxu0
          %v5262 = vpop.f32.mrb[0].mxu0
          %v5263 = vadd.f32 %v5130, %v5262
          %v5264 = vpop.f32.mrb[0].mxu0
          %5265 = vmatprep.mubr.bf16.mxu0 0
          %5266 = vmatmul.mubr.bf16.gmra.mrb[0].mxu0 %v5190
          %v5267 = vpop.f32.mrb[0].mxu0
          %v5268 = vadd.f32 %v5135, %v5267
          %v5269 = vpop.f32.mrb[0].mxu0
          %v5270 = vpop.f32.mrb[0].mxu0
          %v5271 = vadd.f32 %v5138, %v5270
          %v5272 = vpop.f32.mrb[0].mxu0
          %5273 = vmatprep.mubr.bf16.mxu0 0
          %5274 = vmatmul.mubr.bf16.gmra.mrb[0].mxu0 %v5193
          %v5275 = vpop.f32.mrb[0].mxu0
          %v5276 = vadd.f32 %v5143, %v5275
          %v5277 = vpop.f32.mrb[0].mxu0
          %v5278 = vpop.f32.mrb[0].mxu0
          %v5279 = vadd.f32 %v5146, %v5278
          %v5280 = vpop.f32.mrb[0].mxu0
          %5281 = vmatprep.mubr.bf16.mxu0 0
          %5282 = vmatmul.mubr.bf16.gmra.mrb[0].mxu0 %v5196
          %v5283 = vpop.f32.mrb[0].mxu0
          %v5284 = vadd.f32 %v5151, %v5283
          %v5285 = vpop.f32.mrb[0].mxu0
          %v5286 = vpop.f32.mrb[0].mxu0
          %v5287 = vadd.f32 %v5154, %v5286
          %v5288 = vpop.f32.mrb[0].mxu0
          %5289 = vmatprep.mubr.bf16.mxu0 0
          %5290 = vmatmul.mubr.bf16.gmra.mrb[0].mxu0 %v5199
          %v5291 = vpop.f32.mrb[0].mxu0
          %v5292 = vadd.f32 %v5159, %v5291
          %v5293 = vpop.f32.mrb[0].mxu0
          %v5294 = vpop.f32.mrb[0].mxu0
          %v5295 = vadd.f32 %v5162, %v5294
          %v5296 = vpop.f32.mrb[0].mxu0
          %5297 = vdwg.mxu0
          %v5298 = vld [vmem:[%s3620] sm:$0xff]
          %v5299 = vld [vmem:[%s3620 + $0x8] sm:$0xff]
          %v5300 = vld [vmem:[%s3620 + $0x10] sm:$0xff]
          %v5301 = vld [vmem:[%s3620 + $0x18] sm:$0xff]
          %v5302 = vld [vmem:[%s3620 + $0x20] sm:$0xff]
          %v5303 = vld [vmem:[%s3620 + $0x28] sm:$0xff]
          %v5304 = vld [vmem:[%s3620 + $0x30] sm:$0xff]
          %v5305 = vld [vmem:[%s3620 + $0x38] sm:$0xff]
          %v5306 = vld [vmem:[%s3620 + $0x40] sm:$0xff]
          %v5307 = vld [vmem:[%s3620 + $0x48] sm:$0xff]
          %v5308 = vld [vmem:[%s3620 + $0x50] sm:$0xff]
          %v5309 = vld [vmem:[%s3620 + $0x58] sm:$0xff]
          %v5310 = vld [vmem:[%s3620 + $0x60] sm:$0xff]
          %v5311 = vld [vmem:[%s3620 + $0x68] sm:$0xff]
          %v5312 = vld [vmem:[%s3620 + $0x70] sm:$0xff]
          %v5313 = vld [vmem:[%s3620 + $0x78] sm:$0xff]
          %v5314 = vld [vmem:[%s3523] sm:$0xff]
          %v5315 = vld [vmem:[%s3523 + $0x8] sm:$0xff]
          %v5316 = vld [vmem:[%s3523 + $0x10] sm:$0xff]
          %v5317 = vld [vmem:[%s3523 + $0x18] sm:$0xff]
          %v5318 = vld [vmem:[%s3523 + $0x20] sm:$0xff]
          %v5319 = vld [vmem:[%s3523 + $0x28] sm:$0xff]
          %v5320 = vld [vmem:[%s3523 + $0x30] sm:$0xff]
          %v5321 = vld [vmem:[%s3523 + $0x38] sm:$0xff]
          %v5322 = vld [vmem:[%s3523 + $0x40] sm:$0xff]
          %v5323 = vld [vmem:[%s3523 + $0x48] sm:$0xff]
          %v5324 = vld [vmem:[%s3523 + $0x50] sm:$0xff]
          %v5325 = vld [vmem:[%s3523 + $0x58] sm:$0xff]
          %v5326 = vld [vmem:[%s3523 + $0x60] sm:$0xff]
          %v5327 = vld [vmem:[%s3523 + $0x68] sm:$0xff]
          %v5328 = vld [vmem:[%s3523 + $0x70] sm:$0xff]
          %v5329 = vld [vmem:[%s3523 + $0x78] sm:$0xff]
          %v5330 = vrcp.pop %v5314
          %v5331 = vrcp.pop %v5315
          %v5332 = vrcp.pop %v5316
          %v5333 = vrcp.pop %v5317
          %v5334 = vrcp.pop %v5318
          %v5335 = vrcp.pop %v5319
          %v5336 = vrcp.pop %v5320
          %v5337 = vrcp.pop %v5321
          %v5338 = vrcp.pop %v5322
          %v5339 = vrcp.pop %v5323
          %v5340 = vrcp.pop %v5324
          %v5341 = vrcp.pop %v5325
          %v5342 = vrcp.pop %v5326
          %v5343 = vrcp.pop %v5327
          %v5344 = vrcp.pop %v5328
          %v5345 = vrcp.pop %v5329
          %5347 = vset.pattern.permute.xlu0 0
          %5348 = vperm.xlu0 %5347, %v5330
          %v5349 = vpop.permute.xlu0 %5348
          %5352 = vset.pattern.permute.xlu0 0
          %5353 = vperm.xlu0 %5352, %v5331
          %v5354 = vpop.permute.xlu0 %5353
          %5357 = vset.pattern.permute.xlu0 0
          %5358 = vperm.xlu0 %5357, %v5332
          %v5359 = vpop.permute.xlu0 %5358
          %5362 = vset.pattern.permute.xlu0 0
          %5363 = vperm.xlu0 %5362, %v5333
          %v5364 = vpop.permute.xlu0 %5363
          %5367 = vset.pattern.permute.xlu0 0
          %5368 = vperm.xlu0 %5367, %v5334
          %v5369 = vpop.permute.xlu0 %5368
          %5372 = vset.pattern.permute.xlu0 0
          %5373 = vperm.xlu0 %5372, %v5335
          %v5374 = vpop.permute.xlu0 %5373
          %5377 = vset.pattern.permute.xlu0 0
          %5378 = vperm.xlu0 %5377, %v5336
          %v5379 = vpop.permute.xlu0 %5378
          %5382 = vset.pattern.permute.xlu0 0
          %5383 = vperm.xlu0 %5382, %v5337
          %v5384 = vpop.permute.xlu0 %5383
          %5387 = vset.pattern.permute.xlu0 0
          %5388 = vperm.xlu0 %5387, %v5338
          %v5389 = vpop.permute.xlu0 %5388
          %5392 = vset.pattern.permute.xlu0 0
          %5393 = vperm.xlu0 %5392, %v5339
          %v5394 = vpop.permute.xlu0 %5393
          %5397 = vset.pattern.permute.xlu0 0
          %5398 = vperm.xlu0 %5397, %v5340
          %v5399 = vpop.permute.xlu0 %5398
          %5402 = vset.pattern.permute.xlu0 0
          %5403 = vperm.xlu0 %5402, %v5341
          %v5404 = vpop.permute.xlu0 %5403
          %5407 = vset.pattern.permute.xlu0 0
          %5408 = vperm.xlu0 %5407, %v5342
          %v5409 = vpop.permute.xlu0 %5408
          %5412 = vset.pattern.permute.xlu0 0
          %5413 = vperm.xlu0 %5412, %v5343
          %v5414 = vpop.permute.xlu0 %5413
          %5417 = vset.pattern.permute.xlu0 0
          %5418 = vperm.xlu0 %5417, %v5344
          %v5419 = vpop.permute.xlu0 %5418
          %5422 = vset.pattern.permute.xlu0 0
          %5423 = vperm.xlu0 %5422, %v5345
          %v5424 = vpop.permute.xlu0 %5423
          %v5426 = vmul.f32 %v5298, %v5349
          %v5427 = vmul.f32 %v5299, %v5354
          %v5428 = vmul.f32 %v5300, %v5359
          %v5429 = vmul.f32 %v5301, %v5364
          %v5430 = vmul.f32 %v5302, %v5369
          %v5431 = vmul.f32 %v5303, %v5374
          %v5432 = vmul.f32 %v5304, %v5379
          %v5433 = vmul.f32 %v5305, %v5384
          %v5434 = vmul.f32 %v5306, %v5389
          %v5435 = vmul.f32 %v5307, %v5394
          %v5436 = vmul.f32 %v5308, %v5399
          %v5437 = vmul.f32 %v5309, %v5404
          %v5438 = vmul.f32 %v5310, %v5409
          %v5439 = vmul.f32 %v5311, %v5414
          %v5440 = vmul.f32 %v5312, %v5419
          %v5441 = vmul.f32 %v5313, %v5424
          %v5442 = vpack.c.bf16 %v5427, %v5426
          %v5443 = vpack.c.bf16 %v5429, %v5428
          %v5444 = vpack.c.bf16 %v5431, %v5430
          %v5445 = vpack.c.bf16 %v5433, %v5432
          %v5446 = vpack.c.bf16 %v5435, %v5434
          %v5447 = vpack.c.bf16 %v5437, %v5436
          %v5448 = vpack.c.bf16 %v5439, %v5438
          %v5449 = vpack.c.bf16 %v5441, %v5440
          %s5450 = scalar_lea.vmem [#allocation15], 32
          %v5451 = vld [vmem:[%s5450] sm:$0xf]
          %v5452 = vld [vmem:[%s5450 + $0x4] sm:$0xf]
          %v5453 = vld [vmem:[%s5450 + $0x8] sm:$0xf]
          %v5454 = vld [vmem:[%s5450 + $0xc] sm:$0xf]
          %v5459 = vunpack.c.l.b16 %v5451
          %v5460 = vunpack.c.l.b16 %v5452
          %v5461 = vunpack.c.l.b16 %v5453
          %v5462 = vunpack.c.l.b16 %v5454
          %v5463 = vpack.c.b16 %v5460, %v5459
          %v5464 = vpack.c.b16 %v5462, %v5461
          %v5468 = vsel %vm1528, %v5442, 0
          %v5471 = vsel %vm1528, %v5443, 0
          %v5474 = vsel %vm1528, %v5444, 0
          %v5477 = vsel %vm1528, %v5445, 0
          %v5480 = vsel %vm1528, %v5446, 0
          %v5483 = vsel %vm1528, %v5447, 0
          %v5486 = vsel %vm1528, %v5448, 0
          %v5489 = vsel %vm1528, %v5449, 0
          %5491 = vmatprep.subr.bf16.mxu0 0
          %5492 = vmatpush1.bf16.msra.mxu0 %v5463
          %5493 = vmatprep.subr.bf16.mxu0 0
          %5494 = vmatpush1.bf16.msra.mxu0 %v5464
          %5495 = vmatprep.subr.bf16.mxu0 0
          %5496 = vmatpush1.bf16.msra.mxu0 0
          %5497 = vmatprep.subr.bf16.mxu0 0
          %5498 = vmatpush1.bf16.msra.mxu0 0
          %5499 = vmatprep.subr.bf16.mxu0 0
          %5500 = vmatpush1.bf16.msra.mxu0 0
          %5501 = vmatprep.subr.bf16.mxu0 0
          %5502 = vmatpush1.bf16.msra.mxu0 0
          %5503 = vmatprep.subr.bf16.mxu0 0
          %5504 = vmatpush1.bf16.msra.mxu0 0
          %5505 = vmatprep.subr.bf16.mxu0 0
          %5506 = vmatpush1.bf16.msra.mxu0 0
          %5507 = vmatprep.subr.bf16.mxu0 0
          %5508 = vmatpush1.bf16.msra.mxu0 0
          %5509 = vmatprep.subr.bf16.mxu0 0
          %5510 = vmatpush1.bf16.msra.mxu0 0
          %5511 = vmatprep.subr.bf16.mxu0 0
          %5512 = vmatpush1.bf16.msra.mxu0 0
          %5513 = vmatprep.subr.bf16.mxu0 0
          %5514 = vmatpush1.bf16.msra.mxu0 0
          %5515 = vmatprep.subr.bf16.mxu0 0
          %5516 = vmatpush1.bf16.msra.mxu0 0
          %5517 = vmatprep.subr.bf16.mxu0 0
          %5518 = vmatpush1.bf16.msra.mxu0 0
          %5519 = vmatprep.subr.bf16.mxu0 0
          %5520 = vmatpush1.bf16.msra.mxu0 0
          %5521 = vmatprep.subr.bf16.mxu0 0
          %5522 = vmatpush1.bf16.msra.mxu0 0
          %5523 = vmatprep.mubr.bf16.mxu0 0
          %5524 = vmatmul.mubr.bf16.gmra.mrb[0].mxu0 %v5468
          %v5525 = vpop.f32.mrb[0].mxu0
          %v5526 = vadd.f32 0.0, %v5525
          %v5527 = vpop.f32.mrb[0].mxu0
          %v5528 = vpop.f32.mrb[0].mxu0
          %v5529 = vadd.f32 0.0, %v5528
          %v5530 = vpop.f32.mrb[0].mxu0
          %5531 = vmatprep.mubr.bf16.mxu0 0
          %5532 = vmatmul.mubr.bf16.gmra.mrb[0].mxu0 %v5471
          %v5533 = vpop.f32.mrb[0].mxu0
          %v5534 = vadd.f32 0.0, %v5533
          %v5535 = vpop.f32.mrb[0].mxu0
          %v5536 = vpop.f32.mrb[0].mxu0
          %v5537 = vadd.f32 0.0, %v5536
          %v5538 = vpop.f32.mrb[0].mxu0
          %5539 = vmatprep.mubr.bf16.mxu0 0
          %5540 = vmatmul.mubr.bf16.gmra.mrb[0].mxu0 %v5474
          %v5541 = vpop.f32.mrb[0].mxu0
          %v5542 = vadd.f32 0.0, %v5541
          %v5543 = vpop.f32.mrb[0].mxu0
          %v5544 = vpop.f32.mrb[0].mxu0
          %v5545 = vadd.f32 0.0, %v5544
          %v5546 = vpop.f32.mrb[0].mxu0
          %5547 = vmatprep.mubr.bf16.mxu0 0
          %5548 = vmatmul.mubr.bf16.gmra.mrb[0].mxu0 %v5477
          %v5549 = vpop.f32.mrb[0].mxu0
          %v5550 = vadd.f32 0.0, %v5549
          %v5551 = vpop.f32.mrb[0].mxu0
          %v5552 = vpop.f32.mrb[0].mxu0
          %v5553 = vadd.f32 0.0, %v5552
          %v5554 = vpop.f32.mrb[0].mxu0
          %5555 = vmatprep.mubr.bf16.mxu0 0
          %5556 = vmatmul.mubr.bf16.gmra.mrb[0].mxu0 %v5480
          %v5557 = vpop.f32.mrb[0].mxu0
          %v5558 = vadd.f32 0.0, %v5557
          %v5559 = vpop.f32.mrb[0].mxu0
          %v5560 = vpop.f32.mrb[0].mxu0
          %v5561 = vadd.f32 0.0, %v5560
          %v5562 = vpop.f32.mrb[0].mxu0
          %5563 = vmatprep.mubr.bf16.mxu0 0
          %5564 = vmatmul.mubr.bf16.gmra.mrb[0].mxu0 %v5483
          %v5565 = vpop.f32.mrb[0].mxu0
          %v5566 = vadd.f32 0.0, %v5565
          %v5567 = vpop.f32.mrb[0].mxu0
          %v5568 = vpop.f32.mrb[0].mxu0
          %v5569 = vadd.f32 0.0, %v5568
          %v5570 = vpop.f32.mrb[0].mxu0
          %5571 = vmatprep.mubr.bf16.mxu0 0
          %5572 = vmatmul.mubr.bf16.gmra.mrb[0].mxu0 %v5486
          %v5573 = vpop.f32.mrb[0].mxu0
          %v5574 = vadd.f32 0.0, %v5573
          %v5575 = vpop.f32.mrb[0].mxu0
          %v5576 = vpop.f32.mrb[0].mxu0
          %v5577 = vadd.f32 0.0, %v5576
          %v5578 = vpop.f32.mrb[0].mxu0
          %5579 = vmatprep.mubr.bf16.mxu0 0
          %5580 = vmatmul.mubr.bf16.gmra.mrb[0].mxu0 %v5489
          %v5581 = vpop.f32.mrb[0].mxu0
          %v5582 = vadd.f32 0.0, %v5581
          %v5583 = vpop.f32.mrb[0].mxu0
          %v5584 = vpop.f32.mrb[0].mxu0
          %v5585 = vadd.f32 0.0, %v5584
          %v5586 = vpop.f32.mrb[0].mxu0
          %5587 = vdwg.mxu0
          %v5588 = vadd.f32 %v5236, %v5526
          %v5589 = vadd.f32 %v5239, %v5529
          %v5590 = vadd.f32 %v5244, %v5534
          %v5591 = vadd.f32 %v5247, %v5537
          %v5592 = vadd.f32 %v5252, %v5542
          %v5593 = vadd.f32 %v5255, %v5545
          %v5594 = vadd.f32 %v5260, %v5550
          %v5595 = vadd.f32 %v5263, %v5553
          %v5596 = vadd.f32 %v5268, %v5558
          %v5597 = vadd.f32 %v5271, %v5561
          %v5598 = vadd.f32 %v5276, %v5566
          %v5599 = vadd.f32 %v5279, %v5569
          %v5600 = vadd.f32 %v5284, %v5574
          %v5601 = vadd.f32 %v5287, %v5577
          %v5602 = vadd.f32 %v5292, %v5582
          %v5603 = vadd.f32 %v5295, %v5585
          %v5604 = vld [vmem:[%s4425] sm:$0xff]
          %v5605 = vld [vmem:[%s4425 + $0x8] sm:$0xff]
          %v5606 = vld [vmem:[%s4425 + $0x10] sm:$0xff]
          %v5607 = vld [vmem:[%s4425 + $0x18] sm:$0xff]
          %v5608 = vld [vmem:[%s4425 + $0x20] sm:$0xff]
          %v5609 = vld [vmem:[%s4425 + $0x28] sm:$0xff]
          %v5610 = vld [vmem:[%s4425 + $0x30] sm:$0xff]
          %v5611 = vld [vmem:[%s4425 + $0x38] sm:$0xff]
          %v5612 = vld [vmem:[%s4425 + $0x40] sm:$0xff]
          %v5613 = vld [vmem:[%s4425 + $0x48] sm:$0xff]
          %v5614 = vld [vmem:[%s4425 + $0x50] sm:$0xff]
          %v5615 = vld [vmem:[%s4425 + $0x58] sm:$0xff]
          %v5616 = vld [vmem:[%s4425 + $0x60] sm:$0xff]
          %v5617 = vld [vmem:[%s4425 + $0x68] sm:$0xff]
          %v5618 = vld [vmem:[%s4425 + $0x70] sm:$0xff]
          %v5619 = vld [vmem:[%s4425 + $0x78] sm:$0xff]
          %v5620 = vld [vmem:[%s4328] sm:$0xff]
          %v5621 = vld [vmem:[%s4328 + $0x8] sm:$0xff]
          %v5622 = vld [vmem:[%s4328 + $0x10] sm:$0xff]
          %v5623 = vld [vmem:[%s4328 + $0x18] sm:$0xff]
          %v5624 = vld [vmem:[%s4328 + $0x20] sm:$0xff]
          %v5625 = vld [vmem:[%s4328 + $0x28] sm:$0xff]
          %v5626 = vld [vmem:[%s4328 + $0x30] sm:$0xff]
          %v5627 = vld [vmem:[%s4328 + $0x38] sm:$0xff]
          %v5628 = vld [vmem:[%s4328 + $0x40] sm:$0xff]
          %v5629 = vld [vmem:[%s4328 + $0x48] sm:$0xff]
          %v5630 = vld [vmem:[%s4328 + $0x50] sm:$0xff]
          %v5631 = vld [vmem:[%s4328 + $0x58] sm:$0xff]
          %v5632 = vld [vmem:[%s4328 + $0x60] sm:$0xff]
          %v5633 = vld [vmem:[%s4328 + $0x68] sm:$0xff]
          %v5634 = vld [vmem:[%s4328 + $0x70] sm:$0xff]
          %v5635 = vld [vmem:[%s4328 + $0x78] sm:$0xff]
          %v5636 = vrcp.pop %v5620
          %v5637 = vrcp.pop %v5621
          %v5638 = vrcp.pop %v5622
          %v5639 = vrcp.pop %v5623
          %v5640 = vrcp.pop %v5624
          %v5641 = vrcp.pop %v5625
          %v5642 = vrcp.pop %v5626
          %v5643 = vrcp.pop %v5627
          %v5644 = vrcp.pop %v5628
          %v5645 = vrcp.pop %v5629
          %v5646 = vrcp.pop %v5630
          %v5647 = vrcp.pop %v5631
          %v5648 = vrcp.pop %v5632
          %v5649 = vrcp.pop %v5633
          %v5650 = vrcp.pop %v5634
          %v5651 = vrcp.pop %v5635
          %5653 = vset.pattern.permute.xlu0 0
          %5654 = vperm.xlu0 %5653, %v5636
          %v5655 = vpop.permute.xlu0 %5654
          %5658 = vset.pattern.permute.xlu0 0
          %5659 = vperm.xlu0 %5658, %v5637
          %v5660 = vpop.permute.xlu0 %5659
          %5663 = vset.pattern.permute.xlu0 0
          %5664 = vperm.xlu0 %5663, %v5638
          %v5665 = vpop.permute.xlu0 %5664
          %5668 = vset.pattern.permute.xlu0 0
          %5669 = vperm.xlu0 %5668, %v5639
          %v5670 = vpop.permute.xlu0 %5669
          %5673 = vset.pattern.permute.xlu0 0
          %5674 = vperm.xlu0 %5673, %v5640
          %v5675 = vpop.permute.xlu0 %5674
          %5678 = vset.pattern.permute.xlu0 0
          %5679 = vperm.xlu0 %5678, %v5641
          %v5680 = vpop.permute.xlu0 %5679
          %5683 = vset.pattern.permute.xlu0 0
          %5684 = vperm.xlu0 %5683, %v5642
          %v5685 = vpop.permute.xlu0 %5684
          %5688 = vset.pattern.permute.xlu0 0
          %5689 = vperm.xlu0 %5688, %v5643
          %v5690 = vpop.permute.xlu0 %5689
          %5693 = vset.pattern.permute.xlu0 0
          %5694 = vperm.xlu0 %5693, %v5644
          %v5695 = vpop.permute.xlu0 %5694
          %5698 = vset.pattern.permute.xlu0 0
          %5699 = vperm.xlu0 %5698, %v5645
          %v5700 = vpop.permute.xlu0 %5699
          %5703 = vset.pattern.permute.xlu0 0
          %5704 = vperm.xlu0 %5703, %v5646
          %v5705 = vpop.permute.xlu0 %5704
          %5708 = vset.pattern.permute.xlu0 0
          %5709 = vperm.xlu0 %5708, %v5647
          %v5710 = vpop.permute.xlu0 %5709
          %5713 = vset.pattern.permute.xlu0 0
          %5714 = vperm.xlu0 %5713, %v5648
          %v5715 = vpop.permute.xlu0 %5714
          %5718 = vset.pattern.permute.xlu0 0
          %5719 = vperm.xlu0 %5718, %v5649
          %v5720 = vpop.permute.xlu0 %5719
          %5723 = vset.pattern.permute.xlu0 0
          %5724 = vperm.xlu0 %5723, %v5650
          %v5725 = vpop.permute.xlu0 %5724
          %5728 = vset.pattern.permute.xlu0 0
          %5729 = vperm.xlu0 %5728, %v5651
          %v5730 = vpop.permute.xlu0 %5729
          %v5732 = vmul.f32 %v5604, %v5655
          %v5733 = vmul.f32 %v5605, %v5660
          %v5734 = vmul.f32 %v5606, %v5665
          %v5735 = vmul.f32 %v5607, %v5670
          %v5736 = vmul.f32 %v5608, %v5675
          %v5737 = vmul.f32 %v5609, %v5680
          %v5738 = vmul.f32 %v5610, %v5685
          %v5739 = vmul.f32 %v5611, %v5690
          %v5740 = vmul.f32 %v5612, %v5695
          %v5741 = vmul.f32 %v5613, %v5700
          %v5742 = vmul.f32 %v5614, %v5705
          %v5743 = vmul.f32 %v5615, %v5710
          %v5744 = vmul.f32 %v5616, %v5715
          %v5745 = vmul.f32 %v5617, %v5720
          %v5746 = vmul.f32 %v5618, %v5725
          %v5747 = vmul.f32 %v5619, %v5730
          %v5748 = vpack.c.bf16 %v5733, %v5732
          %v5749 = vpack.c.bf16 %v5735, %v5734
          %v5750 = vpack.c.bf16 %v5737, %v5736
          %v5751 = vpack.c.bf16 %v5739, %v5738
          %v5752 = vpack.c.bf16 %v5741, %v5740
          %v5753 = vpack.c.bf16 %v5743, %v5742
          %v5754 = vpack.c.bf16 %v5745, %v5744
          %v5755 = vpack.c.bf16 %v5747, %v5746
          %s5756 = scalar_lea.vmem [#allocation15], 48
          %v5757 = vld [vmem:[%s5756] sm:$0xf]
          %v5758 = vld [vmem:[%s5756 + $0x4] sm:$0xf]
          %v5759 = vld [vmem:[%s5756 + $0x8] sm:$0xf]
          %v5760 = vld [vmem:[%s5756 + $0xc] sm:$0xf]
          %v5765 = vunpack.c.l.b16 %v5757
          %v5766 = vunpack.c.l.b16 %v5758
          %v5767 = vunpack.c.l.b16 %v5759
          %v5768 = vunpack.c.l.b16 %v5760
          %v5769 = vpack.c.b16 %v5766, %v5765
          %v5770 = vpack.c.b16 %v5768, %v5767
          %v5774 = vsel %vm1528, %v5748, 0
          %v5777 = vsel %vm1528, %v5749, 0
          %v5780 = vsel %vm1528, %v5750, 0
          %v5783 = vsel %vm1528, %v5751, 0
          %v5786 = vsel %vm1528, %v5752, 0
          %v5789 = vsel %vm1528, %v5753, 0
          %v5792 = vsel %vm1528, %v5754, 0
          %v5795 = vsel %vm1528, %v5755, 0
          %5797 = vmatprep.subr.bf16.mxu0 0
          %5798 = vmatpush1.bf16.msra.mxu0 %v5769
          %5799 = vmatprep.subr.bf16.mxu0 0
          %5800 = vmatpush1.bf16.msra.mxu0 %v5770
          %5801 = vmatprep.subr.bf16.mxu0 0
          %5802 = vmatpush1.bf16.msra.mxu0 0
          %5803 = vmatprep.subr.bf16.mxu0 0
          %5804 = vmatpush1.bf16.msra.mxu0 0
          %5805 = vmatprep.subr.bf16.mxu0 0
          %5806 = vmatpush1.bf16.msra.mxu0 0
          %5807 = vmatprep.subr.bf16.mxu0 0
          %5808 = vmatpush1.bf16.msra.mxu0 0
          %5809 = vmatprep.subr.bf16.mxu0 0
          %5810 = vmatpush1.bf16.msra.mxu0 0
          %5811 = vmatprep.subr.bf16.mxu0 0
          %5812 = vmatpush1.bf16.msra.mxu0 0
          %5813 = vmatprep.subr.bf16.mxu0 0
          %5814 = vmatpush1.bf16.msra.mxu0 0
          %5815 = vmatprep.subr.bf16.mxu0 0
          %5816 = vmatpush1.bf16.msra.mxu0 0
          %5817 = vmatprep.subr.bf16.mxu0 0
          %5818 = vmatpush1.bf16.msra.mxu0 0
          %5819 = vmatprep.subr.bf16.mxu0 0
          %5820 = vmatpush1.bf16.msra.mxu0 0
          %5821 = vmatprep.subr.bf16.mxu0 0
          %5822 = vmatpush1.bf16.msra.mxu0 0
          %5823 = vmatprep.subr.bf16.mxu0 0
          %5824 = vmatpush1.bf16.msra.mxu0 0
          %5825 = vmatprep.subr.bf16.mxu0 0
          %5826 = vmatpush1.bf16.msra.mxu0 0
          %5827 = vmatprep.subr.bf16.mxu0 0
          %5828 = vmatpush1.bf16.msra.mxu0 0
          %5829 = vmatprep.mubr.bf16.mxu0 0
          %5830 = vmatmul.mubr.bf16.gmra.mrb[0].mxu0 %v5774
          %v5831 = vpop.f32.mrb[0].mxu0
          %v5832 = vadd.f32 0.0, %v5831
          %v5833 = vpop.f32.mrb[0].mxu0
          %v5834 = vpop.f32.mrb[0].mxu0
          %v5835 = vadd.f32 0.0, %v5834
          %v5836 = vpop.f32.mrb[0].mxu0
          %5837 = vmatprep.mubr.bf16.mxu0 0
          %5838 = vmatmul.mubr.bf16.gmra.mrb[0].mxu0 %v5777
          %v5839 = vpop.f32.mrb[0].mxu0
          %v5840 = vadd.f32 0.0, %v5839
          %v5841 = vpop.f32.mrb[0].mxu0
          %v5842 = vpop.f32.mrb[0].mxu0
          %v5843 = vadd.f32 0.0, %v5842
          %v5844 = vpop.f32.mrb[0].mxu0
          %5845 = vmatprep.mubr.bf16.mxu0 0
          %5846 = vmatmul.mubr.bf16.gmra.mrb[0].mxu0 %v5780
          %v5847 = vpop.f32.mrb[0].mxu0
          %v5848 = vadd.f32 0.0, %v5847
          %v5849 = vpop.f32.mrb[0].mxu0
          %v5850 = vpop.f32.mrb[0].mxu0
          %v5851 = vadd.f32 0.0, %v5850
          %v5852 = vpop.f32.mrb[0].mxu0
          %5853 = vmatprep.mubr.bf16.mxu0 0
          %5854 = vmatmul.mubr.bf16.gmra.mrb[0].mxu0 %v5783
          %v5855 = vpop.f32.mrb[0].mxu0
          %v5856 = vadd.f32 0.0, %v5855
          %v5857 = vpop.f32.mrb[0].mxu0
          %v5858 = vpop.f32.mrb[0].mxu0
          %v5859 = vadd.f32 0.0, %v5858
          %v5860 = vpop.f32.mrb[0].mxu0
          %5861 = vmatprep.mubr.bf16.mxu0 0
          %5862 = vmatmul.mubr.bf16.gmra.mrb[0].mxu0 %v5786
          %v5863 = vpop.f32.mrb[0].mxu0
          %v5864 = vadd.f32 0.0, %v5863
          %v5865 = vpop.f32.mrb[0].mxu0
          %v5866 = vpop.f32.mrb[0].mxu0
          %v5867 = vadd.f32 0.0, %v5866
          %v5868 = vpop.f32.mrb[0].mxu0
          %5869 = vmatprep.mubr.bf16.mxu0 0
          %5870 = vmatmul.mubr.bf16.gmra.mrb[0].mxu0 %v5789
          %v5871 = vpop.f32.mrb[0].mxu0
          %v5872 = vadd.f32 0.0, %v5871
          %v5873 = vpop.f32.mrb[0].mxu0
          %v5874 = vpop.f32.mrb[0].mxu0
          %v5875 = vadd.f32 0.0, %v5874
          %v5876 = vpop.f32.mrb[0].mxu0
          %5877 = vmatprep.mubr.bf16.mxu0 0
          %5878 = vmatmul.mubr.bf16.gmra.mrb[0].mxu0 %v5792
          %v5879 = vpop.f32.mrb[0].mxu0
          %v5880 = vadd.f32 0.0, %v5879
          %v5881 = vpop.f32.mrb[0].mxu0
          %v5882 = vpop.f32.mrb[0].mxu0
          %v5883 = vadd.f32 0.0, %v5882
          %v5884 = vpop.f32.mrb[0].mxu0
          %5885 = vmatprep.mubr.bf16.mxu0 0
          %5886 = vmatmul.mubr.bf16.gmra.mrb[0].mxu0 %v5795
          %v5887 = vpop.f32.mrb[0].mxu0
          %v5888 = vadd.f32 0.0, %v5887
          %v5889 = vpop.f32.mrb[0].mxu0
          %v5890 = vpop.f32.mrb[0].mxu0
          %v5891 = vadd.f32 0.0, %v5890
          %v5892 = vpop.f32.mrb[0].mxu0
          %5893 = vdwg.mxu0
          %v5894 = vadd.f32 %v5588, %v5832
          %v5895 = vadd.f32 %v5589, %v5835
          %v5896 = vadd.f32 %v5590, %v5840
          %v5897 = vadd.f32 %v5591, %v5843
          %v5898 = vadd.f32 %v5592, %v5848
          %v5899 = vadd.f32 %v5593, %v5851
          %v5900 = vadd.f32 %v5594, %v5856
          %v5901 = vadd.f32 %v5595, %v5859
          %v5902 = vadd.f32 %v5596, %v5864
          %v5903 = vadd.f32 %v5597, %v5867
          %v5904 = vadd.f32 %v5598, %v5872
          %v5905 = vadd.f32 %v5599, %v5875
          %v5906 = vadd.f32 %v5600, %v5880
          %v5907 = vadd.f32 %v5601, %v5883
          %v5908 = vadd.f32 %v5602, %v5888
          %v5909 = vadd.f32 %v5603, %v5891
          %v5910 = vld [vmem:[%s11] sm:$0x1]
          %v5912 = vlaneseq
          %v5913 = vshrl.u32 %v5912, 7
          %v5914 = vsub.s32 0, %v5913
          %v5915 = vrot.slane %v5910, %v5914
          %v5917 = vadd.f32 %v5894, %v5915
          %v5918 = vadd.f32 %v5895, %v5915
          %v5919 = vadd.f32 %v5896, %v5915
          %v5920 = vadd.f32 %v5897, %v5915
          %v5921 = vadd.f32 %v5898, %v5915
          %v5922 = vadd.f32 %v5899, %v5915
          %v5923 = vadd.f32 %v5900, %v5915
          %v5924 = vadd.f32 %v5901, %v5915
          %v5925 = vadd.f32 %v5902, %v5915
          %v5926 = vadd.f32 %v5903, %v5915
          %v5927 = vadd.f32 %v5904, %v5915
          %v5928 = vadd.f32 %v5905, %v5915
          %v5929 = vadd.f32 %v5906, %v5915
          %v5930 = vadd.f32 %v5907, %v5915
          %v5931 = vadd.f32 %v5908, %v5915
          %v5932 = vadd.f32 %v5909, %v5915
          %v5933 = vld [vmem:[%s629] sm:$0x1]
          %v5935 = vlaneseq
          %v5936 = vshrl.u32 %v5935, 7
          %v5937 = vsub.s32 0, %v5936
          %v5938 = vrot.slane %v5933, %v5937
          %v5940 = vmul.f32 %v5917, %v5938
          %v5941 = vmul.f32 %v5918, %v5938
          %v5942 = vmul.f32 %v5919, %v5938
          %v5943 = vmul.f32 %v5920, %v5938
          %v5944 = vmul.f32 %v5921, %v5938
          %v5945 = vmul.f32 %v5922, %v5938
          %v5946 = vmul.f32 %v5923, %v5938
          %v5947 = vmul.f32 %v5924, %v5938
          %v5948 = vmul.f32 %v5925, %v5938
          %v5949 = vmul.f32 %v5926, %v5938
          %v5950 = vmul.f32 %v5927, %v5938
          %v5951 = vmul.f32 %v5928, %v5938
          %v5952 = vmul.f32 %v5929, %v5938
          %v5953 = vmul.f32 %v5930, %v5938
          %v5954 = vmul.f32 %v5931, %v5938
          %v5955 = vmul.f32 %v5932, %v5938
          %v5956 = vld [vmem:[%s537] sm:$0xff]
          %v5957 = vld [vmem:[%s537 + $0x8] sm:$0xff]
          %v5958 = vld [vmem:[%s537 + $0x10] sm:$0xff]
          %v5959 = vld [vmem:[%s537 + $0x18] sm:$0xff]
          %v5960 = vld [vmem:[%s537 + $0x20] sm:$0xff]
          %v5961 = vld [vmem:[%s537 + $0x28] sm:$0xff]
          %v5962 = vld [vmem:[%s537 + $0x30] sm:$0xff]
          %v5963 = vld [vmem:[%s537 + $0x38] sm:$0xff]
          %v5964 = vld [vmem:[%s537 + $0x40] sm:$0xff]
          %v5965 = vld [vmem:[%s537 + $0x48] sm:$0xff]
          %v5966 = vld [vmem:[%s537 + $0x50] sm:$0xff]
          %v5967 = vld [vmem:[%s537 + $0x58] sm:$0xff]
          %v5968 = vld [vmem:[%s537 + $0x60] sm:$0xff]
          %v5969 = vld [vmem:[%s537 + $0x68] sm:$0xff]
          %v5970 = vld [vmem:[%s537 + $0x70] sm:$0xff]
          %v5971 = vld [vmem:[%s537 + $0x78] sm:$0xff]
          %v5972 = vadd.f32 %v5940, %v5956
          %v5973 = vadd.f32 %v5941, %v5957
          %v5974 = vadd.f32 %v5942, %v5958
          %v5975 = vadd.f32 %v5943, %v5959
          %v5976 = vadd.f32 %v5944, %v5960
          %v5977 = vadd.f32 %v5945, %v5961
          %v5978 = vadd.f32 %v5946, %v5962
          %v5979 = vadd.f32 %v5947, %v5963
          %v5980 = vadd.f32 %v5948, %v5964
          %v5981 = vadd.f32 %v5949, %v5965
          %v5982 = vadd.f32 %v5950, %v5966
          %v5983 = vadd.f32 %v5951, %v5967
          %v5984 = vadd.f32 %v5952, %v5968
          %v5985 = vadd.f32 %v5953, %v5969
          %v5986 = vadd.f32 %v5954, %v5970
          %v5987 = vadd.f32 %v5955, %v5971
          %5988 = vst [vmem:[%s618] sm:$0xff] %v5972
          %5989 = vst [vmem:[%s618 + $0x8] sm:$0xff] %v5973
          %5990 = vst [vmem:[%s618 + $0x10] sm:$0xff] %v5974
          %5991 = vst [vmem:[%s618 + $0x18] sm:$0xff] %v5975
          %5992 = vst [vmem:[%s618 + $0x20] sm:$0xff] %v5976
          %5993 = vst [vmem:[%s618 + $0x28] sm:$0xff] %v5977
          %5994 = vst [vmem:[%s618 + $0x30] sm:$0xff] %v5978
          %5995 = vst [vmem:[%s618 + $0x38] sm:$0xff] %v5979
          %5996 = vst [vmem:[%s618 + $0x40] sm:$0xff] %v5980
          %5997 = vst [vmem:[%s618 + $0x48] sm:$0xff] %v5981
          %5998 = vst [vmem:[%s618 + $0x50] sm:$0xff] %v5982
          %5999 = vst [vmem:[%s618 + $0x58] sm:$0xff] %v5983
          %6000 = vst [vmem:[%s618 + $0x60] sm:$0xff] %v5984
          %6001 = vst [vmem:[%s618 + $0x68] sm:$0xff] %v5985
          %6002 = vst [vmem:[%s618 + $0x70] sm:$0xff] %v5986
          %6003 = vst [vmem:[%s618 + $0x78] sm:$0xff] %v5987
        $region104: #{tpu_custom_call.1} parent=71 // pred_fallthru
          _
        %s6004 = sand.u32 %s366, 1
        %s6005 = scalar_lea.sflag [#allocation8], %s6004
        %s6006 = sand.u32 %s366, 1
        %s6007 = smul.addr %s6006, 128
        %s6008 = scalar_lea.vmem [#allocation17], %s6007
        // Predicated region
        $region105: #{tpu_custom_call.1} parent=71 // pred_check
          %p6009 = pneg %p376
        $region106: #{tpu_custom_call.1} parent=71 // pred_check_branch
          %6011 = sbr.rel (%p6009) target = $region108
        $region107: #{tpu_custom_call.1} parent=71 // pred_region
          %s6012 = smul.u32 16, %s41
          %s6014 = ssub.s32 2048, 2048
          %6015 = vsyncadd %s6005, %s6014
          %s6016 = smul.addr %s40, 32
          %s6017 = sadd.s32 %s6012, %s6016
          %s6018 = smul.addr %s6017, 128
          %s6019 = scalar_lea.hbm %s13, %s6018
          %s6020 = sshll.u32 %s6008, 4
          %s6021 = int_to_ptr.vmem [resolvable:$true] %s6020
          %6026 = dma.vmem_to_hbm [thread:$0]  %s6021, 2048, %s6019, %s6005, 128, 128, 8
        $region108: #{tpu_custom_call.1} parent=71 // pred_fallthru
          _
      $region72: #{tpu_custom_call.1} parent=5 // pred_fallthru
        _
      %p6027 = scmp.le.s32.totalorder 2, %s30
      // Predicated region
      $region109: #{tpu_custom_call.1} parent=5 // pred_check
        %p6028 = pneg %p6027
      $region110: #{tpu_custom_call.1} parent=5 // pred_check_branch
        %6030 = sbr.rel (%p6028) target = $region112
      $region111: #{tpu_custom_call.1} parent=5 // pred_region
        %s6031 = ssub.s32 %s30, 2
        // Predicated region
        $region113: #{tpu_custom_call.1} parent=111 // pred_check
          %p6032 = pneg %p382
        $region114: #{tpu_custom_call.1} parent=111 // pred_check_branch
          %6034 = sbr.rel (%p6032) target = $region116
        $region115: #{tpu_custom_call.1} parent=111 // pred_region
          %s6035 = sand.u32 %s367, 1
          %s6036 = scalar_lea.sflag [#allocation8], %s6035
          %s6037 = sand.u32 %s367, 1
          %s6038 = smul.addr %s6037, 128
          %s6039 = scalar_lea.vmem [#allocation17], %s6038
          %6040 = dma.done %s6036, 2048
        $region116: #{tpu_custom_call.1} parent=111 // pred_fallthru
          _
      $region112: #{tpu_custom_call.1} parent=5 // pred_fallthru
        _
    $region6: #{tpu_custom_call.1} parent=1 // loop_footer
      %s34 = sadd.s32 1, %s30
    $region7: #{tpu_custom_call.1} parent=1 // loop_footer_branch
      %29 = sbr.rel target = $region3
    $region8: #{tpu_custom_call.1} parent=1 // loop_exit
      _
    %6041 = vsyncpa [#allocation7], 1
    %s6042 = scalar_lea.sflag [#allocation7], 1
    %6043 = vsyncpa %s6042, 1
    %6044 = vsyncpa [#allocation10], 1
    %s6045 = scalar_lea.sflag [#allocation10], 1
    %6046 = vsyncpa %s6045, 1
    %6047 = vsyncpa [#allocation13], 1
    %6048 = vsyncpa [#allocation16], 1
    %6049 = vsyncpa [#allocation8], 1
    %s6050 = scalar_lea.sflag [#allocation8], 1
    %6051 = vsyncpa %s6050, 1

</llo_original>
